<compile_context>
chip_gen: v5e
topology: v5e:2x2
jax: 0.10.0
libtpu: 0.0.40
codegen_flags: <defaults>
</compile_context>

<pallas_src>
import functools
import math

import jax
import jax.numpy as jnp
from jax.experimental import pallas as pl
from jax.experimental.pallas import tpu as pltpu

CPAD = 128          # every channel dim padded to one 128-lane tile
BN_EPS = 1e-5


def _row_block(m, cap=256):
    """Largest row-block (multiple of 16, divides m) that still leaves >=2 grid blocks
    (keeps both v7x TensorCores busy); falls back to the full extent."""
    for b in (cap, 128, 64, 32, 16):
        if b < m and m % b == 0:
            return b
    return m


# ----------------------------------------------------------------------------
# Pallas kernels
# ----------------------------------------------------------------------------
def _conv_stats_kernel(a_ref, b_ref, o_ref, stats_ref):
    """One bf16 matmul block (K fully collapsed) + per-column sum / sum-of-squares
    partials for the fused BatchNorm statistics."""
    acc = jnp.dot(a_ref[...], b_ref[...], preferred_element_type=jnp.float32)
    o_ref[...] = acc.astype(o_ref.dtype)
    csum = jnp.sum(acc, axis=0, keepdims=True)            # (1, 128)
    cssq = jnp.sum(acc * acc, axis=0, keepdims=True)      # (1, 128)
    row = jax.lax.broadcasted_iota(jnp.int32, (8, acc.shape[1]), 0)
    stats_ref[...] = jnp.where(row == 0, csum, jnp.where(row == 1, cssq, 0.0))


def conv_matmul_stats(a, w_mat):
    """a:(M, 9*CPAD) bf16, w_mat:(9*CPAD, CPAD) bf16 -> (bf16 output, stats partials)."""
    m, k = a.shape
    _, n = w_mat.shape
    bm = _row_block(m)
    m_tiles = m // bm
    out, stats = pl.pallas_call(
        _conv_stats_kernel,
        out_shape=(jax.ShapeDtypeStruct((m, n), jnp.bfloat16),
                   jax.ShapeDtypeStruct((m_tiles * 8, n), jnp.float32)),
        grid_spec=pltpu.PrefetchScalarGridSpec(
            num_scalar_prefetch=0,
            grid=(m_tiles, n // CPAD),
            in_specs=[
                pl.BlockSpec((bm, k), lambda i, j: (i, 0)),      # full K: single dot
                pl.BlockSpec((k, CPAD), lambda i, j: (0, j)),
            ],
            out_specs=[
                pl.BlockSpec((bm, CPAD), lambda i, j: (i, j)),
                pl.BlockSpec((8, CPAD), lambda i, j: (i, j)),
            ],
        ),
        compiler_params=pltpu.CompilerParams(
            dimension_semantics=("parallel", "parallel"),
            vmem_limit_bytes=32 * 1024 * 1024,
        ),
    )(a, w_mat)
    return out, stats, m_tiles


def _bn_act_kernel(x_ref, scale_ref, shift_ref, o_ref, *, relu):
    y = x_ref[...].astype(jnp.float32) * scale_ref[...] + shift_ref[...]
    if relu:
        y = jnp.maximum(y, 0.0)
    o_ref[...] = y.astype(o_ref.dtype)


def _bn_act_res_kernel(x_ref, res_ref, scale_ref, shift_ref, o_ref, *, relu):
    y = (x_ref[...].astype(jnp.float32) * scale_ref[...] + shift_ref[...]
         + res_ref[...].astype(jnp.float32))
    if relu:
        y = jnp.maximum(y, 0.0)
    o_ref[...] = y.astype(o_ref.dtype)


def bn_apply(x2d, scale, shift, res2d, relu):
    """y = relu?(x*scale + shift [+ res]); x2d:(M, CPAD) bf16, f32 epilogue math."""
    m, c = x2d.shape
    bm = _row_block(m)
    sc = scale.reshape(1, c).astype(jnp.float32)
    sh = shift.reshape(1, c).astype(jnp.float32)
    row_spec = pl.BlockSpec((bm, c), lambda i: (i, 0))
    vec_spec = pl.BlockSpec((1, c), lambda i: (0, 0))
    if res2d is None:
        kern = functools.partial(_bn_act_kernel, relu=relu)
        in_specs = [row_spec, vec_spec, vec_spec]
        args = (x2d, sc, sh)
    else:
        kern = functools.partial(_bn_act_res_kernel, relu=relu)
        in_specs = [row_spec, row_spec, vec_spec, vec_spec]
        args = (x2d, res2d, sc, sh)
    return pl.pallas_call(
        kern,
        out_shape=jax.ShapeDtypeStruct((m, c), jnp.bfloat16),
        grid_spec=pltpu.PrefetchScalarGridSpec(
            num_scalar_prefetch=0,
            grid=(m // bm,),
            in_specs=in_specs,
            out_specs=row_spec,
        ),
        compiler_params=pltpu.CompilerParams(dimension_semantics=("parallel",)),
    )(*args)


# ----------------------------------------------------------------------------
# JAX glue: im2col, conv+BN block, model assembly
# ----------------------------------------------------------------------------
def _im2col(x, stride):
    """x:(N,H,W,CPAD) bf16, 3x3, pad=1 -> (N*Ho*Wo, 9*CPAD) bf16."""
    n, h, w, c = x.shape
    xp = jnp.pad(x, ((0, 0), (1, 1), (1, 1), (0, 0)))
    ho = (h + 2 - 3) // stride + 1
    wo = (w + 2 - 3) // stride + 1
    cols = []
    for ky in range(3):
        for kx in range(3):
            cols.append(xp[:, ky:ky + (ho - 1) * stride + 1:stride,
                              kx:kx + (wo - 1) * stride + 1:stride, :])
    a = jnp.concatenate(cols, axis=-1).reshape(n * ho * wo, 9 * c)
    return a, (n, ho, wo)


def conv_bn(x, w_mat, gamma, beta, stride, residual=None, relu=True):
    """3x3 conv (MXU) with fused BN batch-stats, then BN(+res)(+ReLU) (VPU)."""
    a, (n, ho, wo) = _im2col(x, stride)
    out2d, stats, m_tiles = conv_matmul_stats(a, w_mat)
    m = a.shape[0]
    st = stats.reshape(m_tiles, 8, CPAD)
    mean = jnp.sum(st[:, 0, :], axis=0) / m
    var = jnp.maximum(jnp.sum(st[:, 1, :], axis=0) / m - mean * mean, 0.0)  # biased var
    scale = gamma * jax.lax.rsqrt(var + BN_EPS)      # padded lanes: gamma=0 -> scale=0
    shift = beta - mean * scale
    res2d = None if residual is None else residual.reshape(-1, CPAD)
    y2d = bn_apply(out2d, scale, shift, res2d, relu)
    return y2d.reshape(n, ho, wo, CPAD)


def basic_block(x, p):
    """CIFAR BasicBlock, option 'A' shortcut, expansion=1."""
    stride = p["stride"]
    planes = p["planes"]
    out = conv_bn(x, p["conv1_w"], p["bn1_g"], p["bn1_b"], stride, None, True)
    if stride != 1 or p["in_planes"] != planes:
        # option 'A': ::2 spatial subsample + planes//4 zero channel pad; in the
        # 128-lane padded layout the channel pad is just a lane shift (rest are 0s).
        sc = jnp.roll(x[:, ::2, ::2, :], planes // 4, axis=-1)
    else:
        sc = x
    out = conv_bn(out, p["conv2_w"], p["bn2_g"], p["bn2_b"], 1, sc, True)
    return out


def resnet_forward(x_nchw, params):
    x = jnp.transpose(x_nchw, (0, 2, 3, 1)).astype(jnp.bfloat16)           # NCHW->NHWC
    x = jnp.pad(x, ((0, 0), (0, 0), (0, 0), (0, CPAD - x.shape[-1])))      # pad C once
    out = conv_bn(x, params["conv1_w"], params["bn1_g"], params["bn1_b"], 1, None, True)
    for layer in params["layers"]:
        for blk in layer:
            out = basic_block(out, blk)
    pooled = jnp.mean(out.astype(jnp.float32), axis=(1, 2))                # global avg pool
    pooled = pooled[:, : params["lin_w"].shape[1]]
    # Tiny (Nx64)@(64x10) classifier: plain XLA dot (MXU padding would waste >100x FLOPs).
    return pooled @ params["lin_w"].T + params["lin_b"]


# ----------------------------------------------------------------------------
# Deterministic init (kaiming_normal_ for conv/linear, BN gamma=1 beta=0) + packing
# ----------------------------------------------------------------------------
def _kaiming(key, shape, fan_in):
    return jax.random.normal(key, shape, jnp.float32) * jnp.sqrt(2.0 / fan_in)


def init_params(key, in_channels=3, in_planes=16, num_blocks=(1, 1, 1), num_classes=10):
    keys = iter(jax.random.split(key, 64))
    params = {
        "conv1_w": _kaiming(next(keys), (in_planes, in_channels, 3, 3), in_channels * 9),
        "bn1_g": jnp.ones((in_planes,), jnp.float32),
        "bn1_b": jnp.zeros((in_planes,), jnp.float32),
    }
    layers = []
    cur_in = in_planes
    planes = in_planes
    for ind, nb in enumerate(num_blocks):
        if ind > 0:
            planes *= 2                       # constant_dim=False -> multiplier 2
        strides = [1 if ind == 0 else 2] + [1] * (nb - 1)
        blocks = []
        for s in strides:
            blocks.append({
                "stride": s,
                "in_planes": cur_in,
                "planes": planes,
                "conv1_w": _kaiming(next(keys), (planes, cur_in, 3, 3), cur_in * 9),
                "bn1_g": jnp.ones((planes,), jnp.float32),
                "bn1_b": jnp.zeros((planes,), jnp.float32),
                "conv2_w": _kaiming(next(keys), (planes, planes, 3, 3), planes * 9),
                "bn2_g": jnp.ones((planes,), jnp.float32),
                "bn2_b": jnp.zeros((planes,), jnp.float32),
            })
            cur_in = planes
        layers.append(blocks)
    params["layers"] = layers
    params["lin_w"] = _kaiming(next(keys), (num_classes, cur_in), cur_in)
    bound = 1.0 / math.sqrt(cur_in)
    params["lin_b"] = jax.random.uniform(next(keys), (num_classes,), jnp.float32,
                                         -bound, bound)
    return params


def _prep_conv(w):
    """(Cout,Cin,3,3) f32 -> (9*CPAD, CPAD) bf16, (ky,kx,Cin) row order matching im2col."""
    cout, cin = w.shape[0], w.shape[1]
    wm = jnp.transpose(w, (2, 3, 1, 0))
    wm = jnp.pad(wm, ((0, 0), (0, 0), (0, CPAD - cin), (0, CPAD - cout)))
    return wm.reshape(9 * CPAD, CPAD).astype(jnp.bfloat16)


def _prep_vec(v):
    return jnp.pad(v.astype(jnp.float32), (0, CPAD - v.shape[0]))


def prepare_params(p):
    prep = {
        "conv1_w": _prep_conv(p["conv1_w"]),
        "bn1_g": _prep_vec(p["bn1_g"]),
        "bn1_b": _prep_vec(p["bn1_b"]),
        "lin_w": p["lin_w"].astype(jnp.float32),
        "lin_b": p["lin_b"].astype(jnp.float32),
        "layers": [],
    }
    for layer in p["layers"]:
        blks = []
        for b in layer:
            blks.append({
                "stride": b["stride"],
                "in_planes": b["in_planes"],
                "planes": b["planes"],
                "conv1_w": _prep_conv(b["conv1_w"]),
                "bn1_g": _prep_vec(b["bn1_g"]),
                "bn1_b": _prep_vec(b["bn1_b"]),
                "conv2_w": _prep_conv(b["conv2_w"]),
                "bn2_g": _prep_vec(b["bn2_g"]),
                "bn2_b": _prep_vec(b["bn2_b"]),
            })
        prep["layers"].append(blks)
    return prep


if __name__ == "__main__":
    x = jax.random.normal(jax.random.PRNGKey(0), (2, 3, 16, 16), jnp.float32)
    params = prepare_params(init_params(jax.random.PRNGKey(42)))
    fwd = jax.jit(lambda inp: resnet_forward(inp, params))   # ints stay static via closure
    out = jax.block_until_ready(fwd(x))
    assert out.shape == (2, 10), out.shape
    assert bool(jnp.all(jnp.isfinite(out)))
    print("KERNEL_OK")
</pallas_src>

<mosaic_0001>
module attributes {stable_mosaic.version = 11 : i64} {
  func.func @_conv_stats_kernel(%arg0: i32, %arg1: i32, %arg2: memref<256x1152xbf16, #tpu.memory_space<vmem>>, %arg3: memref<1152x128xbf16, #tpu.memory_space<vmem>>, %arg4: memref<256x128xbf16, #tpu.memory_space<vmem>>, %arg5: memref<8x128xf32, #tpu.memory_space<vmem>>) attributes {dimension_semantics = [#tpu.dimension_semantics<parallel>, #tpu.dimension_semantics<parallel>], iteration_bounds = array<i64: 2, 1>, scalar_prefetch = 0 : i64, scratch_operands = 0 : i64, tpu.core_type = #tpu.core_type<tc>, window_params = [{transform_indices = @transform_0, window_bounds = array<i64: 256, 1152>}, {transform_indices = @transform_1, window_bounds = array<i64: 1152, 128>}, {transform_indices = @transform_2, window_bounds = array<i64: 256, 128>}, {transform_indices = @transform_3, window_bounds = array<i64: 8, 128>}]} {
    %c0 = arith.constant 0 : index
    %c0_0 = arith.constant 0 : index
    %0 = vector.load %arg2[%c0, %c0_0] : memref<256x1152xbf16, #tpu.memory_space<vmem>>, vector<256x1152xbf16>
    %c0_1 = arith.constant 0 : index
    %c0_2 = arith.constant 0 : index
    %1 = vector.load %arg3[%c0_1, %c0_2] : memref<1152x128xbf16, #tpu.memory_space<vmem>>, vector<1152x128xbf16>
    %cst = arith.constant dense<0.000000e+00> : vector<256x128xf32>
    %2 = tpu.matmul %0, %1, %cst {dimension_numbers = #tpu.dot_dimension_numbers<[1], [0], [0], [1], [0, 0, 1, 1], [], []>} : vector<256x1152xbf16>, vector<1152x128xbf16>, vector<256x128xf32> -> vector<256x128xf32>
    %3 = arith.truncf %2 : vector<256x128xf32> to vector<256x128xbf16>
    %c0_3 = arith.constant 0 : index
    %c0_4 = arith.constant 0 : index
    %4 = vector.load %arg4[%c0_3, %c0_4] : memref<256x128xbf16, #tpu.memory_space<vmem>>, vector<256x128xbf16>
    tpu.vector_store %arg4[%c0_3, %c0_4], %3 {strides = array<i32>} : memref<256x128xbf16, #tpu.memory_space<vmem>>, vector<256x128xbf16>,
    %cst_5 = arith.constant dense<0.000000e+00> : vector<128xf32>
    %5 = vector.multi_reduction <add>, %2, %cst_5 [0] : vector<256x128xf32> to vector<128xf32>
    %6 = vector.shape_cast %5 : vector<128xf32> to vector<1x128xf32>
    %7 = arith.mulf %2, %2 : vector<256x128xf32>
    %cst_6 = arith.constant dense<0.000000e+00> : vector<128xf32>
    %8 = vector.multi_reduction <add>, %7, %cst_6 [0] : vector<256x128xf32> to vector<128xf32>
    %9 = vector.shape_cast %8 : vector<128xf32> to vector<1x128xf32>
    %10 = tpu.iota {dimensions = array<i32: 0>} : vector<8x128xi32>
    %c0_i32 = arith.constant 0 : i32
    %11 = vector.broadcast %c0_i32 : i32 to vector<8x128xi32>
    %12 = arith.cmpi eq, %10, %11 : vector<8x128xi32>
    %c1_i32 = arith.constant 1 : i32
    %13 = vector.broadcast %c1_i32 : i32 to vector<8x128xi32>
    %14 = arith.cmpi eq, %10, %13 : vector<8x128xi32>
    %cst_7 = arith.constant 0.000000e+00 : f32
    %15 = vector.shape_cast %9 : vector<1x128xf32> to vector<1x128xf32>
    %16 = vector.broadcast %15 : vector<1x128xf32> to vector<8x128xf32>
    %17 = vector.broadcast %cst_7 : f32 to vector<8x128xf32>
    %18 = arith.select %14, %16, %17 : vector<8x128xi1>, vector<8x128xf32>
    %19 = vector.shape_cast %6 : vector<1x128xf32> to vector<1x128xf32>
    %20 = vector.broadcast %19 : vector<1x128xf32> to vector<8x128xf32>
    %21 = arith.select %12, %20, %18 : vector<8x128xi1>, vector<8x128xf32>
    %c0_8 = arith.constant 0 : index
    %c0_9 = arith.constant 0 : index
    %22 = vector.load %arg5[%c0_8, %c0_9] : memref<8x128xf32, #tpu.memory_space<vmem>>, vector<8x128xf32>
    tpu.vector_store %arg5[%c0_8, %c0_9], %21 {strides = array<i32>} : memref<8x128xf32, #tpu.memory_space<vmem>>, vector<8x128xf32>,
    return
  }
  func.func @transform_0(%arg0: i32, %arg1: i32) -> (i32, i32) {
    %c0_i32 = arith.constant 0 : i32
    %c0_i32_0 = arith.constant 0 : i32
    return %arg0, %c0_i32 : i32, i32
  }
  func.func @transform_1(%arg0: i32, %arg1: i32) -> (i32, i32) {
    %c0_i32 = arith.constant 0 : i32
    %c0_i32_0 = arith.constant 0 : i32
    return %c0_i32, %arg1 : i32, i32
  }
  func.func @transform_2(%arg0: i32, %arg1: i32) -> (i32, i32) {
    %c0_i32 = arith.constant 0 : i32
    return %arg0, %arg1 : i32, i32
  }
  func.func @transform_3(%arg0: i32, %arg1: i32) -> (i32, i32) {
    %c0_i32 = arith.constant 0 : i32
    return %arg0, %arg1 : i32, i32
  }
}

module attributes {stable_mosaic.version = 11 : i64} {
  func.func @_bn_act_kernel(%arg0: i32, %arg1: memref<256x128xbf16, #tpu.memory_space<vmem>>, %arg2: memref<1x128xf32, #tpu.memory_space<vmem>>, %arg3: memref<1x128xf32, #tpu.memory_space<vmem>>, %arg4: memref<256x128xbf16, #tpu.memory_space<vmem>>) attributes {dimension_semantics = [#tpu.dimension_semantics<parallel>], iteration_bounds = array<i64: 2>, scalar_prefetch = 0 : i64, scratch_operands = 0 : i64, tpu.core_type = #tpu.core_type<tc>, window_params = [{transform_indices = @transform_0, window_bounds = array<i64: 256, 128>}, {pipeline_mode = #tpu.pipeline_mode<synchronous>, transform_indices = @transform_1, window_bounds = array<i64: 1, 128>}, {pipeline_mode = #tpu.pipeline_mode<synchronous>, transform_indices = @transform_2, window_bounds = array<i64: 1, 128>}, {transform_indices = @transform_3, window_bounds = array<i64: 256, 128>}]} {
    %c0 = arith.constant 0 : index
    %c0_0 = arith.constant 0 : index
    %0 = vector.load %arg1[%c0, %c0_0] : memref<256x128xbf16, #tpu.memory_space<vmem>>, vector<256x128xbf16>
    %1 = arith.extf %0 : vector<256x128xbf16> to vector<256x128xf32>
    %c0_1 = arith.constant 0 : index
    %c0_2 = arith.constant 0 : index
    %2 = vector.load %arg2[%c0_1, %c0_2] : memref<1x128xf32, #tpu.memory_space<vmem>>, vector<1x128xf32>
    %3 = vector.broadcast %2 : vector<1x128xf32> to vector<256x128xf32>
    %4 = arith.mulf %1, %3 : vector<256x128xf32>
    %c0_3 = arith.constant 0 : index
    %c0_4 = arith.constant 0 : index
    %5 = vector.load %arg3[%c0_3, %c0_4] : memref<1x128xf32, #tpu.memory_space<vmem>>, vector<1x128xf32>
    %6 = vector.broadcast %5 : vector<1x128xf32> to vector<256x128xf32>
    %7 = arith.addf %4, %6 : vector<256x128xf32>
    %cst = arith.constant 0.000000e+00 : f32
    %8 = vector.broadcast %cst : f32 to vector<256x128xf32>
    %9 = arith.maximumf %7, %8 : vector<256x128xf32>
    %10 = arith.truncf %9 : vector<256x128xf32> to vector<256x128xbf16>
    %c0_5 = arith.constant 0 : index
    %c0_6 = arith.constant 0 : index
    %11 = vector.load %arg4[%c0_5, %c0_6] : memref<256x128xbf16, #tpu.memory_space<vmem>>, vector<256x128xbf16>
    tpu.vector_store %arg4[%c0_5, %c0_6], %10 {strides = array<i32>} : memref<256x128xbf16, #tpu.memory_space<vmem>>, vector<256x128xbf16>,
    return
  }
  func.func @transform_0(%arg0: i32) -> (i32, i32) {
    %c0_i32 = arith.constant 0 : i32
    %c0_i32_0 = arith.constant 0 : i32
    return %arg0, %c0_i32 : i32, i32
  }
  func.func @transform_1(%arg0: i32) -> (i32, i32) {
    %c0_i32 = arith.constant 0 : i32
    %c0_i32_0 = arith.constant 0 : i32
    %c0_i32_1 = arith.constant 0 : i32
    return %c0_i32, %c0_i32_0 : i32, i32
  }
  func.func @transform_2(%arg0: i32) -> (i32, i32) {
    %c0_i32 = arith.constant 0 : i32
    %c0_i32_0 = arith.constant 0 : i32
    %c0_i32_1 = arith.constant 0 : i32
    return %c0_i32, %c0_i32_0 : i32, i32
  }
  func.func @transform_3(%arg0: i32) -> (i32, i32) {
    %c0_i32 = arith.constant 0 : i32
    %c0_i32_0 = arith.constant 0 : i32
    return %arg0, %c0_i32 : i32, i32
  }
}

module attributes {stable_mosaic.version = 11 : i64} {
  func.func @_bn_act_res_kernel(%arg0: i32, %arg1: memref<256x128xbf16, #tpu.memory_space<vmem>>, %arg2: memref<256x128xbf16, #tpu.memory_space<vmem>>, %arg3: memref<1x128xf32, #tpu.memory_space<vmem>>, %arg4: memref<1x128xf32, #tpu.memory_space<vmem>>, %arg5: memref<256x128xbf16, #tpu.memory_space<vmem>>) attributes {dimension_semantics = [#tpu.dimension_semantics<parallel>], iteration_bounds = array<i64: 2>, scalar_prefetch = 0 : i64, scratch_operands = 0 : i64, tpu.core_type = #tpu.core_type<tc>, window_params = [{transform_indices = @transform_0, window_bounds = array<i64: 256, 128>}, {transform_indices = @transform_1, window_bounds = array<i64: 256, 128>}, {pipeline_mode = #tpu.pipeline_mode<synchronous>, transform_indices = @transform_2, window_bounds = array<i64: 1, 128>}, {pipeline_mode = #tpu.pipeline_mode<synchronous>, transform_indices = @transform_3, window_bounds = array<i64: 1, 128>}, {transform_indices = @transform_4, window_bounds = array<i64: 256, 128>}]} {
    %c0 = arith.constant 0 : index
    %c0_0 = arith.constant 0 : index
    %0 = vector.load %arg1[%c0, %c0_0] : memref<256x128xbf16, #tpu.memory_space<vmem>>, vector<256x128xbf16>
    %1 = arith.extf %0 : vector<256x128xbf16> to vector<256x128xf32>
    %c0_1 = arith.constant 0 : index
    %c0_2 = arith.constant 0 : index
    %2 = vector.load %arg3[%c0_1, %c0_2] : memref<1x128xf32, #tpu.memory_space<vmem>>, vector<1x128xf32>
    %3 = vector.broadcast %2 : vector<1x128xf32> to vector<256x128xf32>
    %4 = arith.mulf %1, %3 : vector<256x128xf32>
    %c0_3 = arith.constant 0 : index
    %c0_4 = arith.constant 0 : index
    %5 = vector.load %arg4[%c0_3, %c0_4] : memref<1x128xf32, #tpu.memory_space<vmem>>, vector<1x128xf32>
    %6 = vector.broadcast %5 : vector<1x128xf32> to vector<256x128xf32>
    %7 = arith.addf %4, %6 : vector<256x128xf32>
    %c0_5 = arith.constant 0 : index
    %c0_6 = arith.constant 0 : index
    %8 = vector.load %arg2[%c0_5, %c0_6] : memref<256x128xbf16, #tpu.memory_space<vmem>>, vector<256x128xbf16>
    %9 = arith.extf %8 : vector<256x128xbf16> to vector<256x128xf32>
    %10 = arith.addf %7, %9 : vector<256x128xf32>
    %cst = arith.constant 0.000000e+00 : f32
    %11 = vector.broadcast %cst : f32 to vector<256x128xf32>
    %12 = arith.maximumf %10, %11 : vector<256x128xf32>
    %13 = arith.truncf %12 : vector<256x128xf32> to vector<256x128xbf16>
    %c0_7 = arith.constant 0 : index
    %c0_8 = arith.constant 0 : index
    %14 = vector.load %arg5[%c0_7, %c0_8] : memref<256x128xbf16, #tpu.memory_space<vmem>>, vector<256x128xbf16>
    tpu.vector_store %arg5[%c0_7, %c0_8], %13 {strides = array<i32>} : memref<256x128xbf16, #tpu.memory_space<vmem>>, vector<256x128xbf16>,
    return
  }
  func.func @transform_0(%arg0: i32) -> (i32, i32) {
    %c0_i32 = arith.constant 0 : i32
    %c0_i32_0 = arith.constant 0 : i32
    return %arg0, %c0_i32 : i32, i32
  }
  func.func @transform_1(%arg0: i32) -> (i32, i32) {
    %c0_i32 = arith.constant 0 : i32
    %c0_i32_0 = arith.constant 0 : i32
    return %arg0, %c0_i32 : i32, i32
  }
  func.func @transform_2(%arg0: i32) -> (i32, i32) {
    %c0_i32 = arith.constant 0 : i32
    %c0_i32_0 = arith.constant 0 : i32
    %c0_i32_1 = arith.constant 0 : i32
    return %c0_i32, %c0_i32_0 : i32, i32
  }
  func.func @transform_3(%arg0: i32) -> (i32, i32) {
    %c0_i32 = arith.constant 0 : i32
    %c0_i32_0 = arith.constant 0 : i32
    %c0_i32_1 = arith.constant 0 : i32
    return %c0_i32, %c0_i32_0 : i32, i32
  }
  func.func @transform_4(%arg0: i32) -> (i32, i32) {
    %c0_i32 = arith.constant 0 : i32
    %c0_i32_0 = arith.constant 0 : i32
    return %arg0, %c0_i32 : i32, i32
  }
}

module attributes {stable_mosaic.version = 11 : i64} {
  func.func @_conv_stats_kernel(%arg0: i32, %arg1: i32, %arg2: memref<64x1152xbf16, #tpu.memory_space<vmem>>, %arg3: memref<1152x128xbf16, #tpu.memory_space<vmem>>, %arg4: memref<64x128xbf16, #tpu.memory_space<vmem>>, %arg5: memref<8x128xf32, #tpu.memory_space<vmem>>) attributes {dimension_semantics = [#tpu.dimension_semantics<parallel>, #tpu.dimension_semantics<parallel>], iteration_bounds = array<i64: 2, 1>, scalar_prefetch = 0 : i64, scratch_operands = 0 : i64, tpu.core_type = #tpu.core_type<tc>, window_params = [{transform_indices = @transform_0, window_bounds = array<i64: 64, 1152>}, {transform_indices = @transform_1, window_bounds = array<i64: 1152, 128>}, {transform_indices = @transform_2, window_bounds = array<i64: 64, 128>}, {transform_indices = @transform_3, window_bounds = array<i64: 8, 128>}]} {
    %c0 = arith.constant 0 : index
    %c0_0 = arith.constant 0 : index
    %0 = vector.load %arg2[%c0, %c0_0] : memref<64x1152xbf16, #tpu.memory_space<vmem>>, vector<64x1152xbf16>
    %c0_1 = arith.constant 0 : index
    %c0_2 = arith.constant 0 : index
    %1 = vector.load %arg3[%c0_1, %c0_2] : memref<1152x128xbf16, #tpu.memory_space<vmem>>, vector<1152x128xbf16>
    %cst = arith.constant dense<0.000000e+00> : vector<64x128xf32>
    %2 = tpu.matmul %0, %1, %cst {dimension_numbers = #tpu.dot_dimension_numbers<[1], [0], [0], [1], [0, 0, 1, 1], [], []>} : vector<64x1152xbf16>, vector<1152x128xbf16>, vector<64x128xf32> -> vector<64x128xf32>
    %3 = arith.truncf %2 : vector<64x128xf32> to vector<64x128xbf16>
    %c0_3 = arith.constant 0 : index
    %c0_4 = arith.constant 0 : index
    %4 = vector.load %arg4[%c0_3, %c0_4] : memref<64x128xbf16, #tpu.memory_space<vmem>>, vector<64x128xbf16>
    tpu.vector_store %arg4[%c0_3, %c0_4], %3 {strides = array<i32>} : memref<64x128xbf16, #tpu.memory_space<vmem>>, vector<64x128xbf16>,
    %cst_5 = arith.constant dense<0.000000e+00> : vector<128xf32>
    %5 = vector.multi_reduction <add>, %2, %cst_5 [0] : vector<64x128xf32> to vector<128xf32>
    %6 = vector.shape_cast %5 : vector<128xf32> to vector<1x128xf32>
    %7 = arith.mulf %2, %2 : vector<64x128xf32>
    %cst_6 = arith.constant dense<0.000000e+00> : vector<128xf32>
    %8 = vector.multi_reduction <add>, %7, %cst_6 [0] : vector<64x128xf32> to vector<128xf32>
    %9 = vector.shape_cast %8 : vector<128xf32> to vector<1x128xf32>
    %10 = tpu.iota {dimensions = array<i32: 0>} : vector<8x128xi32>
    %c0_i32 = arith.constant 0 : i32
    %11 = vector.broadcast %c0_i32 : i32 to vector<8x128xi32>
    %12 = arith.cmpi eq, %10, %11 : vector<8x128xi32>
    %c1_i32 = arith.constant 1 : i32
    %13 = vector.broadcast %c1_i32 : i32 to vector<8x128xi32>
    %14 = arith.cmpi eq, %10, %13 : vector<8x128xi32>
    %cst_7 = arith.constant 0.000000e+00 : f32
    %15 = vector.shape_cast %9 : vector<1x128xf32> to vector<1x128xf32>
    %16 = vector.broadcast %15 : vector<1x128xf32> to vector<8x128xf32>
    %17 = vector.broadcast %cst_7 : f32 to vector<8x128xf32>
    %18 = arith.select %14, %16, %17 : vector<8x128xi1>, vector<8x128xf32>
    %19 = vector.shape_cast %6 : vector<1x128xf32> to vector<1x128xf32>
    %20 = vector.broadcast %19 : vector<1x128xf32> to vector<8x128xf32>
    %21 = arith.select %12, %20, %18 : vector<8x128xi1>, vector<8x128xf32>
    %c0_8 = arith.constant 0 : index
    %c0_9 = arith.constant 0 : index
    %22 = vector.load %arg5[%c0_8, %c0_9] : memref<8x128xf32, #tpu.memory_space<vmem>>, vector<8x128xf32>
    tpu.vector_store %arg5[%c0_8, %c0_9], %21 {strides = array<i32>} : memref<8x128xf32, #tpu.memory_space<vmem>>, vector<8x128xf32>,
    return
  }
  func.func @transform_0(%arg0: i32, %arg1: i32) -> (i32, i32) {
    %c0_i32 = arith.constant 0 : i32
    %c0_i32_0 = arith.constant 0 : i32
    return %arg0, %c0_i32 : i32, i32
  }
  func.func @transform_1(%arg0: i32, %arg1: i32) -> (i32, i32) {
    %c0_i32 = arith.constant 0 : i32
    %c0_i32_0 = arith.constant 0 : i32
    return %c0_i32, %arg1 : i32, i32
  }
  func.func @transform_2(%arg0: i32, %arg1: i32) -> (i32, i32) {
    %c0_i32 = arith.constant 0 : i32
    return %arg0, %arg1 : i32, i32
  }
  func.func @transform_3(%arg0: i32, %arg1: i32) -> (i32, i32) {
    %c0_i32 = arith.constant 0 : i32
    return %arg0, %arg1 : i32, i32
  }
}

module attributes {stable_mosaic.version = 11 : i64} {
  func.func @_bn_act_kernel(%arg0: i32, %arg1: memref<64x128xbf16, #tpu.memory_space<vmem>>, %arg2: memref<1x128xf32, #tpu.memory_space<vmem>>, %arg3: memref<1x128xf32, #tpu.memory_space<vmem>>, %arg4: memref<64x128xbf16, #tpu.memory_space<vmem>>) attributes {dimension_semantics = [#tpu.dimension_semantics<parallel>], iteration_bounds = array<i64: 2>, scalar_prefetch = 0 : i64, scratch_operands = 0 : i64, tpu.core_type = #tpu.core_type<tc>, window_params = [{transform_indices = @transform_0, window_bounds = array<i64: 64, 128>}, {pipeline_mode = #tpu.pipeline_mode<synchronous>, transform_indices = @transform_1, window_bounds = array<i64: 1, 128>}, {pipeline_mode = #tpu.pipeline_mode<synchronous>, transform_indices = @transform_2, window_bounds = array<i64: 1, 128>}, {transform_indices = @transform_3, window_bounds = array<i64: 64, 128>}]} {
    %c0 = arith.constant 0 : index
    %c0_0 = arith.constant 0 : index
    %0 = vector.load %arg1[%c0, %c0_0] : memref<64x128xbf16, #tpu.memory_space<vmem>>, vector<64x128xbf16>
    %1 = arith.extf %0 : vector<64x128xbf16> to vector<64x128xf32>
    %c0_1 = arith.constant 0 : index
    %c0_2 = arith.constant 0 : index
    %2 = vector.load %arg2[%c0_1, %c0_2] : memref<1x128xf32, #tpu.memory_space<vmem>>, vector<1x128xf32>
    %3 = vector.broadcast %2 : vector<1x128xf32> to vector<64x128xf32>
    %4 = arith.mulf %1, %3 : vector<64x128xf32>
    %c0_3 = arith.constant 0 : index
    %c0_4 = arith.constant 0 : index
    %5 = vector.load %arg3[%c0_3, %c0_4] : memref<1x128xf32, #tpu.memory_space<vmem>>, vector<1x128xf32>
    %6 = vector.broadcast %5 : vector<1x128xf32> to vector<64x128xf32>
    %7 = arith.addf %4, %6 : vector<64x128xf32>
    %cst = arith.constant 0.000000e+00 : f32
    %8 = vector.broadcast %cst : f32 to vector<64x128xf32>
    %9 = arith.maximumf %7, %8 : vector<64x128xf32>
    %10 = arith.truncf %9 : vector<64x128xf32> to vector<64x128xbf16>
    %c0_5 = arith.constant 0 : index
    %c0_6 = arith.constant 0 : index
    %11 = vector.load %arg4[%c0_5, %c0_6] : memref<64x128xbf16, #tpu.memory_space<vmem>>, vector<64x128xbf16>
    tpu.vector_store %arg4[%c0_5, %c0_6], %10 {strides = array<i32>} : memref<64x128xbf16, #tpu.memory_space<vmem>>, vector<64x128xbf16>,
    return
  }
  func.func @transform_0(%arg0: i32) -> (i32, i32) {
    %c0_i32 = arith.constant 0 : i32
    %c0_i32_0 = arith.constant 0 : i32
    return %arg0, %c0_i32 : i32, i32
  }
  func.func @transform_1(%arg0: i32) -> (i32, i32) {
    %c0_i32 = arith.constant 0 : i32
    %c0_i32_0 = arith.constant 0 : i32
    %c0_i32_1 = arith.constant 0 : i32
    return %c0_i32, %c0_i32_0 : i32, i32
  }
  func.func @transform_2(%arg0: i32) -> (i32, i32) {
    %c0_i32 = arith.constant 0 : i32
    %c0_i32_0 = arith.constant 0 : i32
    %c0_i32_1 = arith.constant 0 : i32
    return %c0_i32, %c0_i32_0 : i32, i32
  }
  func.func @transform_3(%arg0: i32) -> (i32, i32) {
    %c0_i32 = arith.constant 0 : i32
    %c0_i32_0 = arith.constant 0 : i32
    return %arg0, %c0_i32 : i32, i32
  }
}

module attributes {stable_mosaic.version = 11 : i64} {
  func.func @_bn_act_res_kernel(%arg0: i32, %arg1: memref<64x128xbf16, #tpu.memory_space<vmem>>, %arg2: memref<64x128xbf16, #tpu.memory_space<vmem>>, %arg3: memref<1x128xf32, #tpu.memory_space<vmem>>, %arg4: memref<1x128xf32, #tpu.memory_space<vmem>>, %arg5: memref<64x128xbf16, #tpu.memory_space<vmem>>) attributes {dimension_semantics = [#tpu.dimension_semantics<parallel>], iteration_bounds = array<i64: 2>, scalar_prefetch = 0 : i64, scratch_operands = 0 : i64, tpu.core_type = #tpu.core_type<tc>, window_params = [{transform_indices = @transform_0, window_bounds = array<i64: 64, 128>}, {transform_indices = @transform_1, window_bounds = array<i64: 64, 128>}, {pipeline_mode = #tpu.pipeline_mode<synchronous>, transform_indices = @transform_2, window_bounds = array<i64: 1, 128>}, {pipeline_mode = #tpu.pipeline_mode<synchronous>, transform_indices = @transform_3, window_bounds = array<i64: 1, 128>}, {transform_indices = @transform_4, window_bounds = array<i64: 64, 128>}]} {
    %c0 = arith.constant 0 : index
    %c0_0 = arith.constant 0 : index
    %0 = vector.load %arg1[%c0, %c0_0] : memref<64x128xbf16, #tpu.memory_space<vmem>>, vector<64x128xbf16>
    %1 = arith.extf %0 : vector<64x128xbf16> to vector<64x128xf32>
    %c0_1 = arith.constant 0 : index
    %c0_2 = arith.constant 0 : index
    %2 = vector.load %arg3[%c0_1, %c0_2] : memref<1x128xf32, #tpu.memory_space<vmem>>, vector<1x128xf32>
    %3 = vector.broadcast %2 : vector<1x128xf32> to vector<64x128xf32>
    %4 = arith.mulf %1, %3 : vector<64x128xf32>
    %c0_3 = arith.constant 0 : index
    %c0_4 = arith.constant 0 : index
    %5 = vector.load %arg4[%c0_3, %c0_4] : memref<1x128xf32, #tpu.memory_space<vmem>>, vector<1x128xf32>
    %6 = vector.broadcast %5 : vector<1x128xf32> to vector<64x128xf32>
    %7 = arith.addf %4, %6 : vector<64x128xf32>
    %c0_5 = arith.constant 0 : index
    %c0_6 = arith.constant 0 : index
    %8 = vector.load %arg2[%c0_5, %c0_6] : memref<64x128xbf16, #tpu.memory_space<vmem>>, vector<64x128xbf16>
    %9 = arith.extf %8 : vector<64x128xbf16> to vector<64x128xf32>
    %10 = arith.addf %7, %9 : vector<64x128xf32>
    %cst = arith.constant 0.000000e+00 : f32
    %11 = vector.broadcast %cst : f32 to vector<64x128xf32>
    %12 = arith.maximumf %10, %11 : vector<64x128xf32>
    %13 = arith.truncf %12 : vector<64x128xf32> to vector<64x128xbf16>
    %c0_7 = arith.constant 0 : index
    %c0_8 = arith.constant 0 : index
    %14 = vector.load %arg5[%c0_7, %c0_8] : memref<64x128xbf16, #tpu.memory_space<vmem>>, vector<64x128xbf16>
    tpu.vector_store %arg5[%c0_7, %c0_8], %13 {strides = array<i32>} : memref<64x128xbf16, #tpu.memory_space<vmem>>, vector<64x128xbf16>,
    return
  }
  func.func @transform_0(%arg0: i32) -> (i32, i32) {
    %c0_i32 = arith.constant 0 : i32
    %c0_i32_0 = arith.constant 0 : i32
    return %arg0, %c0_i32 : i32, i32
  }
  func.func @transform_1(%arg0: i32) -> (i32, i32) {
    %c0_i32 = arith.constant 0 : i32
    %c0_i32_0 = arith.constant 0 : i32
    return %arg0, %c0_i32 : i32, i32
  }
  func.func @transform_2(%arg0: i32) -> (i32, i32) {
    %c0_i32 = arith.constant 0 : i32
    %c0_i32_0 = arith.constant 0 : i32
    %c0_i32_1 = arith.constant 0 : i32
    return %c0_i32, %c0_i32_0 : i32, i32
  }
  func.func @transform_3(%arg0: i32) -> (i32, i32) {
    %c0_i32 = arith.constant 0 : i32
    %c0_i32_0 = arith.constant 0 : i32
    %c0_i32_1 = arith.constant 0 : i32
    return %c0_i32, %c0_i32_0 : i32, i32
  }
  func.func @transform_4(%arg0: i32) -> (i32, i32) {
    %c0_i32 = arith.constant 0 : i32
    %c0_i32_0 = arith.constant 0 : i32
    return %arg0, %c0_i32 : i32, i32
  }
}

module attributes {stable_mosaic.version = 11 : i64} {
  func.func @_bn_act_kernel(%arg0: i32, %arg1: memref<16x128xbf16, #tpu.memory_space<vmem>>, %arg2: memref<1x128xf32, #tpu.memory_space<vmem>>, %arg3: memref<1x128xf32, #tpu.memory_space<vmem>>, %arg4: memref<16x128xbf16, #tpu.memory_space<vmem>>) attributes {dimension_semantics = [#tpu.dimension_semantics<parallel>], iteration_bounds = array<i64: 2>, scalar_prefetch = 0 : i64, scratch_operands = 0 : i64, tpu.core_type = #tpu.core_type<tc>, window_params = [{transform_indices = @transform_0, window_bounds = array<i64: 16, 128>}, {pipeline_mode = #tpu.pipeline_mode<synchronous>, transform_indices = @transform_1, window_bounds = array<i64: 1, 128>}, {pipeline_mode = #tpu.pipeline_mode<synchronous>, transform_indices = @transform_2, window_bounds = array<i64: 1, 128>}, {transform_indices = @transform_3, window_bounds = array<i64: 16, 128>}]} {
    %c0 = arith.constant 0 : index
    %c0_0 = arith.constant 0 : index
    %0 = vector.load %arg1[%c0, %c0_0] : memref<16x128xbf16, #tpu.memory_space<vmem>>, vector<16x128xbf16>
    %1 = arith.extf %0 : vector<16x128xbf16> to vector<16x128xf32>
    %c0_1 = arith.constant 0 : index
    %c0_2 = arith.constant 0 : index
    %2 = vector.load %arg2[%c0_1, %c0_2] : memref<1x128xf32, #tpu.memory_space<vmem>>, vector<1x128xf32>
    %3 = vector.broadcast %2 : vector<1x128xf32> to vector<16x128xf32>
    %4 = arith.mulf %1, %3 : vector<16x128xf32>
    %c0_3 = arith.constant 0 : index
    %c0_4 = arith.constant 0 : index
    %5 = vector.load %arg3[%c0_3, %c0_4] : memref<1x128xf32, #tpu.memory_space<vmem>>, vector<1x128xf32>
    %6 = vector.broadcast %5 : vector<1x128xf32> to vector<16x128xf32>
    %7 = arith.addf %4, %6 : vector<16x128xf32>
    %cst = arith.constant 0.000000e+00 : f32
    %8 = vector.broadcast %cst : f32 to vector<16x128xf32>
    %9 = arith.maximumf %7, %8 : vector<16x128xf32>
    %10 = arith.truncf %9 : vector<16x128xf32> to vector<16x128xbf16>
    %c0_5 = arith.constant 0 : index
    %c0_6 = arith.constant 0 : index
    %11 = vector.load %arg4[%c0_5, %c0_6] : memref<16x128xbf16, #tpu.memory_space<vmem>>, vector<16x128xbf16>
    tpu.vector_store %arg4[%c0_5, %c0_6], %10 {strides = array<i32>} : memref<16x128xbf16, #tpu.memory_space<vmem>>, vector<16x128xbf16>,
    return
  }
  func.func @transform_0(%arg0: i32) -> (i32, i32) {
    %c0_i32 = arith.constant 0 : i32
    %c0_i32_0 = arith.constant 0 : i32
    return %arg0, %c0_i32 : i32, i32
  }
  func.func @transform_1(%arg0: i32) -> (i32, i32) {
    %c0_i32 = arith.constant 0 : i32
    %c0_i32_0 = arith.constant 0 : i32
    %c0_i32_1 = arith.constant 0 : i32
    return %c0_i32, %c0_i32_0 : i32, i32
  }
  func.func @transform_2(%arg0: i32) -> (i32, i32) {
    %c0_i32 = arith.constant 0 : i32
    %c0_i32_0 = arith.constant 0 : i32
    %c0_i32_1 = arith.constant 0 : i32
    return %c0_i32, %c0_i32_0 : i32, i32
  }
  func.func @transform_3(%arg0: i32) -> (i32, i32) {
    %c0_i32 = arith.constant 0 : i32
    %c0_i32_0 = arith.constant 0 : i32
    return %arg0, %c0_i32 : i32, i32
  }
}

module attributes {stable_mosaic.version = 11 : i64} {
  func.func @_conv_stats_kernel(%arg0: i32, %arg1: i32, %arg2: memref<16x1152xbf16, #tpu.memory_space<vmem>>, %arg3: memref<1152x128xbf16, #tpu.memory_space<vmem>>, %arg4: memref<16x128xbf16, #tpu.memory_space<vmem>>, %arg5: memref<8x128xf32, #tpu.memory_space<vmem>>) attributes {dimension_semantics = [#tpu.dimension_semantics<parallel>, #tpu.dimension_semantics<parallel>], iteration_bounds = array<i64: 2, 1>, scalar_prefetch = 0 : i64, scratch_operands = 0 : i64, tpu.core_type = #tpu.core_type<tc>, window_params = [{transform_indices = @transform_0, window_bounds = array<i64: 16, 1152>}, {transform_indices = @transform_1, window_bounds = array<i64: 1152, 128>}, {transform_indices = @transform_2, window_bounds = array<i64: 16, 128>}, {transform_indices = @transform_3, window_bounds = array<i64: 8, 128>}]} {
    %c0 = arith.constant 0 : index
    %c0_0 = arith.constant 0 : index
    %0 = vector.load %arg2[%c0, %c0_0] : memref<16x1152xbf16, #tpu.memory_space<vmem>>, vector<16x1152xbf16>
    %c0_1 = arith.constant 0 : index
    %c0_2 = arith.constant 0 : index
    %1 = vector.load %arg3[%c0_1, %c0_2] : memref<1152x128xbf16, #tpu.memory_space<vmem>>, vector<1152x128xbf16>
    %cst = arith.constant dense<0.000000e+00> : vector<16x128xf32>
    %2 = tpu.matmul %0, %1, %cst {dimension_numbers = #tpu.dot_dimension_numbers<[1], [0], [0], [1], [0, 0, 1, 1], [], []>} : vector<16x1152xbf16>, vector<1152x128xbf16>, vector<16x128xf32> -> vector<16x128xf32>
    %3 = arith.truncf %2 : vector<16x128xf32> to vector<16x128xbf16>
    %c0_3 = arith.constant 0 : index
    %c0_4 = arith.constant 0 : index
    %4 = vector.load %arg4[%c0_3, %c0_4] : memref<16x128xbf16, #tpu.memory_space<vmem>>, vector<16x128xbf16>
    tpu.vector_store %arg4[%c0_3, %c0_4], %3 {strides = array<i32>} : memref<16x128xbf16, #tpu.memory_space<vmem>>, vector<16x128xbf16>,
    %cst_5 = arith.constant dense<0.000000e+00> : vector<128xf32>
    %5 = vector.multi_reduction <add>, %2, %cst_5 [0] : vector<16x128xf32> to vector<128xf32>
    %6 = vector.shape_cast %5 : vector<128xf32> to vector<1x128xf32>
    %7 = arith.mulf %2, %2 : vector<16x128xf32>
    %cst_6 = arith.constant dense<0.000000e+00> : vector<128xf32>
    %8 = vector.multi_reduction <add>, %7, %cst_6 [0] : vector<16x128xf32> to vector<128xf32>
    %9 = vector.shape_cast %8 : vector<128xf32> to vector<1x128xf32>
    %10 = tpu.iota {dimensions = array<i32: 0>} : vector<8x128xi32>
    %c0_i32 = arith.constant 0 : i32
    %11 = vector.broadcast %c0_i32 : i32 to vector<8x128xi32>
    %12 = arith.cmpi eq, %10, %11 : vector<8x128xi32>
    %c1_i32 = arith.constant 1 : i32
    %13 = vector.broadcast %c1_i32 : i32 to vector<8x128xi32>
    %14 = arith.cmpi eq, %10, %13 : vector<8x128xi32>
    %cst_7 = arith.constant 0.000000e+00 : f32
    %15 = vector.shape_cast %9 : vector<1x128xf32> to vector<1x128xf32>
    %16 = vector.broadcast %15 : vector<1x128xf32> to vector<8x128xf32>
    %17 = vector.broadcast %cst_7 : f32 to vector<8x128xf32>
    %18 = arith.select %14, %16, %17 : vector<8x128xi1>, vector<8x128xf32>
    %19 = vector.shape_cast %6 : vector<1x128xf32> to vector<1x128xf32>
    %20 = vector.broadcast %19 : vector<1x128xf32> to vector<8x128xf32>
    %21 = arith.select %12, %20, %18 : vector<8x128xi1>, vector<8x128xf32>
    %c0_8 = arith.constant 0 : index
    %c0_9 = arith.constant 0 : index
    %22 = vector.load %arg5[%c0_8, %c0_9] : memref<8x128xf32, #tpu.memory_space<vmem>>, vector<8x128xf32>
    tpu.vector_store %arg5[%c0_8, %c0_9], %21 {strides = array<i32>} : memref<8x128xf32, #tpu.memory_space<vmem>>, vector<8x128xf32>,
    return
  }
  func.func @transform_0(%arg0: i32, %arg1: i32) -> (i32, i32) {
    %c0_i32 = arith.constant 0 : i32
    %c0_i32_0 = arith.constant 0 : i32
    return %arg0, %c0_i32 : i32, i32
  }
  func.func @transform_1(%arg0: i32, %arg1: i32) -> (i32, i32) {
    %c0_i32 = arith.constant 0 : i32
    %c0_i32_0 = arith.constant 0 : i32
    return %c0_i32, %arg1 : i32, i32
  }
  func.func @transform_2(%arg0: i32, %arg1: i32) -> (i32, i32) {
    %c0_i32 = arith.constant 0 : i32
    return %arg0, %arg1 : i32, i32
  }
  func.func @transform_3(%arg0: i32, %arg1: i32) -> (i32, i32) {
    %c0_i32 = arith.constant 0 : i32
    return %arg0, %arg1 : i32, i32
  }
}

module attributes {stable_mosaic.version = 11 : i64} {
  func.func @_bn_act_res_kernel(%arg0: i32, %arg1: memref<16x128xbf16, #tpu.memory_space<vmem>>, %arg2: memref<16x128xbf16, #tpu.memory_space<vmem>>, %arg3: memref<1x128xf32, #tpu.memory_space<vmem>>, %arg4: memref<1x128xf32, #tpu.memory_space<vmem>>, %arg5: memref<16x128xbf16, #tpu.memory_space<vmem>>) attributes {dimension_semantics = [#tpu.dimension_semantics<parallel>], iteration_bounds = array<i64: 2>, scalar_prefetch = 0 : i64, scratch_operands = 0 : i64, tpu.core_type = #tpu.core_type<tc>, window_params = [{transform_indices = @transform_0, window_bounds = array<i64: 16, 128>}, {transform_indices = @transform_1, window_bounds = array<i64: 16, 128>}, {pipeline_mode = #tpu.pipeline_mode<synchronous>, transform_indices = @transform_2, window_bounds = array<i64: 1, 128>}, {pipeline_mode = #tpu.pipeline_mode<synchronous>, transform_indices = @transform_3, window_bounds = array<i64: 1, 128>}, {transform_indices = @transform_4, window_bounds = array<i64: 16, 128>}]} {
    %c0 = arith.constant 0 : index
    %c0_0 = arith.constant 0 : index
    %0 = vector.load %arg1[%c0, %c0_0] : memref<16x128xbf16, #tpu.memory_space<vmem>>, vector<16x128xbf16>
    %1 = arith.extf %0 : vector<16x128xbf16> to vector<16x128xf32>
    %c0_1 = arith.constant 0 : index
    %c0_2 = arith.constant 0 : index
    %2 = vector.load %arg3[%c0_1, %c0_2] : memref<1x128xf32, #tpu.memory_space<vmem>>, vector<1x128xf32>
    %3 = vector.broadcast %2 : vector<1x128xf32> to vector<16x128xf32>
    %4 = arith.mulf %1, %3 : vector<16x128xf32>
    %c0_3 = arith.constant 0 : index
    %c0_4 = arith.constant 0 : index
    %5 = vector.load %arg4[%c0_3, %c0_4] : memref<1x128xf32, #tpu.memory_space<vmem>>, vector<1x128xf32>
    %6 = vector.broadcast %5 : vector<1x128xf32> to vector<16x128xf32>
    %7 = arith.addf %4, %6 : vector<16x128xf32>
    %c0_5 = arith.constant 0 : index
    %c0_6 = arith.constant 0 : index
    %8 = vector.load %arg2[%c0_5, %c0_6] : memref<16x128xbf16, #tpu.memory_space<vmem>>, vector<16x128xbf16>
    %9 = arith.extf %8 : vector<16x128xbf16> to vector<16x128xf32>
    %10 = arith.addf %7, %9 : vector<16x128xf32>
    %cst = arith.constant 0.000000e+00 : f32
    %11 = vector.broadcast %cst : f32 to vector<16x128xf32>
    %12 = arith.maximumf %10, %11 : vector<16x128xf32>
    %13 = arith.truncf %12 : vector<16x128xf32> to vector<16x128xbf16>
    %c0_7 = arith.constant 0 : index
    %c0_8 = arith.constant 0 : index
    %14 = vector.load %arg5[%c0_7, %c0_8] : memref<16x128xbf16, #tpu.memory_space<vmem>>, vector<16x128xbf16>
    tpu.vector_store %arg5[%c0_7, %c0_8], %13 {strides = array<i32>} : memref<16x128xbf16, #tpu.memory_space<vmem>>, vector<16x128xbf16>,
    return
  }
  func.func @transform_0(%arg0: i32) -> (i32, i32) {
    %c0_i32 = arith.constant 0 : i32
    %c0_i32_0 = arith.constant 0 : i32
    return %arg0, %c0_i32 : i32, i32
  }
  func.func @transform_1(%arg0: i32) -> (i32, i32) {
    %c0_i32 = arith.constant 0 : i32
    %c0_i32_0 = arith.constant 0 : i32
    return %arg0, %c0_i32 : i32, i32
  }
  func.func @transform_2(%arg0: i32) -> (i32, i32) {
    %c0_i32 = arith.constant 0 : i32
    %c0_i32_0 = arith.constant 0 : i32
    %c0_i32_1 = arith.constant 0 : i32
    return %c0_i32, %c0_i32_0 : i32, i32
  }
  func.func @transform_3(%arg0: i32) -> (i32, i32) {
    %c0_i32 = arith.constant 0 : i32
    %c0_i32_0 = arith.constant 0 : i32
    %c0_i32_1 = arith.constant 0 : i32
    return %c0_i32, %c0_i32_0 : i32, i32
  }
  func.func @transform_4(%arg0: i32) -> (i32, i32) {
    %c0_i32 = arith.constant 0 : i32
    %c0_i32_0 = arith.constant 0 : i32
    return %arg0, %c0_i32 : i32, i32
  }
}

</mosaic_0001>

<llo_original>
// kernel: _lambda_.15
$region0: #{_lambda_.15}
  #allocation0 [shape = 'u32[]', space=smem, size = 0x4, offset = 0x4, fixed_abs, tag = 'smem constant byte address 0x4 - core index']
  #allocation1 [shape = 'u32[72,128]{1,0:T(1,128)}', space=vmem, size = 0x9000, scoped, tag = 'internal scratch']
  %s0 = inlined_call_operand.vmem [shape: bf16[512,128], index: 0, kind: input, shape index: {}]
  %s1 = inlined_call_operand.vmem [shape: f32[1,128], index: 1, kind: input, shape index: {}]
  %s2 = inlined_call_operand.vmem [shape: f32[1,128], index: 2, kind: input, shape index: {}]
  %s3 = inlined_call_operand.vmem [shape: bf16[512,128], index: 3, kind: output, shape index: {}]
  %s4 = sld [smem:[#allocation0]]
  $region45: #{_lambda_.15} parent=0
    _
  %s6 = ssub.s32 1, %s4
  %s7 = scalar_select 0, %s6, %s4
  loop: start=0, step=1, limit=4
  $region2: #{_lambda_.15} parent=0 // loop_pre_header
    _
  $region3: #{_lambda_.15} parent=0 // loop_header
    %s9 = sphi 0, %s13
    %p10 = scmp.ge.s32.totalorder %s9, 4
    %s19 = sphi 0, %s21
    %s22 = sphi 0, %s19
    %s23 = sphi 0, %s22
    %s39 = sphi 0, %s23
    %s43 = sphi 0, %s43
    %s45 = sphi 0, %s43
    %s46 = sphi 0, %s45
    %s60 = sphi 0, %s46
    %s64 = sphi 0, %s64
    %s66 = sphi 0, %s64
    %s67 = sphi 0, %s66
    %s81 = sphi 0, %s67
    %s87 = sphi 0, %s89
    %s90 = sphi 0, %s87
    %s91 = sphi 0, %s90
    %s107 = sphi 0, %s91
  $region4: #{_lambda_.15} parent=0 // loop_header_branch
    %12 = sbr.rel (%p10) target = $region8
  $region5: #{_lambda_.15} parent=0 // loop_body
    %s14 = ssub.s32 %s9, 1
    %s15 = ssub.s32 %s9, 2
    %s16 = sadd.s32 %s9, 1
    %s17 = ssub.s32 %s9, %s16
    %p18 = scmp.eq.s32.totalorder %s17, 0
    %s20 = sadd.s32 %s19, 1
    %s21 = scalar_select %p18, %s19, %s20
    %p24 = pneg %p18
    %p25 = scmp.eq.s32.totalorder %s9, 1
    %p26 = por %p24, %p25
    %p27 = scmp.ne.s32.totalorder %s19, %s22
    %p28 = scmp.eq.s32.totalorder %s9, 0
    %p29 = por %p27, %p28
    %p30 = scmp.ne.s32.totalorder %s19, %s22
    %p31 = scmp.eq.s32.totalorder %s14, 1
    %p32 = por %p30, %p31
    %p33 = scmp.ne.s32.totalorder %s22, %s23
    %p34 = scmp.eq.s32.totalorder %s14, 0
    %p35 = por %p33, %p34
    %p36 = scmp.ne.s32.totalorder %s22, %s23
    %p37 = scmp.eq.s32.totalorder %s15, 1
    %p38 = por %p36, %p37
    %p40 = scmp.ne.s32.totalorder %s23, %s39
    %p41 = scmp.eq.s32.totalorder %s15, 0
    %p42 = por %p40, %p41
    %s44 = sadd.s32 %s43, 1
    %p47 = scmp.eq.s32.totalorder %s9, 1
    %p48 = scmp.ne.s32.totalorder %s43, %s45
    %p49 = scmp.eq.s32.totalorder %s9, 0
    %p50 = por %p48, %p49
    %p51 = scmp.ne.s32.totalorder %s43, %s45
    %p52 = scmp.eq.s32.totalorder %s14, 1
    %p53 = por %p51, %p52
    %p54 = scmp.ne.s32.totalorder %s45, %s46
    %p55 = scmp.eq.s32.totalorder %s14, 0
    %p56 = por %p54, %p55
    %p57 = scmp.ne.s32.totalorder %s45, %s46
    %p58 = scmp.eq.s32.totalorder %s15, 1
    %p59 = por %p57, %p58
    %p61 = scmp.ne.s32.totalorder %s46, %s60
    %p62 = scmp.eq.s32.totalorder %s15, 0
    %p63 = por %p61, %p62
    %s65 = sadd.s32 %s64, 1
    %p68 = scmp.eq.s32.totalorder %s9, 1
    %p69 = scmp.ne.s32.totalorder %s64, %s66
    %p70 = scmp.eq.s32.totalorder %s9, 0
    %p71 = por %p69, %p70
    %p72 = scmp.ne.s32.totalorder %s64, %s66
    %p73 = scmp.eq.s32.totalorder %s14, 1
    %p74 = por %p72, %p73
    %p75 = scmp.ne.s32.totalorder %s66, %s67
    %p76 = scmp.eq.s32.totalorder %s14, 0
    %p77 = por %p75, %p76
    %p78 = scmp.ne.s32.totalorder %s66, %s67
    %p79 = scmp.eq.s32.totalorder %s15, 1
    %p80 = por %p78, %p79
    %p82 = scmp.ne.s32.totalorder %s67, %s81
    %p83 = scmp.eq.s32.totalorder %s15, 0
    %p84 = por %p82, %p83
    %s85 = ssub.s32 %s9, %s16
    %p86 = scmp.eq.s32.totalorder %s85, 0
    %s88 = sadd.s32 %s87, 1
    %s89 = scalar_select %p86, %s87, %s88
    %p92 = pneg %p86
    %p93 = scmp.eq.s32.totalorder %s9, 1
    %p94 = por %p92, %p93
    %p95 = scmp.ne.s32.totalorder %s87, %s90
    %p96 = scmp.eq.s32.totalorder %s9, 0
    %p97 = por %p95, %p96
    %p98 = scmp.ne.s32.totalorder %s87, %s90
    %p99 = scmp.eq.s32.totalorder %s14, 1
    %p100 = por %p98, %p99
    %p101 = scmp.ne.s32.totalorder %s90, %s91
    %p102 = scmp.eq.s32.totalorder %s14, 0
    %p103 = por %p101, %p102
    %p104 = scmp.ne.s32.totalorder %s90, %s91
    %p105 = scmp.eq.s32.totalorder %s15, 1
    %p106 = por %p104, %p105
    %p108 = scmp.ne.s32.totalorder %s91, %s107
    %p109 = scmp.eq.s32.totalorder %s15, 0
    %p110 = por %p108, %p109
    %p111 = scmp.le.s32.totalorder 1, %s9
    %p112 = scmp.lt.s32.totalorder %s9, 3
    %p113 = pnand %p111, %p112
    %p114 = pneg %p113
    // Predicated region
    $region9: #{_lambda_.15} parent=5 // pred_check
      _
    $region10: #{_lambda_.15} parent=5 // pred_check_branch
      %116 = sbr.rel (%p113) target = $region12
    $region11: #{_lambda_.15} parent=5 // pred_region
      %s117 = ssub.s32 %s9, 1
      // Predicated region
      $region13: #{_lambda_.15} parent=11 // pred_check
        %p118 = pneg %p56
      $region14: #{_lambda_.15} parent=11 // pred_check_branch
        %120 = sbr.rel (%p118) target = $region16
      $region15: #{_lambda_.15} parent=11 // pred_region
        _
      $region16: #{_lambda_.15} parent=11 // pred_fallthru
        _
      // Predicated region
      $region17: #{_lambda_.15} parent=11 // pred_check
        %p121 = pneg %p77
      $region18: #{_lambda_.15} parent=11 // pred_check_branch
        %123 = sbr.rel (%p121) target = $region20
      $region19: #{_lambda_.15} parent=11 // pred_region
        _
      $region20: #{_lambda_.15} parent=11 // pred_fallthru
        _
    $region12: #{_lambda_.15} parent=5 // pred_fallthru
      _
    %p124 = scmp.lt.s32.totalorder %s9, 2
    // Predicated region
    $region21: #{_lambda_.15} parent=5 // pred_check
      %p125 = pneg %p124
    $region22: #{_lambda_.15} parent=5 // pred_check_branch
      %127 = sbr.rel (%p125) target = $region24
    $region23: #{_lambda_.15} parent=5 // pred_region
      // Predicated region
      $region25: #{_lambda_.15} parent=23 // pred_check
        %p128 = pneg %p29
      $region26: #{_lambda_.15} parent=23 // pred_check_branch
        %130 = sbr.rel (%p128) target = $region28
      $region27: #{_lambda_.15} parent=23 // pred_region
        %s131 = smul.u32 32, %s9
        %p132 = scmp.lt.s32.totalorder %s131, 63
        %s133 = scalar_select %p132, %s131, 63
        %s134 = smul.addr %s133, 4
        %s135 = scalar_lea.vmem %s0, %s134
        %s136 = smul.u32 32, %s9
      $region28: #{_lambda_.15} parent=23 // pred_fallthru
        _
    $region24: #{_lambda_.15} parent=5 // pred_fallthru
      _
    %p137 = scmp.le.s32.totalorder 1, %s9
    %p138 = scmp.lt.s32.totalorder %s9, 3
    %p139 = pnand %p137, %p138
    %p140 = pneg %p139
    // Predicated region
    $region29: #{_lambda_.15} parent=5 // pred_check
      _
    $region30: #{_lambda_.15} parent=5 // pred_check_branch
      %142 = sbr.rel (%p139) target = $region32
    $region31: #{_lambda_.15} parent=5 // pred_region
      %s143 = ssub.s32 %s9, 1
      %s144 = smul.u32 32, %s14
      %p145 = scmp.lt.s32.totalorder %s144, 63
      %s146 = scalar_select %p145, %s144, 63
      %s147 = smul.addr %s146, 4
      %s148 = scalar_lea.vmem %s0, %s147
      %p149 = pneg %p35
      %p150 = pneg %p32
      %p151 = pneg %p56
      %p152 = pneg %p53
      %p153 = pneg %p77
      %p154 = pneg %p74
      %p155 = pneg %p103
      %p156 = pneg %p100
      %s157 = smul.u32 32, %s14
      %p158 = scmp.lt.s32.totalorder %s157, 63
      %s159 = scalar_select %p158, %s157, 63
      %s160 = smul.addr %s159, 4
      %s161 = scalar_lea.vmem %s3, %s160
      %s162 = smul.u32 32, %s14
      %p163 = scmp.lt.s32.totalorder %s162, 63
      %s164 = scalar_select %p163, %s162, 63
      %s165 = smul.addr %s164, 4
      %s166 = scalar_lea.vmem %s0, %s165
      %s167 = smul.u32 32, %s14
      %s168 = smul.u32 32, %s14
      %p169 = scmp.lt.s32.totalorder %s168, 63
      %s170 = scalar_select %p169, %s168, 63
      %s171 = smul.addr %s170, 4
      %s172 = scalar_lea.vmem %s3, %s171
      %s173 = smul.u32 32, %s14
      %v174 = vld [vmem:[%s166] sm:$0xf]
      %v175 = vld [vmem:[%s166 + $0x4] sm:$0xf]
      %v176 = vld [vmem:[%s166 + $0x8] sm:$0xf]
      %v177 = vld [vmem:[%s166 + $0xc] sm:$0xf]
      %v178 = vld [vmem:[%s166 + $0x10] sm:$0xf]
      %v179 = vld [vmem:[%s166 + $0x14] sm:$0xf]
      %v180 = vld [vmem:[%s166 + $0x18] sm:$0xf]
      %v181 = vld [vmem:[%s166 + $0x1c] sm:$0xf]
      %v182 = vld [vmem:[%s166 + $0x20] sm:$0xf]
      %v183 = vld [vmem:[%s166 + $0x24] sm:$0xf]
      %v184 = vld [vmem:[%s166 + $0x28] sm:$0xf]
      %v185 = vld [vmem:[%s166 + $0x2c] sm:$0xf]
      %v186 = vld [vmem:[%s166 + $0x30] sm:$0xf]
      %v187 = vld [vmem:[%s166 + $0x34] sm:$0xf]
      %v188 = vld [vmem:[%s166 + $0x38] sm:$0xf]
      %v189 = vld [vmem:[%s166 + $0x3c] sm:$0xf]
      %v190 = vld [vmem:[%s166 + $0x40] sm:$0xf]
      %v191 = vld [vmem:[%s166 + $0x44] sm:$0xf]
      %v192 = vld [vmem:[%s166 + $0x48] sm:$0xf]
      %v193 = vld [vmem:[%s166 + $0x4c] sm:$0xf]
      %v194 = vld [vmem:[%s166 + $0x50] sm:$0xf]
      %v195 = vld [vmem:[%s166 + $0x54] sm:$0xf]
      %v196 = vld [vmem:[%s166 + $0x58] sm:$0xf]
      %v197 = vld [vmem:[%s166 + $0x5c] sm:$0xf]
      %v198 = vld [vmem:[%s166 + $0x60] sm:$0xf]
      %v199 = vld [vmem:[%s166 + $0x64] sm:$0xf]
      %v200 = vld [vmem:[%s166 + $0x68] sm:$0xf]
      %v201 = vld [vmem:[%s166 + $0x6c] sm:$0xf]
      %v202 = vld [vmem:[%s166 + $0x70] sm:$0xf]
      %v203 = vld [vmem:[%s166 + $0x74] sm:$0xf]
      %v204 = vld [vmem:[%s166 + $0x78] sm:$0xf]
      %v205 = vld [vmem:[%s166 + $0x7c] sm:$0xf]
      %v206 = vunpack.c.l.bf16 %v174
      %v207 = vunpack.c.l.bf16 %v175
      %v208 = vunpack.c.l.bf16 %v176
      %v209 = vunpack.c.l.bf16 %v177
      %v210 = vunpack.c.l.bf16 %v178
      %v211 = vunpack.c.l.bf16 %v179
      %v212 = vunpack.c.l.bf16 %v180
      %v213 = vunpack.c.l.bf16 %v181
      %v214 = vunpack.c.l.bf16 %v182
      %v215 = vunpack.c.l.bf16 %v183
      %v216 = vunpack.c.l.bf16 %v184
      %v217 = vunpack.c.l.bf16 %v185
      %v218 = vunpack.c.l.bf16 %v186
      %v219 = vunpack.c.l.bf16 %v187
      %v220 = vunpack.c.l.bf16 %v188
      %v221 = vunpack.c.l.bf16 %v189
      %v222 = vunpack.c.l.bf16 %v190
      %v223 = vunpack.c.l.bf16 %v191
      %v224 = vunpack.c.l.bf16 %v192
      %v225 = vunpack.c.l.bf16 %v193
      %v226 = vunpack.c.l.bf16 %v194
      %v227 = vunpack.c.l.bf16 %v195
      %v228 = vunpack.c.l.bf16 %v196
      %v229 = vunpack.c.l.bf16 %v197
      %v230 = vunpack.c.l.bf16 %v198
      %v231 = vunpack.c.l.bf16 %v199
      %v232 = vunpack.c.l.bf16 %v200
      %v233 = vunpack.c.l.bf16 %v201
      %v234 = vunpack.c.l.bf16 %v202
      %v235 = vunpack.c.l.bf16 %v203
      %v236 = vunpack.c.l.bf16 %v204
      %v237 = vunpack.c.l.bf16 %v205
      %v238 = vld [vmem:[%s1] sm:$0x1]
      %v240 = vperm.slane %v238, 0
      %v242 = vmul.f32 %v206, %v240
      %v243 = vmul.f32 %v207, %v240
      %v244 = vmul.f32 %v208, %v240
      %v245 = vmul.f32 %v209, %v240
      %v246 = vmul.f32 %v210, %v240
      %v247 = vmul.f32 %v211, %v240
      %v248 = vmul.f32 %v212, %v240
      %v249 = vmul.f32 %v213, %v240
      %v250 = vmul.f32 %v214, %v240
      %v251 = vmul.f32 %v215, %v240
      %v252 = vmul.f32 %v216, %v240
      %v253 = vmul.f32 %v217, %v240
      %v254 = vmul.f32 %v218, %v240
      %v255 = vmul.f32 %v219, %v240
      %v256 = vmul.f32 %v220, %v240
      %v257 = vmul.f32 %v221, %v240
      %v258 = vmul.f32 %v222, %v240
      %v259 = vmul.f32 %v223, %v240
      %v260 = vmul.f32 %v224, %v240
      %v261 = vmul.f32 %v225, %v240
      %v262 = vmul.f32 %v226, %v240
      %v263 = vmul.f32 %v227, %v240
      %v264 = vmul.f32 %v228, %v240
      %v265 = vmul.f32 %v229, %v240
      %v266 = vmul.f32 %v230, %v240
      %v267 = vmul.f32 %v231, %v240
      %v268 = vmul.f32 %v232, %v240
      %v269 = vmul.f32 %v233, %v240
      %v270 = vmul.f32 %v234, %v240
      %v271 = vmul.f32 %v235, %v240
      %v272 = vmul.f32 %v236, %v240
      %v273 = vmul.f32 %v237, %v240
      %v274 = vld [vmem:[%s2] sm:$0x1]
      %v276 = vperm.slane %v274, 0
      %v278 = vadd.f32 %v242, %v276
      %v279 = vadd.f32 %v243, %v276
      %v280 = vadd.f32 %v244, %v276
      %v281 = vadd.f32 %v245, %v276
      %v282 = vadd.f32 %v246, %v276
      %v283 = vadd.f32 %v247, %v276
      %v284 = vadd.f32 %v248, %v276
      %v285 = vadd.f32 %v249, %v276
      %v286 = vadd.f32 %v250, %v276
      %v287 = vadd.f32 %v251, %v276
      %v288 = vadd.f32 %v252, %v276
      %v289 = vadd.f32 %v253, %v276
      %v290 = vadd.f32 %v254, %v276
      %v291 = vadd.f32 %v255, %v276
      %v292 = vadd.f32 %v256, %v276
      %v293 = vadd.f32 %v257, %v276
      %v294 = vadd.f32 %v258, %v276
      %v295 = vadd.f32 %v259, %v276
      %v296 = vadd.f32 %v260, %v276
      %v297 = vadd.f32 %v261, %v276
      %v298 = vadd.f32 %v262, %v276
      %v299 = vadd.f32 %v263, %v276
      %v300 = vadd.f32 %v264, %v276
      %v301 = vadd.f32 %v265, %v276
      %v302 = vadd.f32 %v266, %v276
      %v303 = vadd.f32 %v267, %v276
      %v304 = vadd.f32 %v268, %v276
      %v305 = vadd.f32 %v269, %v276
      %v306 = vadd.f32 %v270, %v276
      %v307 = vadd.f32 %v271, %v276
      %v308 = vadd.f32 %v272, %v276
      %v309 = vadd.f32 %v273, %v276
      %v310 = vmax.f32 %v278, 0.0
      %v311 = vmax.f32 %v279, 0.0
      %v312 = vmax.f32 %v280, 0.0
      %v313 = vmax.f32 %v281, 0.0
      %v314 = vmax.f32 %v282, 0.0
      %v315 = vmax.f32 %v283, 0.0
      %v316 = vmax.f32 %v284, 0.0
      %v317 = vmax.f32 %v285, 0.0
      %v318 = vmax.f32 %v286, 0.0
      %v319 = vmax.f32 %v287, 0.0
      %v320 = vmax.f32 %v288, 0.0
      %v321 = vmax.f32 %v289, 0.0
      %v322 = vmax.f32 %v290, 0.0
      %v323 = vmax.f32 %v291, 0.0
      %v324 = vmax.f32 %v292, 0.0
      %v325 = vmax.f32 %v293, 0.0
      %v326 = vmax.f32 %v294, 0.0
      %v327 = vmax.f32 %v295, 0.0
      %v328 = vmax.f32 %v296, 0.0
      %v329 = vmax.f32 %v297, 0.0
      %v330 = vmax.f32 %v298, 0.0
      %v331 = vmax.f32 %v299, 0.0
      %v332 = vmax.f32 %v300, 0.0
      %v333 = vmax.f32 %v301, 0.0
      %v334 = vmax.f32 %v302, 0.0
      %v335 = vmax.f32 %v303, 0.0
      %v336 = vmax.f32 %v304, 0.0
      %v337 = vmax.f32 %v305, 0.0
      %v338 = vmax.f32 %v306, 0.0
      %v339 = vmax.f32 %v307, 0.0
      %v340 = vmax.f32 %v308, 0.0
      %v341 = vmax.f32 %v309, 0.0
      %v342 = vpack.c.bf16 %v310, %v310
      %v343 = vpack.c.bf16 %v311, %v311
      %v344 = vpack.c.bf16 %v312, %v312
      %v345 = vpack.c.bf16 %v313, %v313
      %v346 = vpack.c.bf16 %v314, %v314
      %v347 = vpack.c.bf16 %v315, %v315
      %v348 = vpack.c.bf16 %v316, %v316
      %v349 = vpack.c.bf16 %v317, %v317
      %v350 = vpack.c.bf16 %v318, %v318
      %v351 = vpack.c.bf16 %v319, %v319
      %v352 = vpack.c.bf16 %v320, %v320
      %v353 = vpack.c.bf16 %v321, %v321
      %v354 = vpack.c.bf16 %v322, %v322
      %v355 = vpack.c.bf16 %v323, %v323
      %v356 = vpack.c.bf16 %v324, %v324
      %v357 = vpack.c.bf16 %v325, %v325
      %v358 = vpack.c.bf16 %v326, %v326
      %v359 = vpack.c.bf16 %v327, %v327
      %v360 = vpack.c.bf16 %v328, %v328
      %v361 = vpack.c.bf16 %v329, %v329
      %v362 = vpack.c.bf16 %v330, %v330
      %v363 = vpack.c.bf16 %v331, %v331
      %v364 = vpack.c.bf16 %v332, %v332
      %v365 = vpack.c.bf16 %v333, %v333
      %v366 = vpack.c.bf16 %v334, %v334
      %v367 = vpack.c.bf16 %v335, %v335
      %v368 = vpack.c.bf16 %v336, %v336
      %v369 = vpack.c.bf16 %v337, %v337
      %v370 = vpack.c.bf16 %v338, %v338
      %v371 = vpack.c.bf16 %v339, %v339
      %v372 = vpack.c.bf16 %v340, %v340
      %v373 = vpack.c.bf16 %v341, %v341
      %374 = vst [vmem:[%s172] sm:$0xf] %v342
      %375 = vst [vmem:[%s172 + $0x4] sm:$0xf] %v343
      %376 = vst [vmem:[%s172 + $0x8] sm:$0xf] %v344
      %377 = vst [vmem:[%s172 + $0xc] sm:$0xf] %v345
      %378 = vst [vmem:[%s172 + $0x10] sm:$0xf] %v346
      %379 = vst [vmem:[%s172 + $0x14] sm:$0xf] %v347
      %380 = vst [vmem:[%s172 + $0x18] sm:$0xf] %v348
      %381 = vst [vmem:[%s172 + $0x1c] sm:$0xf] %v349
      %382 = vst [vmem:[%s172 + $0x20] sm:$0xf] %v350
      %383 = vst [vmem:[%s172 + $0x24] sm:$0xf] %v351
      %384 = vst [vmem:[%s172 + $0x28] sm:$0xf] %v352
      %385 = vst [vmem:[%s172 + $0x2c] sm:$0xf] %v353
      %386 = vst [vmem:[%s172 + $0x30] sm:$0xf] %v354
      %387 = vst [vmem:[%s172 + $0x34] sm:$0xf] %v355
      %388 = vst [vmem:[%s172 + $0x38] sm:$0xf] %v356
      %389 = vst [vmem:[%s172 + $0x3c] sm:$0xf] %v357
      %390 = vst [vmem:[%s172 + $0x40] sm:$0xf] %v358
      %391 = vst [vmem:[%s172 + $0x44] sm:$0xf] %v359
      %392 = vst [vmem:[%s172 + $0x48] sm:$0xf] %v360
      %393 = vst [vmem:[%s172 + $0x4c] sm:$0xf] %v361
      %394 = vst [vmem:[%s172 + $0x50] sm:$0xf] %v362
      %395 = vst [vmem:[%s172 + $0x54] sm:$0xf] %v363
      %396 = vst [vmem:[%s172 + $0x58] sm:$0xf] %v364
      %397 = vst [vmem:[%s172 + $0x5c] sm:$0xf] %v365
      %398 = vst [vmem:[%s172 + $0x60] sm:$0xf] %v366
      %399 = vst [vmem:[%s172 + $0x64] sm:$0xf] %v367
      %400 = vst [vmem:[%s172 + $0x68] sm:$0xf] %v368
      %401 = vst [vmem:[%s172 + $0x6c] sm:$0xf] %v369
      %402 = vst [vmem:[%s172 + $0x70] sm:$0xf] %v370
      %403 = vst [vmem:[%s172 + $0x74] sm:$0xf] %v371
      %404 = vst [vmem:[%s172 + $0x78] sm:$0xf] %v372
      %405 = vst [vmem:[%s172 + $0x7c] sm:$0xf] %v373
      %s406 = smul.u32 32, %s14
      %p407 = scmp.lt.s32.totalorder %s406, 63
      %s408 = scalar_select %p407, %s406, 63
      %s409 = smul.addr %s408, 4
      %s410 = scalar_lea.vmem %s3, %s409
      // Predicated region
      $region33: #{_lambda_.15} parent=31 // pred_check
        %p411 = pneg %p100
      $region34: #{_lambda_.15} parent=31 // pred_check_branch
        %413 = sbr.rel (%p411) target = $region36
      $region35: #{_lambda_.15} parent=31 // pred_region
        %s414 = smul.u32 32, %s14
      $region36: #{_lambda_.15} parent=31 // pred_fallthru
        _
    $region32: #{_lambda_.15} parent=5 // pred_fallthru
      _
    %p415 = scmp.le.s32.totalorder 2, %s9
    // Predicated region
    $region37: #{_lambda_.15} parent=5 // pred_check
      %p416 = pneg %p415
    $region38: #{_lambda_.15} parent=5 // pred_check_branch
      %418 = sbr.rel (%p416) target = $region40
    $region39: #{_lambda_.15} parent=5 // pred_region
      %s419 = ssub.s32 %s9, 2
      // Predicated region
      $region41: #{_lambda_.15} parent=39 // pred_check
        %p420 = pneg %p106
      $region42: #{_lambda_.15} parent=39 // pred_check_branch
        %422 = sbr.rel (%p420) target = $region44
      $region43: #{_lambda_.15} parent=39 // pred_region
        %s423 = smul.u32 32, %s15
        %p424 = scmp.lt.s32.totalorder %s423, 63
        %s425 = scalar_select %p424, %s423, 63
        %s426 = smul.addr %s425, 4
        %s427 = scalar_lea.vmem %s3, %s426
      $region44: #{_lambda_.15} parent=39 // pred_fallthru
        _
    $region40: #{_lambda_.15} parent=5 // pred_fallthru
      _
  $region6: #{_lambda_.15} parent=0 // loop_footer
    %s13 = sadd.s32 1, %s9
  $region7: #{_lambda_.15} parent=0 // loop_footer_branch
    %8 = sbr.rel target = $region3
  $region8: #{_lambda_.15} parent=0 // loop_exit
    _

// kernel: _lambda_.14
$region0: #{_lambda_.14}
  #allocation0 [shape = 'u32[]', space=smem, size = 0x4, offset = 0x4, fixed_abs, tag = 'smem constant byte address 0x4 - core index']
  #allocation1 [shape = 'u32[72,128]{1,0:T(1,128)}', space=vmem, size = 0x9000, scoped, tag = 'internal scratch']
  %s0 = inlined_call_operand.vmem [shape: bf16[512,1152], index: 0, kind: input, shape index: {}]
  %s1 = inlined_call_operand.vmem [shape: bf16[1152,128], index: 1, kind: input, shape index: {}]
  %s2 = inlined_call_operand.vmem [shape: bf16[512,128], index: 2, kind: output, shape index: {0}]
  %s3 = inlined_call_operand.vmem [shape: f32[16,128], index: 3, kind: output, shape index: {1}]
  %4 = xla_tuple %s2, %s3
  %s5 = sld [smem:[#allocation0]]
  $region49: #{_lambda_.14} parent=0
    _
  %s7 = ssub.s32 1, %s5
  %s8 = scalar_select 0, %s7, %s5
  loop: start=0, step=1, limit=4
  $region2: #{_lambda_.14} parent=0 // loop_pre_header
    _
  $region3: #{_lambda_.14} parent=0 // loop_header
    %s10 = sphi 0, %s14
    %p11 = scmp.ge.s32.totalorder %s10, 4
    %s17 = sphi 0, %s29
    %s18 = sphi 0, %s25
    %s19 = sphi 0, %s17
    %s20 = sphi 0, %s18
    %s21 = sphi 0, %s19
    %s22 = sphi 0, %s20
    %s32 = sphi 0, %s34
    %s35 = sphi 0, %s32
    %s36 = sphi 0, %s35
    %s52 = sphi 0, %s36
    %s58 = sphi 0, %s60
    %s61 = sphi 0, %s58
    %s62 = sphi 0, %s61
    %s78 = sphi 0, %s62
    %s86 = sphi 0, %s88
    %s89 = sphi 0, %s86
    %s90 = sphi 0, %s89
    %s106 = sphi 0, %s90
    %s114 = sphi 0, %s116
    %s117 = sphi 0, %s114
    %s118 = sphi 0, %s117
    %s134 = sphi 0, %s118
  $region4: #{_lambda_.14} parent=0 // loop_header_branch
    %13 = sbr.rel (%p11) target = $region8
  $region5: #{_lambda_.14} parent=0 // loop_body
    %s15 = ssub.s32 %s10, 1
    %s16 = ssub.s32 %s10, 2
    %s23 = sadd.s32 1, %s18
    %p24 = scmp.ge.s32.totalorder %s23, 1
    %s25 = scalar_select %p24, 0, %s23
    %s26 = sadd.s32 1, %s17
    %s27 = scalar_select %p24, %s26, %s17
    %p28 = scmp.ge.s32.totalorder %s27, 2
    %s29 = scalar_select %p28, 0, %s27
    %s30 = ssub.s32 %s17, %s29
    %p31 = scmp.eq.s32.totalorder %s30, 0
    %s33 = sadd.s32 %s32, 1
    %s34 = scalar_select %p31, %s32, %s33
    %p37 = pneg %p31
    %p38 = scmp.eq.s32.totalorder %s10, 1
    %p39 = por %p37, %p38
    %p40 = scmp.ne.s32.totalorder %s32, %s35
    %p41 = scmp.eq.s32.totalorder %s10, 0
    %p42 = por %p40, %p41
    %p43 = scmp.ne.s32.totalorder %s32, %s35
    %p44 = scmp.eq.s32.totalorder %s15, 1
    %p45 = por %p43, %p44
    %p46 = scmp.ne.s32.totalorder %s35, %s36
    %p47 = scmp.eq.s32.totalorder %s15, 0
    %p48 = por %p46, %p47
    %p49 = scmp.ne.s32.totalorder %s35, %s36
    %p50 = scmp.eq.s32.totalorder %s16, 1
    %p51 = por %p49, %p50
    %p53 = scmp.ne.s32.totalorder %s36, %s52
    %p54 = scmp.eq.s32.totalorder %s16, 0
    %p55 = por %p53, %p54
    %s56 = ssub.s32 %s18, %s25
    %p57 = scmp.eq.s32.totalorder %s56, 0
    %s59 = sadd.s32 %s58, 1
    %s60 = scalar_select %p57, %s58, %s59
    %p63 = pneg %p57
    %p64 = scmp.eq.s32.totalorder %s10, 1
    %p65 = por %p63, %p64
    %p66 = scmp.ne.s32.totalorder %s58, %s61
    %p67 = scmp.eq.s32.totalorder %s10, 0
    %p68 = por %p66, %p67
    %p69 = scmp.ne.s32.totalorder %s58, %s61
    %p70 = scmp.eq.s32.totalorder %s15, 1
    %p71 = por %p69, %p70
    %p72 = scmp.ne.s32.totalorder %s61, %s62
    %p73 = scmp.eq.s32.totalorder %s15, 0
    %p74 = por %p72, %p73
    %p75 = scmp.ne.s32.totalorder %s61, %s62
    %p76 = scmp.eq.s32.totalorder %s16, 1
    %p77 = por %p75, %p76
    %p79 = scmp.ne.s32.totalorder %s62, %s78
    %p80 = scmp.eq.s32.totalorder %s16, 0
    %p81 = por %p79, %p80
    %s82 = ssub.s32 %s17, %s29
    %s83 = ssub.s32 %s18, %s25
    %s84 = sor.u32 %s82, %s83
    %p85 = scmp.eq.s32.totalorder %s84, 0
    %s87 = sadd.s32 %s86, 1
    %s88 = scalar_select %p85, %s86, %s87
    %p91 = pneg %p85
    %p92 = scmp.eq.s32.totalorder %s10, 1
    %p93 = por %p91, %p92
    %p94 = scmp.ne.s32.totalorder %s86, %s89
    %p95 = scmp.eq.s32.totalorder %s10, 0
    %p96 = por %p94, %p95
    %p97 = scmp.ne.s32.totalorder %s86, %s89
    %p98 = scmp.eq.s32.totalorder %s15, 1
    %p99 = por %p97, %p98
    %p100 = scmp.ne.s32.totalorder %s89, %s90
    %p101 = scmp.eq.s32.totalorder %s15, 0
    %p102 = por %p100, %p101
    %p103 = scmp.ne.s32.totalorder %s89, %s90
    %p104 = scmp.eq.s32.totalorder %s16, 1
    %p105 = por %p103, %p104
    %p107 = scmp.ne.s32.totalorder %s90, %s106
    %p108 = scmp.eq.s32.totalorder %s16, 0
    %p109 = por %p107, %p108
    %s110 = ssub.s32 %s17, %s29
    %s111 = ssub.s32 %s18, %s25
    %s112 = sor.u32 %s110, %s111
    %p113 = scmp.eq.s32.totalorder %s112, 0
    %s115 = sadd.s32 %s114, 1
    %s116 = scalar_select %p113, %s114, %s115
    %p119 = pneg %p113
    %p120 = scmp.eq.s32.totalorder %s10, 1
    %p121 = por %p119, %p120
    %p122 = scmp.ne.s32.totalorder %s114, %s117
    %p123 = scmp.eq.s32.totalorder %s10, 0
    %p124 = por %p122, %p123
    %p125 = scmp.ne.s32.totalorder %s114, %s117
    %p126 = scmp.eq.s32.totalorder %s15, 1
    %p127 = por %p125, %p126
    %p128 = scmp.ne.s32.totalorder %s117, %s118
    %p129 = scmp.eq.s32.totalorder %s15, 0
    %p130 = por %p128, %p129
    %p131 = scmp.ne.s32.totalorder %s117, %s118
    %p132 = scmp.eq.s32.totalorder %s16, 1
    %p133 = por %p131, %p132
    %p135 = scmp.ne.s32.totalorder %s118, %s134
    %p136 = scmp.eq.s32.totalorder %s16, 0
    %p137 = por %p135, %p136
    %p138 = scmp.le.s32.totalorder 1, %s10
    %p139 = scmp.lt.s32.totalorder %s10, 3
    %p140 = pnand %p138, %p139
    %p141 = pneg %p140
    // Predicated region
    $region9: #{_lambda_.14} parent=5 // pred_check
      _
    $region10: #{_lambda_.14} parent=5 // pred_check_branch
      %143 = sbr.rel (%p140) target = $region12
    $region11: #{_lambda_.14} parent=5 // pred_region
      %s144 = ssub.s32 %s10, 1
      // Predicated region
      $region13: #{_lambda_.14} parent=11 // pred_check
        %p145 = pneg %p74
      $region14: #{_lambda_.14} parent=11 // pred_check_branch
        %147 = sbr.rel (%p145) target = $region16
      $region15: #{_lambda_.14} parent=11 // pred_region
        %p148 = scmp.lt.s32.totalorder %s20, 0
        %s149 = scalar_select %p148, %s20, 0
        %s150 = smul.addr %s149, 4
        %s151 = scalar_lea.vmem %s1, %s150
      $region16: #{_lambda_.14} parent=11 // pred_fallthru
        _
    $region12: #{_lambda_.14} parent=5 // pred_fallthru
      _
    %p152 = scmp.lt.s32.totalorder %s10, 2
    // Predicated region
    $region17: #{_lambda_.14} parent=5 // pred_check
      %p153 = pneg %p152
    $region18: #{_lambda_.14} parent=5 // pred_check_branch
      %155 = sbr.rel (%p153) target = $region20
    $region19: #{_lambda_.14} parent=5 // pred_region
      // Predicated region
      $region21: #{_lambda_.14} parent=19 // pred_check
        %p156 = pneg %p42
      $region22: #{_lambda_.14} parent=19 // pred_check_branch
        %158 = sbr.rel (%p156) target = $region24
      $region23: #{_lambda_.14} parent=19 // pred_region
        %s159 = smul.u32 32, %s17
        %p160 = scmp.lt.s32.totalorder %s159, 63
        %s161 = scalar_select %p160, %s159, 63
        %s162 = smul.addr %s161, 9
        %s163 = smul.addr %s162, 4
        %s164 = scalar_lea.vmem %s0, %s163
        %s165 = smul.u32 32, %s17
      $region24: #{_lambda_.14} parent=19 // pred_fallthru
        _
    $region20: #{_lambda_.14} parent=5 // pred_fallthru
      _
    %p166 = scmp.le.s32.totalorder 1, %s10
    %p167 = scmp.lt.s32.totalorder %s10, 3
    %p168 = pnand %p166, %p167
    %p169 = pneg %p168
    // Predicated region
    $region25: #{_lambda_.14} parent=5 // pred_check
      _
    $region26: #{_lambda_.14} parent=5 // pred_check_branch
      %171 = sbr.rel (%p168) target = $region28
    $region27: #{_lambda_.14} parent=5 // pred_region
      %s172 = ssub.s32 %s10, 1
      %s173 = smul.u32 32, %s19
      %p174 = scmp.lt.s32.totalorder %s173, 63
      %s175 = scalar_select %p174, %s173, 63
      %s176 = smul.addr %s175, 9
      %s177 = smul.addr %s176, 4
      %s178 = scalar_lea.vmem %s0, %s177
      %p179 = pneg %p48
      %p180 = pneg %p45
      %p181 = scmp.lt.s32.totalorder %s20, 0
      %s182 = scalar_select %p181, %s20, 0
      %s183 = smul.addr %s182, 4
      %s184 = scalar_lea.vmem %s1, %s183
      %p185 = pneg %p74
      %p186 = pneg %p71
      %p187 = pneg %p102
      %p188 = pneg %p99
      %s189 = smul.u32 32, %s19
      %p190 = scmp.lt.s32.totalorder %s189, 63
      %s191 = scalar_select %p190, %s189, 63
      %p192 = scmp.lt.s32.totalorder %s20, 0
      %s193 = scalar_select %p192, %s20, 0
      %s194 = sadd.s32 %s193, %s191
      %s195 = smul.addr %s194, 4
      %s196 = scalar_lea.vmem %s2, %s195
      %p197 = pneg %p130
      %p198 = pneg %p127
      %p199 = scmp.lt.s32.totalorder %s19, 1
      %s200 = scalar_select %p199, %s19, 1
      %p201 = scmp.lt.s32.totalorder %s20, 0
      %s202 = scalar_select %p201, %s20, 0
      %s203 = sadd.s32 %s202, %s200
      %s204 = smul.addr %s203, 8
      %s205 = scalar_lea.vmem %s3, %s204
      %s206 = smul.u32 32, %s19
      %p207 = scmp.lt.s32.totalorder %s206, 63
      %s208 = scalar_select %p207, %s206, 63
      %s209 = smul.addr %s208, 9
      %s210 = smul.addr %s209, 4
      %s211 = scalar_lea.vmem %s0, %s210
      %s212 = smul.u32 32, %s19
      %p213 = scmp.lt.s32.totalorder %s20, 0
      %s214 = scalar_select %p213, %s20, 0
      %s215 = smul.addr %s214, 4
      %s216 = scalar_lea.vmem %s1, %s215
      %s217 = smul.u32 32, %s19
      %p218 = scmp.lt.s32.totalorder %s217, 63
      %s219 = scalar_select %p218, %s217, 63
      %p220 = scmp.lt.s32.totalorder %s20, 0
      %s221 = scalar_select %p220, %s20, 0
      %s222 = sadd.s32 %s221, %s219
      %s223 = smul.addr %s222, 4
      %s224 = scalar_lea.vmem %s2, %s223
      %s225 = smul.u32 32, %s19
      %p226 = scmp.lt.s32.totalorder %s19, 1
      %s227 = scalar_select %p226, %s19, 1
      %p228 = scmp.lt.s32.totalorder %s20, 0
      %s229 = scalar_select %p228, %s20, 0
      %s230 = sadd.s32 %s229, %s227
      %s231 = smul.addr %s230, 8
      %s232 = scalar_lea.vmem %s3, %s231
      %v233 = vld [vmem:[%s211] sm:$0xff]
      %v234 = vld [vmem:[%s211 + $0x8] sm:$0xff]
      %v235 = vld [vmem:[%s211 + $0x10] sm:$0xff]
      %v236 = vld [vmem:[%s211 + $0x18] sm:$0xff]
      %v237 = vld [vmem:[%s211 + $0x20] sm:$0xf]
      %v238 = vld [vmem:[%s211 + $0x24] sm:$0xff]
      %v239 = vld [vmem:[%s211 + $0x2c] sm:$0xff]
      %v240 = vld [vmem:[%s211 + $0x34] sm:$0xff]
      %v241 = vld [vmem:[%s211 + $0x3c] sm:$0xff]
      %v242 = vld [vmem:[%s211 + $0x44] sm:$0xf]
      %v243 = vld [vmem:[%s211 + $0x48] sm:$0xff]
      %v244 = vld [vmem:[%s211 + $0x50] sm:$0xff]
      %v245 = vld [vmem:[%s211 + $0x58] sm:$0xff]
      %v246 = vld [vmem:[%s211 + $0x60] sm:$0xff]
      %v247 = vld [vmem:[%s211 + $0x68] sm:$0xf]
      %v248 = vld [vmem:[%s211 + $0x6c] sm:$0xff]
      %v249 = vld [vmem:[%s211 + $0x74] sm:$0xff]
      %v250 = vld [vmem:[%s211 + $0x7c] sm:$0xff]
      %v251 = vld [vmem:[%s211 + $0x84] sm:$0xff]
      %v252 = vld [vmem:[%s211 + $0x8c] sm:$0xf]
      %v253 = vld [vmem:[%s211 + $0x90] sm:$0xff]
      %v254 = vld [vmem:[%s211 + $0x98] sm:$0xff]
      %v255 = vld [vmem:[%s211 + $0xa0] sm:$0xff]
      %v256 = vld [vmem:[%s211 + $0xa8] sm:$0xff]
      %v257 = vld [vmem:[%s211 + $0xb0] sm:$0xf]
      %v258 = vld [vmem:[%s211 + $0xb4] sm:$0xff]
      %v259 = vld [vmem:[%s211 + $0xbc] sm:$0xff]
      %v260 = vld [vmem:[%s211 + $0xc4] sm:$0xff]
      %v261 = vld [vmem:[%s211 + $0xcc] sm:$0xff]
      %v262 = vld [vmem:[%s211 + $0xd4] sm:$0xf]
      %v263 = vld [vmem:[%s211 + $0xd8] sm:$0xff]
      %v264 = vld [vmem:[%s211 + $0xe0] sm:$0xff]
      %v265 = vld [vmem:[%s211 + $0xe8] sm:$0xff]
      %v266 = vld [vmem:[%s211 + $0xf0] sm:$0xff]
      %v267 = vld [vmem:[%s211 + $0xf8] sm:$0xf]
      %v268 = vld [vmem:[%s211 + $0xfc] sm:$0xff]
      %v269 = vld [vmem:[%s211 + $0x104] sm:$0xff]
      %v270 = vld [vmem:[%s211 + $0x10c] sm:$0xff]
      %v271 = vld [vmem:[%s211 + $0x114] sm:$0xff]
      %v272 = vld [vmem:[%s211 + $0x11c] sm:$0xf]
      %v273 = vld [vmem:[%s211 + $0x120] sm:$0xff]
      %v274 = vld [vmem:[%s211 + $0x128] sm:$0xff]
      %v275 = vld [vmem:[%s211 + $0x130] sm:$0xff]
      %v276 = vld [vmem:[%s211 + $0x138] sm:$0xff]
      %v277 = vld [vmem:[%s211 + $0x140] sm:$0xf]
      %v278 = vld [vmem:[%s211 + $0x144] sm:$0xff]
      %v279 = vld [vmem:[%s211 + $0x14c] sm:$0xff]
      %v280 = vld [vmem:[%s211 + $0x154] sm:$0xff]
      %v281 = vld [vmem:[%s211 + $0x15c] sm:$0xff]
      %v282 = vld [vmem:[%s211 + $0x164] sm:$0xf]
      %v283 = vld [vmem:[%s211 + $0x168] sm:$0xff]
      %v284 = vld [vmem:[%s211 + $0x170] sm:$0xff]
      %v285 = vld [vmem:[%s211 + $0x178] sm:$0xff]
      %v286 = vld [vmem:[%s211 + $0x180] sm:$0xff]
      %v287 = vld [vmem:[%s211 + $0x188] sm:$0xf]
      %v288 = vld [vmem:[%s211 + $0x18c] sm:$0xff]
      %v289 = vld [vmem:[%s211 + $0x194] sm:$0xff]
      %v290 = vld [vmem:[%s211 + $0x19c] sm:$0xff]
      %v291 = vld [vmem:[%s211 + $0x1a4] sm:$0xff]
      %v292 = vld [vmem:[%s211 + $0x1ac] sm:$0xf]
      %v293 = vld [vmem:[%s211 + $0x1b0] sm:$0xff]
      %v294 = vld [vmem:[%s211 + $0x1b8] sm:$0xff]
      %v295 = vld [vmem:[%s211 + $0x1c0] sm:$0xff]
      %v296 = vld [vmem:[%s211 + $0x1c8] sm:$0xff]
      %v297 = vld [vmem:[%s211 + $0x1d0] sm:$0xf]
      %v298 = vld [vmem:[%s211 + $0x1d4] sm:$0xff]
      %v299 = vld [vmem:[%s211 + $0x1dc] sm:$0xff]
      %v300 = vld [vmem:[%s211 + $0x1e4] sm:$0xff]
      %v301 = vld [vmem:[%s211 + $0x1ec] sm:$0xff]
      %v302 = vld [vmem:[%s211 + $0x1f4] sm:$0xf]
      %v303 = vld [vmem:[%s211 + $0x1f8] sm:$0xff]
      %v304 = vld [vmem:[%s211 + $0x200] sm:$0xff]
      %v305 = vld [vmem:[%s211 + $0x208] sm:$0xff]
      %v306 = vld [vmem:[%s211 + $0x210] sm:$0xff]
      %v307 = vld [vmem:[%s211 + $0x218] sm:$0xf]
      %v308 = vld [vmem:[%s211 + $0x21c] sm:$0xff]
      %v309 = vld [vmem:[%s211 + $0x224] sm:$0xff]
      %v310 = vld [vmem:[%s211 + $0x22c] sm:$0xff]
      %v311 = vld [vmem:[%s211 + $0x234] sm:$0xff]
      %v312 = vld [vmem:[%s211 + $0x23c] sm:$0xf]
      %v313 = vld [vmem:[%s211 + $0x240] sm:$0xff]
      %v314 = vld [vmem:[%s211 + $0x248] sm:$0xff]
      %v315 = vld [vmem:[%s211 + $0x250] sm:$0xff]
      %v316 = vld [vmem:[%s211 + $0x258] sm:$0xff]
      %v317 = vld [vmem:[%s211 + $0x260] sm:$0xf]
      %v318 = vld [vmem:[%s211 + $0x264] sm:$0xff]
      %v319 = vld [vmem:[%s211 + $0x26c] sm:$0xff]
      %v320 = vld [vmem:[%s211 + $0x274] sm:$0xff]
      %v321 = vld [vmem:[%s211 + $0x27c] sm:$0xff]
      %v322 = vld [vmem:[%s211 + $0x284] sm:$0xf]
      %v323 = vld [vmem:[%s211 + $0x288] sm:$0xff]
      %v324 = vld [vmem:[%s211 + $0x290] sm:$0xff]
      %v325 = vld [vmem:[%s211 + $0x298] sm:$0xff]
      %v326 = vld [vmem:[%s211 + $0x2a0] sm:$0xff]
      %v327 = vld [vmem:[%s211 + $0x2a8] sm:$0xf]
      %v328 = vld [vmem:[%s211 + $0x2ac] sm:$0xff]
      %v329 = vld [vmem:[%s211 + $0x2b4] sm:$0xff]
      %v330 = vld [vmem:[%s211 + $0x2bc] sm:$0xff]
      %v331 = vld [vmem:[%s211 + $0x2c4] sm:$0xff]
      %v332 = vld [vmem:[%s211 + $0x2cc] sm:$0xf]
      %v333 = vld [vmem:[%s211 + $0x2d0] sm:$0xff]
      %v334 = vld [vmem:[%s211 + $0x2d8] sm:$0xff]
      %v335 = vld [vmem:[%s211 + $0x2e0] sm:$0xff]
      %v336 = vld [vmem:[%s211 + $0x2e8] sm:$0xff]
      %v337 = vld [vmem:[%s211 + $0x2f0] sm:$0xf]
      %v338 = vld [vmem:[%s211 + $0x2f4] sm:$0xff]
      %v339 = vld [vmem:[%s211 + $0x2fc] sm:$0xff]
      %v340 = vld [vmem:[%s211 + $0x304] sm:$0xff]
      %v341 = vld [vmem:[%s211 + $0x30c] sm:$0xff]
      %v342 = vld [vmem:[%s211 + $0x314] sm:$0xf]
      %v343 = vld [vmem:[%s211 + $0x318] sm:$0xff]
      %v344 = vld [vmem:[%s211 + $0x320] sm:$0xff]
      %v345 = vld [vmem:[%s211 + $0x328] sm:$0xff]
      %v346 = vld [vmem:[%s211 + $0x330] sm:$0xff]
      %v347 = vld [vmem:[%s211 + $0x338] sm:$0xf]
      %v348 = vld [vmem:[%s211 + $0x33c] sm:$0xff]
      %v349 = vld [vmem:[%s211 + $0x344] sm:$0xff]
      %v350 = vld [vmem:[%s211 + $0x34c] sm:$0xff]
      %v351 = vld [vmem:[%s211 + $0x354] sm:$0xff]
      %v352 = vld [vmem:[%s211 + $0x35c] sm:$0xf]
      %v353 = vld [vmem:[%s211 + $0x360] sm:$0xff]
      %v354 = vld [vmem:[%s211 + $0x368] sm:$0xff]
      %v355 = vld [vmem:[%s211 + $0x370] sm:$0xff]
      %v356 = vld [vmem:[%s211 + $0x378] sm:$0xff]
      %v357 = vld [vmem:[%s211 + $0x380] sm:$0xf]
      %v358 = vld [vmem:[%s211 + $0x384] sm:$0xff]
      %v359 = vld [vmem:[%s211 + $0x38c] sm:$0xff]
      %v360 = vld [vmem:[%s211 + $0x394] sm:$0xff]
      %v361 = vld [vmem:[%s211 + $0x39c] sm:$0xff]
      %v362 = vld [vmem:[%s211 + $0x3a4] sm:$0xf]
      %v363 = vld [vmem:[%s211 + $0x3a8] sm:$0xff]
      %v364 = vld [vmem:[%s211 + $0x3b0] sm:$0xff]
      %v365 = vld [vmem:[%s211 + $0x3b8] sm:$0xff]
      %v366 = vld [vmem:[%s211 + $0x3c0] sm:$0xff]
      %v367 = vld [vmem:[%s211 + $0x3c8] sm:$0xf]
      %v368 = vld [vmem:[%s211 + $0x3cc] sm:$0xff]
      %v369 = vld [vmem:[%s211 + $0x3d4] sm:$0xff]
      %v370 = vld [vmem:[%s211 + $0x3dc] sm:$0xff]
      %v371 = vld [vmem:[%s211 + $0x3e4] sm:$0xff]
      %v372 = vld [vmem:[%s211 + $0x3ec] sm:$0xf]
      %v373 = vld [vmem:[%s211 + $0x3f0] sm:$0xff]
      %v374 = vld [vmem:[%s211 + $0x3f8] sm:$0xff]
      %v375 = vld [vmem:[%s211 + $0x400] sm:$0xff]
      %v376 = vld [vmem:[%s211 + $0x408] sm:$0xff]
      %v377 = vld [vmem:[%s211 + $0x410] sm:$0xf]
      %v378 = vld [vmem:[%s211 + $0x414] sm:$0xff]
      %v379 = vld [vmem:[%s211 + $0x41c] sm:$0xff]
      %v380 = vld [vmem:[%s211 + $0x424] sm:$0xff]
      %v381 = vld [vmem:[%s211 + $0x42c] sm:$0xff]
      %v382 = vld [vmem:[%s211 + $0x434] sm:$0xf]
      %v383 = vld [vmem:[%s211 + $0x438] sm:$0xff]
      %v384 = vld [vmem:[%s211 + $0x440] sm:$0xff]
      %v385 = vld [vmem:[%s211 + $0x448] sm:$0xff]
      %v386 = vld [vmem:[%s211 + $0x450] sm:$0xff]
      %v387 = vld [vmem:[%s211 + $0x458] sm:$0xf]
      %v388 = vld [vmem:[%s211 + $0x45c] sm:$0xff]
      %v389 = vld [vmem:[%s211 + $0x464] sm:$0xff]
      %v390 = vld [vmem:[%s211 + $0x46c] sm:$0xff]
      %v391 = vld [vmem:[%s211 + $0x474] sm:$0xff]
      %v392 = vld [vmem:[%s211 + $0x47c] sm:$0xf]
      %v393 = vld [vmem:[%s216] sm:$0xf]
      %v394 = vld [vmem:[%s216 + $0x4] sm:$0xf]
      %v395 = vld [vmem:[%s216 + $0x8] sm:$0xf]
      %v396 = vld [vmem:[%s216 + $0xc] sm:$0xf]
      %v397 = vld [vmem:[%s216 + $0x10] sm:$0xf]
      %v398 = vld [vmem:[%s216 + $0x14] sm:$0xf]
      %v399 = vld [vmem:[%s216 + $0x18] sm:$0xf]
      %v400 = vld [vmem:[%s216 + $0x1c] sm:$0xf]
      %v401 = vld [vmem:[%s216 + $0x20] sm:$0xf]
      %v402 = vld [vmem:[%s216 + $0x24] sm:$0xf]
      %v403 = vld [vmem:[%s216 + $0x28] sm:$0xf]
      %v404 = vld [vmem:[%s216 + $0x2c] sm:$0xf]
      %v405 = vld [vmem:[%s216 + $0x30] sm:$0xf]
      %v406 = vld [vmem:[%s216 + $0x34] sm:$0xf]
      %v407 = vld [vmem:[%s216 + $0x38] sm:$0xf]
      %v408 = vld [vmem:[%s216 + $0x3c] sm:$0xf]
      %v409 = vld [vmem:[%s216 + $0x40] sm:$0xf]
      %v410 = vld [vmem:[%s216 + $0x44] sm:$0xf]
      %v411 = vld [vmem:[%s216 + $0x48] sm:$0xf]
      %v412 = vld [vmem:[%s216 + $0x4c] sm:$0xf]
      %v413 = vld [vmem:[%s216 + $0x50] sm:$0xf]
      %v414 = vld [vmem:[%s216 + $0x54] sm:$0xf]
      %v415 = vld [vmem:[%s216 + $0x58] sm:$0xf]
      %v416 = vld [vmem:[%s216 + $0x5c] sm:$0xf]
      %v417 = vld [vmem:[%s216 + $0x60] sm:$0xf]
      %v418 = vld [vmem:[%s216 + $0x64] sm:$0xf]
      %v419 = vld [vmem:[%s216 + $0x68] sm:$0xf]
      %v420 = vld [vmem:[%s216 + $0x6c] sm:$0xf]
      %v421 = vld [vmem:[%s216 + $0x70] sm:$0xf]
      %v422 = vld [vmem:[%s216 + $0x74] sm:$0xf]
      %v423 = vld [vmem:[%s216 + $0x78] sm:$0xf]
      %v424 = vld [vmem:[%s216 + $0x7c] sm:$0xf]
      %v425 = vld [vmem:[%s216 + $0x80] sm:$0xf]
      %v426 = vld [vmem:[%s216 + $0x84] sm:$0xf]
      %v427 = vld [vmem:[%s216 + $0x88] sm:$0xf]
      %v428 = vld [vmem:[%s216 + $0x8c] sm:$0xf]
      %v429 = vld [vmem:[%s216 + $0x90] sm:$0xf]
      %v430 = vld [vmem:[%s216 + $0x94] sm:$0xf]
      %v431 = vld [vmem:[%s216 + $0x98] sm:$0xf]
      %v432 = vld [vmem:[%s216 + $0x9c] sm:$0xf]
      %v433 = vld [vmem:[%s216 + $0xa0] sm:$0xf]
      %v434 = vld [vmem:[%s216 + $0xa4] sm:$0xf]
      %v435 = vld [vmem:[%s216 + $0xa8] sm:$0xf]
      %v436 = vld [vmem:[%s216 + $0xac] sm:$0xf]
      %v437 = vld [vmem:[%s216 + $0xb0] sm:$0xf]
      %v438 = vld [vmem:[%s216 + $0xb4] sm:$0xf]
      %v439 = vld [vmem:[%s216 + $0xb8] sm:$0xf]
      %v440 = vld [vmem:[%s216 + $0xbc] sm:$0xf]
      %v441 = vld [vmem:[%s216 + $0xc0] sm:$0xf]
      %v442 = vld [vmem:[%s216 + $0xc4] sm:$0xf]
      %v443 = vld [vmem:[%s216 + $0xc8] sm:$0xf]
      %v444 = vld [vmem:[%s216 + $0xcc] sm:$0xf]
      %v445 = vld [vmem:[%s216 + $0xd0] sm:$0xf]
      %v446 = vld [vmem:[%s216 + $0xd4] sm:$0xf]
      %v447 = vld [vmem:[%s216 + $0xd8] sm:$0xf]
      %v448 = vld [vmem:[%s216 + $0xdc] sm:$0xf]
      %v449 = vld [vmem:[%s216 + $0xe0] sm:$0xf]
      %v450 = vld [vmem:[%s216 + $0xe4] sm:$0xf]
      %v451 = vld [vmem:[%s216 + $0xe8] sm:$0xf]
      %v452 = vld [vmem:[%s216 + $0xec] sm:$0xf]
      %v453 = vld [vmem:[%s216 + $0xf0] sm:$0xf]
      %v454 = vld [vmem:[%s216 + $0xf4] sm:$0xf]
      %v455 = vld [vmem:[%s216 + $0xf8] sm:$0xf]
      %v456 = vld [vmem:[%s216 + $0xfc] sm:$0xf]
      %v457 = vld [vmem:[%s216 + $0x100] sm:$0xf]
      %v458 = vld [vmem:[%s216 + $0x104] sm:$0xf]
      %v459 = vld [vmem:[%s216 + $0x108] sm:$0xf]
      %v460 = vld [vmem:[%s216 + $0x10c] sm:$0xf]
      %v461 = vld [vmem:[%s216 + $0x110] sm:$0xf]
      %v462 = vld [vmem:[%s216 + $0x114] sm:$0xf]
      %v463 = vld [vmem:[%s216 + $0x118] sm:$0xf]
      %v464 = vld [vmem:[%s216 + $0x11c] sm:$0xf]
      %v465 = vld [vmem:[%s216 + $0x120] sm:$0xf]
      %v466 = vld [vmem:[%s216 + $0x124] sm:$0xf]
      %v467 = vld [vmem:[%s216 + $0x128] sm:$0xf]
      %v468 = vld [vmem:[%s216 + $0x12c] sm:$0xf]
      %v469 = vld [vmem:[%s216 + $0x130] sm:$0xf]
      %v470 = vld [vmem:[%s216 + $0x134] sm:$0xf]
      %v471 = vld [vmem:[%s216 + $0x138] sm:$0xf]
      %v472 = vld [vmem:[%s216 + $0x13c] sm:$0xf]
      %v473 = vld [vmem:[%s216 + $0x140] sm:$0xf]
      %v474 = vld [vmem:[%s216 + $0x144] sm:$0xf]
      %v475 = vld [vmem:[%s216 + $0x148] sm:$0xf]
      %v476 = vld [vmem:[%s216 + $0x14c] sm:$0xf]
      %v477 = vld [vmem:[%s216 + $0x150] sm:$0xf]
      %v478 = vld [vmem:[%s216 + $0x154] sm:$0xf]
      %v479 = vld [vmem:[%s216 + $0x158] sm:$0xf]
      %v480 = vld [vmem:[%s216 + $0x15c] sm:$0xf]
      %v481 = vld [vmem:[%s216 + $0x160] sm:$0xf]
      %v482 = vld [vmem:[%s216 + $0x164] sm:$0xf]
      %v483 = vld [vmem:[%s216 + $0x168] sm:$0xf]
      %v484 = vld [vmem:[%s216 + $0x16c] sm:$0xf]
      %v485 = vld [vmem:[%s216 + $0x170] sm:$0xf]
      %v486 = vld [vmem:[%s216 + $0x174] sm:$0xf]
      %v487 = vld [vmem:[%s216 + $0x178] sm:$0xf]
      %v488 = vld [vmem:[%s216 + $0x17c] sm:$0xf]
      %v489 = vld [vmem:[%s216 + $0x180] sm:$0xf]
      %v490 = vld [vmem:[%s216 + $0x184] sm:$0xf]
      %v491 = vld [vmem:[%s216 + $0x188] sm:$0xf]
      %v492 = vld [vmem:[%s216 + $0x18c] sm:$0xf]
      %v493 = vld [vmem:[%s216 + $0x190] sm:$0xf]
      %v494 = vld [vmem:[%s216 + $0x194] sm:$0xf]
      %v495 = vld [vmem:[%s216 + $0x198] sm:$0xf]
      %v496 = vld [vmem:[%s216 + $0x19c] sm:$0xf]
      %v497 = vld [vmem:[%s216 + $0x1a0] sm:$0xf]
      %v498 = vld [vmem:[%s216 + $0x1a4] sm:$0xf]
      %v499 = vld [vmem:[%s216 + $0x1a8] sm:$0xf]
      %v500 = vld [vmem:[%s216 + $0x1ac] sm:$0xf]
      %v501 = vld [vmem:[%s216 + $0x1b0] sm:$0xf]
      %v502 = vld [vmem:[%s216 + $0x1b4] sm:$0xf]
      %v503 = vld [vmem:[%s216 + $0x1b8] sm:$0xf]
      %v504 = vld [vmem:[%s216 + $0x1bc] sm:$0xf]
      %v505 = vld [vmem:[%s216 + $0x1c0] sm:$0xf]
      %v506 = vld [vmem:[%s216 + $0x1c4] sm:$0xf]
      %v507 = vld [vmem:[%s216 + $0x1c8] sm:$0xf]
      %v508 = vld [vmem:[%s216 + $0x1cc] sm:$0xf]
      %v509 = vld [vmem:[%s216 + $0x1d0] sm:$0xf]
      %v510 = vld [vmem:[%s216 + $0x1d4] sm:$0xf]
      %v511 = vld [vmem:[%s216 + $0x1d8] sm:$0xf]
      %v512 = vld [vmem:[%s216 + $0x1dc] sm:$0xf]
      %v513 = vld [vmem:[%s216 + $0x1e0] sm:$0xf]
      %v514 = vld [vmem:[%s216 + $0x1e4] sm:$0xf]
      %v515 = vld [vmem:[%s216 + $0x1e8] sm:$0xf]
      %v516 = vld [vmem:[%s216 + $0x1ec] sm:$0xf]
      %v517 = vld [vmem:[%s216 + $0x1f0] sm:$0xf]
      %v518 = vld [vmem:[%s216 + $0x1f4] sm:$0xf]
      %v519 = vld [vmem:[%s216 + $0x1f8] sm:$0xf]
      %v520 = vld [vmem:[%s216 + $0x1fc] sm:$0xf]
      %v521 = vld [vmem:[%s216 + $0x200] sm:$0xf]
      %v522 = vld [vmem:[%s216 + $0x204] sm:$0xf]
      %v523 = vld [vmem:[%s216 + $0x208] sm:$0xf]
      %v524 = vld [vmem:[%s216 + $0x20c] sm:$0xf]
      %v525 = vld [vmem:[%s216 + $0x210] sm:$0xf]
      %v526 = vld [vmem:[%s216 + $0x214] sm:$0xf]
      %v527 = vld [vmem:[%s216 + $0x218] sm:$0xf]
      %v528 = vld [vmem:[%s216 + $0x21c] sm:$0xf]
      %v529 = vld [vmem:[%s216 + $0x220] sm:$0xf]
      %v530 = vld [vmem:[%s216 + $0x224] sm:$0xf]
      %v531 = vld [vmem:[%s216 + $0x228] sm:$0xf]
      %v532 = vld [vmem:[%s216 + $0x22c] sm:$0xf]
      %v533 = vld [vmem:[%s216 + $0x230] sm:$0xf]
      %v534 = vld [vmem:[%s216 + $0x234] sm:$0xf]
      %v535 = vld [vmem:[%s216 + $0x238] sm:$0xf]
      %v536 = vld [vmem:[%s216 + $0x23c] sm:$0xf]
      %v697 = vunpack.c.l.b16 %v233
      %v698 = vunpack.c.h.b16 %v233
      %v699 = vunpack.c.l.b16 %v234
      %v700 = vunpack.c.h.b16 %v234
      %v701 = vunpack.c.l.b16 %v235
      %v702 = vunpack.c.h.b16 %v235
      %v703 = vunpack.c.l.b16 %v236
      %v704 = vunpack.c.h.b16 %v236
      %v705 = vunpack.c.l.b16 %v237
      %v706 = vunpack.c.l.b16 %v238
      %v707 = vunpack.c.h.b16 %v238
      %v708 = vunpack.c.l.b16 %v239
      %v709 = vunpack.c.h.b16 %v239
      %v710 = vunpack.c.l.b16 %v240
      %v711 = vunpack.c.h.b16 %v240
      %v712 = vunpack.c.l.b16 %v241
      %v713 = vunpack.c.h.b16 %v241
      %v714 = vunpack.c.l.b16 %v242
      %v715 = vunpack.c.l.b16 %v243
      %v716 = vunpack.c.h.b16 %v243
      %v717 = vunpack.c.l.b16 %v244
      %v718 = vunpack.c.h.b16 %v244
      %v719 = vunpack.c.l.b16 %v245
      %v720 = vunpack.c.h.b16 %v245
      %v721 = vunpack.c.l.b16 %v246
      %v722 = vunpack.c.h.b16 %v246
      %v723 = vunpack.c.l.b16 %v247
      %v724 = vunpack.c.l.b16 %v248
      %v725 = vunpack.c.h.b16 %v248
      %v726 = vunpack.c.l.b16 %v249
      %v727 = vunpack.c.h.b16 %v249
      %v728 = vunpack.c.l.b16 %v250
      %v729 = vunpack.c.h.b16 %v250
      %v730 = vunpack.c.l.b16 %v251
      %v731 = vunpack.c.h.b16 %v251
      %v732 = vunpack.c.l.b16 %v252
      %v733 = vunpack.c.l.b16 %v253
      %v734 = vunpack.c.h.b16 %v253
      %v735 = vunpack.c.l.b16 %v254
      %v736 = vunpack.c.h.b16 %v254
      %v737 = vunpack.c.l.b16 %v255
      %v738 = vunpack.c.h.b16 %v255
      %v739 = vunpack.c.l.b16 %v256
      %v740 = vunpack.c.h.b16 %v256
      %v741 = vunpack.c.l.b16 %v257
      %v742 = vunpack.c.l.b16 %v258
      %v743 = vunpack.c.h.b16 %v258
      %v744 = vunpack.c.l.b16 %v259
      %v745 = vunpack.c.h.b16 %v259
      %v746 = vunpack.c.l.b16 %v260
      %v747 = vunpack.c.h.b16 %v260
      %v748 = vunpack.c.l.b16 %v261
      %v749 = vunpack.c.h.b16 %v261
      %v750 = vunpack.c.l.b16 %v262
      %v751 = vunpack.c.l.b16 %v263
      %v752 = vunpack.c.h.b16 %v263
      %v753 = vunpack.c.l.b16 %v264
      %v754 = vunpack.c.h.b16 %v264
      %v755 = vunpack.c.l.b16 %v265
      %v756 = vunpack.c.h.b16 %v265
      %v757 = vunpack.c.l.b16 %v266
      %v758 = vunpack.c.h.b16 %v266
      %v759 = vunpack.c.l.b16 %v267
      %v760 = vunpack.c.l.b16 %v268
      %v761 = vunpack.c.h.b16 %v268
      %v762 = vunpack.c.l.b16 %v269
      %v763 = vunpack.c.h.b16 %v269
      %v764 = vunpack.c.l.b16 %v270
      %v765 = vunpack.c.h.b16 %v270
      %v766 = vunpack.c.l.b16 %v271
      %v767 = vunpack.c.h.b16 %v271
      %v768 = vunpack.c.l.b16 %v272
      %v769 = vunpack.c.l.b16 %v273
      %v770 = vunpack.c.h.b16 %v273
      %v771 = vunpack.c.l.b16 %v274
      %v772 = vunpack.c.h.b16 %v274
      %v773 = vunpack.c.l.b16 %v275
      %v774 = vunpack.c.h.b16 %v275
      %v775 = vunpack.c.l.b16 %v276
      %v776 = vunpack.c.h.b16 %v276
      %v777 = vunpack.c.l.b16 %v277
      %v778 = vunpack.c.l.b16 %v278
      %v779 = vunpack.c.h.b16 %v278
      %v780 = vunpack.c.l.b16 %v279
      %v781 = vunpack.c.h.b16 %v279
      %v782 = vunpack.c.l.b16 %v280
      %v783 = vunpack.c.h.b16 %v280
      %v784 = vunpack.c.l.b16 %v281
      %v785 = vunpack.c.h.b16 %v281
      %v786 = vunpack.c.l.b16 %v282
      %v787 = vunpack.c.l.b16 %v283
      %v788 = vunpack.c.h.b16 %v283
      %v789 = vunpack.c.l.b16 %v284
      %v790 = vunpack.c.h.b16 %v284
      %v791 = vunpack.c.l.b16 %v285
      %v792 = vunpack.c.h.b16 %v285
      %v793 = vunpack.c.l.b16 %v286
      %v794 = vunpack.c.h.b16 %v286
      %v795 = vunpack.c.l.b16 %v287
      %v796 = vunpack.c.l.b16 %v288
      %v797 = vunpack.c.h.b16 %v288
      %v798 = vunpack.c.l.b16 %v289
      %v799 = vunpack.c.h.b16 %v289
      %v800 = vunpack.c.l.b16 %v290
      %v801 = vunpack.c.h.b16 %v290
      %v802 = vunpack.c.l.b16 %v291
      %v803 = vunpack.c.h.b16 %v291
      %v804 = vunpack.c.l.b16 %v292
      %v805 = vunpack.c.l.b16 %v293
      %v806 = vunpack.c.h.b16 %v293
      %v807 = vunpack.c.l.b16 %v294
      %v808 = vunpack.c.h.b16 %v294
      %v809 = vunpack.c.l.b16 %v295
      %v810 = vunpack.c.h.b16 %v295
      %v811 = vunpack.c.l.b16 %v296
      %v812 = vunpack.c.h.b16 %v296
      %v813 = vunpack.c.l.b16 %v297
      %v814 = vunpack.c.l.b16 %v298
      %v815 = vunpack.c.h.b16 %v298
      %v816 = vunpack.c.l.b16 %v299
      %v817 = vunpack.c.h.b16 %v299
      %v818 = vunpack.c.l.b16 %v300
      %v819 = vunpack.c.h.b16 %v300
      %v820 = vunpack.c.l.b16 %v301
      %v821 = vunpack.c.h.b16 %v301
      %v822 = vunpack.c.l.b16 %v302
      %v823 = vunpack.c.l.b16 %v303
      %v824 = vunpack.c.h.b16 %v303
      %v825 = vunpack.c.l.b16 %v304
      %v826 = vunpack.c.h.b16 %v304
      %v827 = vunpack.c.l.b16 %v305
      %v828 = vunpack.c.h.b16 %v305
      %v829 = vunpack.c.l.b16 %v306
      %v830 = vunpack.c.h.b16 %v306
      %v831 = vunpack.c.l.b16 %v307
      %v832 = vunpack.c.l.b16 %v308
      %v833 = vunpack.c.h.b16 %v308
      %v834 = vunpack.c.l.b16 %v309
      %v835 = vunpack.c.h.b16 %v309
      %v836 = vunpack.c.l.b16 %v310
      %v837 = vunpack.c.h.b16 %v310
      %v838 = vunpack.c.l.b16 %v311
      %v839 = vunpack.c.h.b16 %v311
      %v840 = vunpack.c.l.b16 %v312
      %v841 = vunpack.c.l.b16 %v313
      %v842 = vunpack.c.h.b16 %v313
      %v843 = vunpack.c.l.b16 %v314
      %v844 = vunpack.c.h.b16 %v314
      %v845 = vunpack.c.l.b16 %v315
      %v846 = vunpack.c.h.b16 %v315
      %v847 = vunpack.c.l.b16 %v316
      %v848 = vunpack.c.h.b16 %v316
      %v849 = vunpack.c.l.b16 %v317
      %v850 = vunpack.c.l.b16 %v318
      %v851 = vunpack.c.h.b16 %v318
      %v852 = vunpack.c.l.b16 %v319
      %v853 = vunpack.c.h.b16 %v319
      %v854 = vunpack.c.l.b16 %v320
      %v855 = vunpack.c.h.b16 %v320
      %v856 = vunpack.c.l.b16 %v321
      %v857 = vunpack.c.h.b16 %v321
      %v858 = vunpack.c.l.b16 %v322
      %v859 = vunpack.c.l.b16 %v323
      %v860 = vunpack.c.h.b16 %v323
      %v861 = vunpack.c.l.b16 %v324
      %v862 = vunpack.c.h.b16 %v324
      %v863 = vunpack.c.l.b16 %v325
      %v864 = vunpack.c.h.b16 %v325
      %v865 = vunpack.c.l.b16 %v326
      %v866 = vunpack.c.h.b16 %v326
      %v867 = vunpack.c.l.b16 %v327
      %v868 = vunpack.c.l.b16 %v328
      %v869 = vunpack.c.h.b16 %v328
      %v870 = vunpack.c.l.b16 %v329
      %v871 = vunpack.c.h.b16 %v329
      %v872 = vunpack.c.l.b16 %v330
      %v873 = vunpack.c.h.b16 %v330
      %v874 = vunpack.c.l.b16 %v331
      %v875 = vunpack.c.h.b16 %v331
      %v876 = vunpack.c.l.b16 %v332
      %v877 = vunpack.c.l.b16 %v333
      %v878 = vunpack.c.h.b16 %v333
      %v879 = vunpack.c.l.b16 %v334
      %v880 = vunpack.c.h.b16 %v334
      %v881 = vunpack.c.l.b16 %v335
      %v882 = vunpack.c.h.b16 %v335
      %v883 = vunpack.c.l.b16 %v336
      %v884 = vunpack.c.h.b16 %v336
      %v885 = vunpack.c.l.b16 %v337
      %v886 = vunpack.c.l.b16 %v338
      %v887 = vunpack.c.h.b16 %v338
      %v888 = vunpack.c.l.b16 %v339
      %v889 = vunpack.c.h.b16 %v339
      %v890 = vunpack.c.l.b16 %v340
      %v891 = vunpack.c.h.b16 %v340
      %v892 = vunpack.c.l.b16 %v341
      %v893 = vunpack.c.h.b16 %v341
      %v894 = vunpack.c.l.b16 %v342
      %v895 = vunpack.c.l.b16 %v343
      %v896 = vunpack.c.h.b16 %v343
      %v897 = vunpack.c.l.b16 %v344
      %v898 = vunpack.c.h.b16 %v344
      %v899 = vunpack.c.l.b16 %v345
      %v900 = vunpack.c.h.b16 %v345
      %v901 = vunpack.c.l.b16 %v346
      %v902 = vunpack.c.h.b16 %v346
      %v903 = vunpack.c.l.b16 %v347
      %v904 = vunpack.c.l.b16 %v348
      %v905 = vunpack.c.h.b16 %v348
      %v906 = vunpack.c.l.b16 %v349
      %v907 = vunpack.c.h.b16 %v349
      %v908 = vunpack.c.l.b16 %v350
      %v909 = vunpack.c.h.b16 %v350
      %v910 = vunpack.c.l.b16 %v351
      %v911 = vunpack.c.h.b16 %v351
      %v912 = vunpack.c.l.b16 %v352
      %v913 = vunpack.c.l.b16 %v353
      %v914 = vunpack.c.h.b16 %v353
      %v915 = vunpack.c.l.b16 %v354
      %v916 = vunpack.c.h.b16 %v354
      %v917 = vunpack.c.l.b16 %v355
      %v918 = vunpack.c.h.b16 %v355
      %v919 = vunpack.c.l.b16 %v356
      %v920 = vunpack.c.h.b16 %v356
      %v921 = vunpack.c.l.b16 %v357
      %v922 = vunpack.c.l.b16 %v358
      %v923 = vunpack.c.h.b16 %v358
      %v924 = vunpack.c.l.b16 %v359
      %v925 = vunpack.c.h.b16 %v359
      %v926 = vunpack.c.l.b16 %v360
      %v927 = vunpack.c.h.b16 %v360
      %v928 = vunpack.c.l.b16 %v361
      %v929 = vunpack.c.h.b16 %v361
      %v930 = vunpack.c.l.b16 %v362
      %v931 = vunpack.c.l.b16 %v363
      %v932 = vunpack.c.h.b16 %v363
      %v933 = vunpack.c.l.b16 %v364
      %v934 = vunpack.c.h.b16 %v364
      %v935 = vunpack.c.l.b16 %v365
      %v936 = vunpack.c.h.b16 %v365
      %v937 = vunpack.c.l.b16 %v366
      %v938 = vunpack.c.h.b16 %v366
      %v939 = vunpack.c.l.b16 %v367
      %v940 = vunpack.c.l.b16 %v368
      %v941 = vunpack.c.h.b16 %v368
      %v942 = vunpack.c.l.b16 %v369
      %v943 = vunpack.c.h.b16 %v369
      %v944 = vunpack.c.l.b16 %v370
      %v945 = vunpack.c.h.b16 %v370
      %v946 = vunpack.c.l.b16 %v371
      %v947 = vunpack.c.h.b16 %v371
      %v948 = vunpack.c.l.b16 %v372
      %v949 = vunpack.c.l.b16 %v373
      %v950 = vunpack.c.h.b16 %v373
      %v951 = vunpack.c.l.b16 %v374
      %v952 = vunpack.c.h.b16 %v374
      %v953 = vunpack.c.l.b16 %v375
      %v954 = vunpack.c.h.b16 %v375
      %v955 = vunpack.c.l.b16 %v376
      %v956 = vunpack.c.h.b16 %v376
      %v957 = vunpack.c.l.b16 %v377
      %v958 = vunpack.c.l.b16 %v378
      %v959 = vunpack.c.h.b16 %v378
      %v960 = vunpack.c.l.b16 %v379
      %v961 = vunpack.c.h.b16 %v379
      %v962 = vunpack.c.l.b16 %v380
      %v963 = vunpack.c.h.b16 %v380
      %v964 = vunpack.c.l.b16 %v381
      %v965 = vunpack.c.h.b16 %v381
      %v966 = vunpack.c.l.b16 %v382
      %v967 = vunpack.c.l.b16 %v383
      %v968 = vunpack.c.h.b16 %v383
      %v969 = vunpack.c.l.b16 %v384
      %v970 = vunpack.c.h.b16 %v384
      %v971 = vunpack.c.l.b16 %v385
      %v972 = vunpack.c.h.b16 %v385
      %v973 = vunpack.c.l.b16 %v386
      %v974 = vunpack.c.h.b16 %v386
      %v975 = vunpack.c.l.b16 %v387
      %v976 = vunpack.c.l.b16 %v388
      %v977 = vunpack.c.h.b16 %v388
      %v978 = vunpack.c.l.b16 %v389
      %v979 = vunpack.c.h.b16 %v389
      %v980 = vunpack.c.l.b16 %v390
      %v981 = vunpack.c.h.b16 %v390
      %v982 = vunpack.c.l.b16 %v391
      %v983 = vunpack.c.h.b16 %v391
      %v984 = vunpack.c.l.b16 %v392
      %v985 = vpack.c.b16 %v706, %v697
      %v986 = vpack.c.b16 %v707, %v698
      %v987 = vpack.c.b16 %v708, %v699
      %v988 = vpack.c.b16 %v709, %v700
      %v989 = vpack.c.b16 %v710, %v701
      %v990 = vpack.c.b16 %v711, %v702
      %v991 = vpack.c.b16 %v712, %v703
      %v992 = vpack.c.b16 %v713, %v704
      %v993 = vpack.c.b16 %v714, %v705
      %v994 = vpack.c.b16 %v724, %v715
      %v995 = vpack.c.b16 %v725, %v716
      %v996 = vpack.c.b16 %v726, %v717
      %v997 = vpack.c.b16 %v727, %v718
      %v998 = vpack.c.b16 %v728, %v719
      %v999 = vpack.c.b16 %v729, %v720
      %v1000 = vpack.c.b16 %v730, %v721
      %v1001 = vpack.c.b16 %v731, %v722
      %v1002 = vpack.c.b16 %v732, %v723
      %v1003 = vpack.c.b16 %v742, %v733
      %v1004 = vpack.c.b16 %v743, %v734
      %v1005 = vpack.c.b16 %v744, %v735
      %v1006 = vpack.c.b16 %v745, %v736
      %v1007 = vpack.c.b16 %v746, %v737
      %v1008 = vpack.c.b16 %v747, %v738
      %v1009 = vpack.c.b16 %v748, %v739
      %v1010 = vpack.c.b16 %v749, %v740
      %v1011 = vpack.c.b16 %v750, %v741
      %v1012 = vpack.c.b16 %v760, %v751
      %v1013 = vpack.c.b16 %v761, %v752
      %v1014 = vpack.c.b16 %v762, %v753
      %v1015 = vpack.c.b16 %v763, %v754
      %v1016 = vpack.c.b16 %v764, %v755
      %v1017 = vpack.c.b16 %v765, %v756
      %v1018 = vpack.c.b16 %v766, %v757
      %v1019 = vpack.c.b16 %v767, %v758
      %v1020 = vpack.c.b16 %v768, %v759
      %v1021 = vpack.c.b16 %v778, %v769
      %v1022 = vpack.c.b16 %v779, %v770
      %v1023 = vpack.c.b16 %v780, %v771
      %v1024 = vpack.c.b16 %v781, %v772
      %v1025 = vpack.c.b16 %v782, %v773
      %v1026 = vpack.c.b16 %v783, %v774
      %v1027 = vpack.c.b16 %v784, %v775
      %v1028 = vpack.c.b16 %v785, %v776
      %v1029 = vpack.c.b16 %v786, %v777
      %v1030 = vpack.c.b16 %v796, %v787
      %v1031 = vpack.c.b16 %v797, %v788
      %v1032 = vpack.c.b16 %v798, %v789
      %v1033 = vpack.c.b16 %v799, %v790
      %v1034 = vpack.c.b16 %v800, %v791
      %v1035 = vpack.c.b16 %v801, %v792
      %v1036 = vpack.c.b16 %v802, %v793
      %v1037 = vpack.c.b16 %v803, %v794
      %v1038 = vpack.c.b16 %v804, %v795
      %v1039 = vpack.c.b16 %v814, %v805
      %v1040 = vpack.c.b16 %v815, %v806
      %v1041 = vpack.c.b16 %v816, %v807
      %v1042 = vpack.c.b16 %v817, %v808
      %v1043 = vpack.c.b16 %v818, %v809
      %v1044 = vpack.c.b16 %v819, %v810
      %v1045 = vpack.c.b16 %v820, %v811
      %v1046 = vpack.c.b16 %v821, %v812
      %v1047 = vpack.c.b16 %v822, %v813
      %v1048 = vpack.c.b16 %v832, %v823
      %v1049 = vpack.c.b16 %v833, %v824
      %v1050 = vpack.c.b16 %v834, %v825
      %v1051 = vpack.c.b16 %v835, %v826
      %v1052 = vpack.c.b16 %v836, %v827
      %v1053 = vpack.c.b16 %v837, %v828
      %v1054 = vpack.c.b16 %v838, %v829
      %v1055 = vpack.c.b16 %v839, %v830
      %v1056 = vpack.c.b16 %v840, %v831
      %v1057 = vpack.c.b16 %v850, %v841
      %v1058 = vpack.c.b16 %v851, %v842
      %v1059 = vpack.c.b16 %v852, %v843
      %v1060 = vpack.c.b16 %v853, %v844
      %v1061 = vpack.c.b16 %v854, %v845
      %v1062 = vpack.c.b16 %v855, %v846
      %v1063 = vpack.c.b16 %v856, %v847
      %v1064 = vpack.c.b16 %v857, %v848
      %v1065 = vpack.c.b16 %v858, %v849
      %v1066 = vpack.c.b16 %v868, %v859
      %v1067 = vpack.c.b16 %v869, %v860
      %v1068 = vpack.c.b16 %v870, %v861
      %v1069 = vpack.c.b16 %v871, %v862
      %v1070 = vpack.c.b16 %v872, %v863
      %v1071 = vpack.c.b16 %v873, %v864
      %v1072 = vpack.c.b16 %v874, %v865
      %v1073 = vpack.c.b16 %v875, %v866
      %v1074 = vpack.c.b16 %v876, %v867
      %v1075 = vpack.c.b16 %v886, %v877
      %v1076 = vpack.c.b16 %v887, %v878
      %v1077 = vpack.c.b16 %v888, %v879
      %v1078 = vpack.c.b16 %v889, %v880
      %v1079 = vpack.c.b16 %v890, %v881
      %v1080 = vpack.c.b16 %v891, %v882
      %v1081 = vpack.c.b16 %v892, %v883
      %v1082 = vpack.c.b16 %v893, %v884
      %v1083 = vpack.c.b16 %v894, %v885
      %v1084 = vpack.c.b16 %v904, %v895
      %v1085 = vpack.c.b16 %v905, %v896
      %v1086 = vpack.c.b16 %v906, %v897
      %v1087 = vpack.c.b16 %v907, %v898
      %v1088 = vpack.c.b16 %v908, %v899
      %v1089 = vpack.c.b16 %v909, %v900
      %v1090 = vpack.c.b16 %v910, %v901
      %v1091 = vpack.c.b16 %v911, %v902
      %v1092 = vpack.c.b16 %v912, %v903
      %v1093 = vpack.c.b16 %v922, %v913
      %v1094 = vpack.c.b16 %v923, %v914
      %v1095 = vpack.c.b16 %v924, %v915
      %v1096 = vpack.c.b16 %v925, %v916
      %v1097 = vpack.c.b16 %v926, %v917
      %v1098 = vpack.c.b16 %v927, %v918
      %v1099 = vpack.c.b16 %v928, %v919
      %v1100 = vpack.c.b16 %v929, %v920
      %v1101 = vpack.c.b16 %v930, %v921
      %v1102 = vpack.c.b16 %v940, %v931
      %v1103 = vpack.c.b16 %v941, %v932
      %v1104 = vpack.c.b16 %v942, %v933
      %v1105 = vpack.c.b16 %v943, %v934
      %v1106 = vpack.c.b16 %v944, %v935
      %v1107 = vpack.c.b16 %v945, %v936
      %v1108 = vpack.c.b16 %v946, %v937
      %v1109 = vpack.c.b16 %v947, %v938
      %v1110 = vpack.c.b16 %v948, %v939
      %v1111 = vpack.c.b16 %v958, %v949
      %v1112 = vpack.c.b16 %v959, %v950
      %v1113 = vpack.c.b16 %v960, %v951
      %v1114 = vpack.c.b16 %v961, %v952
      %v1115 = vpack.c.b16 %v962, %v953
      %v1116 = vpack.c.b16 %v963, %v954
      %v1117 = vpack.c.b16 %v964, %v955
      %v1118 = vpack.c.b16 %v965, %v956
      %v1119 = vpack.c.b16 %v966, %v957
      %v1120 = vpack.c.b16 %v976, %v967
      %v1121 = vpack.c.b16 %v977, %v968
      %v1122 = vpack.c.b16 %v978, %v969
      %v1123 = vpack.c.b16 %v979, %v970
      %v1124 = vpack.c.b16 %v980, %v971
      %v1125 = vpack.c.b16 %v981, %v972
      %v1126 = vpack.c.b16 %v982, %v973
      %v1127 = vpack.c.b16 %v983, %v974
      %v1128 = vpack.c.b16 %v984, %v975
      %v1417 = vunpack.c.l.b16 %v393
      %v1418 = vunpack.c.l.b16 %v394
      %v1419 = vunpack.c.l.b16 %v395
      %v1420 = vunpack.c.l.b16 %v396
      %v1421 = vunpack.c.l.b16 %v397
      %v1422 = vunpack.c.l.b16 %v398
      %v1423 = vunpack.c.l.b16 %v399
      %v1424 = vunpack.c.l.b16 %v400
      %v1425 = vunpack.c.l.b16 %v401
      %v1426 = vunpack.c.l.b16 %v402
      %v1427 = vunpack.c.l.b16 %v403
      %v1428 = vunpack.c.l.b16 %v404
      %v1429 = vunpack.c.l.b16 %v405
      %v1430 = vunpack.c.l.b16 %v406
      %v1431 = vunpack.c.l.b16 %v407
      %v1432 = vunpack.c.l.b16 %v408
      %v1433 = vunpack.c.l.b16 %v409
      %v1434 = vunpack.c.l.b16 %v410
      %v1435 = vunpack.c.l.b16 %v411
      %v1436 = vunpack.c.l.b16 %v412
      %v1437 = vunpack.c.l.b16 %v413
      %v1438 = vunpack.c.l.b16 %v414
      %v1439 = vunpack.c.l.b16 %v415
      %v1440 = vunpack.c.l.b16 %v416
      %v1441 = vunpack.c.l.b16 %v417
      %v1442 = vunpack.c.l.b16 %v418
      %v1443 = vunpack.c.l.b16 %v419
      %v1444 = vunpack.c.l.b16 %v420
      %v1445 = vunpack.c.l.b16 %v421
      %v1446 = vunpack.c.l.b16 %v422
      %v1447 = vunpack.c.l.b16 %v423
      %v1448 = vunpack.c.l.b16 %v424
      %v1449 = vunpack.c.l.b16 %v425
      %v1450 = vunpack.c.l.b16 %v426
      %v1451 = vunpack.c.l.b16 %v427
      %v1452 = vunpack.c.l.b16 %v428
      %v1453 = vunpack.c.l.b16 %v429
      %v1454 = vunpack.c.l.b16 %v430
      %v1455 = vunpack.c.l.b16 %v431
      %v1456 = vunpack.c.l.b16 %v432
      %v1457 = vunpack.c.l.b16 %v433
      %v1458 = vunpack.c.l.b16 %v434
      %v1459 = vunpack.c.l.b16 %v435
      %v1460 = vunpack.c.l.b16 %v436
      %v1461 = vunpack.c.l.b16 %v437
      %v1462 = vunpack.c.l.b16 %v438
      %v1463 = vunpack.c.l.b16 %v439
      %v1464 = vunpack.c.l.b16 %v440
      %v1465 = vunpack.c.l.b16 %v441
      %v1466 = vunpack.c.l.b16 %v442
      %v1467 = vunpack.c.l.b16 %v443
      %v1468 = vunpack.c.l.b16 %v444
      %v1469 = vunpack.c.l.b16 %v445
      %v1470 = vunpack.c.l.b16 %v446
      %v1471 = vunpack.c.l.b16 %v447
      %v1472 = vunpack.c.l.b16 %v448
      %v1473 = vunpack.c.l.b16 %v449
      %v1474 = vunpack.c.l.b16 %v450
      %v1475 = vunpack.c.l.b16 %v451
      %v1476 = vunpack.c.l.b16 %v452
      %v1477 = vunpack.c.l.b16 %v453
      %v1478 = vunpack.c.l.b16 %v454
      %v1479 = vunpack.c.l.b16 %v455
      %v1480 = vunpack.c.l.b16 %v456
      %v1481 = vunpack.c.l.b16 %v457
      %v1482 = vunpack.c.l.b16 %v458
      %v1483 = vunpack.c.l.b16 %v459
      %v1484 = vunpack.c.l.b16 %v460
      %v1485 = vunpack.c.l.b16 %v461
      %v1486 = vunpack.c.l.b16 %v462
      %v1487 = vunpack.c.l.b16 %v463
      %v1488 = vunpack.c.l.b16 %v464
      %v1489 = vunpack.c.l.b16 %v465
      %v1490 = vunpack.c.l.b16 %v466
      %v1491 = vunpack.c.l.b16 %v467
      %v1492 = vunpack.c.l.b16 %v468
      %v1493 = vunpack.c.l.b16 %v469
      %v1494 = vunpack.c.l.b16 %v470
      %v1495 = vunpack.c.l.b16 %v471
      %v1496 = vunpack.c.l.b16 %v472
      %v1497 = vunpack.c.l.b16 %v473
      %v1498 = vunpack.c.l.b16 %v474
      %v1499 = vunpack.c.l.b16 %v475
      %v1500 = vunpack.c.l.b16 %v476
      %v1501 = vunpack.c.l.b16 %v477
      %v1502 = vunpack.c.l.b16 %v478
      %v1503 = vunpack.c.l.b16 %v479
      %v1504 = vunpack.c.l.b16 %v480
      %v1505 = vunpack.c.l.b16 %v481
      %v1506 = vunpack.c.l.b16 %v482
      %v1507 = vunpack.c.l.b16 %v483
      %v1508 = vunpack.c.l.b16 %v484
      %v1509 = vunpack.c.l.b16 %v485
      %v1510 = vunpack.c.l.b16 %v486
      %v1511 = vunpack.c.l.b16 %v487
      %v1512 = vunpack.c.l.b16 %v488
      %v1513 = vunpack.c.l.b16 %v489
      %v1514 = vunpack.c.l.b16 %v490
      %v1515 = vunpack.c.l.b16 %v491
      %v1516 = vunpack.c.l.b16 %v492
      %v1517 = vunpack.c.l.b16 %v493
      %v1518 = vunpack.c.l.b16 %v494
      %v1519 = vunpack.c.l.b16 %v495
      %v1520 = vunpack.c.l.b16 %v496
      %v1521 = vunpack.c.l.b16 %v497
      %v1522 = vunpack.c.l.b16 %v498
      %v1523 = vunpack.c.l.b16 %v499
      %v1524 = vunpack.c.l.b16 %v500
      %v1525 = vunpack.c.l.b16 %v501
      %v1526 = vunpack.c.l.b16 %v502
      %v1527 = vunpack.c.l.b16 %v503
      %v1528 = vunpack.c.l.b16 %v504
      %v1529 = vunpack.c.l.b16 %v505
      %v1530 = vunpack.c.l.b16 %v506
      %v1531 = vunpack.c.l.b16 %v507
      %v1532 = vunpack.c.l.b16 %v508
      %v1533 = vunpack.c.l.b16 %v509
      %v1534 = vunpack.c.l.b16 %v510
      %v1535 = vunpack.c.l.b16 %v511
      %v1536 = vunpack.c.l.b16 %v512
      %v1537 = vunpack.c.l.b16 %v513
      %v1538 = vunpack.c.l.b16 %v514
      %v1539 = vunpack.c.l.b16 %v515
      %v1540 = vunpack.c.l.b16 %v516
      %v1541 = vunpack.c.l.b16 %v517
      %v1542 = vunpack.c.l.b16 %v518
      %v1543 = vunpack.c.l.b16 %v519
      %v1544 = vunpack.c.l.b16 %v520
      %v1545 = vunpack.c.l.b16 %v521
      %v1546 = vunpack.c.l.b16 %v522
      %v1547 = vunpack.c.l.b16 %v523
      %v1548 = vunpack.c.l.b16 %v524
      %v1549 = vunpack.c.l.b16 %v525
      %v1550 = vunpack.c.l.b16 %v526
      %v1551 = vunpack.c.l.b16 %v527
      %v1552 = vunpack.c.l.b16 %v528
      %v1553 = vunpack.c.l.b16 %v529
      %v1554 = vunpack.c.l.b16 %v530
      %v1555 = vunpack.c.l.b16 %v531
      %v1556 = vunpack.c.l.b16 %v532
      %v1557 = vunpack.c.l.b16 %v533
      %v1558 = vunpack.c.l.b16 %v534
      %v1559 = vunpack.c.l.b16 %v535
      %v1560 = vunpack.c.l.b16 %v536
      %v1561 = vpack.c.b16 %v1418, %v1417
      %v1562 = vpack.c.b16 %v1420, %v1419
      %v1563 = vpack.c.b16 %v1422, %v1421
      %v1564 = vpack.c.b16 %v1424, %v1423
      %v1565 = vpack.c.b16 %v1426, %v1425
      %v1566 = vpack.c.b16 %v1428, %v1427
      %v1567 = vpack.c.b16 %v1430, %v1429
      %v1568 = vpack.c.b16 %v1432, %v1431
      %v1569 = vpack.c.b16 %v1434, %v1433
      %v1570 = vpack.c.b16 %v1436, %v1435
      %v1571 = vpack.c.b16 %v1438, %v1437
      %v1572 = vpack.c.b16 %v1440, %v1439
      %v1573 = vpack.c.b16 %v1442, %v1441
      %v1574 = vpack.c.b16 %v1444, %v1443
      %v1575 = vpack.c.b16 %v1446, %v1445
      %v1576 = vpack.c.b16 %v1448, %v1447
      %v1577 = vpack.c.b16 %v1450, %v1449
      %v1578 = vpack.c.b16 %v1452, %v1451
      %v1579 = vpack.c.b16 %v1454, %v1453
      %v1580 = vpack.c.b16 %v1456, %v1455
      %v1581 = vpack.c.b16 %v1458, %v1457
      %v1582 = vpack.c.b16 %v1460, %v1459
      %v1583 = vpack.c.b16 %v1462, %v1461
      %v1584 = vpack.c.b16 %v1464, %v1463
      %v1585 = vpack.c.b16 %v1466, %v1465
      %v1586 = vpack.c.b16 %v1468, %v1467
      %v1587 = vpack.c.b16 %v1470, %v1469
      %v1588 = vpack.c.b16 %v1472, %v1471
      %v1589 = vpack.c.b16 %v1474, %v1473
      %v1590 = vpack.c.b16 %v1476, %v1475
      %v1591 = vpack.c.b16 %v1478, %v1477
      %v1592 = vpack.c.b16 %v1480, %v1479
      %v1593 = vpack.c.b16 %v1482, %v1481
      %v1594 = vpack.c.b16 %v1484, %v1483
      %v1595 = vpack.c.b16 %v1486, %v1485
      %v1596 = vpack.c.b16 %v1488, %v1487
      %v1597 = vpack.c.b16 %v1490, %v1489
      %v1598 = vpack.c.b16 %v1492, %v1491
      %v1599 = vpack.c.b16 %v1494, %v1493
      %v1600 = vpack.c.b16 %v1496, %v1495
      %v1601 = vpack.c.b16 %v1498, %v1497
      %v1602 = vpack.c.b16 %v1500, %v1499
      %v1603 = vpack.c.b16 %v1502, %v1501
      %v1604 = vpack.c.b16 %v1504, %v1503
      %v1605 = vpack.c.b16 %v1506, %v1505
      %v1606 = vpack.c.b16 %v1508, %v1507
      %v1607 = vpack.c.b16 %v1510, %v1509
      %v1608 = vpack.c.b16 %v1512, %v1511
      %v1609 = vpack.c.b16 %v1514, %v1513
      %v1610 = vpack.c.b16 %v1516, %v1515
      %v1611 = vpack.c.b16 %v1518, %v1517
      %v1612 = vpack.c.b16 %v1520, %v1519
      %v1613 = vpack.c.b16 %v1522, %v1521
      %v1614 = vpack.c.b16 %v1524, %v1523
      %v1615 = vpack.c.b16 %v1526, %v1525
      %v1616 = vpack.c.b16 %v1528, %v1527
      %v1617 = vpack.c.b16 %v1530, %v1529
      %v1618 = vpack.c.b16 %v1532, %v1531
      %v1619 = vpack.c.b16 %v1534, %v1533
      %v1620 = vpack.c.b16 %v1536, %v1535
      %v1621 = vpack.c.b16 %v1538, %v1537
      %v1622 = vpack.c.b16 %v1540, %v1539
      %v1623 = vpack.c.b16 %v1542, %v1541
      %v1624 = vpack.c.b16 %v1544, %v1543
      %v1625 = vpack.c.b16 %v1546, %v1545
      %v1626 = vpack.c.b16 %v1548, %v1547
      %v1627 = vpack.c.b16 %v1550, %v1549
      %v1628 = vpack.c.b16 %v1552, %v1551
      %v1629 = vpack.c.b16 %v1554, %v1553
      %v1630 = vpack.c.b16 %v1556, %v1555
      %v1631 = vpack.c.b16 %v1558, %v1557
      %v1632 = vpack.c.b16 %v1560, %v1559
      %1705 = vmatpush.bf16.msra.mxu0 %v1568
      %1706 = vmatpush.bf16.msra.mxu0 %v1567
      %1707 = vmatpush.bf16.msra.mxu0 %v1566
      %1708 = vmatpush.bf16.msra.mxu0 %v1565
      %1709 = vmatpush.bf16.msra.mxu0 %v1564
      %1710 = vmatpush.bf16.msra.mxu0 %v1563
      %1711 = vmatpush.bf16.msra.mxu0 %v1562
      %1712 = vmatpush.bf16.msra.mxu0 %v1561
      %1713 = vmatmul.bf16.gmra.mxu0 %v985
      %v1714 = vpop.f32.mrf.mxu0
      %v1715 = vadd.f32 0.0, %v1714
      %v1716 = vpop.f32.mrf.mxu0
      %v1717 = vadd.f32 0.0, %v1716
      %1718 = vmatmul.bf16.gmra.mxu0 %v994
      %v1719 = vpop.f32.mrf.mxu0
      %v1720 = vadd.f32 0.0, %v1719
      %v1721 = vpop.f32.mrf.mxu0
      %v1722 = vadd.f32 0.0, %v1721
      %1723 = vmatmul.bf16.gmra.mxu0 %v1003
      %v1724 = vpop.f32.mrf.mxu0
      %v1725 = vadd.f32 0.0, %v1724
      %v1726 = vpop.f32.mrf.mxu0
      %v1727 = vadd.f32 0.0, %v1726
      %1728 = vmatmul.bf16.gmra.mxu0 %v1012
      %v1729 = vpop.f32.mrf.mxu0
      %v1730 = vadd.f32 0.0, %v1729
      %v1731 = vpop.f32.mrf.mxu0
      %v1732 = vadd.f32 0.0, %v1731
      %1733 = vmatmul.bf16.gmra.mxu0 %v1021
      %v1734 = vpop.f32.mrf.mxu0
      %v1735 = vadd.f32 0.0, %v1734
      %v1736 = vpop.f32.mrf.mxu0
      %v1737 = vadd.f32 0.0, %v1736
      %1738 = vmatmul.bf16.gmra.mxu0 %v1030
      %v1739 = vpop.f32.mrf.mxu0
      %v1740 = vadd.f32 0.0, %v1739
      %v1741 = vpop.f32.mrf.mxu0
      %v1742 = vadd.f32 0.0, %v1741
      %1743 = vmatmul.bf16.gmra.mxu0 %v1039
      %v1744 = vpop.f32.mrf.mxu0
      %v1745 = vadd.f32 0.0, %v1744
      %v1746 = vpop.f32.mrf.mxu0
      %v1747 = vadd.f32 0.0, %v1746
      %1748 = vmatmul.bf16.gmra.mxu0 %v1048
      %v1749 = vpop.f32.mrf.mxu0
      %v1750 = vadd.f32 0.0, %v1749
      %v1751 = vpop.f32.mrf.mxu0
      %v1752 = vadd.f32 0.0, %v1751
      %1753 = vmatmul.bf16.gmra.mxu0 %v1057
      %v1754 = vpop.f32.mrf.mxu0
      %v1755 = vadd.f32 0.0, %v1754
      %v1756 = vpop.f32.mrf.mxu0
      %v1757 = vadd.f32 0.0, %v1756
      %1758 = vmatmul.bf16.gmra.mxu0 %v1066
      %v1759 = vpop.f32.mrf.mxu0
      %v1760 = vadd.f32 0.0, %v1759
      %v1761 = vpop.f32.mrf.mxu0
      %v1762 = vadd.f32 0.0, %v1761
      %1763 = vmatmul.bf16.gmra.mxu0 %v1075
      %v1764 = vpop.f32.mrf.mxu0
      %v1765 = vadd.f32 0.0, %v1764
      %v1766 = vpop.f32.mrf.mxu0
      %v1767 = vadd.f32 0.0, %v1766
      %1768 = vmatmul.bf16.gmra.mxu0 %v1084
      %v1769 = vpop.f32.mrf.mxu0
      %v1770 = vadd.f32 0.0, %v1769
      %v1771 = vpop.f32.mrf.mxu0
      %v1772 = vadd.f32 0.0, %v1771
      %1773 = vmatmul.bf16.gmra.mxu0 %v1093
      %v1774 = vpop.f32.mrf.mxu0
      %v1775 = vadd.f32 0.0, %v1774
      %v1776 = vpop.f32.mrf.mxu0
      %v1777 = vadd.f32 0.0, %v1776
      %1778 = vmatmul.bf16.gmra.mxu0 %v1102
      %v1779 = vpop.f32.mrf.mxu0
      %v1780 = vadd.f32 0.0, %v1779
      %v1781 = vpop.f32.mrf.mxu0
      %v1782 = vadd.f32 0.0, %v1781
      %1783 = vmatmul.bf16.gmra.mxu0 %v1111
      %v1784 = vpop.f32.mrf.mxu0
      %v1785 = vadd.f32 0.0, %v1784
      %v1786 = vpop.f32.mrf.mxu0
      %v1787 = vadd.f32 0.0, %v1786
      %1788 = vmatmul.bf16.gmra.mxu0 %v1120
      %v1789 = vpop.f32.mrf.mxu0
      %v1790 = vadd.f32 0.0, %v1789
      %v1791 = vpop.f32.mrf.mxu0
      %v1792 = vadd.f32 0.0, %v1791
      %1793 = vdwg.mxu0
      %1794 = vmatpush.bf16.msra.mxu0 %v1576
      %1795 = vmatpush.bf16.msra.mxu0 %v1575
      %1796 = vmatpush.bf16.msra.mxu0 %v1574
      %1797 = vmatpush.bf16.msra.mxu0 %v1573
      %1798 = vmatpush.bf16.msra.mxu0 %v1572
      %1799 = vmatpush.bf16.msra.mxu0 %v1571
      %1800 = vmatpush.bf16.msra.mxu0 %v1570
      %1801 = vmatpush.bf16.msra.mxu0 %v1569
      %1802 = vmatmul.bf16.gmra.mxu0 %v986
      %v1803 = vpop.f32.mrf.mxu0
      %v1804 = vadd.f32 %v1715, %v1803
      %v1805 = vpop.f32.mrf.mxu0
      %v1806 = vadd.f32 %v1717, %v1805
      %1807 = vmatmul.bf16.gmra.mxu0 %v995
      %v1808 = vpop.f32.mrf.mxu0
      %v1809 = vadd.f32 %v1720, %v1808
      %v1810 = vpop.f32.mrf.mxu0
      %v1811 = vadd.f32 %v1722, %v1810
      %1812 = vmatmul.bf16.gmra.mxu0 %v1004
      %v1813 = vpop.f32.mrf.mxu0
      %v1814 = vadd.f32 %v1725, %v1813
      %v1815 = vpop.f32.mrf.mxu0
      %v1816 = vadd.f32 %v1727, %v1815
      %1817 = vmatmul.bf16.gmra.mxu0 %v1013
      %v1818 = vpop.f32.mrf.mxu0
      %v1819 = vadd.f32 %v1730, %v1818
      %v1820 = vpop.f32.mrf.mxu0
      %v1821 = vadd.f32 %v1732, %v1820
      %1822 = vmatmul.bf16.gmra.mxu0 %v1022
      %v1823 = vpop.f32.mrf.mxu0
      %v1824 = vadd.f32 %v1735, %v1823
      %v1825 = vpop.f32.mrf.mxu0
      %v1826 = vadd.f32 %v1737, %v1825
      %1827 = vmatmul.bf16.gmra.mxu0 %v1031
      %v1828 = vpop.f32.mrf.mxu0
      %v1829 = vadd.f32 %v1740, %v1828
      %v1830 = vpop.f32.mrf.mxu0
      %v1831 = vadd.f32 %v1742, %v1830
      %1832 = vmatmul.bf16.gmra.mxu0 %v1040
      %v1833 = vpop.f32.mrf.mxu0
      %v1834 = vadd.f32 %v1745, %v1833
      %v1835 = vpop.f32.mrf.mxu0
      %v1836 = vadd.f32 %v1747, %v1835
      %1837 = vmatmul.bf16.gmra.mxu0 %v1049
      %v1838 = vpop.f32.mrf.mxu0
      %v1839 = vadd.f32 %v1750, %v1838
      %v1840 = vpop.f32.mrf.mxu0
      %v1841 = vadd.f32 %v1752, %v1840
      %1842 = vmatmul.bf16.gmra.mxu0 %v1058
      %v1843 = vpop.f32.mrf.mxu0
      %v1844 = vadd.f32 %v1755, %v1843
      %v1845 = vpop.f32.mrf.mxu0
      %v1846 = vadd.f32 %v1757, %v1845
      %1847 = vmatmul.bf16.gmra.mxu0 %v1067
      %v1848 = vpop.f32.mrf.mxu0
      %v1849 = vadd.f32 %v1760, %v1848
      %v1850 = vpop.f32.mrf.mxu0
      %v1851 = vadd.f32 %v1762, %v1850
      %1852 = vmatmul.bf16.gmra.mxu0 %v1076
      %v1853 = vpop.f32.mrf.mxu0
      %v1854 = vadd.f32 %v1765, %v1853
      %v1855 = vpop.f32.mrf.mxu0
      %v1856 = vadd.f32 %v1767, %v1855
      %1857 = vmatmul.bf16.gmra.mxu0 %v1085
      %v1858 = vpop.f32.mrf.mxu0
      %v1859 = vadd.f32 %v1770, %v1858
      %v1860 = vpop.f32.mrf.mxu0
      %v1861 = vadd.f32 %v1772, %v1860
      %1862 = vmatmul.bf16.gmra.mxu0 %v1094
      %v1863 = vpop.f32.mrf.mxu0
      %v1864 = vadd.f32 %v1775, %v1863
      %v1865 = vpop.f32.mrf.mxu0
      %v1866 = vadd.f32 %v1777, %v1865
      %1867 = vmatmul.bf16.gmra.mxu0 %v1103
      %v1868 = vpop.f32.mrf.mxu0
      %v1869 = vadd.f32 %v1780, %v1868
      %v1870 = vpop.f32.mrf.mxu0
      %v1871 = vadd.f32 %v1782, %v1870
      %1872 = vmatmul.bf16.gmra.mxu0 %v1112
      %v1873 = vpop.f32.mrf.mxu0
      %v1874 = vadd.f32 %v1785, %v1873
      %v1875 = vpop.f32.mrf.mxu0
      %v1876 = vadd.f32 %v1787, %v1875
      %1877 = vmatmul.bf16.gmra.mxu0 %v1121
      %v1878 = vpop.f32.mrf.mxu0
      %v1879 = vadd.f32 %v1790, %v1878
      %v1880 = vpop.f32.mrf.mxu0
      %v1881 = vadd.f32 %v1792, %v1880
      %1882 = vdwg.mxu0
      %1883 = vmatpush.bf16.msra.mxu0 %v1584
      %1884 = vmatpush.bf16.msra.mxu0 %v1583
      %1885 = vmatpush.bf16.msra.mxu0 %v1582
      %1886 = vmatpush.bf16.msra.mxu0 %v1581
      %1887 = vmatpush.bf16.msra.mxu0 %v1580
      %1888 = vmatpush.bf16.msra.mxu0 %v1579
      %1889 = vmatpush.bf16.msra.mxu0 %v1578
      %1890 = vmatpush.bf16.msra.mxu0 %v1577
      %1891 = vmatmul.bf16.gmra.mxu0 %v987
      %v1892 = vpop.f32.mrf.mxu0
      %v1893 = vadd.f32 %v1804, %v1892
      %v1894 = vpop.f32.mrf.mxu0
      %v1895 = vadd.f32 %v1806, %v1894
      %1896 = vmatmul.bf16.gmra.mxu0 %v996
      %v1897 = vpop.f32.mrf.mxu0
      %v1898 = vadd.f32 %v1809, %v1897
      %v1899 = vpop.f32.mrf.mxu0
      %v1900 = vadd.f32 %v1811, %v1899
      %1901 = vmatmul.bf16.gmra.mxu0 %v1005
      %v1902 = vpop.f32.mrf.mxu0
      %v1903 = vadd.f32 %v1814, %v1902
      %v1904 = vpop.f32.mrf.mxu0
      %v1905 = vadd.f32 %v1816, %v1904
      %1906 = vmatmul.bf16.gmra.mxu0 %v1014
      %v1907 = vpop.f32.mrf.mxu0
      %v1908 = vadd.f32 %v1819, %v1907
      %v1909 = vpop.f32.mrf.mxu0
      %v1910 = vadd.f32 %v1821, %v1909
      %1911 = vmatmul.bf16.gmra.mxu0 %v1023
      %v1912 = vpop.f32.mrf.mxu0
      %v1913 = vadd.f32 %v1824, %v1912
      %v1914 = vpop.f32.mrf.mxu0
      %v1915 = vadd.f32 %v1826, %v1914
      %1916 = vmatmul.bf16.gmra.mxu0 %v1032
      %v1917 = vpop.f32.mrf.mxu0
      %v1918 = vadd.f32 %v1829, %v1917
      %v1919 = vpop.f32.mrf.mxu0
      %v1920 = vadd.f32 %v1831, %v1919
      %1921 = vmatmul.bf16.gmra.mxu0 %v1041
      %v1922 = vpop.f32.mrf.mxu0
      %v1923 = vadd.f32 %v1834, %v1922
      %v1924 = vpop.f32.mrf.mxu0
      %v1925 = vadd.f32 %v1836, %v1924
      %1926 = vmatmul.bf16.gmra.mxu0 %v1050
      %v1927 = vpop.f32.mrf.mxu0
      %v1928 = vadd.f32 %v1839, %v1927
      %v1929 = vpop.f32.mrf.mxu0
      %v1930 = vadd.f32 %v1841, %v1929
      %1931 = vmatmul.bf16.gmra.mxu0 %v1059
      %v1932 = vpop.f32.mrf.mxu0
      %v1933 = vadd.f32 %v1844, %v1932
      %v1934 = vpop.f32.mrf.mxu0
      %v1935 = vadd.f32 %v1846, %v1934
      %1936 = vmatmul.bf16.gmra.mxu0 %v1068
      %v1937 = vpop.f32.mrf.mxu0
      %v1938 = vadd.f32 %v1849, %v1937
      %v1939 = vpop.f32.mrf.mxu0
      %v1940 = vadd.f32 %v1851, %v1939
      %1941 = vmatmul.bf16.gmra.mxu0 %v1077
      %v1942 = vpop.f32.mrf.mxu0
      %v1943 = vadd.f32 %v1854, %v1942
      %v1944 = vpop.f32.mrf.mxu0
      %v1945 = vadd.f32 %v1856, %v1944
      %1946 = vmatmul.bf16.gmra.mxu0 %v1086
      %v1947 = vpop.f32.mrf.mxu0
      %v1948 = vadd.f32 %v1859, %v1947
      %v1949 = vpop.f32.mrf.mxu0
      %v1950 = vadd.f32 %v1861, %v1949
      %1951 = vmatmul.bf16.gmra.mxu0 %v1095
      %v1952 = vpop.f32.mrf.mxu0
      %v1953 = vadd.f32 %v1864, %v1952
      %v1954 = vpop.f32.mrf.mxu0
      %v1955 = vadd.f32 %v1866, %v1954
      %1956 = vmatmul.bf16.gmra.mxu0 %v1104
      %v1957 = vpop.f32.mrf.mxu0
      %v1958 = vadd.f32 %v1869, %v1957
      %v1959 = vpop.f32.mrf.mxu0
      %v1960 = vadd.f32 %v1871, %v1959
      %1961 = vmatmul.bf16.gmra.mxu0 %v1113
      %v1962 = vpop.f32.mrf.mxu0
      %v1963 = vadd.f32 %v1874, %v1962
      %v1964 = vpop.f32.mrf.mxu0
      %v1965 = vadd.f32 %v1876, %v1964
      %1966 = vmatmul.bf16.gmra.mxu0 %v1122
      %v1967 = vpop.f32.mrf.mxu0
      %v1968 = vadd.f32 %v1879, %v1967
      %v1969 = vpop.f32.mrf.mxu0
      %v1970 = vadd.f32 %v1881, %v1969
      %1971 = vdwg.mxu0
      %1972 = vmatpush.bf16.msra.mxu0 %v1592
      %1973 = vmatpush.bf16.msra.mxu0 %v1591
      %1974 = vmatpush.bf16.msra.mxu0 %v1590
      %1975 = vmatpush.bf16.msra.mxu0 %v1589
      %1976 = vmatpush.bf16.msra.mxu0 %v1588
      %1977 = vmatpush.bf16.msra.mxu0 %v1587
      %1978 = vmatpush.bf16.msra.mxu0 %v1586
      %1979 = vmatpush.bf16.msra.mxu0 %v1585
      %1980 = vmatmul.bf16.gmra.mxu0 %v988
      %v1981 = vpop.f32.mrf.mxu0
      %v1982 = vadd.f32 %v1893, %v1981
      %v1983 = vpop.f32.mrf.mxu0
      %v1984 = vadd.f32 %v1895, %v1983
      %1985 = vmatmul.bf16.gmra.mxu0 %v997
      %v1986 = vpop.f32.mrf.mxu0
      %v1987 = vadd.f32 %v1898, %v1986
      %v1988 = vpop.f32.mrf.mxu0
      %v1989 = vadd.f32 %v1900, %v1988
      %1990 = vmatmul.bf16.gmra.mxu0 %v1006
      %v1991 = vpop.f32.mrf.mxu0
      %v1992 = vadd.f32 %v1903, %v1991
      %v1993 = vpop.f32.mrf.mxu0
      %v1994 = vadd.f32 %v1905, %v1993
      %1995 = vmatmul.bf16.gmra.mxu0 %v1015
      %v1996 = vpop.f32.mrf.mxu0
      %v1997 = vadd.f32 %v1908, %v1996
      %v1998 = vpop.f32.mrf.mxu0
      %v1999 = vadd.f32 %v1910, %v1998
      %2000 = vmatmul.bf16.gmra.mxu0 %v1024
      %v2001 = vpop.f32.mrf.mxu0
      %v2002 = vadd.f32 %v1913, %v2001
      %v2003 = vpop.f32.mrf.mxu0
      %v2004 = vadd.f32 %v1915, %v2003
      %2005 = vmatmul.bf16.gmra.mxu0 %v1033
      %v2006 = vpop.f32.mrf.mxu0
      %v2007 = vadd.f32 %v1918, %v2006
      %v2008 = vpop.f32.mrf.mxu0
      %v2009 = vadd.f32 %v1920, %v2008
      %2010 = vmatmul.bf16.gmra.mxu0 %v1042
      %v2011 = vpop.f32.mrf.mxu0
      %v2012 = vadd.f32 %v1923, %v2011
      %v2013 = vpop.f32.mrf.mxu0
      %v2014 = vadd.f32 %v1925, %v2013
      %2015 = vmatmul.bf16.gmra.mxu0 %v1051
      %v2016 = vpop.f32.mrf.mxu0
      %v2017 = vadd.f32 %v1928, %v2016
      %v2018 = vpop.f32.mrf.mxu0
      %v2019 = vadd.f32 %v1930, %v2018
      %2020 = vmatmul.bf16.gmra.mxu0 %v1060
      %v2021 = vpop.f32.mrf.mxu0
      %v2022 = vadd.f32 %v1933, %v2021
      %v2023 = vpop.f32.mrf.mxu0
      %v2024 = vadd.f32 %v1935, %v2023
      %2025 = vmatmul.bf16.gmra.mxu0 %v1069
      %v2026 = vpop.f32.mrf.mxu0
      %v2027 = vadd.f32 %v1938, %v2026
      %v2028 = vpop.f32.mrf.mxu0
      %v2029 = vadd.f32 %v1940, %v2028
      %2030 = vmatmul.bf16.gmra.mxu0 %v1078
      %v2031 = vpop.f32.mrf.mxu0
      %v2032 = vadd.f32 %v1943, %v2031
      %v2033 = vpop.f32.mrf.mxu0
      %v2034 = vadd.f32 %v1945, %v2033
      %2035 = vmatmul.bf16.gmra.mxu0 %v1087
      %v2036 = vpop.f32.mrf.mxu0
      %v2037 = vadd.f32 %v1948, %v2036
      %v2038 = vpop.f32.mrf.mxu0
      %v2039 = vadd.f32 %v1950, %v2038
      %2040 = vmatmul.bf16.gmra.mxu0 %v1096
      %v2041 = vpop.f32.mrf.mxu0
      %v2042 = vadd.f32 %v1953, %v2041
      %v2043 = vpop.f32.mrf.mxu0
      %v2044 = vadd.f32 %v1955, %v2043
      %2045 = vmatmul.bf16.gmra.mxu0 %v1105
      %v2046 = vpop.f32.mrf.mxu0
      %v2047 = vadd.f32 %v1958, %v2046
      %v2048 = vpop.f32.mrf.mxu0
      %v2049 = vadd.f32 %v1960, %v2048
      %2050 = vmatmul.bf16.gmra.mxu0 %v1114
      %v2051 = vpop.f32.mrf.mxu0
      %v2052 = vadd.f32 %v1963, %v2051
      %v2053 = vpop.f32.mrf.mxu0
      %v2054 = vadd.f32 %v1965, %v2053
      %2055 = vmatmul.bf16.gmra.mxu0 %v1123
      %v2056 = vpop.f32.mrf.mxu0
      %v2057 = vadd.f32 %v1968, %v2056
      %v2058 = vpop.f32.mrf.mxu0
      %v2059 = vadd.f32 %v1970, %v2058
      %2060 = vdwg.mxu0
      %2061 = vmatpush.bf16.msra.mxu0 %v1600
      %2062 = vmatpush.bf16.msra.mxu0 %v1599
      %2063 = vmatpush.bf16.msra.mxu0 %v1598
      %2064 = vmatpush.bf16.msra.mxu0 %v1597
      %2065 = vmatpush.bf16.msra.mxu0 %v1596
      %2066 = vmatpush.bf16.msra.mxu0 %v1595
      %2067 = vmatpush.bf16.msra.mxu0 %v1594
      %2068 = vmatpush.bf16.msra.mxu0 %v1593
      %2069 = vmatmul.bf16.gmra.mxu0 %v989
      %v2070 = vpop.f32.mrf.mxu0
      %v2071 = vadd.f32 %v1982, %v2070
      %v2072 = vpop.f32.mrf.mxu0
      %v2073 = vadd.f32 %v1984, %v2072
      %2074 = vmatmul.bf16.gmra.mxu0 %v998
      %v2075 = vpop.f32.mrf.mxu0
      %v2076 = vadd.f32 %v1987, %v2075
      %v2077 = vpop.f32.mrf.mxu0
      %v2078 = vadd.f32 %v1989, %v2077
      %2079 = vmatmul.bf16.gmra.mxu0 %v1007
      %v2080 = vpop.f32.mrf.mxu0
      %v2081 = vadd.f32 %v1992, %v2080
      %v2082 = vpop.f32.mrf.mxu0
      %v2083 = vadd.f32 %v1994, %v2082
      %2084 = vmatmul.bf16.gmra.mxu0 %v1016
      %v2085 = vpop.f32.mrf.mxu0
      %v2086 = vadd.f32 %v1997, %v2085
      %v2087 = vpop.f32.mrf.mxu0
      %v2088 = vadd.f32 %v1999, %v2087
      %2089 = vmatmul.bf16.gmra.mxu0 %v1025
      %v2090 = vpop.f32.mrf.mxu0
      %v2091 = vadd.f32 %v2002, %v2090
      %v2092 = vpop.f32.mrf.mxu0
      %v2093 = vadd.f32 %v2004, %v2092
      %2094 = vmatmul.bf16.gmra.mxu0 %v1034
      %v2095 = vpop.f32.mrf.mxu0
      %v2096 = vadd.f32 %v2007, %v2095
      %v2097 = vpop.f32.mrf.mxu0
      %v2098 = vadd.f32 %v2009, %v2097
      %2099 = vmatmul.bf16.gmra.mxu0 %v1043
      %v2100 = vpop.f32.mrf.mxu0
      %v2101 = vadd.f32 %v2012, %v2100
      %v2102 = vpop.f32.mrf.mxu0
      %v2103 = vadd.f32 %v2014, %v2102
      %2104 = vmatmul.bf16.gmra.mxu0 %v1052
      %v2105 = vpop.f32.mrf.mxu0
      %v2106 = vadd.f32 %v2017, %v2105
      %v2107 = vpop.f32.mrf.mxu0
      %v2108 = vadd.f32 %v2019, %v2107
      %2109 = vmatmul.bf16.gmra.mxu0 %v1061
      %v2110 = vpop.f32.mrf.mxu0
      %v2111 = vadd.f32 %v2022, %v2110
      %v2112 = vpop.f32.mrf.mxu0
      %v2113 = vadd.f32 %v2024, %v2112
      %2114 = vmatmul.bf16.gmra.mxu0 %v1070
      %v2115 = vpop.f32.mrf.mxu0
      %v2116 = vadd.f32 %v2027, %v2115
      %v2117 = vpop.f32.mrf.mxu0
      %v2118 = vadd.f32 %v2029, %v2117
      %2119 = vmatmul.bf16.gmra.mxu0 %v1079
      %v2120 = vpop.f32.mrf.mxu0
      %v2121 = vadd.f32 %v2032, %v2120
      %v2122 = vpop.f32.mrf.mxu0
      %v2123 = vadd.f32 %v2034, %v2122
      %2124 = vmatmul.bf16.gmra.mxu0 %v1088
      %v2125 = vpop.f32.mrf.mxu0
      %v2126 = vadd.f32 %v2037, %v2125
      %v2127 = vpop.f32.mrf.mxu0
      %v2128 = vadd.f32 %v2039, %v2127
      %2129 = vmatmul.bf16.gmra.mxu0 %v1097
      %v2130 = vpop.f32.mrf.mxu0
      %v2131 = vadd.f32 %v2042, %v2130
      %v2132 = vpop.f32.mrf.mxu0
      %v2133 = vadd.f32 %v2044, %v2132
      %2134 = vmatmul.bf16.gmra.mxu0 %v1106
      %v2135 = vpop.f32.mrf.mxu0
      %v2136 = vadd.f32 %v2047, %v2135
      %v2137 = vpop.f32.mrf.mxu0
      %v2138 = vadd.f32 %v2049, %v2137
      %2139 = vmatmul.bf16.gmra.mxu0 %v1115
      %v2140 = vpop.f32.mrf.mxu0
      %v2141 = vadd.f32 %v2052, %v2140
      %v2142 = vpop.f32.mrf.mxu0
      %v2143 = vadd.f32 %v2054, %v2142
      %2144 = vmatmul.bf16.gmra.mxu0 %v1124
      %v2145 = vpop.f32.mrf.mxu0
      %v2146 = vadd.f32 %v2057, %v2145
      %v2147 = vpop.f32.mrf.mxu0
      %v2148 = vadd.f32 %v2059, %v2147
      %2149 = vdwg.mxu0
      %2150 = vmatpush.bf16.msra.mxu0 %v1608
      %2151 = vmatpush.bf16.msra.mxu0 %v1607
      %2152 = vmatpush.bf16.msra.mxu0 %v1606
      %2153 = vmatpush.bf16.msra.mxu0 %v1605
      %2154 = vmatpush.bf16.msra.mxu0 %v1604
      %2155 = vmatpush.bf16.msra.mxu0 %v1603
      %2156 = vmatpush.bf16.msra.mxu0 %v1602
      %2157 = vmatpush.bf16.msra.mxu0 %v1601
      %2158 = vmatmul.bf16.gmra.mxu0 %v990
      %v2159 = vpop.f32.mrf.mxu0
      %v2160 = vadd.f32 %v2071, %v2159
      %v2161 = vpop.f32.mrf.mxu0
      %v2162 = vadd.f32 %v2073, %v2161
      %2163 = vmatmul.bf16.gmra.mxu0 %v999
      %v2164 = vpop.f32.mrf.mxu0
      %v2165 = vadd.f32 %v2076, %v2164
      %v2166 = vpop.f32.mrf.mxu0
      %v2167 = vadd.f32 %v2078, %v2166
      %2168 = vmatmul.bf16.gmra.mxu0 %v1008
      %v2169 = vpop.f32.mrf.mxu0
      %v2170 = vadd.f32 %v2081, %v2169
      %v2171 = vpop.f32.mrf.mxu0
      %v2172 = vadd.f32 %v2083, %v2171
      %2173 = vmatmul.bf16.gmra.mxu0 %v1017
      %v2174 = vpop.f32.mrf.mxu0
      %v2175 = vadd.f32 %v2086, %v2174
      %v2176 = vpop.f32.mrf.mxu0
      %v2177 = vadd.f32 %v2088, %v2176
      %2178 = vmatmul.bf16.gmra.mxu0 %v1026
      %v2179 = vpop.f32.mrf.mxu0
      %v2180 = vadd.f32 %v2091, %v2179
      %v2181 = vpop.f32.mrf.mxu0
      %v2182 = vadd.f32 %v2093, %v2181
      %2183 = vmatmul.bf16.gmra.mxu0 %v1035
      %v2184 = vpop.f32.mrf.mxu0
      %v2185 = vadd.f32 %v2096, %v2184
      %v2186 = vpop.f32.mrf.mxu0
      %v2187 = vadd.f32 %v2098, %v2186
      %2188 = vmatmul.bf16.gmra.mxu0 %v1044
      %v2189 = vpop.f32.mrf.mxu0
      %v2190 = vadd.f32 %v2101, %v2189
      %v2191 = vpop.f32.mrf.mxu0
      %v2192 = vadd.f32 %v2103, %v2191
      %2193 = vmatmul.bf16.gmra.mxu0 %v1053
      %v2194 = vpop.f32.mrf.mxu0
      %v2195 = vadd.f32 %v2106, %v2194
      %v2196 = vpop.f32.mrf.mxu0
      %v2197 = vadd.f32 %v2108, %v2196
      %2198 = vmatmul.bf16.gmra.mxu0 %v1062
      %v2199 = vpop.f32.mrf.mxu0
      %v2200 = vadd.f32 %v2111, %v2199
      %v2201 = vpop.f32.mrf.mxu0
      %v2202 = vadd.f32 %v2113, %v2201
      %2203 = vmatmul.bf16.gmra.mxu0 %v1071
      %v2204 = vpop.f32.mrf.mxu0
      %v2205 = vadd.f32 %v2116, %v2204
      %v2206 = vpop.f32.mrf.mxu0
      %v2207 = vadd.f32 %v2118, %v2206
      %2208 = vmatmul.bf16.gmra.mxu0 %v1080
      %v2209 = vpop.f32.mrf.mxu0
      %v2210 = vadd.f32 %v2121, %v2209
      %v2211 = vpop.f32.mrf.mxu0
      %v2212 = vadd.f32 %v2123, %v2211
      %2213 = vmatmul.bf16.gmra.mxu0 %v1089
      %v2214 = vpop.f32.mrf.mxu0
      %v2215 = vadd.f32 %v2126, %v2214
      %v2216 = vpop.f32.mrf.mxu0
      %v2217 = vadd.f32 %v2128, %v2216
      %2218 = vmatmul.bf16.gmra.mxu0 %v1098
      %v2219 = vpop.f32.mrf.mxu0
      %v2220 = vadd.f32 %v2131, %v2219
      %v2221 = vpop.f32.mrf.mxu0
      %v2222 = vadd.f32 %v2133, %v2221
      %2223 = vmatmul.bf16.gmra.mxu0 %v1107
      %v2224 = vpop.f32.mrf.mxu0
      %v2225 = vadd.f32 %v2136, %v2224
      %v2226 = vpop.f32.mrf.mxu0
      %v2227 = vadd.f32 %v2138, %v2226
      %2228 = vmatmul.bf16.gmra.mxu0 %v1116
      %v2229 = vpop.f32.mrf.mxu0
      %v2230 = vadd.f32 %v2141, %v2229
      %v2231 = vpop.f32.mrf.mxu0
      %v2232 = vadd.f32 %v2143, %v2231
      %2233 = vmatmul.bf16.gmra.mxu0 %v1125
      %v2234 = vpop.f32.mrf.mxu0
      %v2235 = vadd.f32 %v2146, %v2234
      %v2236 = vpop.f32.mrf.mxu0
      %v2237 = vadd.f32 %v2148, %v2236
      %2238 = vdwg.mxu0
      %2239 = vmatpush.bf16.msra.mxu0 %v1616
      %2240 = vmatpush.bf16.msra.mxu0 %v1615
      %2241 = vmatpush.bf16.msra.mxu0 %v1614
      %2242 = vmatpush.bf16.msra.mxu0 %v1613
      %2243 = vmatpush.bf16.msra.mxu0 %v1612
      %2244 = vmatpush.bf16.msra.mxu0 %v1611
      %2245 = vmatpush.bf16.msra.mxu0 %v1610
      %2246 = vmatpush.bf16.msra.mxu0 %v1609
      %2247 = vmatmul.bf16.gmra.mxu0 %v991
      %v2248 = vpop.f32.mrf.mxu0
      %v2249 = vadd.f32 %v2160, %v2248
      %v2250 = vpop.f32.mrf.mxu0
      %v2251 = vadd.f32 %v2162, %v2250
      %2252 = vmatmul.bf16.gmra.mxu0 %v1000
      %v2253 = vpop.f32.mrf.mxu0
      %v2254 = vadd.f32 %v2165, %v2253
      %v2255 = vpop.f32.mrf.mxu0
      %v2256 = vadd.f32 %v2167, %v2255
      %2257 = vmatmul.bf16.gmra.mxu0 %v1009
      %v2258 = vpop.f32.mrf.mxu0
      %v2259 = vadd.f32 %v2170, %v2258
      %v2260 = vpop.f32.mrf.mxu0
      %v2261 = vadd.f32 %v2172, %v2260
      %2262 = vmatmul.bf16.gmra.mxu0 %v1018
      %v2263 = vpop.f32.mrf.mxu0
      %v2264 = vadd.f32 %v2175, %v2263
      %v2265 = vpop.f32.mrf.mxu0
      %v2266 = vadd.f32 %v2177, %v2265
      %2267 = vmatmul.bf16.gmra.mxu0 %v1027
      %v2268 = vpop.f32.mrf.mxu0
      %v2269 = vadd.f32 %v2180, %v2268
      %v2270 = vpop.f32.mrf.mxu0
      %v2271 = vadd.f32 %v2182, %v2270
      %2272 = vmatmul.bf16.gmra.mxu0 %v1036
      %v2273 = vpop.f32.mrf.mxu0
      %v2274 = vadd.f32 %v2185, %v2273
      %v2275 = vpop.f32.mrf.mxu0
      %v2276 = vadd.f32 %v2187, %v2275
      %2277 = vmatmul.bf16.gmra.mxu0 %v1045
      %v2278 = vpop.f32.mrf.mxu0
      %v2279 = vadd.f32 %v2190, %v2278
      %v2280 = vpop.f32.mrf.mxu0
      %v2281 = vadd.f32 %v2192, %v2280
      %2282 = vmatmul.bf16.gmra.mxu0 %v1054
      %v2283 = vpop.f32.mrf.mxu0
      %v2284 = vadd.f32 %v2195, %v2283
      %v2285 = vpop.f32.mrf.mxu0
      %v2286 = vadd.f32 %v2197, %v2285
      %2287 = vmatmul.bf16.gmra.mxu0 %v1063
      %v2288 = vpop.f32.mrf.mxu0
      %v2289 = vadd.f32 %v2200, %v2288
      %v2290 = vpop.f32.mrf.mxu0
      %v2291 = vadd.f32 %v2202, %v2290
      %2292 = vmatmul.bf16.gmra.mxu0 %v1072
      %v2293 = vpop.f32.mrf.mxu0
      %v2294 = vadd.f32 %v2205, %v2293
      %v2295 = vpop.f32.mrf.mxu0
      %v2296 = vadd.f32 %v2207, %v2295
      %2297 = vmatmul.bf16.gmra.mxu0 %v1081
      %v2298 = vpop.f32.mrf.mxu0
      %v2299 = vadd.f32 %v2210, %v2298
      %v2300 = vpop.f32.mrf.mxu0
      %v2301 = vadd.f32 %v2212, %v2300
      %2302 = vmatmul.bf16.gmra.mxu0 %v1090
      %v2303 = vpop.f32.mrf.mxu0
      %v2304 = vadd.f32 %v2215, %v2303
      %v2305 = vpop.f32.mrf.mxu0
      %v2306 = vadd.f32 %v2217, %v2305
      %2307 = vmatmul.bf16.gmra.mxu0 %v1099
      %v2308 = vpop.f32.mrf.mxu0
      %v2309 = vadd.f32 %v2220, %v2308
      %v2310 = vpop.f32.mrf.mxu0
      %v2311 = vadd.f32 %v2222, %v2310
      %2312 = vmatmul.bf16.gmra.mxu0 %v1108
      %v2313 = vpop.f32.mrf.mxu0
      %v2314 = vadd.f32 %v2225, %v2313
      %v2315 = vpop.f32.mrf.mxu0
      %v2316 = vadd.f32 %v2227, %v2315
      %2317 = vmatmul.bf16.gmra.mxu0 %v1117
      %v2318 = vpop.f32.mrf.mxu0
      %v2319 = vadd.f32 %v2230, %v2318
      %v2320 = vpop.f32.mrf.mxu0
      %v2321 = vadd.f32 %v2232, %v2320
      %2322 = vmatmul.bf16.gmra.mxu0 %v1126
      %v2323 = vpop.f32.mrf.mxu0
      %v2324 = vadd.f32 %v2235, %v2323
      %v2325 = vpop.f32.mrf.mxu0
      %v2326 = vadd.f32 %v2237, %v2325
      %2327 = vdwg.mxu0
      %2328 = vmatpush.bf16.msra.mxu0 %v1624
      %2329 = vmatpush.bf16.msra.mxu0 %v1623
      %2330 = vmatpush.bf16.msra.mxu0 %v1622
      %2331 = vmatpush.bf16.msra.mxu0 %v1621
      %2332 = vmatpush.bf16.msra.mxu0 %v1620
      %2333 = vmatpush.bf16.msra.mxu0 %v1619
      %2334 = vmatpush.bf16.msra.mxu0 %v1618
      %2335 = vmatpush.bf16.msra.mxu0 %v1617
      %2336 = vmatmul.bf16.gmra.mxu0 %v992
      %v2337 = vpop.f32.mrf.mxu0
      %v2338 = vadd.f32 %v2249, %v2337
      %v2339 = vpop.f32.mrf.mxu0
      %v2340 = vadd.f32 %v2251, %v2339
      %2341 = vmatmul.bf16.gmra.mxu0 %v1001
      %v2342 = vpop.f32.mrf.mxu0
      %v2343 = vadd.f32 %v2254, %v2342
      %v2344 = vpop.f32.mrf.mxu0
      %v2345 = vadd.f32 %v2256, %v2344
      %2346 = vmatmul.bf16.gmra.mxu0 %v1010
      %v2347 = vpop.f32.mrf.mxu0
      %v2348 = vadd.f32 %v2259, %v2347
      %v2349 = vpop.f32.mrf.mxu0
      %v2350 = vadd.f32 %v2261, %v2349
      %2351 = vmatmul.bf16.gmra.mxu0 %v1019
      %v2352 = vpop.f32.mrf.mxu0
      %v2353 = vadd.f32 %v2264, %v2352
      %v2354 = vpop.f32.mrf.mxu0
      %v2355 = vadd.f32 %v2266, %v2354
      %2356 = vmatmul.bf16.gmra.mxu0 %v1028
      %v2357 = vpop.f32.mrf.mxu0
      %v2358 = vadd.f32 %v2269, %v2357
      %v2359 = vpop.f32.mrf.mxu0
      %v2360 = vadd.f32 %v2271, %v2359
      %2361 = vmatmul.bf16.gmra.mxu0 %v1037
      %v2362 = vpop.f32.mrf.mxu0
      %v2363 = vadd.f32 %v2274, %v2362
      %v2364 = vpop.f32.mrf.mxu0
      %v2365 = vadd.f32 %v2276, %v2364
      %2366 = vmatmul.bf16.gmra.mxu0 %v1046
      %v2367 = vpop.f32.mrf.mxu0
      %v2368 = vadd.f32 %v2279, %v2367
      %v2369 = vpop.f32.mrf.mxu0
      %v2370 = vadd.f32 %v2281, %v2369
      %2371 = vmatmul.bf16.gmra.mxu0 %v1055
      %v2372 = vpop.f32.mrf.mxu0
      %v2373 = vadd.f32 %v2284, %v2372
      %v2374 = vpop.f32.mrf.mxu0
      %v2375 = vadd.f32 %v2286, %v2374
      %2376 = vmatmul.bf16.gmra.mxu0 %v1064
      %v2377 = vpop.f32.mrf.mxu0
      %v2378 = vadd.f32 %v2289, %v2377
      %v2379 = vpop.f32.mrf.mxu0
      %v2380 = vadd.f32 %v2291, %v2379
      %2381 = vmatmul.bf16.gmra.mxu0 %v1073
      %v2382 = vpop.f32.mrf.mxu0
      %v2383 = vadd.f32 %v2294, %v2382
      %v2384 = vpop.f32.mrf.mxu0
      %v2385 = vadd.f32 %v2296, %v2384
      %2386 = vmatmul.bf16.gmra.mxu0 %v1082
      %v2387 = vpop.f32.mrf.mxu0
      %v2388 = vadd.f32 %v2299, %v2387
      %v2389 = vpop.f32.mrf.mxu0
      %v2390 = vadd.f32 %v2301, %v2389
      %2391 = vmatmul.bf16.gmra.mxu0 %v1091
      %v2392 = vpop.f32.mrf.mxu0
      %v2393 = vadd.f32 %v2304, %v2392
      %v2394 = vpop.f32.mrf.mxu0
      %v2395 = vadd.f32 %v2306, %v2394
      %2396 = vmatmul.bf16.gmra.mxu0 %v1100
      %v2397 = vpop.f32.mrf.mxu0
      %v2398 = vadd.f32 %v2309, %v2397
      %v2399 = vpop.f32.mrf.mxu0
      %v2400 = vadd.f32 %v2311, %v2399
      %2401 = vmatmul.bf16.gmra.mxu0 %v1109
      %v2402 = vpop.f32.mrf.mxu0
      %v2403 = vadd.f32 %v2314, %v2402
      %v2404 = vpop.f32.mrf.mxu0
      %v2405 = vadd.f32 %v2316, %v2404
      %2406 = vmatmul.bf16.gmra.mxu0 %v1118
      %v2407 = vpop.f32.mrf.mxu0
      %v2408 = vadd.f32 %v2319, %v2407
      %v2409 = vpop.f32.mrf.mxu0
      %v2410 = vadd.f32 %v2321, %v2409
      %2411 = vmatmul.bf16.gmra.mxu0 %v1127
      %v2412 = vpop.f32.mrf.mxu0
      %v2413 = vadd.f32 %v2324, %v2412
      %v2414 = vpop.f32.mrf.mxu0
      %v2415 = vadd.f32 %v2326, %v2414
      %2416 = vdwg.mxu0
      %2417 = vmatpush.bf16.msra.mxu0 %v1632
      %2418 = vmatpush.bf16.msra.mxu0 %v1631
      %2419 = vmatpush.bf16.msra.mxu0 %v1630
      %2420 = vmatpush.bf16.msra.mxu0 %v1629
      %2421 = vmatpush.bf16.msra.mxu0 %v1628
      %2422 = vmatpush.bf16.msra.mxu0 %v1627
      %2423 = vmatpush.bf16.msra.mxu0 %v1626
      %2424 = vmatpush.bf16.msra.mxu0 %v1625
      %2425 = vmatmul.bf16.gmra.mxu0 %v993
      %v2426 = vpop.f32.mrf.mxu0
      %v2427 = vadd.f32 %v2338, %v2426
      %v2428 = vpop.f32.mrf.mxu0
      %v2429 = vadd.f32 %v2340, %v2428
      %2430 = vmatmul.bf16.gmra.mxu0 %v1002
      %v2431 = vpop.f32.mrf.mxu0
      %v2432 = vadd.f32 %v2343, %v2431
      %v2433 = vpop.f32.mrf.mxu0
      %v2434 = vadd.f32 %v2345, %v2433
      %2435 = vmatmul.bf16.gmra.mxu0 %v1011
      %v2436 = vpop.f32.mrf.mxu0
      %v2437 = vadd.f32 %v2348, %v2436
      %v2438 = vpop.f32.mrf.mxu0
      %v2439 = vadd.f32 %v2350, %v2438
      %2440 = vmatmul.bf16.gmra.mxu0 %v1020
      %v2441 = vpop.f32.mrf.mxu0
      %v2442 = vadd.f32 %v2353, %v2441
      %v2443 = vpop.f32.mrf.mxu0
      %v2444 = vadd.f32 %v2355, %v2443
      %2445 = vmatmul.bf16.gmra.mxu0 %v1029
      %v2446 = vpop.f32.mrf.mxu0
      %v2447 = vadd.f32 %v2358, %v2446
      %v2448 = vpop.f32.mrf.mxu0
      %v2449 = vadd.f32 %v2360, %v2448
      %2450 = vmatmul.bf16.gmra.mxu0 %v1038
      %v2451 = vpop.f32.mrf.mxu0
      %v2452 = vadd.f32 %v2363, %v2451
      %v2453 = vpop.f32.mrf.mxu0
      %v2454 = vadd.f32 %v2365, %v2453
      %2455 = vmatmul.bf16.gmra.mxu0 %v1047
      %v2456 = vpop.f32.mrf.mxu0
      %v2457 = vadd.f32 %v2368, %v2456
      %v2458 = vpop.f32.mrf.mxu0
      %v2459 = vadd.f32 %v2370, %v2458
      %2460 = vmatmul.bf16.gmra.mxu0 %v1056
      %v2461 = vpop.f32.mrf.mxu0
      %v2462 = vadd.f32 %v2373, %v2461
      %v2463 = vpop.f32.mrf.mxu0
      %v2464 = vadd.f32 %v2375, %v2463
      %2465 = vmatmul.bf16.gmra.mxu0 %v1065
      %v2466 = vpop.f32.mrf.mxu0
      %v2467 = vadd.f32 %v2378, %v2466
      %v2468 = vpop.f32.mrf.mxu0
      %v2469 = vadd.f32 %v2380, %v2468
      %2470 = vmatmul.bf16.gmra.mxu0 %v1074
      %v2471 = vpop.f32.mrf.mxu0
      %v2472 = vadd.f32 %v2383, %v2471
      %v2473 = vpop.f32.mrf.mxu0
      %v2474 = vadd.f32 %v2385, %v2473
      %2475 = vmatmul.bf16.gmra.mxu0 %v1083
      %v2476 = vpop.f32.mrf.mxu0
      %v2477 = vadd.f32 %v2388, %v2476
      %v2478 = vpop.f32.mrf.mxu0
      %v2479 = vadd.f32 %v2390, %v2478
      %2480 = vmatmul.bf16.gmra.mxu0 %v1092
      %v2481 = vpop.f32.mrf.mxu0
      %v2482 = vadd.f32 %v2393, %v2481
      %v2483 = vpop.f32.mrf.mxu0
      %v2484 = vadd.f32 %v2395, %v2483
      %2485 = vmatmul.bf16.gmra.mxu0 %v1101
      %v2486 = vpop.f32.mrf.mxu0
      %v2487 = vadd.f32 %v2398, %v2486
      %v2488 = vpop.f32.mrf.mxu0
      %v2489 = vadd.f32 %v2400, %v2488
      %2490 = vmatmul.bf16.gmra.mxu0 %v1110
      %v2491 = vpop.f32.mrf.mxu0
      %v2492 = vadd.f32 %v2403, %v2491
      %v2493 = vpop.f32.mrf.mxu0
      %v2494 = vadd.f32 %v2405, %v2493
      %2495 = vmatmul.bf16.gmra.mxu0 %v1119
      %v2496 = vpop.f32.mrf.mxu0
      %v2497 = vadd.f32 %v2408, %v2496
      %v2498 = vpop.f32.mrf.mxu0
      %v2499 = vadd.f32 %v2410, %v2498
      %2500 = vmatmul.bf16.gmra.mxu0 %v1128
      %v2501 = vpop.f32.mrf.mxu0
      %v2502 = vadd.f32 %v2413, %v2501
      %v2503 = vpop.f32.mrf.mxu0
      %v2504 = vadd.f32 %v2415, %v2503
      %2505 = vdwg.mxu0
      %v2506 = vpack.c.bf16 %v2427, %v2427
      %v2507 = vpack.c.bf16 %v2429, %v2429
      %v2508 = vpack.c.bf16 %v2432, %v2432
      %v2509 = vpack.c.bf16 %v2434, %v2434
      %v2510 = vpack.c.bf16 %v2437, %v2437
      %v2511 = vpack.c.bf16 %v2439, %v2439
      %v2512 = vpack.c.bf16 %v2442, %v2442
      %v2513 = vpack.c.bf16 %v2444, %v2444
      %v2514 = vpack.c.bf16 %v2447, %v2447
      %v2515 = vpack.c.bf16 %v2449, %v2449
      %v2516 = vpack.c.bf16 %v2452, %v2452
      %v2517 = vpack.c.bf16 %v2454, %v2454
      %v2518 = vpack.c.bf16 %v2457, %v2457
      %v2519 = vpack.c.bf16 %v2459, %v2459
      %v2520 = vpack.c.bf16 %v2462, %v2462
      %v2521 = vpack.c.bf16 %v2464, %v2464
      %v2522 = vpack.c.bf16 %v2467, %v2467
      %v2523 = vpack.c.bf16 %v2469, %v2469
      %v2524 = vpack.c.bf16 %v2472, %v2472
      %v2525 = vpack.c.bf16 %v2474, %v2474
      %v2526 = vpack.c.bf16 %v2477, %v2477
      %v2527 = vpack.c.bf16 %v2479, %v2479
      %v2528 = vpack.c.bf16 %v2482, %v2482
      %v2529 = vpack.c.bf16 %v2484, %v2484
      %v2530 = vpack.c.bf16 %v2487, %v2487
      %v2531 = vpack.c.bf16 %v2489, %v2489
      %v2532 = vpack.c.bf16 %v2492, %v2492
      %v2533 = vpack.c.bf16 %v2494, %v2494
      %v2534 = vpack.c.bf16 %v2497, %v2497
      %v2535 = vpack.c.bf16 %v2499, %v2499
      %v2536 = vpack.c.bf16 %v2502, %v2502
      %v2537 = vpack.c.bf16 %v2504, %v2504
      %2538 = vst [vmem:[%s224] sm:$0xf] %v2506
      %2539 = vst [vmem:[%s224 + $0x4] sm:$0xf] %v2507
      %2540 = vst [vmem:[%s224 + $0x8] sm:$0xf] %v2508
      %2541 = vst [vmem:[%s224 + $0xc] sm:$0xf] %v2509
      %2542 = vst [vmem:[%s224 + $0x10] sm:$0xf] %v2510
      %2543 = vst [vmem:[%s224 + $0x14] sm:$0xf] %v2511
      %2544 = vst [vmem:[%s224 + $0x18] sm:$0xf] %v2512
      %2545 = vst [vmem:[%s224 + $0x1c] sm:$0xf] %v2513
      %2546 = vst [vmem:[%s224 + $0x20] sm:$0xf] %v2514
      %2547 = vst [vmem:[%s224 + $0x24] sm:$0xf] %v2515
      %2548 = vst [vmem:[%s224 + $0x28] sm:$0xf] %v2516
      %2549 = vst [vmem:[%s224 + $0x2c] sm:$0xf] %v2517
      %2550 = vst [vmem:[%s224 + $0x30] sm:$0xf] %v2518
      %2551 = vst [vmem:[%s224 + $0x34] sm:$0xf] %v2519
      %2552 = vst [vmem:[%s224 + $0x38] sm:$0xf] %v2520
      %2553 = vst [vmem:[%s224 + $0x3c] sm:$0xf] %v2521
      %2554 = vst [vmem:[%s224 + $0x40] sm:$0xf] %v2522
      %2555 = vst [vmem:[%s224 + $0x44] sm:$0xf] %v2523
      %2556 = vst [vmem:[%s224 + $0x48] sm:$0xf] %v2524
      %2557 = vst [vmem:[%s224 + $0x4c] sm:$0xf] %v2525
      %2558 = vst [vmem:[%s224 + $0x50] sm:$0xf] %v2526
      %2559 = vst [vmem:[%s224 + $0x54] sm:$0xf] %v2527
      %2560 = vst [vmem:[%s224 + $0x58] sm:$0xf] %v2528
      %2561 = vst [vmem:[%s224 + $0x5c] sm:$0xf] %v2529
      %2562 = vst [vmem:[%s224 + $0x60] sm:$0xf] %v2530
      %2563 = vst [vmem:[%s224 + $0x64] sm:$0xf] %v2531
      %2564 = vst [vmem:[%s224 + $0x68] sm:$0xf] %v2532
      %2565 = vst [vmem:[%s224 + $0x6c] sm:$0xf] %v2533
      %2566 = vst [vmem:[%s224 + $0x70] sm:$0xf] %v2534
      %2567 = vst [vmem:[%s224 + $0x74] sm:$0xf] %v2535
      %2568 = vst [vmem:[%s224 + $0x78] sm:$0xf] %v2536
      %2569 = vst [vmem:[%s224 + $0x7c] sm:$0xf] %v2537
      %v2570 = vadd.f32 %v2427, %v2429
      %v2571 = vadd.f32 %v2570, %v2432
      %v2572 = vadd.f32 %v2571, %v2434
      %v2573 = vadd.f32 %v2572, %v2437
      %v2574 = vadd.f32 %v2573, %v2439
      %v2575 = vadd.f32 %v2574, %v2442
      %v2576 = vadd.f32 %v2575, %v2444
      %v2577 = vadd.f32 %v2576, %v2447
      %v2578 = vadd.f32 %v2577, %v2449
      %v2579 = vadd.f32 %v2578, %v2452
      %v2580 = vadd.f32 %v2579, %v2454
      %v2581 = vadd.f32 %v2580, %v2457
      %v2582 = vadd.f32 %v2581, %v2459
      %v2583 = vadd.f32 %v2582, %v2462
      %v2584 = vadd.f32 %v2583, %v2464
      %v2585 = vadd.f32 %v2584, %v2467
      %v2586 = vadd.f32 %v2585, %v2469
      %v2587 = vadd.f32 %v2586, %v2472
      %v2588 = vadd.f32 %v2587, %v2474
      %v2589 = vadd.f32 %v2588, %v2477
      %v2590 = vadd.f32 %v2589, %v2479
      %v2591 = vadd.f32 %v2590, %v2482
      %v2592 = vadd.f32 %v2591, %v2484
      %v2593 = vadd.f32 %v2592, %v2487
      %v2594 = vadd.f32 %v2593, %v2489
      %v2595 = vadd.f32 %v2594, %v2492
      %v2596 = vadd.f32 %v2595, %v2494
      %v2597 = vadd.f32 %v2596, %v2497
      %v2598 = vadd.f32 %v2597, %v2499
      %v2599 = vadd.f32 %v2598, %v2502
      %v2600 = vadd.f32 %v2599, %v2504
      %v2601 = vrot.slane %v2600, 4
      %v2602 = vadd.f32 %v2600, %v2601
      %v2603 = vrot.slane %v2602, 2
      %v2604 = vadd.f32 %v2602, %v2603
      %v2605 = vrot.slane %v2604, 1
      %v2606 = vadd.f32 %v2604, %v2605
      %v2607 = vmul.f32 %v2427, %v2427
      %v2608 = vmul.f32 %v2429, %v2429
      %v2609 = vmul.f32 %v2432, %v2432
      %v2610 = vmul.f32 %v2434, %v2434
      %v2611 = vmul.f32 %v2437, %v2437
      %v2612 = vmul.f32 %v2439, %v2439
      %v2613 = vmul.f32 %v2442, %v2442
      %v2614 = vmul.f32 %v2444, %v2444
      %v2615 = vmul.f32 %v2447, %v2447
      %v2616 = vmul.f32 %v2449, %v2449
      %v2617 = vmul.f32 %v2452, %v2452
      %v2618 = vmul.f32 %v2454, %v2454
      %v2619 = vmul.f32 %v2457, %v2457
      %v2620 = vmul.f32 %v2459, %v2459
      %v2621 = vmul.f32 %v2462, %v2462
      %v2622 = vmul.f32 %v2464, %v2464
      %v2623 = vmul.f32 %v2467, %v2467
      %v2624 = vmul.f32 %v2469, %v2469
      %v2625 = vmul.f32 %v2472, %v2472
      %v2626 = vmul.f32 %v2474, %v2474
      %v2627 = vmul.f32 %v2477, %v2477
      %v2628 = vmul.f32 %v2479, %v2479
      %v2629 = vmul.f32 %v2482, %v2482
      %v2630 = vmul.f32 %v2484, %v2484
      %v2631 = vmul.f32 %v2487, %v2487
      %v2632 = vmul.f32 %v2489, %v2489
      %v2633 = vmul.f32 %v2492, %v2492
      %v2634 = vmul.f32 %v2494, %v2494
      %v2635 = vmul.f32 %v2497, %v2497
      %v2636 = vmul.f32 %v2499, %v2499
      %v2637 = vmul.f32 %v2502, %v2502
      %v2638 = vmul.f32 %v2504, %v2504
      %v2639 = vadd.f32 %v2607, %v2608
      %v2640 = vadd.f32 %v2639, %v2609
      %v2641 = vadd.f32 %v2640, %v2610
      %v2642 = vadd.f32 %v2641, %v2611
      %v2643 = vadd.f32 %v2642, %v2612
      %v2644 = vadd.f32 %v2643, %v2613
      %v2645 = vadd.f32 %v2644, %v2614
      %v2646 = vadd.f32 %v2645, %v2615
      %v2647 = vadd.f32 %v2646, %v2616
      %v2648 = vadd.f32 %v2647, %v2617
      %v2649 = vadd.f32 %v2648, %v2618
      %v2650 = vadd.f32 %v2649, %v2619
      %v2651 = vadd.f32 %v2650, %v2620
      %v2652 = vadd.f32 %v2651, %v2621
      %v2653 = vadd.f32 %v2652, %v2622
      %v2654 = vadd.f32 %v2653, %v2623
      %v2655 = vadd.f32 %v2654, %v2624
      %v2656 = vadd.f32 %v2655, %v2625
      %v2657 = vadd.f32 %v2656, %v2626
      %v2658 = vadd.f32 %v2657, %v2627
      %v2659 = vadd.f32 %v2658, %v2628
      %v2660 = vadd.f32 %v2659, %v2629
      %v2661 = vadd.f32 %v2660, %v2630
      %v2662 = vadd.f32 %v2661, %v2631
      %v2663 = vadd.f32 %v2662, %v2632
      %v2664 = vadd.f32 %v2663, %v2633
      %v2665 = vadd.f32 %v2664, %v2634
      %v2666 = vadd.f32 %v2665, %v2635
      %v2667 = vadd.f32 %v2666, %v2636
      %v2668 = vadd.f32 %v2667, %v2637
      %v2669 = vadd.f32 %v2668, %v2638
      %v2670 = vrot.slane %v2669, 4
      %v2671 = vadd.f32 %v2669, %v2670
      %v2672 = vrot.slane %v2671, 2
      %v2673 = vadd.f32 %v2671, %v2672
      %v2674 = vrot.slane %v2673, 1
      %v2675 = vadd.f32 %v2673, %v2674
      %v2676 = vlaneseq
      %v2677 = vshrl.u32 %v2676, 7
      %vm2678 = vcmp.eq.s32.totalorder %v2677, 0
      %vm2679 = vcmp.eq.s32.totalorder %v2677, 1
      %v2680 = vsel %vm2679, %v2675, 0.0
      %v2681 = vsel %vm2678, %v2606, %v2680
      %2682 = vst [vmem:[%s232] sm:$0xff] %v2681
      %s2683 = smul.u32 32, %s19
      %p2684 = scmp.lt.s32.totalorder %s2683, 63
      %s2685 = scalar_select %p2684, %s2683, 63
      %p2686 = scmp.lt.s32.totalorder %s20, 0
      %s2687 = scalar_select %p2686, %s20, 0
      %s2688 = sadd.s32 %s2687, %s2685
      %s2689 = smul.addr %s2688, 4
      %s2690 = scalar_lea.vmem %s2, %s2689
      %p2691 = scmp.lt.s32.totalorder %s19, 1
      %s2692 = scalar_select %p2691, %s19, 1
      %p2693 = scmp.lt.s32.totalorder %s20, 0
      %s2694 = scalar_select %p2693, %s20, 0
      %s2695 = sadd.s32 %s2694, %s2692
      %s2696 = smul.addr %s2695, 8
      %s2697 = scalar_lea.vmem %s3, %s2696
      // Predicated region
      $region29: #{_lambda_.14} parent=27 // pred_check
        %p2698 = pneg %p99
      $region30: #{_lambda_.14} parent=27 // pred_check_branch
        %2700 = sbr.rel (%p2698) target = $region32
      $region31: #{_lambda_.14} parent=27 // pred_region
        %s2701 = smul.u32 32, %s19
      $region32: #{_lambda_.14} parent=27 // pred_fallthru
        _
      // Predicated region
      $region33: #{_lambda_.14} parent=27 // pred_check
        %p2702 = pneg %p127
      $region34: #{_lambda_.14} parent=27 // pred_check_branch
        %2704 = sbr.rel (%p2702) target = $region36
      $region35: #{_lambda_.14} parent=27 // pred_region
        _
      $region36: #{_lambda_.14} parent=27 // pred_fallthru
        _
    $region28: #{_lambda_.14} parent=5 // pred_fallthru
      _
    %p2705 = scmp.le.s32.totalorder 2, %s10
    // Predicated region
    $region37: #{_lambda_.14} parent=5 // pred_check
      %p2706 = pneg %p2705
    $region38: #{_lambda_.14} parent=5 // pred_check_branch
      %2708 = sbr.rel (%p2706) target = $region40
    $region39: #{_lambda_.14} parent=5 // pred_region
      %s2709 = ssub.s32 %s10, 2
      // Predicated region
      $region41: #{_lambda_.14} parent=39 // pred_check
        %p2710 = pneg %p105
      $region42: #{_lambda_.14} parent=39 // pred_check_branch
        %2712 = sbr.rel (%p2710) target = $region44
      $region43: #{_lambda_.14} parent=39 // pred_region
        %s2713 = smul.u32 32, %s21
        %p2714 = scmp.lt.s32.totalorder %s2713, 63
        %s2715 = scalar_select %p2714, %s2713, 63
        %p2716 = scmp.lt.s32.totalorder %s22, 0
        %s2717 = scalar_select %p2716, %s22, 0
        %s2718 = sadd.s32 %s2717, %s2715
        %s2719 = smul.addr %s2718, 4
        %s2720 = scalar_lea.vmem %s2, %s2719
      $region44: #{_lambda_.14} parent=39 // pred_fallthru
        _
      // Predicated region
      $region45: #{_lambda_.14} parent=39 // pred_check
        %p2721 = pneg %p133
      $region46: #{_lambda_.14} parent=39 // pred_check_branch
        %2723 = sbr.rel (%p2721) target = $region48
      $region47: #{_lambda_.14} parent=39 // pred_region
        %p2724 = scmp.lt.s32.totalorder %s21, 1
        %s2725 = scalar_select %p2724, %s21, 1
        %p2726 = scmp.lt.s32.totalorder %s22, 0
        %s2727 = scalar_select %p2726, %s22, 0
        %s2728 = sadd.s32 %s2727, %s2725
        %s2729 = smul.addr %s2728, 8
        %s2730 = scalar_lea.vmem %s3, %s2729
      $region48: #{_lambda_.14} parent=39 // pred_fallthru
        _
    $region40: #{_lambda_.14} parent=5 // pred_fallthru
      _
  $region6: #{_lambda_.14} parent=0 // loop_footer
    %s14 = sadd.s32 1, %s10
  $region7: #{_lambda_.14} parent=0 // loop_footer_branch
    %9 = sbr.rel target = $region3
  $region8: #{_lambda_.14} parent=0 // loop_exit
    _

// kernel: _lambda_.19
$region0: #{_lambda_.19}
  #allocation0 [shape = 'u32[]', space=smem, size = 0x4, offset = 0x4, fixed_abs, tag = 'smem constant byte address 0x4 - core index']
  #allocation1 [shape = 'u32[72,128]{1,0:T(1,128)}', space=vmem, size = 0x9000, scoped, tag = 'internal scratch']
  %s0 = inlined_call_operand.vmem [shape: bf16[512,128], index: 0, kind: input, shape index: {}]
  %s1 = inlined_call_operand.vmem [shape: bf16[512,128], index: 1, kind: input, shape index: {}]
  %s2 = inlined_call_operand.vmem [shape: f32[1,128], index: 2, kind: input, shape index: {}]
  %s3 = inlined_call_operand.vmem [shape: f32[1,128], index: 3, kind: input, shape index: {}]
  %s4 = inlined_call_operand.vmem [shape: bf16[512,128], index: 4, kind: output, shape index: {}]
  %s5 = sld [smem:[#allocation0]]
  $region49: #{_lambda_.19} parent=0
    _
  %s7 = ssub.s32 1, %s5
  %s8 = scalar_select 0, %s7, %s5
  loop: start=0, step=1, limit=4
  $region2: #{_lambda_.19} parent=0 // loop_pre_header
    _
  $region3: #{_lambda_.19} parent=0 // loop_header
    %s10 = sphi 0, %s14
    %p11 = scmp.ge.s32.totalorder %s10, 4
    %s20 = sphi 0, %s22
    %s23 = sphi 0, %s20
    %s24 = sphi 0, %s23
    %s40 = sphi 0, %s24
    %s46 = sphi 0, %s48
    %s49 = sphi 0, %s46
    %s50 = sphi 0, %s49
    %s66 = sphi 0, %s50
    %s70 = sphi 0, %s70
    %s72 = sphi 0, %s70
    %s73 = sphi 0, %s72
    %s87 = sphi 0, %s73
    %s91 = sphi 0, %s91
    %s93 = sphi 0, %s91
    %s94 = sphi 0, %s93
    %s108 = sphi 0, %s94
    %s114 = sphi 0, %s116
    %s117 = sphi 0, %s114
    %s118 = sphi 0, %s117
    %s134 = sphi 0, %s118
  $region4: #{_lambda_.19} parent=0 // loop_header_branch
    %13 = sbr.rel (%p11) target = $region8
  $region5: #{_lambda_.19} parent=0 // loop_body
    %s15 = ssub.s32 %s10, 1
    %s16 = ssub.s32 %s10, 2
    %s17 = sadd.s32 %s10, 1
    %s18 = ssub.s32 %s10, %s17
    %p19 = scmp.eq.s32.totalorder %s18, 0
    %s21 = sadd.s32 %s20, 1
    %s22 = scalar_select %p19, %s20, %s21
    %p25 = pneg %p19
    %p26 = scmp.eq.s32.totalorder %s10, 1
    %p27 = por %p25, %p26
    %p28 = scmp.ne.s32.totalorder %s20, %s23
    %p29 = scmp.eq.s32.totalorder %s10, 0
    %p30 = por %p28, %p29
    %p31 = scmp.ne.s32.totalorder %s20, %s23
    %p32 = scmp.eq.s32.totalorder %s15, 1
    %p33 = por %p31, %p32
    %p34 = scmp.ne.s32.totalorder %s23, %s24
    %p35 = scmp.eq.s32.totalorder %s15, 0
    %p36 = por %p34, %p35
    %p37 = scmp.ne.s32.totalorder %s23, %s24
    %p38 = scmp.eq.s32.totalorder %s16, 1
    %p39 = por %p37, %p38
    %p41 = scmp.ne.s32.totalorder %s24, %s40
    %p42 = scmp.eq.s32.totalorder %s16, 0
    %p43 = por %p41, %p42
    %s44 = ssub.s32 %s10, %s17
    %p45 = scmp.eq.s32.totalorder %s44, 0
    %s47 = sadd.s32 %s46, 1
    %s48 = scalar_select %p45, %s46, %s47
    %p51 = pneg %p45
    %p52 = scmp.eq.s32.totalorder %s10, 1
    %p53 = por %p51, %p52
    %p54 = scmp.ne.s32.totalorder %s46, %s49
    %p55 = scmp.eq.s32.totalorder %s10, 0
    %p56 = por %p54, %p55
    %p57 = scmp.ne.s32.totalorder %s46, %s49
    %p58 = scmp.eq.s32.totalorder %s15, 1
    %p59 = por %p57, %p58
    %p60 = scmp.ne.s32.totalorder %s49, %s50
    %p61 = scmp.eq.s32.totalorder %s15, 0
    %p62 = por %p60, %p61
    %p63 = scmp.ne.s32.totalorder %s49, %s50
    %p64 = scmp.eq.s32.totalorder %s16, 1
    %p65 = por %p63, %p64
    %p67 = scmp.ne.s32.totalorder %s50, %s66
    %p68 = scmp.eq.s32.totalorder %s16, 0
    %p69 = por %p67, %p68
    %s71 = sadd.s32 %s70, 1
    %p74 = scmp.eq.s32.totalorder %s10, 1
    %p75 = scmp.ne.s32.totalorder %s70, %s72
    %p76 = scmp.eq.s32.totalorder %s10, 0
    %p77 = por %p75, %p76
    %p78 = scmp.ne.s32.totalorder %s70, %s72
    %p79 = scmp.eq.s32.totalorder %s15, 1
    %p80 = por %p78, %p79
    %p81 = scmp.ne.s32.totalorder %s72, %s73
    %p82 = scmp.eq.s32.totalorder %s15, 0
    %p83 = por %p81, %p82
    %p84 = scmp.ne.s32.totalorder %s72, %s73
    %p85 = scmp.eq.s32.totalorder %s16, 1
    %p86 = por %p84, %p85
    %p88 = scmp.ne.s32.totalorder %s73, %s87
    %p89 = scmp.eq.s32.totalorder %s16, 0
    %p90 = por %p88, %p89
    %s92 = sadd.s32 %s91, 1
    %p95 = scmp.eq.s32.totalorder %s10, 1
    %p96 = scmp.ne.s32.totalorder %s91, %s93
    %p97 = scmp.eq.s32.totalorder %s10, 0
    %p98 = por %p96, %p97
    %p99 = scmp.ne.s32.totalorder %s91, %s93
    %p100 = scmp.eq.s32.totalorder %s15, 1
    %p101 = por %p99, %p100
    %p102 = scmp.ne.s32.totalorder %s93, %s94
    %p103 = scmp.eq.s32.totalorder %s15, 0
    %p104 = por %p102, %p103
    %p105 = scmp.ne.s32.totalorder %s93, %s94
    %p106 = scmp.eq.s32.totalorder %s16, 1
    %p107 = por %p105, %p106
    %p109 = scmp.ne.s32.totalorder %s94, %s108
    %p110 = scmp.eq.s32.totalorder %s16, 0
    %p111 = por %p109, %p110
    %s112 = ssub.s32 %s10, %s17
    %p113 = scmp.eq.s32.totalorder %s112, 0
    %s115 = sadd.s32 %s114, 1
    %s116 = scalar_select %p113, %s114, %s115
    %p119 = pneg %p113
    %p120 = scmp.eq.s32.totalorder %s10, 1
    %p121 = por %p119, %p120
    %p122 = scmp.ne.s32.totalorder %s114, %s117
    %p123 = scmp.eq.s32.totalorder %s10, 0
    %p124 = por %p122, %p123
    %p125 = scmp.ne.s32.totalorder %s114, %s117
    %p126 = scmp.eq.s32.totalorder %s15, 1
    %p127 = por %p125, %p126
    %p128 = scmp.ne.s32.totalorder %s117, %s118
    %p129 = scmp.eq.s32.totalorder %s15, 0
    %p130 = por %p128, %p129
    %p131 = scmp.ne.s32.totalorder %s117, %s118
    %p132 = scmp.eq.s32.totalorder %s16, 1
    %p133 = por %p131, %p132
    %p135 = scmp.ne.s32.totalorder %s118, %s134
    %p136 = scmp.eq.s32.totalorder %s16, 0
    %p137 = por %p135, %p136
    %p138 = scmp.le.s32.totalorder 1, %s10
    %p139 = scmp.lt.s32.totalorder %s10, 3
    %p140 = pnand %p138, %p139
    %p141 = pneg %p140
    // Predicated region
    $region9: #{_lambda_.19} parent=5 // pred_check
      _
    $region10: #{_lambda_.19} parent=5 // pred_check_branch
      %143 = sbr.rel (%p140) target = $region12
    $region11: #{_lambda_.19} parent=5 // pred_region
      %s144 = ssub.s32 %s10, 1
      // Predicated region
      $region13: #{_lambda_.19} parent=11 // pred_check
        %p145 = pneg %p83
      $region14: #{_lambda_.19} parent=11 // pred_check_branch
        %147 = sbr.rel (%p145) target = $region16
      $region15: #{_lambda_.19} parent=11 // pred_region
        _
      $region16: #{_lambda_.19} parent=11 // pred_fallthru
        _
      // Predicated region
      $region17: #{_lambda_.19} parent=11 // pred_check
        %p148 = pneg %p104
      $region18: #{_lambda_.19} parent=11 // pred_check_branch
        %150 = sbr.rel (%p148) target = $region20
      $region19: #{_lambda_.19} parent=11 // pred_region
        _
      $region20: #{_lambda_.19} parent=11 // pred_fallthru
        _
    $region12: #{_lambda_.19} parent=5 // pred_fallthru
      _
    %p151 = scmp.lt.s32.totalorder %s10, 2
    // Predicated region
    $region21: #{_lambda_.19} parent=5 // pred_check
      %p152 = pneg %p151
    $region22: #{_lambda_.19} parent=5 // pred_check_branch
      %154 = sbr.rel (%p152) target = $region24
    $region23: #{_lambda_.19} parent=5 // pred_region
      // Predicated region
      $region25: #{_lambda_.19} parent=23 // pred_check
        %p155 = pneg %p30
      $region26: #{_lambda_.19} parent=23 // pred_check_branch
        %157 = sbr.rel (%p155) target = $region28
      $region27: #{_lambda_.19} parent=23 // pred_region
        %s158 = smul.u32 32, %s10
        %p159 = scmp.lt.s32.totalorder %s158, 63
        %s160 = scalar_select %p159, %s158, 63
        %s161 = smul.addr %s160, 4
        %s162 = scalar_lea.vmem %s0, %s161
        %s163 = smul.u32 32, %s10
      $region28: #{_lambda_.19} parent=23 // pred_fallthru
        _
      // Predicated region
      $region29: #{_lambda_.19} parent=23 // pred_check
        %p164 = pneg %p56
      $region30: #{_lambda_.19} parent=23 // pred_check_branch
        %166 = sbr.rel (%p164) target = $region32
      $region31: #{_lambda_.19} parent=23 // pred_region
        %s167 = smul.u32 32, %s10
        %p168 = scmp.lt.s32.totalorder %s167, 63
        %s169 = scalar_select %p168, %s167, 63
        %s170 = smul.addr %s169, 4
        %s171 = scalar_lea.vmem %s1, %s170
        %s172 = smul.u32 32, %s10
      $region32: #{_lambda_.19} parent=23 // pred_fallthru
        _
    $region24: #{_lambda_.19} parent=5 // pred_fallthru
      _
    %p173 = scmp.le.s32.totalorder 1, %s10
    %p174 = scmp.lt.s32.totalorder %s10, 3
    %p175 = pnand %p173, %p174
    %p176 = pneg %p175
    // Predicated region
    $region33: #{_lambda_.19} parent=5 // pred_check
      _
    $region34: #{_lambda_.19} parent=5 // pred_check_branch
      %178 = sbr.rel (%p175) target = $region36
    $region35: #{_lambda_.19} parent=5 // pred_region
      %s179 = ssub.s32 %s10, 1
      %s180 = smul.u32 32, %s15
      %p181 = scmp.lt.s32.totalorder %s180, 63
      %s182 = scalar_select %p181, %s180, 63
      %s183 = smul.addr %s182, 4
      %s184 = scalar_lea.vmem %s0, %s183
      %p185 = pneg %p36
      %p186 = pneg %p33
      %s187 = smul.u32 32, %s15
      %p188 = scmp.lt.s32.totalorder %s187, 63
      %s189 = scalar_select %p188, %s187, 63
      %s190 = smul.addr %s189, 4
      %s191 = scalar_lea.vmem %s1, %s190
      %p192 = pneg %p62
      %p193 = pneg %p59
      %p194 = pneg %p83
      %p195 = pneg %p80
      %p196 = pneg %p104
      %p197 = pneg %p101
      %p198 = pneg %p130
      %p199 = pneg %p127
      %s200 = smul.u32 32, %s15
      %p201 = scmp.lt.s32.totalorder %s200, 63
      %s202 = scalar_select %p201, %s200, 63
      %s203 = smul.addr %s202, 4
      %s204 = scalar_lea.vmem %s4, %s203
      %s205 = smul.u32 32, %s15
      %p206 = scmp.lt.s32.totalorder %s205, 63
      %s207 = scalar_select %p206, %s205, 63
      %s208 = smul.addr %s207, 4
      %s209 = scalar_lea.vmem %s0, %s208
      %s210 = smul.u32 32, %s15
      %s211 = smul.u32 32, %s15
      %p212 = scmp.lt.s32.totalorder %s211, 63
      %s213 = scalar_select %p212, %s211, 63
      %s214 = smul.addr %s213, 4
      %s215 = scalar_lea.vmem %s1, %s214
      %s216 = smul.u32 32, %s15
      %s217 = smul.u32 32, %s15
      %p218 = scmp.lt.s32.totalorder %s217, 63
      %s219 = scalar_select %p218, %s217, 63
      %s220 = smul.addr %s219, 4
      %s221 = scalar_lea.vmem %s4, %s220
      %s222 = smul.u32 32, %s15
      %v223 = vld [vmem:[%s209] sm:$0xf]
      %v224 = vld [vmem:[%s209 + $0x4] sm:$0xf]
      %v225 = vld [vmem:[%s209 + $0x8] sm:$0xf]
      %v226 = vld [vmem:[%s209 + $0xc] sm:$0xf]
      %v227 = vld [vmem:[%s209 + $0x10] sm:$0xf]
      %v228 = vld [vmem:[%s209 + $0x14] sm:$0xf]
      %v229 = vld [vmem:[%s209 + $0x18] sm:$0xf]
      %v230 = vld [vmem:[%s209 + $0x1c] sm:$0xf]
      %v231 = vld [vmem:[%s209 + $0x20] sm:$0xf]
      %v232 = vld [vmem:[%s209 + $0x24] sm:$0xf]
      %v233 = vld [vmem:[%s209 + $0x28] sm:$0xf]
      %v234 = vld [vmem:[%s209 + $0x2c] sm:$0xf]
      %v235 = vld [vmem:[%s209 + $0x30] sm:$0xf]
      %v236 = vld [vmem:[%s209 + $0x34] sm:$0xf]
      %v237 = vld [vmem:[%s209 + $0x38] sm:$0xf]
      %v238 = vld [vmem:[%s209 + $0x3c] sm:$0xf]
      %v239 = vld [vmem:[%s209 + $0x40] sm:$0xf]
      %v240 = vld [vmem:[%s209 + $0x44] sm:$0xf]
      %v241 = vld [vmem:[%s209 + $0x48] sm:$0xf]
      %v242 = vld [vmem:[%s209 + $0x4c] sm:$0xf]
      %v243 = vld [vmem:[%s209 + $0x50] sm:$0xf]
      %v244 = vld [vmem:[%s209 + $0x54] sm:$0xf]
      %v245 = vld [vmem:[%s209 + $0x58] sm:$0xf]
      %v246 = vld [vmem:[%s209 + $0x5c] sm:$0xf]
      %v247 = vld [vmem:[%s209 + $0x60] sm:$0xf]
      %v248 = vld [vmem:[%s209 + $0x64] sm:$0xf]
      %v249 = vld [vmem:[%s209 + $0x68] sm:$0xf]
      %v250 = vld [vmem:[%s209 + $0x6c] sm:$0xf]
      %v251 = vld [vmem:[%s209 + $0x70] sm:$0xf]
      %v252 = vld [vmem:[%s209 + $0x74] sm:$0xf]
      %v253 = vld [vmem:[%s209 + $0x78] sm:$0xf]
      %v254 = vld [vmem:[%s209 + $0x7c] sm:$0xf]
      %v255 = vunpack.c.l.bf16 %v223
      %v256 = vunpack.c.l.bf16 %v224
      %v257 = vunpack.c.l.bf16 %v225
      %v258 = vunpack.c.l.bf16 %v226
      %v259 = vunpack.c.l.bf16 %v227
      %v260 = vunpack.c.l.bf16 %v228
      %v261 = vunpack.c.l.bf16 %v229
      %v262 = vunpack.c.l.bf16 %v230
      %v263 = vunpack.c.l.bf16 %v231
      %v264 = vunpack.c.l.bf16 %v232
      %v265 = vunpack.c.l.bf16 %v233
      %v266 = vunpack.c.l.bf16 %v234
      %v267 = vunpack.c.l.bf16 %v235
      %v268 = vunpack.c.l.bf16 %v236
      %v269 = vunpack.c.l.bf16 %v237
      %v270 = vunpack.c.l.bf16 %v238
      %v271 = vunpack.c.l.bf16 %v239
      %v272 = vunpack.c.l.bf16 %v240
      %v273 = vunpack.c.l.bf16 %v241
      %v274 = vunpack.c.l.bf16 %v242
      %v275 = vunpack.c.l.bf16 %v243
      %v276 = vunpack.c.l.bf16 %v244
      %v277 = vunpack.c.l.bf16 %v245
      %v278 = vunpack.c.l.bf16 %v246
      %v279 = vunpack.c.l.bf16 %v247
      %v280 = vunpack.c.l.bf16 %v248
      %v281 = vunpack.c.l.bf16 %v249
      %v282 = vunpack.c.l.bf16 %v250
      %v283 = vunpack.c.l.bf16 %v251
      %v284 = vunpack.c.l.bf16 %v252
      %v285 = vunpack.c.l.bf16 %v253
      %v286 = vunpack.c.l.bf16 %v254
      %v287 = vld [vmem:[%s2] sm:$0x1]
      %v289 = vperm.slane %v287, 0
      %v291 = vmul.f32 %v255, %v289
      %v292 = vmul.f32 %v256, %v289
      %v293 = vmul.f32 %v257, %v289
      %v294 = vmul.f32 %v258, %v289
      %v295 = vmul.f32 %v259, %v289
      %v296 = vmul.f32 %v260, %v289
      %v297 = vmul.f32 %v261, %v289
      %v298 = vmul.f32 %v262, %v289
      %v299 = vmul.f32 %v263, %v289
      %v300 = vmul.f32 %v264, %v289
      %v301 = vmul.f32 %v265, %v289
      %v302 = vmul.f32 %v266, %v289
      %v303 = vmul.f32 %v267, %v289
      %v304 = vmul.f32 %v268, %v289
      %v305 = vmul.f32 %v269, %v289
      %v306 = vmul.f32 %v270, %v289
      %v307 = vmul.f32 %v271, %v289
      %v308 = vmul.f32 %v272, %v289
      %v309 = vmul.f32 %v273, %v289
      %v310 = vmul.f32 %v274, %v289
      %v311 = vmul.f32 %v275, %v289
      %v312 = vmul.f32 %v276, %v289
      %v313 = vmul.f32 %v277, %v289
      %v314 = vmul.f32 %v278, %v289
      %v315 = vmul.f32 %v279, %v289
      %v316 = vmul.f32 %v280, %v289
      %v317 = vmul.f32 %v281, %v289
      %v318 = vmul.f32 %v282, %v289
      %v319 = vmul.f32 %v283, %v289
      %v320 = vmul.f32 %v284, %v289
      %v321 = vmul.f32 %v285, %v289
      %v322 = vmul.f32 %v286, %v289
      %v323 = vld [vmem:[%s3] sm:$0x1]
      %v325 = vperm.slane %v323, 0
      %v327 = vadd.f32 %v291, %v325
      %v328 = vadd.f32 %v292, %v325
      %v329 = vadd.f32 %v293, %v325
      %v330 = vadd.f32 %v294, %v325
      %v331 = vadd.f32 %v295, %v325
      %v332 = vadd.f32 %v296, %v325
      %v333 = vadd.f32 %v297, %v325
      %v334 = vadd.f32 %v298, %v325
      %v335 = vadd.f32 %v299, %v325
      %v336 = vadd.f32 %v300, %v325
      %v337 = vadd.f32 %v301, %v325
      %v338 = vadd.f32 %v302, %v325
      %v339 = vadd.f32 %v303, %v325
      %v340 = vadd.f32 %v304, %v325
      %v341 = vadd.f32 %v305, %v325
      %v342 = vadd.f32 %v306, %v325
      %v343 = vadd.f32 %v307, %v325
      %v344 = vadd.f32 %v308, %v325
      %v345 = vadd.f32 %v309, %v325
      %v346 = vadd.f32 %v310, %v325
      %v347 = vadd.f32 %v311, %v325
      %v348 = vadd.f32 %v312, %v325
      %v349 = vadd.f32 %v313, %v325
      %v350 = vadd.f32 %v314, %v325
      %v351 = vadd.f32 %v315, %v325
      %v352 = vadd.f32 %v316, %v325
      %v353 = vadd.f32 %v317, %v325
      %v354 = vadd.f32 %v318, %v325
      %v355 = vadd.f32 %v319, %v325
      %v356 = vadd.f32 %v320, %v325
      %v357 = vadd.f32 %v321, %v325
      %v358 = vadd.f32 %v322, %v325
      %v359 = vld [vmem:[%s215] sm:$0xf]
      %v360 = vld [vmem:[%s215 + $0x4] sm:$0xf]
      %v361 = vld [vmem:[%s215 + $0x8] sm:$0xf]
      %v362 = vld [vmem:[%s215 + $0xc] sm:$0xf]
      %v363 = vld [vmem:[%s215 + $0x10] sm:$0xf]
      %v364 = vld [vmem:[%s215 + $0x14] sm:$0xf]
      %v365 = vld [vmem:[%s215 + $0x18] sm:$0xf]
      %v366 = vld [vmem:[%s215 + $0x1c] sm:$0xf]
      %v367 = vld [vmem:[%s215 + $0x20] sm:$0xf]
      %v368 = vld [vmem:[%s215 + $0x24] sm:$0xf]
      %v369 = vld [vmem:[%s215 + $0x28] sm:$0xf]
      %v370 = vld [vmem:[%s215 + $0x2c] sm:$0xf]
      %v371 = vld [vmem:[%s215 + $0x30] sm:$0xf]
      %v372 = vld [vmem:[%s215 + $0x34] sm:$0xf]
      %v373 = vld [vmem:[%s215 + $0x38] sm:$0xf]
      %v374 = vld [vmem:[%s215 + $0x3c] sm:$0xf]
      %v375 = vld [vmem:[%s215 + $0x40] sm:$0xf]
      %v376 = vld [vmem:[%s215 + $0x44] sm:$0xf]
      %v377 = vld [vmem:[%s215 + $0x48] sm:$0xf]
      %v378 = vld [vmem:[%s215 + $0x4c] sm:$0xf]
      %v379 = vld [vmem:[%s215 + $0x50] sm:$0xf]
      %v380 = vld [vmem:[%s215 + $0x54] sm:$0xf]
      %v381 = vld [vmem:[%s215 + $0x58] sm:$0xf]
      %v382 = vld [vmem:[%s215 + $0x5c] sm:$0xf]
      %v383 = vld [vmem:[%s215 + $0x60] sm:$0xf]
      %v384 = vld [vmem:[%s215 + $0x64] sm:$0xf]
      %v385 = vld [vmem:[%s215 + $0x68] sm:$0xf]
      %v386 = vld [vmem:[%s215 + $0x6c] sm:$0xf]
      %v387 = vld [vmem:[%s215 + $0x70] sm:$0xf]
      %v388 = vld [vmem:[%s215 + $0x74] sm:$0xf]
      %v389 = vld [vmem:[%s215 + $0x78] sm:$0xf]
      %v390 = vld [vmem:[%s215 + $0x7c] sm:$0xf]
      %v391 = vunpack.c.l.bf16 %v359
      %v392 = vunpack.c.l.bf16 %v360
      %v393 = vunpack.c.l.bf16 %v361
      %v394 = vunpack.c.l.bf16 %v362
      %v395 = vunpack.c.l.bf16 %v363
      %v396 = vunpack.c.l.bf16 %v364
      %v397 = vunpack.c.l.bf16 %v365
      %v398 = vunpack.c.l.bf16 %v366
      %v399 = vunpack.c.l.bf16 %v367
      %v400 = vunpack.c.l.bf16 %v368
      %v401 = vunpack.c.l.bf16 %v369
      %v402 = vunpack.c.l.bf16 %v370
      %v403 = vunpack.c.l.bf16 %v371
      %v404 = vunpack.c.l.bf16 %v372
      %v405 = vunpack.c.l.bf16 %v373
      %v406 = vunpack.c.l.bf16 %v374
      %v407 = vunpack.c.l.bf16 %v375
      %v408 = vunpack.c.l.bf16 %v376
      %v409 = vunpack.c.l.bf16 %v377
      %v410 = vunpack.c.l.bf16 %v378
      %v411 = vunpack.c.l.bf16 %v379
      %v412 = vunpack.c.l.bf16 %v380
      %v413 = vunpack.c.l.bf16 %v381
      %v414 = vunpack.c.l.bf16 %v382
      %v415 = vunpack.c.l.bf16 %v383
      %v416 = vunpack.c.l.bf16 %v384
      %v417 = vunpack.c.l.bf16 %v385
      %v418 = vunpack.c.l.bf16 %v386
      %v419 = vunpack.c.l.bf16 %v387
      %v420 = vunpack.c.l.bf16 %v388
      %v421 = vunpack.c.l.bf16 %v389
      %v422 = vunpack.c.l.bf16 %v390
      %v423 = vadd.f32 %v327, %v391
      %v424 = vadd.f32 %v328, %v392
      %v425 = vadd.f32 %v329, %v393
      %v426 = vadd.f32 %v330, %v394
      %v427 = vadd.f32 %v331, %v395
      %v428 = vadd.f32 %v332, %v396
      %v429 = vadd.f32 %v333, %v397
      %v430 = vadd.f32 %v334, %v398
      %v431 = vadd.f32 %v335, %v399
      %v432 = vadd.f32 %v336, %v400
      %v433 = vadd.f32 %v337, %v401
      %v434 = vadd.f32 %v338, %v402
      %v435 = vadd.f32 %v339, %v403
      %v436 = vadd.f32 %v340, %v404
      %v437 = vadd.f32 %v341, %v405
      %v438 = vadd.f32 %v342, %v406
      %v439 = vadd.f32 %v343, %v407
      %v440 = vadd.f32 %v344, %v408
      %v441 = vadd.f32 %v345, %v409
      %v442 = vadd.f32 %v346, %v410
      %v443 = vadd.f32 %v347, %v411
      %v444 = vadd.f32 %v348, %v412
      %v445 = vadd.f32 %v349, %v413
      %v446 = vadd.f32 %v350, %v414
      %v447 = vadd.f32 %v351, %v415
      %v448 = vadd.f32 %v352, %v416
      %v449 = vadd.f32 %v353, %v417
      %v450 = vadd.f32 %v354, %v418
      %v451 = vadd.f32 %v355, %v419
      %v452 = vadd.f32 %v356, %v420
      %v453 = vadd.f32 %v357, %v421
      %v454 = vadd.f32 %v358, %v422
      %v455 = vmax.f32 %v423, 0.0
      %v456 = vmax.f32 %v424, 0.0
      %v457 = vmax.f32 %v425, 0.0
      %v458 = vmax.f32 %v426, 0.0
      %v459 = vmax.f32 %v427, 0.0
      %v460 = vmax.f32 %v428, 0.0
      %v461 = vmax.f32 %v429, 0.0
      %v462 = vmax.f32 %v430, 0.0
      %v463 = vmax.f32 %v431, 0.0
      %v464 = vmax.f32 %v432, 0.0
      %v465 = vmax.f32 %v433, 0.0
      %v466 = vmax.f32 %v434, 0.0
      %v467 = vmax.f32 %v435, 0.0
      %v468 = vmax.f32 %v436, 0.0
      %v469 = vmax.f32 %v437, 0.0
      %v470 = vmax.f32 %v438, 0.0
      %v471 = vmax.f32 %v439, 0.0
      %v472 = vmax.f32 %v440, 0.0
      %v473 = vmax.f32 %v441, 0.0
      %v474 = vmax.f32 %v442, 0.0
      %v475 = vmax.f32 %v443, 0.0
      %v476 = vmax.f32 %v444, 0.0
      %v477 = vmax.f32 %v445, 0.0
      %v478 = vmax.f32 %v446, 0.0
      %v479 = vmax.f32 %v447, 0.0
      %v480 = vmax.f32 %v448, 0.0
      %v481 = vmax.f32 %v449, 0.0
      %v482 = vmax.f32 %v450, 0.0
      %v483 = vmax.f32 %v451, 0.0
      %v484 = vmax.f32 %v452, 0.0
      %v485 = vmax.f32 %v453, 0.0
      %v486 = vmax.f32 %v454, 0.0
      %v487 = vpack.c.bf16 %v455, %v455
      %v488 = vpack.c.bf16 %v456, %v456
      %v489 = vpack.c.bf16 %v457, %v457
      %v490 = vpack.c.bf16 %v458, %v458
      %v491 = vpack.c.bf16 %v459, %v459
      %v492 = vpack.c.bf16 %v460, %v460
      %v493 = vpack.c.bf16 %v461, %v461
      %v494 = vpack.c.bf16 %v462, %v462
      %v495 = vpack.c.bf16 %v463, %v463
      %v496 = vpack.c.bf16 %v464, %v464
      %v497 = vpack.c.bf16 %v465, %v465
      %v498 = vpack.c.bf16 %v466, %v466
      %v499 = vpack.c.bf16 %v467, %v467
      %v500 = vpack.c.bf16 %v468, %v468
      %v501 = vpack.c.bf16 %v469, %v469
      %v502 = vpack.c.bf16 %v470, %v470
      %v503 = vpack.c.bf16 %v471, %v471
      %v504 = vpack.c.bf16 %v472, %v472
      %v505 = vpack.c.bf16 %v473, %v473
      %v506 = vpack.c.bf16 %v474, %v474
      %v507 = vpack.c.bf16 %v475, %v475
      %v508 = vpack.c.bf16 %v476, %v476
      %v509 = vpack.c.bf16 %v477, %v477
      %v510 = vpack.c.bf16 %v478, %v478
      %v511 = vpack.c.bf16 %v479, %v479
      %v512 = vpack.c.bf16 %v480, %v480
      %v513 = vpack.c.bf16 %v481, %v481
      %v514 = vpack.c.bf16 %v482, %v482
      %v515 = vpack.c.bf16 %v483, %v483
      %v516 = vpack.c.bf16 %v484, %v484
      %v517 = vpack.c.bf16 %v485, %v485
      %v518 = vpack.c.bf16 %v486, %v486
      %519 = vst [vmem:[%s221] sm:$0xf] %v487
      %520 = vst [vmem:[%s221 + $0x4] sm:$0xf] %v488
      %521 = vst [vmem:[%s221 + $0x8] sm:$0xf] %v489
      %522 = vst [vmem:[%s221 + $0xc] sm:$0xf] %v490
      %523 = vst [vmem:[%s221 + $0x10] sm:$0xf] %v491
      %524 = vst [vmem:[%s221 + $0x14] sm:$0xf] %v492
      %525 = vst [vmem:[%s221 + $0x18] sm:$0xf] %v493
      %526 = vst [vmem:[%s221 + $0x1c] sm:$0xf] %v494
      %527 = vst [vmem:[%s221 + $0x20] sm:$0xf] %v495
      %528 = vst [vmem:[%s221 + $0x24] sm:$0xf] %v496
      %529 = vst [vmem:[%s221 + $0x28] sm:$0xf] %v497
      %530 = vst [vmem:[%s221 + $0x2c] sm:$0xf] %v498
      %531 = vst [vmem:[%s221 + $0x30] sm:$0xf] %v499
      %532 = vst [vmem:[%s221 + $0x34] sm:$0xf] %v500
      %533 = vst [vmem:[%s221 + $0x38] sm:$0xf] %v501
      %534 = vst [vmem:[%s221 + $0x3c] sm:$0xf] %v502
      %535 = vst [vmem:[%s221 + $0x40] sm:$0xf] %v503
      %536 = vst [vmem:[%s221 + $0x44] sm:$0xf] %v504
      %537 = vst [vmem:[%s221 + $0x48] sm:$0xf] %v505
      %538 = vst [vmem:[%s221 + $0x4c] sm:$0xf] %v506
      %539 = vst [vmem:[%s221 + $0x50] sm:$0xf] %v507
      %540 = vst [vmem:[%s221 + $0x54] sm:$0xf] %v508
      %541 = vst [vmem:[%s221 + $0x58] sm:$0xf] %v509
      %542 = vst [vmem:[%s221 + $0x5c] sm:$0xf] %v510
      %543 = vst [vmem:[%s221 + $0x60] sm:$0xf] %v511
      %544 = vst [vmem:[%s221 + $0x64] sm:$0xf] %v512
      %545 = vst [vmem:[%s221 + $0x68] sm:$0xf] %v513
      %546 = vst [vmem:[%s221 + $0x6c] sm:$0xf] %v514
      %547 = vst [vmem:[%s221 + $0x70] sm:$0xf] %v515
      %548 = vst [vmem:[%s221 + $0x74] sm:$0xf] %v516
      %549 = vst [vmem:[%s221 + $0x78] sm:$0xf] %v517
      %550 = vst [vmem:[%s221 + $0x7c] sm:$0xf] %v518
      %s551 = smul.u32 32, %s15
      %p552 = scmp.lt.s32.totalorder %s551, 63
      %s553 = scalar_select %p552, %s551, 63
      %s554 = smul.addr %s553, 4
      %s555 = scalar_lea.vmem %s4, %s554
      // Predicated region
      $region37: #{_lambda_.19} parent=35 // pred_check
        %p556 = pneg %p127
      $region38: #{_lambda_.19} parent=35 // pred_check_branch
        %558 = sbr.rel (%p556) target = $region40
      $region39: #{_lambda_.19} parent=35 // pred_region
        %s559 = smul.u32 32, %s15
      $region40: #{_lambda_.19} parent=35 // pred_fallthru
        _
    $region36: #{_lambda_.19} parent=5 // pred_fallthru
      _
    %p560 = scmp.le.s32.totalorder 2, %s10
    // Predicated region
    $region41: #{_lambda_.19} parent=5 // pred_check
      %p561 = pneg %p560
    $region42: #{_lambda_.19} parent=5 // pred_check_branch
      %563 = sbr.rel (%p561) target = $region44
    $region43: #{_lambda_.19} parent=5 // pred_region
      %s564 = ssub.s32 %s10, 2
      // Predicated region
      $region45: #{_lambda_.19} parent=43 // pred_check
        %p565 = pneg %p133
      $region46: #{_lambda_.19} parent=43 // pred_check_branch
        %567 = sbr.rel (%p565) target = $region48
      $region47: #{_lambda_.19} parent=43 // pred_region
        %s568 = smul.u32 32, %s16
        %p569 = scmp.lt.s32.totalorder %s568, 63
        %s570 = scalar_select %p569, %s568, 63
        %s571 = smul.addr %s570, 4
        %s572 = scalar_lea.vmem %s4, %s571
      $region48: #{_lambda_.19} parent=43 // pred_fallthru
        _
    $region44: #{_lambda_.19} parent=5 // pred_fallthru
      _
  $region6: #{_lambda_.19} parent=0 // loop_footer
    %s14 = sadd.s32 1, %s10
  $region7: #{_lambda_.19} parent=0 // loop_footer_branch
    %9 = sbr.rel target = $region3
  $region8: #{_lambda_.19} parent=0 // loop_exit
    _

// kernel: _lambda_.21
$region0: #{_lambda_.21}
  #allocation0 [shape = 'u32[]', space=smem, size = 0x4, offset = 0x4, fixed_abs, tag = 'smem constant byte address 0x4 - core index']
  #allocation1 [shape = 'u32[72,128]{1,0:T(1,128)}', space=vmem, size = 0x9000, scoped, tag = 'internal scratch']
  %s0 = inlined_call_operand.vmem [shape: bf16[128,128], index: 0, kind: input, shape index: {}]
  %s1 = inlined_call_operand.vmem [shape: f32[1,128], index: 1, kind: input, shape index: {}]
  %s2 = inlined_call_operand.vmem [shape: f32[1,128], index: 2, kind: input, shape index: {}]
  %s3 = inlined_call_operand.vmem [shape: bf16[128,128], index: 3, kind: output, shape index: {}]
  %s4 = sld [smem:[#allocation0]]
  $region45: #{_lambda_.21} parent=0
    _
  %s6 = ssub.s32 1, %s4
  %s7 = scalar_select 0, %s6, %s4
  loop: start=0, step=1, limit=4
  $region2: #{_lambda_.21} parent=0 // loop_pre_header
    _
  $region3: #{_lambda_.21} parent=0 // loop_header
    %s9 = sphi 0, %s13
    %p10 = scmp.ge.s32.totalorder %s9, 4
    %s19 = sphi 0, %s21
    %s22 = sphi 0, %s19
    %s23 = sphi 0, %s22
    %s39 = sphi 0, %s23
    %s43 = sphi 0, %s43
    %s45 = sphi 0, %s43
    %s46 = sphi 0, %s45
    %s60 = sphi 0, %s46
    %s64 = sphi 0, %s64
    %s66 = sphi 0, %s64
    %s67 = sphi 0, %s66
    %s81 = sphi 0, %s67
    %s87 = sphi 0, %s89
    %s90 = sphi 0, %s87
    %s91 = sphi 0, %s90
    %s107 = sphi 0, %s91
  $region4: #{_lambda_.21} parent=0 // loop_header_branch
    %12 = sbr.rel (%p10) target = $region8
  $region5: #{_lambda_.21} parent=0 // loop_body
    %s14 = ssub.s32 %s9, 1
    %s15 = ssub.s32 %s9, 2
    %s16 = sadd.s32 %s9, 1
    %s17 = ssub.s32 %s9, %s16
    %p18 = scmp.eq.s32.totalorder %s17, 0
    %s20 = sadd.s32 %s19, 1
    %s21 = scalar_select %p18, %s19, %s20
    %p24 = pneg %p18
    %p25 = scmp.eq.s32.totalorder %s9, 1
    %p26 = por %p24, %p25
    %p27 = scmp.ne.s32.totalorder %s19, %s22
    %p28 = scmp.eq.s32.totalorder %s9, 0
    %p29 = por %p27, %p28
    %p30 = scmp.ne.s32.totalorder %s19, %s22
    %p31 = scmp.eq.s32.totalorder %s14, 1
    %p32 = por %p30, %p31
    %p33 = scmp.ne.s32.totalorder %s22, %s23
    %p34 = scmp.eq.s32.totalorder %s14, 0
    %p35 = por %p33, %p34
    %p36 = scmp.ne.s32.totalorder %s22, %s23
    %p37 = scmp.eq.s32.totalorder %s15, 1
    %p38 = por %p36, %p37
    %p40 = scmp.ne.s32.totalorder %s23, %s39
    %p41 = scmp.eq.s32.totalorder %s15, 0
    %p42 = por %p40, %p41
    %s44 = sadd.s32 %s43, 1
    %p47 = scmp.eq.s32.totalorder %s9, 1
    %p48 = scmp.ne.s32.totalorder %s43, %s45
    %p49 = scmp.eq.s32.totalorder %s9, 0
    %p50 = por %p48, %p49
    %p51 = scmp.ne.s32.totalorder %s43, %s45
    %p52 = scmp.eq.s32.totalorder %s14, 1
    %p53 = por %p51, %p52
    %p54 = scmp.ne.s32.totalorder %s45, %s46
    %p55 = scmp.eq.s32.totalorder %s14, 0
    %p56 = por %p54, %p55
    %p57 = scmp.ne.s32.totalorder %s45, %s46
    %p58 = scmp.eq.s32.totalorder %s15, 1
    %p59 = por %p57, %p58
    %p61 = scmp.ne.s32.totalorder %s46, %s60
    %p62 = scmp.eq.s32.totalorder %s15, 0
    %p63 = por %p61, %p62
    %s65 = sadd.s32 %s64, 1
    %p68 = scmp.eq.s32.totalorder %s9, 1
    %p69 = scmp.ne.s32.totalorder %s64, %s66
    %p70 = scmp.eq.s32.totalorder %s9, 0
    %p71 = por %p69, %p70
    %p72 = scmp.ne.s32.totalorder %s64, %s66
    %p73 = scmp.eq.s32.totalorder %s14, 1
    %p74 = por %p72, %p73
    %p75 = scmp.ne.s32.totalorder %s66, %s67
    %p76 = scmp.eq.s32.totalorder %s14, 0
    %p77 = por %p75, %p76
    %p78 = scmp.ne.s32.totalorder %s66, %s67
    %p79 = scmp.eq.s32.totalorder %s15, 1
    %p80 = por %p78, %p79
    %p82 = scmp.ne.s32.totalorder %s67, %s81
    %p83 = scmp.eq.s32.totalorder %s15, 0
    %p84 = por %p82, %p83
    %s85 = ssub.s32 %s9, %s16
    %p86 = scmp.eq.s32.totalorder %s85, 0
    %s88 = sadd.s32 %s87, 1
    %s89 = scalar_select %p86, %s87, %s88
    %p92 = pneg %p86
    %p93 = scmp.eq.s32.totalorder %s9, 1
    %p94 = por %p92, %p93
    %p95 = scmp.ne.s32.totalorder %s87, %s90
    %p96 = scmp.eq.s32.totalorder %s9, 0
    %p97 = por %p95, %p96
    %p98 = scmp.ne.s32.totalorder %s87, %s90
    %p99 = scmp.eq.s32.totalorder %s14, 1
    %p100 = por %p98, %p99
    %p101 = scmp.ne.s32.totalorder %s90, %s91
    %p102 = scmp.eq.s32.totalorder %s14, 0
    %p103 = por %p101, %p102
    %p104 = scmp.ne.s32.totalorder %s90, %s91
    %p105 = scmp.eq.s32.totalorder %s15, 1
    %p106 = por %p104, %p105
    %p108 = scmp.ne.s32.totalorder %s91, %s107
    %p109 = scmp.eq.s32.totalorder %s15, 0
    %p110 = por %p108, %p109
    %p111 = scmp.le.s32.totalorder 1, %s9
    %p112 = scmp.lt.s32.totalorder %s9, 3
    %p113 = pnand %p111, %p112
    %p114 = pneg %p113
    // Predicated region
    $region9: #{_lambda_.21} parent=5 // pred_check
      _
    $region10: #{_lambda_.21} parent=5 // pred_check_branch
      %116 = sbr.rel (%p113) target = $region12
    $region11: #{_lambda_.21} parent=5 // pred_region
      %s117 = ssub.s32 %s9, 1
      // Predicated region
      $region13: #{_lambda_.21} parent=11 // pred_check
        %p118 = pneg %p56
      $region14: #{_lambda_.21} parent=11 // pred_check_branch
        %120 = sbr.rel (%p118) target = $region16
      $region15: #{_lambda_.21} parent=11 // pred_region
        _
      $region16: #{_lambda_.21} parent=11 // pred_fallthru
        _
      // Predicated region
      $region17: #{_lambda_.21} parent=11 // pred_check
        %p121 = pneg %p77
      $region18: #{_lambda_.21} parent=11 // pred_check_branch
        %123 = sbr.rel (%p121) target = $region20
      $region19: #{_lambda_.21} parent=11 // pred_region
        _
      $region20: #{_lambda_.21} parent=11 // pred_fallthru
        _
    $region12: #{_lambda_.21} parent=5 // pred_fallthru
      _
    %p124 = scmp.lt.s32.totalorder %s9, 2
    // Predicated region
    $region21: #{_lambda_.21} parent=5 // pred_check
      %p125 = pneg %p124
    $region22: #{_lambda_.21} parent=5 // pred_check_branch
      %127 = sbr.rel (%p125) target = $region24
    $region23: #{_lambda_.21} parent=5 // pred_region
      // Predicated region
      $region25: #{_lambda_.21} parent=23 // pred_check
        %p128 = pneg %p29
      $region26: #{_lambda_.21} parent=23 // pred_check_branch
        %130 = sbr.rel (%p128) target = $region28
      $region27: #{_lambda_.21} parent=23 // pred_region
        %s131 = smul.u32 8, %s9
        %p132 = scmp.lt.s32.totalorder %s131, 15
        %s133 = scalar_select %p132, %s131, 15
        %s134 = smul.addr %s133, 4
        %s135 = scalar_lea.vmem %s0, %s134
        %s136 = smul.u32 8, %s9
      $region28: #{_lambda_.21} parent=23 // pred_fallthru
        _
    $region24: #{_lambda_.21} parent=5 // pred_fallthru
      _
    %p137 = scmp.le.s32.totalorder 1, %s9
    %p138 = scmp.lt.s32.totalorder %s9, 3
    %p139 = pnand %p137, %p138
    %p140 = pneg %p139
    // Predicated region
    $region29: #{_lambda_.21} parent=5 // pred_check
      _
    $region30: #{_lambda_.21} parent=5 // pred_check_branch
      %142 = sbr.rel (%p139) target = $region32
    $region31: #{_lambda_.21} parent=5 // pred_region
      %s143 = ssub.s32 %s9, 1
      %s144 = smul.u32 8, %s14
      %p145 = scmp.lt.s32.totalorder %s144, 15
      %s146 = scalar_select %p145, %s144, 15
      %s147 = smul.addr %s146, 4
      %s148 = scalar_lea.vmem %s0, %s147
      %p149 = pneg %p35
      %p150 = pneg %p32
      %p151 = pneg %p56
      %p152 = pneg %p53
      %p153 = pneg %p77
      %p154 = pneg %p74
      %p155 = pneg %p103
      %p156 = pneg %p100
      %s157 = smul.u32 8, %s14
      %p158 = scmp.lt.s32.totalorder %s157, 15
      %s159 = scalar_select %p158, %s157, 15
      %s160 = smul.addr %s159, 4
      %s161 = scalar_lea.vmem %s3, %s160
      %s162 = smul.u32 8, %s14
      %p163 = scmp.lt.s32.totalorder %s162, 15
      %s164 = scalar_select %p163, %s162, 15
      %s165 = smul.addr %s164, 4
      %s166 = scalar_lea.vmem %s0, %s165
      %s167 = smul.u32 8, %s14
      %s168 = smul.u32 8, %s14
      %p169 = scmp.lt.s32.totalorder %s168, 15
      %s170 = scalar_select %p169, %s168, 15
      %s171 = smul.addr %s170, 4
      %s172 = scalar_lea.vmem %s3, %s171
      %s173 = smul.u32 8, %s14
      %v174 = vld [vmem:[%s166] sm:$0xf]
      %v175 = vld [vmem:[%s166 + $0x4] sm:$0xf]
      %v176 = vld [vmem:[%s166 + $0x8] sm:$0xf]
      %v177 = vld [vmem:[%s166 + $0xc] sm:$0xf]
      %v178 = vld [vmem:[%s166 + $0x10] sm:$0xf]
      %v179 = vld [vmem:[%s166 + $0x14] sm:$0xf]
      %v180 = vld [vmem:[%s166 + $0x18] sm:$0xf]
      %v181 = vld [vmem:[%s166 + $0x1c] sm:$0xf]
      %v182 = vunpack.c.l.bf16 %v174
      %v183 = vunpack.c.l.bf16 %v175
      %v184 = vunpack.c.l.bf16 %v176
      %v185 = vunpack.c.l.bf16 %v177
      %v186 = vunpack.c.l.bf16 %v178
      %v187 = vunpack.c.l.bf16 %v179
      %v188 = vunpack.c.l.bf16 %v180
      %v189 = vunpack.c.l.bf16 %v181
      %v190 = vld [vmem:[%s1] sm:$0x1]
      %v192 = vperm.slane %v190, 0
      %v194 = vmul.f32 %v182, %v192
      %v195 = vmul.f32 %v183, %v192
      %v196 = vmul.f32 %v184, %v192
      %v197 = vmul.f32 %v185, %v192
      %v198 = vmul.f32 %v186, %v192
      %v199 = vmul.f32 %v187, %v192
      %v200 = vmul.f32 %v188, %v192
      %v201 = vmul.f32 %v189, %v192
      %v202 = vld [vmem:[%s2] sm:$0x1]
      %v204 = vperm.slane %v202, 0
      %v206 = vadd.f32 %v194, %v204
      %v207 = vadd.f32 %v195, %v204
      %v208 = vadd.f32 %v196, %v204
      %v209 = vadd.f32 %v197, %v204
      %v210 = vadd.f32 %v198, %v204
      %v211 = vadd.f32 %v199, %v204
      %v212 = vadd.f32 %v200, %v204
      %v213 = vadd.f32 %v201, %v204
      %v214 = vmax.f32 %v206, 0.0
      %v215 = vmax.f32 %v207, 0.0
      %v216 = vmax.f32 %v208, 0.0
      %v217 = vmax.f32 %v209, 0.0
      %v218 = vmax.f32 %v210, 0.0
      %v219 = vmax.f32 %v211, 0.0
      %v220 = vmax.f32 %v212, 0.0
      %v221 = vmax.f32 %v213, 0.0
      %v222 = vpack.c.bf16 %v214, %v214
      %v223 = vpack.c.bf16 %v215, %v215
      %v224 = vpack.c.bf16 %v216, %v216
      %v225 = vpack.c.bf16 %v217, %v217
      %v226 = vpack.c.bf16 %v218, %v218
      %v227 = vpack.c.bf16 %v219, %v219
      %v228 = vpack.c.bf16 %v220, %v220
      %v229 = vpack.c.bf16 %v221, %v221
      %230 = vst [vmem:[%s172] sm:$0xf] %v222
      %231 = vst [vmem:[%s172 + $0x4] sm:$0xf] %v223
      %232 = vst [vmem:[%s172 + $0x8] sm:$0xf] %v224
      %233 = vst [vmem:[%s172 + $0xc] sm:$0xf] %v225
      %234 = vst [vmem:[%s172 + $0x10] sm:$0xf] %v226
      %235 = vst [vmem:[%s172 + $0x14] sm:$0xf] %v227
      %236 = vst [vmem:[%s172 + $0x18] sm:$0xf] %v228
      %237 = vst [vmem:[%s172 + $0x1c] sm:$0xf] %v229
      %s238 = smul.u32 8, %s14
      %p239 = scmp.lt.s32.totalorder %s238, 15
      %s240 = scalar_select %p239, %s238, 15
      %s241 = smul.addr %s240, 4
      %s242 = scalar_lea.vmem %s3, %s241
      // Predicated region
      $region33: #{_lambda_.21} parent=31 // pred_check
        %p243 = pneg %p100
      $region34: #{_lambda_.21} parent=31 // pred_check_branch
        %245 = sbr.rel (%p243) target = $region36
      $region35: #{_lambda_.21} parent=31 // pred_region
        %s246 = smul.u32 8, %s14
      $region36: #{_lambda_.21} parent=31 // pred_fallthru
        _
    $region32: #{_lambda_.21} parent=5 // pred_fallthru
      _
    %p247 = scmp.le.s32.totalorder 2, %s9
    // Predicated region
    $region37: #{_lambda_.21} parent=5 // pred_check
      %p248 = pneg %p247
    $region38: #{_lambda_.21} parent=5 // pred_check_branch
      %250 = sbr.rel (%p248) target = $region40
    $region39: #{_lambda_.21} parent=5 // pred_region
      %s251 = ssub.s32 %s9, 2
      // Predicated region
      $region41: #{_lambda_.21} parent=39 // pred_check
        %p252 = pneg %p106
      $region42: #{_lambda_.21} parent=39 // pred_check_branch
        %254 = sbr.rel (%p252) target = $region44
      $region43: #{_lambda_.21} parent=39 // pred_region
        %s255 = smul.u32 8, %s15
        %p256 = scmp.lt.s32.totalorder %s255, 15
        %s257 = scalar_select %p256, %s255, 15
        %s258 = smul.addr %s257, 4
        %s259 = scalar_lea.vmem %s3, %s258
      $region44: #{_lambda_.21} parent=39 // pred_fallthru
        _
    $region40: #{_lambda_.21} parent=5 // pred_fallthru
      _
  $region6: #{_lambda_.21} parent=0 // loop_footer
    %s13 = sadd.s32 1, %s9
  $region7: #{_lambda_.21} parent=0 // loop_footer_branch
    %8 = sbr.rel target = $region3
  $region8: #{_lambda_.21} parent=0 // loop_exit
    _

// kernel: _lambda_.20
$region0: #{_lambda_.20}
  #allocation0 [shape = 'u32[]', space=smem, size = 0x4, offset = 0x4, fixed_abs, tag = 'smem constant byte address 0x4 - core index']
  #allocation1 [shape = 'u32[72,128]{1,0:T(1,128)}', space=vmem, size = 0x9000, scoped, tag = 'internal scratch']
  %s0 = inlined_call_operand.vmem [shape: bf16[128,1152], index: 0, kind: input, shape index: {}]
  %s1 = inlined_call_operand.vmem [shape: bf16[1152,128], index: 1, kind: input, shape index: {}]
  %s2 = inlined_call_operand.vmem [shape: bf16[128,128], index: 2, kind: output, shape index: {0}]
  %s3 = inlined_call_operand.vmem [shape: f32[16,128], index: 3, kind: output, shape index: {1}]
  %4 = xla_tuple %s2, %s3
  %s5 = sld [smem:[#allocation0]]
  $region49: #{_lambda_.20} parent=0
    _
  %s7 = ssub.s32 1, %s5
  %s8 = scalar_select 0, %s7, %s5
  loop: start=0, step=1, limit=4
  $region2: #{_lambda_.20} parent=0 // loop_pre_header
    _
  $region3: #{_lambda_.20} parent=0 // loop_header
    %s10 = sphi 0, %s14
    %p11 = scmp.ge.s32.totalorder %s10, 4
    %s17 = sphi 0, %s29
    %s18 = sphi 0, %s25
    %s19 = sphi 0, %s17
    %s20 = sphi 0, %s18
    %s21 = sphi 0, %s19
    %s22 = sphi 0, %s20
    %s32 = sphi 0, %s34
    %s35 = sphi 0, %s32
    %s36 = sphi 0, %s35
    %s52 = sphi 0, %s36
    %s58 = sphi 0, %s60
    %s61 = sphi 0, %s58
    %s62 = sphi 0, %s61
    %s78 = sphi 0, %s62
    %s86 = sphi 0, %s88
    %s89 = sphi 0, %s86
    %s90 = sphi 0, %s89
    %s106 = sphi 0, %s90
    %s114 = sphi 0, %s116
    %s117 = sphi 0, %s114
    %s118 = sphi 0, %s117
    %s134 = sphi 0, %s118
  $region4: #{_lambda_.20} parent=0 // loop_header_branch
    %13 = sbr.rel (%p11) target = $region8
  $region5: #{_lambda_.20} parent=0 // loop_body
    %s15 = ssub.s32 %s10, 1
    %s16 = ssub.s32 %s10, 2
    %s23 = sadd.s32 1, %s18
    %p24 = scmp.ge.s32.totalorder %s23, 1
    %s25 = scalar_select %p24, 0, %s23
    %s26 = sadd.s32 1, %s17
    %s27 = scalar_select %p24, %s26, %s17
    %p28 = scmp.ge.s32.totalorder %s27, 2
    %s29 = scalar_select %p28, 0, %s27
    %s30 = ssub.s32 %s17, %s29
    %p31 = scmp.eq.s32.totalorder %s30, 0
    %s33 = sadd.s32 %s32, 1
    %s34 = scalar_select %p31, %s32, %s33
    %p37 = pneg %p31
    %p38 = scmp.eq.s32.totalorder %s10, 1
    %p39 = por %p37, %p38
    %p40 = scmp.ne.s32.totalorder %s32, %s35
    %p41 = scmp.eq.s32.totalorder %s10, 0
    %p42 = por %p40, %p41
    %p43 = scmp.ne.s32.totalorder %s32, %s35
    %p44 = scmp.eq.s32.totalorder %s15, 1
    %p45 = por %p43, %p44
    %p46 = scmp.ne.s32.totalorder %s35, %s36
    %p47 = scmp.eq.s32.totalorder %s15, 0
    %p48 = por %p46, %p47
    %p49 = scmp.ne.s32.totalorder %s35, %s36
    %p50 = scmp.eq.s32.totalorder %s16, 1
    %p51 = por %p49, %p50
    %p53 = scmp.ne.s32.totalorder %s36, %s52
    %p54 = scmp.eq.s32.totalorder %s16, 0
    %p55 = por %p53, %p54
    %s56 = ssub.s32 %s18, %s25
    %p57 = scmp.eq.s32.totalorder %s56, 0
    %s59 = sadd.s32 %s58, 1
    %s60 = scalar_select %p57, %s58, %s59
    %p63 = pneg %p57
    %p64 = scmp.eq.s32.totalorder %s10, 1
    %p65 = por %p63, %p64
    %p66 = scmp.ne.s32.totalorder %s58, %s61
    %p67 = scmp.eq.s32.totalorder %s10, 0
    %p68 = por %p66, %p67
    %p69 = scmp.ne.s32.totalorder %s58, %s61
    %p70 = scmp.eq.s32.totalorder %s15, 1
    %p71 = por %p69, %p70
    %p72 = scmp.ne.s32.totalorder %s61, %s62
    %p73 = scmp.eq.s32.totalorder %s15, 0
    %p74 = por %p72, %p73
    %p75 = scmp.ne.s32.totalorder %s61, %s62
    %p76 = scmp.eq.s32.totalorder %s16, 1
    %p77 = por %p75, %p76
    %p79 = scmp.ne.s32.totalorder %s62, %s78
    %p80 = scmp.eq.s32.totalorder %s16, 0
    %p81 = por %p79, %p80
    %s82 = ssub.s32 %s17, %s29
    %s83 = ssub.s32 %s18, %s25
    %s84 = sor.u32 %s82, %s83
    %p85 = scmp.eq.s32.totalorder %s84, 0
    %s87 = sadd.s32 %s86, 1
    %s88 = scalar_select %p85, %s86, %s87
    %p91 = pneg %p85
    %p92 = scmp.eq.s32.totalorder %s10, 1
    %p93 = por %p91, %p92
    %p94 = scmp.ne.s32.totalorder %s86, %s89
    %p95 = scmp.eq.s32.totalorder %s10, 0
    %p96 = por %p94, %p95
    %p97 = scmp.ne.s32.totalorder %s86, %s89
    %p98 = scmp.eq.s32.totalorder %s15, 1
    %p99 = por %p97, %p98
    %p100 = scmp.ne.s32.totalorder %s89, %s90
    %p101 = scmp.eq.s32.totalorder %s15, 0
    %p102 = por %p100, %p101
    %p103 = scmp.ne.s32.totalorder %s89, %s90
    %p104 = scmp.eq.s32.totalorder %s16, 1
    %p105 = por %p103, %p104
    %p107 = scmp.ne.s32.totalorder %s90, %s106
    %p108 = scmp.eq.s32.totalorder %s16, 0
    %p109 = por %p107, %p108
    %s110 = ssub.s32 %s17, %s29
    %s111 = ssub.s32 %s18, %s25
    %s112 = sor.u32 %s110, %s111
    %p113 = scmp.eq.s32.totalorder %s112, 0
    %s115 = sadd.s32 %s114, 1
    %s116 = scalar_select %p113, %s114, %s115
    %p119 = pneg %p113
    %p120 = scmp.eq.s32.totalorder %s10, 1
    %p121 = por %p119, %p120
    %p122 = scmp.ne.s32.totalorder %s114, %s117
    %p123 = scmp.eq.s32.totalorder %s10, 0
    %p124 = por %p122, %p123
    %p125 = scmp.ne.s32.totalorder %s114, %s117
    %p126 = scmp.eq.s32.totalorder %s15, 1
    %p127 = por %p125, %p126
    %p128 = scmp.ne.s32.totalorder %s117, %s118
    %p129 = scmp.eq.s32.totalorder %s15, 0
    %p130 = por %p128, %p129
    %p131 = scmp.ne.s32.totalorder %s117, %s118
    %p132 = scmp.eq.s32.totalorder %s16, 1
    %p133 = por %p131, %p132
    %p135 = scmp.ne.s32.totalorder %s118, %s134
    %p136 = scmp.eq.s32.totalorder %s16, 0
    %p137 = por %p135, %p136
    %p138 = scmp.le.s32.totalorder 1, %s10
    %p139 = scmp.lt.s32.totalorder %s10, 3
    %p140 = pnand %p138, %p139
    %p141 = pneg %p140
    // Predicated region
    $region9: #{_lambda_.20} parent=5 // pred_check
      _
    $region10: #{_lambda_.20} parent=5 // pred_check_branch
      %143 = sbr.rel (%p140) target = $region12
    $region11: #{_lambda_.20} parent=5 // pred_region
      %s144 = ssub.s32 %s10, 1
      // Predicated region
      $region13: #{_lambda_.20} parent=11 // pred_check
        %p145 = pneg %p74
      $region14: #{_lambda_.20} parent=11 // pred_check_branch
        %147 = sbr.rel (%p145) target = $region16
      $region15: #{_lambda_.20} parent=11 // pred_region
        %p148 = scmp.lt.s32.totalorder %s20, 0
        %s149 = scalar_select %p148, %s20, 0
        %s150 = smul.addr %s149, 4
        %s151 = scalar_lea.vmem %s1, %s150
      $region16: #{_lambda_.20} parent=11 // pred_fallthru
        _
    $region12: #{_lambda_.20} parent=5 // pred_fallthru
      _
    %p152 = scmp.lt.s32.totalorder %s10, 2
    // Predicated region
    $region17: #{_lambda_.20} parent=5 // pred_check
      %p153 = pneg %p152
    $region18: #{_lambda_.20} parent=5 // pred_check_branch
      %155 = sbr.rel (%p153) target = $region20
    $region19: #{_lambda_.20} parent=5 // pred_region
      // Predicated region
      $region21: #{_lambda_.20} parent=19 // pred_check
        %p156 = pneg %p42
      $region22: #{_lambda_.20} parent=19 // pred_check_branch
        %158 = sbr.rel (%p156) target = $region24
      $region23: #{_lambda_.20} parent=19 // pred_region
        %s159 = smul.u32 8, %s17
        %p160 = scmp.lt.s32.totalorder %s159, 15
        %s161 = scalar_select %p160, %s159, 15
        %s162 = smul.addr %s161, 9
        %s163 = smul.addr %s162, 4
        %s164 = scalar_lea.vmem %s0, %s163
        %s165 = smul.u32 8, %s17
      $region24: #{_lambda_.20} parent=19 // pred_fallthru
        _
    $region20: #{_lambda_.20} parent=5 // pred_fallthru
      _
    %p166 = scmp.le.s32.totalorder 1, %s10
    %p167 = scmp.lt.s32.totalorder %s10, 3
    %p168 = pnand %p166, %p167
    %p169 = pneg %p168
    // Predicated region
    $region25: #{_lambda_.20} parent=5 // pred_check
      _
    $region26: #{_lambda_.20} parent=5 // pred_check_branch
      %171 = sbr.rel (%p168) target = $region28
    $region27: #{_lambda_.20} parent=5 // pred_region
      %s172 = ssub.s32 %s10, 1
      %s173 = smul.u32 8, %s19
      %p174 = scmp.lt.s32.totalorder %s173, 15
      %s175 = scalar_select %p174, %s173, 15
      %s176 = smul.addr %s175, 9
      %s177 = smul.addr %s176, 4
      %s178 = scalar_lea.vmem %s0, %s177
      %p179 = pneg %p48
      %p180 = pneg %p45
      %p181 = scmp.lt.s32.totalorder %s20, 0
      %s182 = scalar_select %p181, %s20, 0
      %s183 = smul.addr %s182, 4
      %s184 = scalar_lea.vmem %s1, %s183
      %p185 = pneg %p74
      %p186 = pneg %p71
      %p187 = pneg %p102
      %p188 = pneg %p99
      %s189 = smul.u32 8, %s19
      %p190 = scmp.lt.s32.totalorder %s189, 15
      %s191 = scalar_select %p190, %s189, 15
      %p192 = scmp.lt.s32.totalorder %s20, 0
      %s193 = scalar_select %p192, %s20, 0
      %s194 = sadd.s32 %s193, %s191
      %s195 = smul.addr %s194, 4
      %s196 = scalar_lea.vmem %s2, %s195
      %p197 = pneg %p130
      %p198 = pneg %p127
      %p199 = scmp.lt.s32.totalorder %s19, 1
      %s200 = scalar_select %p199, %s19, 1
      %p201 = scmp.lt.s32.totalorder %s20, 0
      %s202 = scalar_select %p201, %s20, 0
      %s203 = sadd.s32 %s202, %s200
      %s204 = smul.addr %s203, 8
      %s205 = scalar_lea.vmem %s3, %s204
      %s206 = smul.u32 8, %s19
      %p207 = scmp.lt.s32.totalorder %s206, 15
      %s208 = scalar_select %p207, %s206, 15
      %s209 = smul.addr %s208, 9
      %s210 = smul.addr %s209, 4
      %s211 = scalar_lea.vmem %s0, %s210
      %s212 = smul.u32 8, %s19
      %p213 = scmp.lt.s32.totalorder %s20, 0
      %s214 = scalar_select %p213, %s20, 0
      %s215 = smul.addr %s214, 4
      %s216 = scalar_lea.vmem %s1, %s215
      %s217 = smul.u32 8, %s19
      %p218 = scmp.lt.s32.totalorder %s217, 15
      %s219 = scalar_select %p218, %s217, 15
      %p220 = scmp.lt.s32.totalorder %s20, 0
      %s221 = scalar_select %p220, %s20, 0
      %s222 = sadd.s32 %s221, %s219
      %s223 = smul.addr %s222, 4
      %s224 = scalar_lea.vmem %s2, %s223
      %s225 = smul.u32 8, %s19
      %p226 = scmp.lt.s32.totalorder %s19, 1
      %s227 = scalar_select %p226, %s19, 1
      %p228 = scmp.lt.s32.totalorder %s20, 0
      %s229 = scalar_select %p228, %s20, 0
      %s230 = sadd.s32 %s229, %s227
      %s231 = smul.addr %s230, 8
      %s232 = scalar_lea.vmem %s3, %s231
      %v233 = vld [vmem:[%s211] sm:$0xff]
      %v234 = vld [vmem:[%s211 + $0x8] sm:$0xff]
      %v235 = vld [vmem:[%s211 + $0x10] sm:$0xff]
      %v236 = vld [vmem:[%s211 + $0x18] sm:$0xff]
      %v237 = vld [vmem:[%s211 + $0x20] sm:$0xf]
      %v238 = vld [vmem:[%s211 + $0x24] sm:$0xff]
      %v239 = vld [vmem:[%s211 + $0x2c] sm:$0xff]
      %v240 = vld [vmem:[%s211 + $0x34] sm:$0xff]
      %v241 = vld [vmem:[%s211 + $0x3c] sm:$0xff]
      %v242 = vld [vmem:[%s211 + $0x44] sm:$0xf]
      %v243 = vld [vmem:[%s211 + $0x48] sm:$0xff]
      %v244 = vld [vmem:[%s211 + $0x50] sm:$0xff]
      %v245 = vld [vmem:[%s211 + $0x58] sm:$0xff]
      %v246 = vld [vmem:[%s211 + $0x60] sm:$0xff]
      %v247 = vld [vmem:[%s211 + $0x68] sm:$0xf]
      %v248 = vld [vmem:[%s211 + $0x6c] sm:$0xff]
      %v249 = vld [vmem:[%s211 + $0x74] sm:$0xff]
      %v250 = vld [vmem:[%s211 + $0x7c] sm:$0xff]
      %v251 = vld [vmem:[%s211 + $0x84] sm:$0xff]
      %v252 = vld [vmem:[%s211 + $0x8c] sm:$0xf]
      %v253 = vld [vmem:[%s211 + $0x90] sm:$0xff]
      %v254 = vld [vmem:[%s211 + $0x98] sm:$0xff]
      %v255 = vld [vmem:[%s211 + $0xa0] sm:$0xff]
      %v256 = vld [vmem:[%s211 + $0xa8] sm:$0xff]
      %v257 = vld [vmem:[%s211 + $0xb0] sm:$0xf]
      %v258 = vld [vmem:[%s211 + $0xb4] sm:$0xff]
      %v259 = vld [vmem:[%s211 + $0xbc] sm:$0xff]
      %v260 = vld [vmem:[%s211 + $0xc4] sm:$0xff]
      %v261 = vld [vmem:[%s211 + $0xcc] sm:$0xff]
      %v262 = vld [vmem:[%s211 + $0xd4] sm:$0xf]
      %v263 = vld [vmem:[%s211 + $0xd8] sm:$0xff]
      %v264 = vld [vmem:[%s211 + $0xe0] sm:$0xff]
      %v265 = vld [vmem:[%s211 + $0xe8] sm:$0xff]
      %v266 = vld [vmem:[%s211 + $0xf0] sm:$0xff]
      %v267 = vld [vmem:[%s211 + $0xf8] sm:$0xf]
      %v268 = vld [vmem:[%s211 + $0xfc] sm:$0xff]
      %v269 = vld [vmem:[%s211 + $0x104] sm:$0xff]
      %v270 = vld [vmem:[%s211 + $0x10c] sm:$0xff]
      %v271 = vld [vmem:[%s211 + $0x114] sm:$0xff]
      %v272 = vld [vmem:[%s211 + $0x11c] sm:$0xf]
      %v273 = vld [vmem:[%s216] sm:$0xf]
      %v274 = vld [vmem:[%s216 + $0x4] sm:$0xf]
      %v275 = vld [vmem:[%s216 + $0x8] sm:$0xf]
      %v276 = vld [vmem:[%s216 + $0xc] sm:$0xf]
      %v277 = vld [vmem:[%s216 + $0x10] sm:$0xf]
      %v278 = vld [vmem:[%s216 + $0x14] sm:$0xf]
      %v279 = vld [vmem:[%s216 + $0x18] sm:$0xf]
      %v280 = vld [vmem:[%s216 + $0x1c] sm:$0xf]
      %v281 = vld [vmem:[%s216 + $0x20] sm:$0xf]
      %v282 = vld [vmem:[%s216 + $0x24] sm:$0xf]
      %v283 = vld [vmem:[%s216 + $0x28] sm:$0xf]
      %v284 = vld [vmem:[%s216 + $0x2c] sm:$0xf]
      %v285 = vld [vmem:[%s216 + $0x30] sm:$0xf]
      %v286 = vld [vmem:[%s216 + $0x34] sm:$0xf]
      %v287 = vld [vmem:[%s216 + $0x38] sm:$0xf]
      %v288 = vld [vmem:[%s216 + $0x3c] sm:$0xf]
      %v289 = vld [vmem:[%s216 + $0x40] sm:$0xf]
      %v290 = vld [vmem:[%s216 + $0x44] sm:$0xf]
      %v291 = vld [vmem:[%s216 + $0x48] sm:$0xf]
      %v292 = vld [vmem:[%s216 + $0x4c] sm:$0xf]
      %v293 = vld [vmem:[%s216 + $0x50] sm:$0xf]
      %v294 = vld [vmem:[%s216 + $0x54] sm:$0xf]
      %v295 = vld [vmem:[%s216 + $0x58] sm:$0xf]
      %v296 = vld [vmem:[%s216 + $0x5c] sm:$0xf]
      %v297 = vld [vmem:[%s216 + $0x60] sm:$0xf]
      %v298 = vld [vmem:[%s216 + $0x64] sm:$0xf]
      %v299 = vld [vmem:[%s216 + $0x68] sm:$0xf]
      %v300 = vld [vmem:[%s216 + $0x6c] sm:$0xf]
      %v301 = vld [vmem:[%s216 + $0x70] sm:$0xf]
      %v302 = vld [vmem:[%s216 + $0x74] sm:$0xf]
      %v303 = vld [vmem:[%s216 + $0x78] sm:$0xf]
      %v304 = vld [vmem:[%s216 + $0x7c] sm:$0xf]
      %v305 = vld [vmem:[%s216 + $0x80] sm:$0xf]
      %v306 = vld [vmem:[%s216 + $0x84] sm:$0xf]
      %v307 = vld [vmem:[%s216 + $0x88] sm:$0xf]
      %v308 = vld [vmem:[%s216 + $0x8c] sm:$0xf]
      %v309 = vld [vmem:[%s216 + $0x90] sm:$0xf]
      %v310 = vld [vmem:[%s216 + $0x94] sm:$0xf]
      %v311 = vld [vmem:[%s216 + $0x98] sm:$0xf]
      %v312 = vld [vmem:[%s216 + $0x9c] sm:$0xf]
      %v313 = vld [vmem:[%s216 + $0xa0] sm:$0xf]
      %v314 = vld [vmem:[%s216 + $0xa4] sm:$0xf]
      %v315 = vld [vmem:[%s216 + $0xa8] sm:$0xf]
      %v316 = vld [vmem:[%s216 + $0xac] sm:$0xf]
      %v317 = vld [vmem:[%s216 + $0xb0] sm:$0xf]
      %v318 = vld [vmem:[%s216 + $0xb4] sm:$0xf]
      %v319 = vld [vmem:[%s216 + $0xb8] sm:$0xf]
      %v320 = vld [vmem:[%s216 + $0xbc] sm:$0xf]
      %v321 = vld [vmem:[%s216 + $0xc0] sm:$0xf]
      %v322 = vld [vmem:[%s216 + $0xc4] sm:$0xf]
      %v323 = vld [vmem:[%s216 + $0xc8] sm:$0xf]
      %v324 = vld [vmem:[%s216 + $0xcc] sm:$0xf]
      %v325 = vld [vmem:[%s216 + $0xd0] sm:$0xf]
      %v326 = vld [vmem:[%s216 + $0xd4] sm:$0xf]
      %v327 = vld [vmem:[%s216 + $0xd8] sm:$0xf]
      %v328 = vld [vmem:[%s216 + $0xdc] sm:$0xf]
      %v329 = vld [vmem:[%s216 + $0xe0] sm:$0xf]
      %v330 = vld [vmem:[%s216 + $0xe4] sm:$0xf]
      %v331 = vld [vmem:[%s216 + $0xe8] sm:$0xf]
      %v332 = vld [vmem:[%s216 + $0xec] sm:$0xf]
      %v333 = vld [vmem:[%s216 + $0xf0] sm:$0xf]
      %v334 = vld [vmem:[%s216 + $0xf4] sm:$0xf]
      %v335 = vld [vmem:[%s216 + $0xf8] sm:$0xf]
      %v336 = vld [vmem:[%s216 + $0xfc] sm:$0xf]
      %v337 = vld [vmem:[%s216 + $0x100] sm:$0xf]
      %v338 = vld [vmem:[%s216 + $0x104] sm:$0xf]
      %v339 = vld [vmem:[%s216 + $0x108] sm:$0xf]
      %v340 = vld [vmem:[%s216 + $0x10c] sm:$0xf]
      %v341 = vld [vmem:[%s216 + $0x110] sm:$0xf]
      %v342 = vld [vmem:[%s216 + $0x114] sm:$0xf]
      %v343 = vld [vmem:[%s216 + $0x118] sm:$0xf]
      %v344 = vld [vmem:[%s216 + $0x11c] sm:$0xf]
      %v345 = vld [vmem:[%s216 + $0x120] sm:$0xf]
      %v346 = vld [vmem:[%s216 + $0x124] sm:$0xf]
      %v347 = vld [vmem:[%s216 + $0x128] sm:$0xf]
      %v348 = vld [vmem:[%s216 + $0x12c] sm:$0xf]
      %v349 = vld [vmem:[%s216 + $0x130] sm:$0xf]
      %v350 = vld [vmem:[%s216 + $0x134] sm:$0xf]
      %v351 = vld [vmem:[%s216 + $0x138] sm:$0xf]
      %v352 = vld [vmem:[%s216 + $0x13c] sm:$0xf]
      %v353 = vld [vmem:[%s216 + $0x140] sm:$0xf]
      %v354 = vld [vmem:[%s216 + $0x144] sm:$0xf]
      %v355 = vld [vmem:[%s216 + $0x148] sm:$0xf]
      %v356 = vld [vmem:[%s216 + $0x14c] sm:$0xf]
      %v357 = vld [vmem:[%s216 + $0x150] sm:$0xf]
      %v358 = vld [vmem:[%s216 + $0x154] sm:$0xf]
      %v359 = vld [vmem:[%s216 + $0x158] sm:$0xf]
      %v360 = vld [vmem:[%s216 + $0x15c] sm:$0xf]
      %v361 = vld [vmem:[%s216 + $0x160] sm:$0xf]
      %v362 = vld [vmem:[%s216 + $0x164] sm:$0xf]
      %v363 = vld [vmem:[%s216 + $0x168] sm:$0xf]
      %v364 = vld [vmem:[%s216 + $0x16c] sm:$0xf]
      %v365 = vld [vmem:[%s216 + $0x170] sm:$0xf]
      %v366 = vld [vmem:[%s216 + $0x174] sm:$0xf]
      %v367 = vld [vmem:[%s216 + $0x178] sm:$0xf]
      %v368 = vld [vmem:[%s216 + $0x17c] sm:$0xf]
      %v369 = vld [vmem:[%s216 + $0x180] sm:$0xf]
      %v370 = vld [vmem:[%s216 + $0x184] sm:$0xf]
      %v371 = vld [vmem:[%s216 + $0x188] sm:$0xf]
      %v372 = vld [vmem:[%s216 + $0x18c] sm:$0xf]
      %v373 = vld [vmem:[%s216 + $0x190] sm:$0xf]
      %v374 = vld [vmem:[%s216 + $0x194] sm:$0xf]
      %v375 = vld [vmem:[%s216 + $0x198] sm:$0xf]
      %v376 = vld [vmem:[%s216 + $0x19c] sm:$0xf]
      %v377 = vld [vmem:[%s216 + $0x1a0] sm:$0xf]
      %v378 = vld [vmem:[%s216 + $0x1a4] sm:$0xf]
      %v379 = vld [vmem:[%s216 + $0x1a8] sm:$0xf]
      %v380 = vld [vmem:[%s216 + $0x1ac] sm:$0xf]
      %v381 = vld [vmem:[%s216 + $0x1b0] sm:$0xf]
      %v382 = vld [vmem:[%s216 + $0x1b4] sm:$0xf]
      %v383 = vld [vmem:[%s216 + $0x1b8] sm:$0xf]
      %v384 = vld [vmem:[%s216 + $0x1bc] sm:$0xf]
      %v385 = vld [vmem:[%s216 + $0x1c0] sm:$0xf]
      %v386 = vld [vmem:[%s216 + $0x1c4] sm:$0xf]
      %v387 = vld [vmem:[%s216 + $0x1c8] sm:$0xf]
      %v388 = vld [vmem:[%s216 + $0x1cc] sm:$0xf]
      %v389 = vld [vmem:[%s216 + $0x1d0] sm:$0xf]
      %v390 = vld [vmem:[%s216 + $0x1d4] sm:$0xf]
      %v391 = vld [vmem:[%s216 + $0x1d8] sm:$0xf]
      %v392 = vld [vmem:[%s216 + $0x1dc] sm:$0xf]
      %v393 = vld [vmem:[%s216 + $0x1e0] sm:$0xf]
      %v394 = vld [vmem:[%s216 + $0x1e4] sm:$0xf]
      %v395 = vld [vmem:[%s216 + $0x1e8] sm:$0xf]
      %v396 = vld [vmem:[%s216 + $0x1ec] sm:$0xf]
      %v397 = vld [vmem:[%s216 + $0x1f0] sm:$0xf]
      %v398 = vld [vmem:[%s216 + $0x1f4] sm:$0xf]
      %v399 = vld [vmem:[%s216 + $0x1f8] sm:$0xf]
      %v400 = vld [vmem:[%s216 + $0x1fc] sm:$0xf]
      %v401 = vld [vmem:[%s216 + $0x200] sm:$0xf]
      %v402 = vld [vmem:[%s216 + $0x204] sm:$0xf]
      %v403 = vld [vmem:[%s216 + $0x208] sm:$0xf]
      %v404 = vld [vmem:[%s216 + $0x20c] sm:$0xf]
      %v405 = vld [vmem:[%s216 + $0x210] sm:$0xf]
      %v406 = vld [vmem:[%s216 + $0x214] sm:$0xf]
      %v407 = vld [vmem:[%s216 + $0x218] sm:$0xf]
      %v408 = vld [vmem:[%s216 + $0x21c] sm:$0xf]
      %v409 = vld [vmem:[%s216 + $0x220] sm:$0xf]
      %v410 = vld [vmem:[%s216 + $0x224] sm:$0xf]
      %v411 = vld [vmem:[%s216 + $0x228] sm:$0xf]
      %v412 = vld [vmem:[%s216 + $0x22c] sm:$0xf]
      %v413 = vld [vmem:[%s216 + $0x230] sm:$0xf]
      %v414 = vld [vmem:[%s216 + $0x234] sm:$0xf]
      %v415 = vld [vmem:[%s216 + $0x238] sm:$0xf]
      %v416 = vld [vmem:[%s216 + $0x23c] sm:$0xf]
      %v457 = vunpack.c.l.b16 %v233
      %v458 = vunpack.c.h.b16 %v233
      %v459 = vunpack.c.l.b16 %v234
      %v460 = vunpack.c.h.b16 %v234
      %v461 = vunpack.c.l.b16 %v235
      %v462 = vunpack.c.h.b16 %v235
      %v463 = vunpack.c.l.b16 %v236
      %v464 = vunpack.c.h.b16 %v236
      %v465 = vunpack.c.l.b16 %v237
      %v466 = vunpack.c.l.b16 %v238
      %v467 = vunpack.c.h.b16 %v238
      %v468 = vunpack.c.l.b16 %v239
      %v469 = vunpack.c.h.b16 %v239
      %v470 = vunpack.c.l.b16 %v240
      %v471 = vunpack.c.h.b16 %v240
      %v472 = vunpack.c.l.b16 %v241
      %v473 = vunpack.c.h.b16 %v241
      %v474 = vunpack.c.l.b16 %v242
      %v475 = vunpack.c.l.b16 %v243
      %v476 = vunpack.c.h.b16 %v243
      %v477 = vunpack.c.l.b16 %v244
      %v478 = vunpack.c.h.b16 %v244
      %v479 = vunpack.c.l.b16 %v245
      %v480 = vunpack.c.h.b16 %v245
      %v481 = vunpack.c.l.b16 %v246
      %v482 = vunpack.c.h.b16 %v246
      %v483 = vunpack.c.l.b16 %v247
      %v484 = vunpack.c.l.b16 %v248
      %v485 = vunpack.c.h.b16 %v248
      %v486 = vunpack.c.l.b16 %v249
      %v487 = vunpack.c.h.b16 %v249
      %v488 = vunpack.c.l.b16 %v250
      %v489 = vunpack.c.h.b16 %v250
      %v490 = vunpack.c.l.b16 %v251
      %v491 = vunpack.c.h.b16 %v251
      %v492 = vunpack.c.l.b16 %v252
      %v493 = vunpack.c.l.b16 %v253
      %v494 = vunpack.c.h.b16 %v253
      %v495 = vunpack.c.l.b16 %v254
      %v496 = vunpack.c.h.b16 %v254
      %v497 = vunpack.c.l.b16 %v255
      %v498 = vunpack.c.h.b16 %v255
      %v499 = vunpack.c.l.b16 %v256
      %v500 = vunpack.c.h.b16 %v256
      %v501 = vunpack.c.l.b16 %v257
      %v502 = vunpack.c.l.b16 %v258
      %v503 = vunpack.c.h.b16 %v258
      %v504 = vunpack.c.l.b16 %v259
      %v505 = vunpack.c.h.b16 %v259
      %v506 = vunpack.c.l.b16 %v260
      %v507 = vunpack.c.h.b16 %v260
      %v508 = vunpack.c.l.b16 %v261
      %v509 = vunpack.c.h.b16 %v261
      %v510 = vunpack.c.l.b16 %v262
      %v511 = vunpack.c.l.b16 %v263
      %v512 = vunpack.c.h.b16 %v263
      %v513 = vunpack.c.l.b16 %v264
      %v514 = vunpack.c.h.b16 %v264
      %v515 = vunpack.c.l.b16 %v265
      %v516 = vunpack.c.h.b16 %v265
      %v517 = vunpack.c.l.b16 %v266
      %v518 = vunpack.c.h.b16 %v266
      %v519 = vunpack.c.l.b16 %v267
      %v520 = vunpack.c.l.b16 %v268
      %v521 = vunpack.c.h.b16 %v268
      %v522 = vunpack.c.l.b16 %v269
      %v523 = vunpack.c.h.b16 %v269
      %v524 = vunpack.c.l.b16 %v270
      %v525 = vunpack.c.h.b16 %v270
      %v526 = vunpack.c.l.b16 %v271
      %v527 = vunpack.c.h.b16 %v271
      %v528 = vunpack.c.l.b16 %v272
      %v529 = vpack.c.b16 %v466, %v457
      %v530 = vpack.c.b16 %v467, %v458
      %v531 = vpack.c.b16 %v468, %v459
      %v532 = vpack.c.b16 %v469, %v460
      %v533 = vpack.c.b16 %v470, %v461
      %v534 = vpack.c.b16 %v471, %v462
      %v535 = vpack.c.b16 %v472, %v463
      %v536 = vpack.c.b16 %v473, %v464
      %v537 = vpack.c.b16 %v474, %v465
      %v538 = vpack.c.b16 %v484, %v475
      %v539 = vpack.c.b16 %v485, %v476
      %v540 = vpack.c.b16 %v486, %v477
      %v541 = vpack.c.b16 %v487, %v478
      %v542 = vpack.c.b16 %v488, %v479
      %v543 = vpack.c.b16 %v489, %v480
      %v544 = vpack.c.b16 %v490, %v481
      %v545 = vpack.c.b16 %v491, %v482
      %v546 = vpack.c.b16 %v492, %v483
      %v547 = vpack.c.b16 %v502, %v493
      %v548 = vpack.c.b16 %v503, %v494
      %v549 = vpack.c.b16 %v504, %v495
      %v550 = vpack.c.b16 %v505, %v496
      %v551 = vpack.c.b16 %v506, %v497
      %v552 = vpack.c.b16 %v507, %v498
      %v553 = vpack.c.b16 %v508, %v499
      %v554 = vpack.c.b16 %v509, %v500
      %v555 = vpack.c.b16 %v510, %v501
      %v556 = vpack.c.b16 %v520, %v511
      %v557 = vpack.c.b16 %v521, %v512
      %v558 = vpack.c.b16 %v522, %v513
      %v559 = vpack.c.b16 %v523, %v514
      %v560 = vpack.c.b16 %v524, %v515
      %v561 = vpack.c.b16 %v525, %v516
      %v562 = vpack.c.b16 %v526, %v517
      %v563 = vpack.c.b16 %v527, %v518
      %v564 = vpack.c.b16 %v528, %v519
      %v745 = vunpack.c.l.b16 %v273
      %v746 = vunpack.c.l.b16 %v274
      %v747 = vunpack.c.l.b16 %v275
      %v748 = vunpack.c.l.b16 %v276
      %v749 = vunpack.c.l.b16 %v277
      %v750 = vunpack.c.l.b16 %v278
      %v751 = vunpack.c.l.b16 %v279
      %v752 = vunpack.c.l.b16 %v280
      %v753 = vunpack.c.l.b16 %v281
      %v754 = vunpack.c.l.b16 %v282
      %v755 = vunpack.c.l.b16 %v283
      %v756 = vunpack.c.l.b16 %v284
      %v757 = vunpack.c.l.b16 %v285
      %v758 = vunpack.c.l.b16 %v286
      %v759 = vunpack.c.l.b16 %v287
      %v760 = vunpack.c.l.b16 %v288
      %v761 = vunpack.c.l.b16 %v289
      %v762 = vunpack.c.l.b16 %v290
      %v763 = vunpack.c.l.b16 %v291
      %v764 = vunpack.c.l.b16 %v292
      %v765 = vunpack.c.l.b16 %v293
      %v766 = vunpack.c.l.b16 %v294
      %v767 = vunpack.c.l.b16 %v295
      %v768 = vunpack.c.l.b16 %v296
      %v769 = vunpack.c.l.b16 %v297
      %v770 = vunpack.c.l.b16 %v298
      %v771 = vunpack.c.l.b16 %v299
      %v772 = vunpack.c.l.b16 %v300
      %v773 = vunpack.c.l.b16 %v301
      %v774 = vunpack.c.l.b16 %v302
      %v775 = vunpack.c.l.b16 %v303
      %v776 = vunpack.c.l.b16 %v304
      %v777 = vunpack.c.l.b16 %v305
      %v778 = vunpack.c.l.b16 %v306
      %v779 = vunpack.c.l.b16 %v307
      %v780 = vunpack.c.l.b16 %v308
      %v781 = vunpack.c.l.b16 %v309
      %v782 = vunpack.c.l.b16 %v310
      %v783 = vunpack.c.l.b16 %v311
      %v784 = vunpack.c.l.b16 %v312
      %v785 = vunpack.c.l.b16 %v313
      %v786 = vunpack.c.l.b16 %v314
      %v787 = vunpack.c.l.b16 %v315
      %v788 = vunpack.c.l.b16 %v316
      %v789 = vunpack.c.l.b16 %v317
      %v790 = vunpack.c.l.b16 %v318
      %v791 = vunpack.c.l.b16 %v319
      %v792 = vunpack.c.l.b16 %v320
      %v793 = vunpack.c.l.b16 %v321
      %v794 = vunpack.c.l.b16 %v322
      %v795 = vunpack.c.l.b16 %v323
      %v796 = vunpack.c.l.b16 %v324
      %v797 = vunpack.c.l.b16 %v325
      %v798 = vunpack.c.l.b16 %v326
      %v799 = vunpack.c.l.b16 %v327
      %v800 = vunpack.c.l.b16 %v328
      %v801 = vunpack.c.l.b16 %v329
      %v802 = vunpack.c.l.b16 %v330
      %v803 = vunpack.c.l.b16 %v331
      %v804 = vunpack.c.l.b16 %v332
      %v805 = vunpack.c.l.b16 %v333
      %v806 = vunpack.c.l.b16 %v334
      %v807 = vunpack.c.l.b16 %v335
      %v808 = vunpack.c.l.b16 %v336
      %v809 = vunpack.c.l.b16 %v337
      %v810 = vunpack.c.l.b16 %v338
      %v811 = vunpack.c.l.b16 %v339
      %v812 = vunpack.c.l.b16 %v340
      %v813 = vunpack.c.l.b16 %v341
      %v814 = vunpack.c.l.b16 %v342
      %v815 = vunpack.c.l.b16 %v343
      %v816 = vunpack.c.l.b16 %v344
      %v817 = vunpack.c.l.b16 %v345
      %v818 = vunpack.c.l.b16 %v346
      %v819 = vunpack.c.l.b16 %v347
      %v820 = vunpack.c.l.b16 %v348
      %v821 = vunpack.c.l.b16 %v349
      %v822 = vunpack.c.l.b16 %v350
      %v823 = vunpack.c.l.b16 %v351
      %v824 = vunpack.c.l.b16 %v352
      %v825 = vunpack.c.l.b16 %v353
      %v826 = vunpack.c.l.b16 %v354
      %v827 = vunpack.c.l.b16 %v355
      %v828 = vunpack.c.l.b16 %v356
      %v829 = vunpack.c.l.b16 %v357
      %v830 = vunpack.c.l.b16 %v358
      %v831 = vunpack.c.l.b16 %v359
      %v832 = vunpack.c.l.b16 %v360
      %v833 = vunpack.c.l.b16 %v361
      %v834 = vunpack.c.l.b16 %v362
      %v835 = vunpack.c.l.b16 %v363
      %v836 = vunpack.c.l.b16 %v364
      %v837 = vunpack.c.l.b16 %v365
      %v838 = vunpack.c.l.b16 %v366
      %v839 = vunpack.c.l.b16 %v367
      %v840 = vunpack.c.l.b16 %v368
      %v841 = vunpack.c.l.b16 %v369
      %v842 = vunpack.c.l.b16 %v370
      %v843 = vunpack.c.l.b16 %v371
      %v844 = vunpack.c.l.b16 %v372
      %v845 = vunpack.c.l.b16 %v373
      %v846 = vunpack.c.l.b16 %v374
      %v847 = vunpack.c.l.b16 %v375
      %v848 = vunpack.c.l.b16 %v376
      %v849 = vunpack.c.l.b16 %v377
      %v850 = vunpack.c.l.b16 %v378
      %v851 = vunpack.c.l.b16 %v379
      %v852 = vunpack.c.l.b16 %v380
      %v853 = vunpack.c.l.b16 %v381
      %v854 = vunpack.c.l.b16 %v382
      %v855 = vunpack.c.l.b16 %v383
      %v856 = vunpack.c.l.b16 %v384
      %v857 = vunpack.c.l.b16 %v385
      %v858 = vunpack.c.l.b16 %v386
      %v859 = vunpack.c.l.b16 %v387
      %v860 = vunpack.c.l.b16 %v388
      %v861 = vunpack.c.l.b16 %v389
      %v862 = vunpack.c.l.b16 %v390
      %v863 = vunpack.c.l.b16 %v391
      %v864 = vunpack.c.l.b16 %v392
      %v865 = vunpack.c.l.b16 %v393
      %v866 = vunpack.c.l.b16 %v394
      %v867 = vunpack.c.l.b16 %v395
      %v868 = vunpack.c.l.b16 %v396
      %v869 = vunpack.c.l.b16 %v397
      %v870 = vunpack.c.l.b16 %v398
      %v871 = vunpack.c.l.b16 %v399
      %v872 = vunpack.c.l.b16 %v400
      %v873 = vunpack.c.l.b16 %v401
      %v874 = vunpack.c.l.b16 %v402
      %v875 = vunpack.c.l.b16 %v403
      %v876 = vunpack.c.l.b16 %v404
      %v877 = vunpack.c.l.b16 %v405
      %v878 = vunpack.c.l.b16 %v406
      %v879 = vunpack.c.l.b16 %v407
      %v880 = vunpack.c.l.b16 %v408
      %v881 = vunpack.c.l.b16 %v409
      %v882 = vunpack.c.l.b16 %v410
      %v883 = vunpack.c.l.b16 %v411
      %v884 = vunpack.c.l.b16 %v412
      %v885 = vunpack.c.l.b16 %v413
      %v886 = vunpack.c.l.b16 %v414
      %v887 = vunpack.c.l.b16 %v415
      %v888 = vunpack.c.l.b16 %v416
      %v889 = vpack.c.b16 %v746, %v745
      %v890 = vpack.c.b16 %v748, %v747
      %v891 = vpack.c.b16 %v750, %v749
      %v892 = vpack.c.b16 %v752, %v751
      %v893 = vpack.c.b16 %v754, %v753
      %v894 = vpack.c.b16 %v756, %v755
      %v895 = vpack.c.b16 %v758, %v757
      %v896 = vpack.c.b16 %v760, %v759
      %v897 = vpack.c.b16 %v762, %v761
      %v898 = vpack.c.b16 %v764, %v763
      %v899 = vpack.c.b16 %v766, %v765
      %v900 = vpack.c.b16 %v768, %v767
      %v901 = vpack.c.b16 %v770, %v769
      %v902 = vpack.c.b16 %v772, %v771
      %v903 = vpack.c.b16 %v774, %v773
      %v904 = vpack.c.b16 %v776, %v775
      %v905 = vpack.c.b16 %v778, %v777
      %v906 = vpack.c.b16 %v780, %v779
      %v907 = vpack.c.b16 %v782, %v781
      %v908 = vpack.c.b16 %v784, %v783
      %v909 = vpack.c.b16 %v786, %v785
      %v910 = vpack.c.b16 %v788, %v787
      %v911 = vpack.c.b16 %v790, %v789
      %v912 = vpack.c.b16 %v792, %v791
      %v913 = vpack.c.b16 %v794, %v793
      %v914 = vpack.c.b16 %v796, %v795
      %v915 = vpack.c.b16 %v798, %v797
      %v916 = vpack.c.b16 %v800, %v799
      %v917 = vpack.c.b16 %v802, %v801
      %v918 = vpack.c.b16 %v804, %v803
      %v919 = vpack.c.b16 %v806, %v805
      %v920 = vpack.c.b16 %v808, %v807
      %v921 = vpack.c.b16 %v810, %v809
      %v922 = vpack.c.b16 %v812, %v811
      %v923 = vpack.c.b16 %v814, %v813
      %v924 = vpack.c.b16 %v816, %v815
      %v925 = vpack.c.b16 %v818, %v817
      %v926 = vpack.c.b16 %v820, %v819
      %v927 = vpack.c.b16 %v822, %v821
      %v928 = vpack.c.b16 %v824, %v823
      %v929 = vpack.c.b16 %v826, %v825
      %v930 = vpack.c.b16 %v828, %v827
      %v931 = vpack.c.b16 %v830, %v829
      %v932 = vpack.c.b16 %v832, %v831
      %v933 = vpack.c.b16 %v834, %v833
      %v934 = vpack.c.b16 %v836, %v835
      %v935 = vpack.c.b16 %v838, %v837
      %v936 = vpack.c.b16 %v840, %v839
      %v937 = vpack.c.b16 %v842, %v841
      %v938 = vpack.c.b16 %v844, %v843
      %v939 = vpack.c.b16 %v846, %v845
      %v940 = vpack.c.b16 %v848, %v847
      %v941 = vpack.c.b16 %v850, %v849
      %v942 = vpack.c.b16 %v852, %v851
      %v943 = vpack.c.b16 %v854, %v853
      %v944 = vpack.c.b16 %v856, %v855
      %v945 = vpack.c.b16 %v858, %v857
      %v946 = vpack.c.b16 %v860, %v859
      %v947 = vpack.c.b16 %v862, %v861
      %v948 = vpack.c.b16 %v864, %v863
      %v949 = vpack.c.b16 %v866, %v865
      %v950 = vpack.c.b16 %v868, %v867
      %v951 = vpack.c.b16 %v870, %v869
      %v952 = vpack.c.b16 %v872, %v871
      %v953 = vpack.c.b16 %v874, %v873
      %v954 = vpack.c.b16 %v876, %v875
      %v955 = vpack.c.b16 %v878, %v877
      %v956 = vpack.c.b16 %v880, %v879
      %v957 = vpack.c.b16 %v882, %v881
      %v958 = vpack.c.b16 %v884, %v883
      %v959 = vpack.c.b16 %v886, %v885
      %v960 = vpack.c.b16 %v888, %v887
      %1033 = vmatpush.bf16.msra.mxu0 %v896
      %1034 = vmatpush.bf16.msra.mxu0 %v895
      %1035 = vmatpush.bf16.msra.mxu0 %v894
      %1036 = vmatpush.bf16.msra.mxu0 %v893
      %1037 = vmatpush.bf16.msra.mxu0 %v892
      %1038 = vmatpush.bf16.msra.mxu0 %v891
      %1039 = vmatpush.bf16.msra.mxu0 %v890
      %1040 = vmatpush.bf16.msra.mxu0 %v889
      %1041 = vmatmul.bf16.gmra.mxu0 %v529
      %v1042 = vpop.f32.mrf.mxu0
      %v1043 = vadd.f32 0.0, %v1042
      %v1044 = vpop.f32.mrf.mxu0
      %v1045 = vadd.f32 0.0, %v1044
      %1046 = vmatmul.bf16.gmra.mxu0 %v538
      %v1047 = vpop.f32.mrf.mxu0
      %v1048 = vadd.f32 0.0, %v1047
      %v1049 = vpop.f32.mrf.mxu0
      %v1050 = vadd.f32 0.0, %v1049
      %1051 = vmatmul.bf16.gmra.mxu0 %v547
      %v1052 = vpop.f32.mrf.mxu0
      %v1053 = vadd.f32 0.0, %v1052
      %v1054 = vpop.f32.mrf.mxu0
      %v1055 = vadd.f32 0.0, %v1054
      %1056 = vmatmul.bf16.gmra.mxu0 %v556
      %v1057 = vpop.f32.mrf.mxu0
      %v1058 = vadd.f32 0.0, %v1057
      %v1059 = vpop.f32.mrf.mxu0
      %v1060 = vadd.f32 0.0, %v1059
      %1061 = vdwg.mxu0
      %1062 = vmatpush.bf16.msra.mxu0 %v904
      %1063 = vmatpush.bf16.msra.mxu0 %v903
      %1064 = vmatpush.bf16.msra.mxu0 %v902
      %1065 = vmatpush.bf16.msra.mxu0 %v901
      %1066 = vmatpush.bf16.msra.mxu0 %v900
      %1067 = vmatpush.bf16.msra.mxu0 %v899
      %1068 = vmatpush.bf16.msra.mxu0 %v898
      %1069 = vmatpush.bf16.msra.mxu0 %v897
      %1070 = vmatmul.bf16.gmra.mxu0 %v530
      %v1071 = vpop.f32.mrf.mxu0
      %v1072 = vadd.f32 %v1043, %v1071
      %v1073 = vpop.f32.mrf.mxu0
      %v1074 = vadd.f32 %v1045, %v1073
      %1075 = vmatmul.bf16.gmra.mxu0 %v539
      %v1076 = vpop.f32.mrf.mxu0
      %v1077 = vadd.f32 %v1048, %v1076
      %v1078 = vpop.f32.mrf.mxu0
      %v1079 = vadd.f32 %v1050, %v1078
      %1080 = vmatmul.bf16.gmra.mxu0 %v548
      %v1081 = vpop.f32.mrf.mxu0
      %v1082 = vadd.f32 %v1053, %v1081
      %v1083 = vpop.f32.mrf.mxu0
      %v1084 = vadd.f32 %v1055, %v1083
      %1085 = vmatmul.bf16.gmra.mxu0 %v557
      %v1086 = vpop.f32.mrf.mxu0
      %v1087 = vadd.f32 %v1058, %v1086
      %v1088 = vpop.f32.mrf.mxu0
      %v1089 = vadd.f32 %v1060, %v1088
      %1090 = vdwg.mxu0
      %1091 = vmatpush.bf16.msra.mxu0 %v912
      %1092 = vmatpush.bf16.msra.mxu0 %v911
      %1093 = vmatpush.bf16.msra.mxu0 %v910
      %1094 = vmatpush.bf16.msra.mxu0 %v909
      %1095 = vmatpush.bf16.msra.mxu0 %v908
      %1096 = vmatpush.bf16.msra.mxu0 %v907
      %1097 = vmatpush.bf16.msra.mxu0 %v906
      %1098 = vmatpush.bf16.msra.mxu0 %v905
      %1099 = vmatmul.bf16.gmra.mxu0 %v531
      %v1100 = vpop.f32.mrf.mxu0
      %v1101 = vadd.f32 %v1072, %v1100
      %v1102 = vpop.f32.mrf.mxu0
      %v1103 = vadd.f32 %v1074, %v1102
      %1104 = vmatmul.bf16.gmra.mxu0 %v540
      %v1105 = vpop.f32.mrf.mxu0
      %v1106 = vadd.f32 %v1077, %v1105
      %v1107 = vpop.f32.mrf.mxu0
      %v1108 = vadd.f32 %v1079, %v1107
      %1109 = vmatmul.bf16.gmra.mxu0 %v549
      %v1110 = vpop.f32.mrf.mxu0
      %v1111 = vadd.f32 %v1082, %v1110
      %v1112 = vpop.f32.mrf.mxu0
      %v1113 = vadd.f32 %v1084, %v1112
      %1114 = vmatmul.bf16.gmra.mxu0 %v558
      %v1115 = vpop.f32.mrf.mxu0
      %v1116 = vadd.f32 %v1087, %v1115
      %v1117 = vpop.f32.mrf.mxu0
      %v1118 = vadd.f32 %v1089, %v1117
      %1119 = vdwg.mxu0
      %1120 = vmatpush.bf16.msra.mxu0 %v920
      %1121 = vmatpush.bf16.msra.mxu0 %v919
      %1122 = vmatpush.bf16.msra.mxu0 %v918
      %1123 = vmatpush.bf16.msra.mxu0 %v917
      %1124 = vmatpush.bf16.msra.mxu0 %v916
      %1125 = vmatpush.bf16.msra.mxu0 %v915
      %1126 = vmatpush.bf16.msra.mxu0 %v914
      %1127 = vmatpush.bf16.msra.mxu0 %v913
      %1128 = vmatmul.bf16.gmra.mxu0 %v532
      %v1129 = vpop.f32.mrf.mxu0
      %v1130 = vadd.f32 %v1101, %v1129
      %v1131 = vpop.f32.mrf.mxu0
      %v1132 = vadd.f32 %v1103, %v1131
      %1133 = vmatmul.bf16.gmra.mxu0 %v541
      %v1134 = vpop.f32.mrf.mxu0
      %v1135 = vadd.f32 %v1106, %v1134
      %v1136 = vpop.f32.mrf.mxu0
      %v1137 = vadd.f32 %v1108, %v1136
      %1138 = vmatmul.bf16.gmra.mxu0 %v550
      %v1139 = vpop.f32.mrf.mxu0
      %v1140 = vadd.f32 %v1111, %v1139
      %v1141 = vpop.f32.mrf.mxu0
      %v1142 = vadd.f32 %v1113, %v1141
      %1143 = vmatmul.bf16.gmra.mxu0 %v559
      %v1144 = vpop.f32.mrf.mxu0
      %v1145 = vadd.f32 %v1116, %v1144
      %v1146 = vpop.f32.mrf.mxu0
      %v1147 = vadd.f32 %v1118, %v1146
      %1148 = vdwg.mxu0
      %1149 = vmatpush.bf16.msra.mxu0 %v928
      %1150 = vmatpush.bf16.msra.mxu0 %v927
      %1151 = vmatpush.bf16.msra.mxu0 %v926
      %1152 = vmatpush.bf16.msra.mxu0 %v925
      %1153 = vmatpush.bf16.msra.mxu0 %v924
      %1154 = vmatpush.bf16.msra.mxu0 %v923
      %1155 = vmatpush.bf16.msra.mxu0 %v922
      %1156 = vmatpush.bf16.msra.mxu0 %v921
      %1157 = vmatmul.bf16.gmra.mxu0 %v533
      %v1158 = vpop.f32.mrf.mxu0
      %v1159 = vadd.f32 %v1130, %v1158
      %v1160 = vpop.f32.mrf.mxu0
      %v1161 = vadd.f32 %v1132, %v1160
      %1162 = vmatmul.bf16.gmra.mxu0 %v542
      %v1163 = vpop.f32.mrf.mxu0
      %v1164 = vadd.f32 %v1135, %v1163
      %v1165 = vpop.f32.mrf.mxu0
      %v1166 = vadd.f32 %v1137, %v1165
      %1167 = vmatmul.bf16.gmra.mxu0 %v551
      %v1168 = vpop.f32.mrf.mxu0
      %v1169 = vadd.f32 %v1140, %v1168
      %v1170 = vpop.f32.mrf.mxu0
      %v1171 = vadd.f32 %v1142, %v1170
      %1172 = vmatmul.bf16.gmra.mxu0 %v560
      %v1173 = vpop.f32.mrf.mxu0
      %v1174 = vadd.f32 %v1145, %v1173
      %v1175 = vpop.f32.mrf.mxu0
      %v1176 = vadd.f32 %v1147, %v1175
      %1177 = vdwg.mxu0
      %1178 = vmatpush.bf16.msra.mxu0 %v936
      %1179 = vmatpush.bf16.msra.mxu0 %v935
      %1180 = vmatpush.bf16.msra.mxu0 %v934
      %1181 = vmatpush.bf16.msra.mxu0 %v933
      %1182 = vmatpush.bf16.msra.mxu0 %v932
      %1183 = vmatpush.bf16.msra.mxu0 %v931
      %1184 = vmatpush.bf16.msra.mxu0 %v930
      %1185 = vmatpush.bf16.msra.mxu0 %v929
      %1186 = vmatmul.bf16.gmra.mxu0 %v534
      %v1187 = vpop.f32.mrf.mxu0
      %v1188 = vadd.f32 %v1159, %v1187
      %v1189 = vpop.f32.mrf.mxu0
      %v1190 = vadd.f32 %v1161, %v1189
      %1191 = vmatmul.bf16.gmra.mxu0 %v543
      %v1192 = vpop.f32.mrf.mxu0
      %v1193 = vadd.f32 %v1164, %v1192
      %v1194 = vpop.f32.mrf.mxu0
      %v1195 = vadd.f32 %v1166, %v1194
      %1196 = vmatmul.bf16.gmra.mxu0 %v552
      %v1197 = vpop.f32.mrf.mxu0
      %v1198 = vadd.f32 %v1169, %v1197
      %v1199 = vpop.f32.mrf.mxu0
      %v1200 = vadd.f32 %v1171, %v1199
      %1201 = vmatmul.bf16.gmra.mxu0 %v561
      %v1202 = vpop.f32.mrf.mxu0
      %v1203 = vadd.f32 %v1174, %v1202
      %v1204 = vpop.f32.mrf.mxu0
      %v1205 = vadd.f32 %v1176, %v1204
      %1206 = vdwg.mxu0
      %1207 = vmatpush.bf16.msra.mxu0 %v944
      %1208 = vmatpush.bf16.msra.mxu0 %v943
      %1209 = vmatpush.bf16.msra.mxu0 %v942
      %1210 = vmatpush.bf16.msra.mxu0 %v941
      %1211 = vmatpush.bf16.msra.mxu0 %v940
      %1212 = vmatpush.bf16.msra.mxu0 %v939
      %1213 = vmatpush.bf16.msra.mxu0 %v938
      %1214 = vmatpush.bf16.msra.mxu0 %v937
      %1215 = vmatmul.bf16.gmra.mxu0 %v535
      %v1216 = vpop.f32.mrf.mxu0
      %v1217 = vadd.f32 %v1188, %v1216
      %v1218 = vpop.f32.mrf.mxu0
      %v1219 = vadd.f32 %v1190, %v1218
      %1220 = vmatmul.bf16.gmra.mxu0 %v544
      %v1221 = vpop.f32.mrf.mxu0
      %v1222 = vadd.f32 %v1193, %v1221
      %v1223 = vpop.f32.mrf.mxu0
      %v1224 = vadd.f32 %v1195, %v1223
      %1225 = vmatmul.bf16.gmra.mxu0 %v553
      %v1226 = vpop.f32.mrf.mxu0
      %v1227 = vadd.f32 %v1198, %v1226
      %v1228 = vpop.f32.mrf.mxu0
      %v1229 = vadd.f32 %v1200, %v1228
      %1230 = vmatmul.bf16.gmra.mxu0 %v562
      %v1231 = vpop.f32.mrf.mxu0
      %v1232 = vadd.f32 %v1203, %v1231
      %v1233 = vpop.f32.mrf.mxu0
      %v1234 = vadd.f32 %v1205, %v1233
      %1235 = vdwg.mxu0
      %1236 = vmatpush.bf16.msra.mxu0 %v952
      %1237 = vmatpush.bf16.msra.mxu0 %v951
      %1238 = vmatpush.bf16.msra.mxu0 %v950
      %1239 = vmatpush.bf16.msra.mxu0 %v949
      %1240 = vmatpush.bf16.msra.mxu0 %v948
      %1241 = vmatpush.bf16.msra.mxu0 %v947
      %1242 = vmatpush.bf16.msra.mxu0 %v946
      %1243 = vmatpush.bf16.msra.mxu0 %v945
      %1244 = vmatmul.bf16.gmra.mxu0 %v536
      %v1245 = vpop.f32.mrf.mxu0
      %v1246 = vadd.f32 %v1217, %v1245
      %v1247 = vpop.f32.mrf.mxu0
      %v1248 = vadd.f32 %v1219, %v1247
      %1249 = vmatmul.bf16.gmra.mxu0 %v545
      %v1250 = vpop.f32.mrf.mxu0
      %v1251 = vadd.f32 %v1222, %v1250
      %v1252 = vpop.f32.mrf.mxu0
      %v1253 = vadd.f32 %v1224, %v1252
      %1254 = vmatmul.bf16.gmra.mxu0 %v554
      %v1255 = vpop.f32.mrf.mxu0
      %v1256 = vadd.f32 %v1227, %v1255
      %v1257 = vpop.f32.mrf.mxu0
      %v1258 = vadd.f32 %v1229, %v1257
      %1259 = vmatmul.bf16.gmra.mxu0 %v563
      %v1260 = vpop.f32.mrf.mxu0
      %v1261 = vadd.f32 %v1232, %v1260
      %v1262 = vpop.f32.mrf.mxu0
      %v1263 = vadd.f32 %v1234, %v1262
      %1264 = vdwg.mxu0
      %1265 = vmatpush.bf16.msra.mxu0 %v960
      %1266 = vmatpush.bf16.msra.mxu0 %v959
      %1267 = vmatpush.bf16.msra.mxu0 %v958
      %1268 = vmatpush.bf16.msra.mxu0 %v957
      %1269 = vmatpush.bf16.msra.mxu0 %v956
      %1270 = vmatpush.bf16.msra.mxu0 %v955
      %1271 = vmatpush.bf16.msra.mxu0 %v954
      %1272 = vmatpush.bf16.msra.mxu0 %v953
      %1273 = vmatmul.bf16.gmra.mxu0 %v537
      %v1274 = vpop.f32.mrf.mxu0
      %v1275 = vadd.f32 %v1246, %v1274
      %v1276 = vpop.f32.mrf.mxu0
      %v1277 = vadd.f32 %v1248, %v1276
      %1278 = vmatmul.bf16.gmra.mxu0 %v546
      %v1279 = vpop.f32.mrf.mxu0
      %v1280 = vadd.f32 %v1251, %v1279
      %v1281 = vpop.f32.mrf.mxu0
      %v1282 = vadd.f32 %v1253, %v1281
      %1283 = vmatmul.bf16.gmra.mxu0 %v555
      %v1284 = vpop.f32.mrf.mxu0
      %v1285 = vadd.f32 %v1256, %v1284
      %v1286 = vpop.f32.mrf.mxu0
      %v1287 = vadd.f32 %v1258, %v1286
      %1288 = vmatmul.bf16.gmra.mxu0 %v564
      %v1289 = vpop.f32.mrf.mxu0
      %v1290 = vadd.f32 %v1261, %v1289
      %v1291 = vpop.f32.mrf.mxu0
      %v1292 = vadd.f32 %v1263, %v1291
      %1293 = vdwg.mxu0
      %v1294 = vpack.c.bf16 %v1275, %v1275
      %v1295 = vpack.c.bf16 %v1277, %v1277
      %v1296 = vpack.c.bf16 %v1280, %v1280
      %v1297 = vpack.c.bf16 %v1282, %v1282
      %v1298 = vpack.c.bf16 %v1285, %v1285
      %v1299 = vpack.c.bf16 %v1287, %v1287
      %v1300 = vpack.c.bf16 %v1290, %v1290
      %v1301 = vpack.c.bf16 %v1292, %v1292
      %1302 = vst [vmem:[%s224] sm:$0xf] %v1294
      %1303 = vst [vmem:[%s224 + $0x4] sm:$0xf] %v1295
      %1304 = vst [vmem:[%s224 + $0x8] sm:$0xf] %v1296
      %1305 = vst [vmem:[%s224 + $0xc] sm:$0xf] %v1297
      %1306 = vst [vmem:[%s224 + $0x10] sm:$0xf] %v1298
      %1307 = vst [vmem:[%s224 + $0x14] sm:$0xf] %v1299
      %1308 = vst [vmem:[%s224 + $0x18] sm:$0xf] %v1300
      %1309 = vst [vmem:[%s224 + $0x1c] sm:$0xf] %v1301
      %v1310 = vadd.f32 %v1275, %v1277
      %v1311 = vadd.f32 %v1310, %v1280
      %v1312 = vadd.f32 %v1311, %v1282
      %v1313 = vadd.f32 %v1312, %v1285
      %v1314 = vadd.f32 %v1313, %v1287
      %v1315 = vadd.f32 %v1314, %v1290
      %v1316 = vadd.f32 %v1315, %v1292
      %v1317 = vrot.slane %v1316, 4
      %v1318 = vadd.f32 %v1316, %v1317
      %v1319 = vrot.slane %v1318, 2
      %v1320 = vadd.f32 %v1318, %v1319
      %v1321 = vrot.slane %v1320, 1
      %v1322 = vadd.f32 %v1320, %v1321
      %v1323 = vmul.f32 %v1275, %v1275
      %v1324 = vmul.f32 %v1277, %v1277
      %v1325 = vmul.f32 %v1280, %v1280
      %v1326 = vmul.f32 %v1282, %v1282
      %v1327 = vmul.f32 %v1285, %v1285
      %v1328 = vmul.f32 %v1287, %v1287
      %v1329 = vmul.f32 %v1290, %v1290
      %v1330 = vmul.f32 %v1292, %v1292
      %v1331 = vadd.f32 %v1323, %v1324
      %v1332 = vadd.f32 %v1331, %v1325
      %v1333 = vadd.f32 %v1332, %v1326
      %v1334 = vadd.f32 %v1333, %v1327
      %v1335 = vadd.f32 %v1334, %v1328
      %v1336 = vadd.f32 %v1335, %v1329
      %v1337 = vadd.f32 %v1336, %v1330
      %v1338 = vrot.slane %v1337, 4
      %v1339 = vadd.f32 %v1337, %v1338
      %v1340 = vrot.slane %v1339, 2
      %v1341 = vadd.f32 %v1339, %v1340
      %v1342 = vrot.slane %v1341, 1
      %v1343 = vadd.f32 %v1341, %v1342
      %v1344 = vlaneseq
      %v1345 = vshrl.u32 %v1344, 7
      %vm1346 = vcmp.eq.s32.totalorder %v1345, 0
      %vm1347 = vcmp.eq.s32.totalorder %v1345, 1
      %v1348 = vsel %vm1347, %v1343, 0.0
      %v1349 = vsel %vm1346, %v1322, %v1348
      %1350 = vst [vmem:[%s232] sm:$0xff] %v1349
      %s1351 = smul.u32 8, %s19
      %p1352 = scmp.lt.s32.totalorder %s1351, 15
      %s1353 = scalar_select %p1352, %s1351, 15
      %p1354 = scmp.lt.s32.totalorder %s20, 0
      %s1355 = scalar_select %p1354, %s20, 0
      %s1356 = sadd.s32 %s1355, %s1353
      %s1357 = smul.addr %s1356, 4
      %s1358 = scalar_lea.vmem %s2, %s1357
      %p1359 = scmp.lt.s32.totalorder %s19, 1
      %s1360 = scalar_select %p1359, %s19, 1
      %p1361 = scmp.lt.s32.totalorder %s20, 0
      %s1362 = scalar_select %p1361, %s20, 0
      %s1363 = sadd.s32 %s1362, %s1360
      %s1364 = smul.addr %s1363, 8
      %s1365 = scalar_lea.vmem %s3, %s1364
      // Predicated region
      $region29: #{_lambda_.20} parent=27 // pred_check
        %p1366 = pneg %p99
      $region30: #{_lambda_.20} parent=27 // pred_check_branch
        %1368 = sbr.rel (%p1366) target = $region32
      $region31: #{_lambda_.20} parent=27 // pred_region
        %s1369 = smul.u32 8, %s19
      $region32: #{_lambda_.20} parent=27 // pred_fallthru
        _
      // Predicated region
      $region33: #{_lambda_.20} parent=27 // pred_check
        %p1370 = pneg %p127
      $region34: #{_lambda_.20} parent=27 // pred_check_branch
        %1372 = sbr.rel (%p1370) target = $region36
      $region35: #{_lambda_.20} parent=27 // pred_region
        _
      $region36: #{_lambda_.20} parent=27 // pred_fallthru
        _
    $region28: #{_lambda_.20} parent=5 // pred_fallthru
      _
    %p1373 = scmp.le.s32.totalorder 2, %s10
    // Predicated region
    $region37: #{_lambda_.20} parent=5 // pred_check
      %p1374 = pneg %p1373
    $region38: #{_lambda_.20} parent=5 // pred_check_branch
      %1376 = sbr.rel (%p1374) target = $region40
    $region39: #{_lambda_.20} parent=5 // pred_region
      %s1377 = ssub.s32 %s10, 2
      // Predicated region
      $region41: #{_lambda_.20} parent=39 // pred_check
        %p1378 = pneg %p105
      $region42: #{_lambda_.20} parent=39 // pred_check_branch
        %1380 = sbr.rel (%p1378) target = $region44
      $region43: #{_lambda_.20} parent=39 // pred_region
        %s1381 = smul.u32 8, %s21
        %p1382 = scmp.lt.s32.totalorder %s1381, 15
        %s1383 = scalar_select %p1382, %s1381, 15
        %p1384 = scmp.lt.s32.totalorder %s22, 0
        %s1385 = scalar_select %p1384, %s22, 0
        %s1386 = sadd.s32 %s1385, %s1383
        %s1387 = smul.addr %s1386, 4
        %s1388 = scalar_lea.vmem %s2, %s1387
      $region44: #{_lambda_.20} parent=39 // pred_fallthru
        _
      // Predicated region
      $region45: #{_lambda_.20} parent=39 // pred_check
        %p1389 = pneg %p133
      $region46: #{_lambda_.20} parent=39 // pred_check_branch
        %1391 = sbr.rel (%p1389) target = $region48
      $region47: #{_lambda_.20} parent=39 // pred_region
        %p1392 = scmp.lt.s32.totalorder %s21, 1
        %s1393 = scalar_select %p1392, %s21, 1
        %p1394 = scmp.lt.s32.totalorder %s22, 0
        %s1395 = scalar_select %p1394, %s22, 0
        %s1396 = sadd.s32 %s1395, %s1393
        %s1397 = smul.addr %s1396, 8
        %s1398 = scalar_lea.vmem %s3, %s1397
      $region48: #{_lambda_.20} parent=39 // pred_fallthru
        _
    $region40: #{_lambda_.20} parent=5 // pred_fallthru
      _
  $region6: #{_lambda_.20} parent=0 // loop_footer
    %s14 = sadd.s32 1, %s10
  $region7: #{_lambda_.20} parent=0 // loop_footer_branch
    %9 = sbr.rel target = $region3
  $region8: #{_lambda_.20} parent=0 // loop_exit
    _

// kernel: _lambda_.23
$region0: #{_lambda_.23}
  #allocation0 [shape = 'u32[]', space=smem, size = 0x4, offset = 0x4, fixed_abs, tag = 'smem constant byte address 0x4 - core index']
  #allocation1 [shape = 'u32[72,128]{1,0:T(1,128)}', space=vmem, size = 0x9000, scoped, tag = 'internal scratch']
  %s0 = inlined_call_operand.vmem [shape: bf16[128,128], index: 0, kind: input, shape index: {}]
  %s1 = inlined_call_operand.vmem [shape: bf16[128,128], index: 1, kind: input, shape index: {}]
  %s2 = inlined_call_operand.vmem [shape: f32[1,128], index: 2, kind: input, shape index: {}]
  %s3 = inlined_call_operand.vmem [shape: f32[1,128], index: 3, kind: input, shape index: {}]
  %s4 = inlined_call_operand.vmem [shape: bf16[128,128], index: 4, kind: output, shape index: {}]
  %s5 = sld [smem:[#allocation0]]
  $region49: #{_lambda_.23} parent=0
    _
  %s7 = ssub.s32 1, %s5
  %s8 = scalar_select 0, %s7, %s5
  loop: start=0, step=1, limit=4
  $region2: #{_lambda_.23} parent=0 // loop_pre_header
    _
  $region3: #{_lambda_.23} parent=0 // loop_header
    %s10 = sphi 0, %s14
    %p11 = scmp.ge.s32.totalorder %s10, 4
    %s20 = sphi 0, %s22
    %s23 = sphi 0, %s20
    %s24 = sphi 0, %s23
    %s40 = sphi 0, %s24
    %s46 = sphi 0, %s48
    %s49 = sphi 0, %s46
    %s50 = sphi 0, %s49
    %s66 = sphi 0, %s50
    %s70 = sphi 0, %s70
    %s72 = sphi 0, %s70
    %s73 = sphi 0, %s72
    %s87 = sphi 0, %s73
    %s91 = sphi 0, %s91
    %s93 = sphi 0, %s91
    %s94 = sphi 0, %s93
    %s108 = sphi 0, %s94
    %s114 = sphi 0, %s116
    %s117 = sphi 0, %s114
    %s118 = sphi 0, %s117
    %s134 = sphi 0, %s118
  $region4: #{_lambda_.23} parent=0 // loop_header_branch
    %13 = sbr.rel (%p11) target = $region8
  $region5: #{_lambda_.23} parent=0 // loop_body
    %s15 = ssub.s32 %s10, 1
    %s16 = ssub.s32 %s10, 2
    %s17 = sadd.s32 %s10, 1
    %s18 = ssub.s32 %s10, %s17
    %p19 = scmp.eq.s32.totalorder %s18, 0
    %s21 = sadd.s32 %s20, 1
    %s22 = scalar_select %p19, %s20, %s21
    %p25 = pneg %p19
    %p26 = scmp.eq.s32.totalorder %s10, 1
    %p27 = por %p25, %p26
    %p28 = scmp.ne.s32.totalorder %s20, %s23
    %p29 = scmp.eq.s32.totalorder %s10, 0
    %p30 = por %p28, %p29
    %p31 = scmp.ne.s32.totalorder %s20, %s23
    %p32 = scmp.eq.s32.totalorder %s15, 1
    %p33 = por %p31, %p32
    %p34 = scmp.ne.s32.totalorder %s23, %s24
    %p35 = scmp.eq.s32.totalorder %s15, 0
    %p36 = por %p34, %p35
    %p37 = scmp.ne.s32.totalorder %s23, %s24
    %p38 = scmp.eq.s32.totalorder %s16, 1
    %p39 = por %p37, %p38
    %p41 = scmp.ne.s32.totalorder %s24, %s40
    %p42 = scmp.eq.s32.totalorder %s16, 0
    %p43 = por %p41, %p42
    %s44 = ssub.s32 %s10, %s17
    %p45 = scmp.eq.s32.totalorder %s44, 0
    %s47 = sadd.s32 %s46, 1
    %s48 = scalar_select %p45, %s46, %s47
    %p51 = pneg %p45
    %p52 = scmp.eq.s32.totalorder %s10, 1
    %p53 = por %p51, %p52
    %p54 = scmp.ne.s32.totalorder %s46, %s49
    %p55 = scmp.eq.s32.totalorder %s10, 0
    %p56 = por %p54, %p55
    %p57 = scmp.ne.s32.totalorder %s46, %s49
    %p58 = scmp.eq.s32.totalorder %s15, 1
    %p59 = por %p57, %p58
    %p60 = scmp.ne.s32.totalorder %s49, %s50
    %p61 = scmp.eq.s32.totalorder %s15, 0
    %p62 = por %p60, %p61
    %p63 = scmp.ne.s32.totalorder %s49, %s50
    %p64 = scmp.eq.s32.totalorder %s16, 1
    %p65 = por %p63, %p64
    %p67 = scmp.ne.s32.totalorder %s50, %s66
    %p68 = scmp.eq.s32.totalorder %s16, 0
    %p69 = por %p67, %p68
    %s71 = sadd.s32 %s70, 1
    %p74 = scmp.eq.s32.totalorder %s10, 1
    %p75 = scmp.ne.s32.totalorder %s70, %s72
    %p76 = scmp.eq.s32.totalorder %s10, 0
    %p77 = por %p75, %p76
    %p78 = scmp.ne.s32.totalorder %s70, %s72
    %p79 = scmp.eq.s32.totalorder %s15, 1
    %p80 = por %p78, %p79
    %p81 = scmp.ne.s32.totalorder %s72, %s73
    %p82 = scmp.eq.s32.totalorder %s15, 0
    %p83 = por %p81, %p82
    %p84 = scmp.ne.s32.totalorder %s72, %s73
    %p85 = scmp.eq.s32.totalorder %s16, 1
    %p86 = por %p84, %p85
    %p88 = scmp.ne.s32.totalorder %s73, %s87
    %p89 = scmp.eq.s32.totalorder %s16, 0
    %p90 = por %p88, %p89
    %s92 = sadd.s32 %s91, 1
    %p95 = scmp.eq.s32.totalorder %s10, 1
    %p96 = scmp.ne.s32.totalorder %s91, %s93
    %p97 = scmp.eq.s32.totalorder %s10, 0
    %p98 = por %p96, %p97
    %p99 = scmp.ne.s32.totalorder %s91, %s93
    %p100 = scmp.eq.s32.totalorder %s15, 1
    %p101 = por %p99, %p100
    %p102 = scmp.ne.s32.totalorder %s93, %s94
    %p103 = scmp.eq.s32.totalorder %s15, 0
    %p104 = por %p102, %p103
    %p105 = scmp.ne.s32.totalorder %s93, %s94
    %p106 = scmp.eq.s32.totalorder %s16, 1
    %p107 = por %p105, %p106
    %p109 = scmp.ne.s32.totalorder %s94, %s108
    %p110 = scmp.eq.s32.totalorder %s16, 0
    %p111 = por %p109, %p110
    %s112 = ssub.s32 %s10, %s17
    %p113 = scmp.eq.s32.totalorder %s112, 0
    %s115 = sadd.s32 %s114, 1
    %s116 = scalar_select %p113, %s114, %s115
    %p119 = pneg %p113
    %p120 = scmp.eq.s32.totalorder %s10, 1
    %p121 = por %p119, %p120
    %p122 = scmp.ne.s32.totalorder %s114, %s117
    %p123 = scmp.eq.s32.totalorder %s10, 0
    %p124 = por %p122, %p123
    %p125 = scmp.ne.s32.totalorder %s114, %s117
    %p126 = scmp.eq.s32.totalorder %s15, 1
    %p127 = por %p125, %p126
    %p128 = scmp.ne.s32.totalorder %s117, %s118
    %p129 = scmp.eq.s32.totalorder %s15, 0
    %p130 = por %p128, %p129
    %p131 = scmp.ne.s32.totalorder %s117, %s118
    %p132 = scmp.eq.s32.totalorder %s16, 1
    %p133 = por %p131, %p132
    %p135 = scmp.ne.s32.totalorder %s118, %s134
    %p136 = scmp.eq.s32.totalorder %s16, 0
    %p137 = por %p135, %p136
    %p138 = scmp.le.s32.totalorder 1, %s10
    %p139 = scmp.lt.s32.totalorder %s10, 3
    %p140 = pnand %p138, %p139
    %p141 = pneg %p140
    // Predicated region
    $region9: #{_lambda_.23} parent=5 // pred_check
      _
    $region10: #{_lambda_.23} parent=5 // pred_check_branch
      %143 = sbr.rel (%p140) target = $region12
    $region11: #{_lambda_.23} parent=5 // pred_region
      %s144 = ssub.s32 %s10, 1
      // Predicated region
      $region13: #{_lambda_.23} parent=11 // pred_check
        %p145 = pneg %p83
      $region14: #{_lambda_.23} parent=11 // pred_check_branch
        %147 = sbr.rel (%p145) target = $region16
      $region15: #{_lambda_.23} parent=11 // pred_region
        _
      $region16: #{_lambda_.23} parent=11 // pred_fallthru
        _
      // Predicated region
      $region17: #{_lambda_.23} parent=11 // pred_check
        %p148 = pneg %p104
      $region18: #{_lambda_.23} parent=11 // pred_check_branch
        %150 = sbr.rel (%p148) target = $region20
      $region19: #{_lambda_.23} parent=11 // pred_region
        _
      $region20: #{_lambda_.23} parent=11 // pred_fallthru
        _
    $region12: #{_lambda_.23} parent=5 // pred_fallthru
      _
    %p151 = scmp.lt.s32.totalorder %s10, 2
    // Predicated region
    $region21: #{_lambda_.23} parent=5 // pred_check
      %p152 = pneg %p151
    $region22: #{_lambda_.23} parent=5 // pred_check_branch
      %154 = sbr.rel (%p152) target = $region24
    $region23: #{_lambda_.23} parent=5 // pred_region
      // Predicated region
      $region25: #{_lambda_.23} parent=23 // pred_check
        %p155 = pneg %p30
      $region26: #{_lambda_.23} parent=23 // pred_check_branch
        %157 = sbr.rel (%p155) target = $region28
      $region27: #{_lambda_.23} parent=23 // pred_region
        %s158 = smul.u32 8, %s10
        %p159 = scmp.lt.s32.totalorder %s158, 15
        %s160 = scalar_select %p159, %s158, 15
        %s161 = smul.addr %s160, 4
        %s162 = scalar_lea.vmem %s0, %s161
        %s163 = smul.u32 8, %s10
      $region28: #{_lambda_.23} parent=23 // pred_fallthru
        _
      // Predicated region
      $region29: #{_lambda_.23} parent=23 // pred_check
        %p164 = pneg %p56
      $region30: #{_lambda_.23} parent=23 // pred_check_branch
        %166 = sbr.rel (%p164) target = $region32
      $region31: #{_lambda_.23} parent=23 // pred_region
        %s167 = smul.u32 8, %s10
        %p168 = scmp.lt.s32.totalorder %s167, 15
        %s169 = scalar_select %p168, %s167, 15
        %s170 = smul.addr %s169, 4
        %s171 = scalar_lea.vmem %s1, %s170
        %s172 = smul.u32 8, %s10
      $region32: #{_lambda_.23} parent=23 // pred_fallthru
        _
    $region24: #{_lambda_.23} parent=5 // pred_fallthru
      _
    %p173 = scmp.le.s32.totalorder 1, %s10
    %p174 = scmp.lt.s32.totalorder %s10, 3
    %p175 = pnand %p173, %p174
    %p176 = pneg %p175
    // Predicated region
    $region33: #{_lambda_.23} parent=5 // pred_check
      _
    $region34: #{_lambda_.23} parent=5 // pred_check_branch
      %178 = sbr.rel (%p175) target = $region36
    $region35: #{_lambda_.23} parent=5 // pred_region
      %s179 = ssub.s32 %s10, 1
      %s180 = smul.u32 8, %s15
      %p181 = scmp.lt.s32.totalorder %s180, 15
      %s182 = scalar_select %p181, %s180, 15
      %s183 = smul.addr %s182, 4
      %s184 = scalar_lea.vmem %s0, %s183
      %p185 = pneg %p36
      %p186 = pneg %p33
      %s187 = smul.u32 8, %s15
      %p188 = scmp.lt.s32.totalorder %s187, 15
      %s189 = scalar_select %p188, %s187, 15
      %s190 = smul.addr %s189, 4
      %s191 = scalar_lea.vmem %s1, %s190
      %p192 = pneg %p62
      %p193 = pneg %p59
      %p194 = pneg %p83
      %p195 = pneg %p80
      %p196 = pneg %p104
      %p197 = pneg %p101
      %p198 = pneg %p130
      %p199 = pneg %p127
      %s200 = smul.u32 8, %s15
      %p201 = scmp.lt.s32.totalorder %s200, 15
      %s202 = scalar_select %p201, %s200, 15
      %s203 = smul.addr %s202, 4
      %s204 = scalar_lea.vmem %s4, %s203
      %s205 = smul.u32 8, %s15
      %p206 = scmp.lt.s32.totalorder %s205, 15
      %s207 = scalar_select %p206, %s205, 15
      %s208 = smul.addr %s207, 4
      %s209 = scalar_lea.vmem %s0, %s208
      %s210 = smul.u32 8, %s15
      %s211 = smul.u32 8, %s15
      %p212 = scmp.lt.s32.totalorder %s211, 15
      %s213 = scalar_select %p212, %s211, 15
      %s214 = smul.addr %s213, 4
      %s215 = scalar_lea.vmem %s1, %s214
      %s216 = smul.u32 8, %s15
      %s217 = smul.u32 8, %s15
      %p218 = scmp.lt.s32.totalorder %s217, 15
      %s219 = scalar_select %p218, %s217, 15
      %s220 = smul.addr %s219, 4
      %s221 = scalar_lea.vmem %s4, %s220
      %s222 = smul.u32 8, %s15
      %v223 = vld [vmem:[%s209] sm:$0xf]
      %v224 = vld [vmem:[%s209 + $0x4] sm:$0xf]
      %v225 = vld [vmem:[%s209 + $0x8] sm:$0xf]
      %v226 = vld [vmem:[%s209 + $0xc] sm:$0xf]
      %v227 = vld [vmem:[%s209 + $0x10] sm:$0xf]
      %v228 = vld [vmem:[%s209 + $0x14] sm:$0xf]
      %v229 = vld [vmem:[%s209 + $0x18] sm:$0xf]
      %v230 = vld [vmem:[%s209 + $0x1c] sm:$0xf]
      %v231 = vunpack.c.l.bf16 %v223
      %v232 = vunpack.c.l.bf16 %v224
      %v233 = vunpack.c.l.bf16 %v225
      %v234 = vunpack.c.l.bf16 %v226
      %v235 = vunpack.c.l.bf16 %v227
      %v236 = vunpack.c.l.bf16 %v228
      %v237 = vunpack.c.l.bf16 %v229
      %v238 = vunpack.c.l.bf16 %v230
      %v239 = vld [vmem:[%s2] sm:$0x1]
      %v241 = vperm.slane %v239, 0
      %v243 = vmul.f32 %v231, %v241
      %v244 = vmul.f32 %v232, %v241
      %v245 = vmul.f32 %v233, %v241
      %v246 = vmul.f32 %v234, %v241
      %v247 = vmul.f32 %v235, %v241
      %v248 = vmul.f32 %v236, %v241
      %v249 = vmul.f32 %v237, %v241
      %v250 = vmul.f32 %v238, %v241
      %v251 = vld [vmem:[%s3] sm:$0x1]
      %v253 = vperm.slane %v251, 0
      %v255 = vadd.f32 %v243, %v253
      %v256 = vadd.f32 %v244, %v253
      %v257 = vadd.f32 %v245, %v253
      %v258 = vadd.f32 %v246, %v253
      %v259 = vadd.f32 %v247, %v253
      %v260 = vadd.f32 %v248, %v253
      %v261 = vadd.f32 %v249, %v253
      %v262 = vadd.f32 %v250, %v253
      %v263 = vld [vmem:[%s215] sm:$0xf]
      %v264 = vld [vmem:[%s215 + $0x4] sm:$0xf]
      %v265 = vld [vmem:[%s215 + $0x8] sm:$0xf]
      %v266 = vld [vmem:[%s215 + $0xc] sm:$0xf]
      %v267 = vld [vmem:[%s215 + $0x10] sm:$0xf]
      %v268 = vld [vmem:[%s215 + $0x14] sm:$0xf]
      %v269 = vld [vmem:[%s215 + $0x18] sm:$0xf]
      %v270 = vld [vmem:[%s215 + $0x1c] sm:$0xf]
      %v271 = vunpack.c.l.bf16 %v263
      %v272 = vunpack.c.l.bf16 %v264
      %v273 = vunpack.c.l.bf16 %v265
      %v274 = vunpack.c.l.bf16 %v266
      %v275 = vunpack.c.l.bf16 %v267
      %v276 = vunpack.c.l.bf16 %v268
      %v277 = vunpack.c.l.bf16 %v269
      %v278 = vunpack.c.l.bf16 %v270
      %v279 = vadd.f32 %v255, %v271
      %v280 = vadd.f32 %v256, %v272
      %v281 = vadd.f32 %v257, %v273
      %v282 = vadd.f32 %v258, %v274
      %v283 = vadd.f32 %v259, %v275
      %v284 = vadd.f32 %v260, %v276
      %v285 = vadd.f32 %v261, %v277
      %v286 = vadd.f32 %v262, %v278
      %v287 = vmax.f32 %v279, 0.0
      %v288 = vmax.f32 %v280, 0.0
      %v289 = vmax.f32 %v281, 0.0
      %v290 = vmax.f32 %v282, 0.0
      %v291 = vmax.f32 %v283, 0.0
      %v292 = vmax.f32 %v284, 0.0
      %v293 = vmax.f32 %v285, 0.0
      %v294 = vmax.f32 %v286, 0.0
      %v295 = vpack.c.bf16 %v287, %v287
      %v296 = vpack.c.bf16 %v288, %v288
      %v297 = vpack.c.bf16 %v289, %v289
      %v298 = vpack.c.bf16 %v290, %v290
      %v299 = vpack.c.bf16 %v291, %v291
      %v300 = vpack.c.bf16 %v292, %v292
      %v301 = vpack.c.bf16 %v293, %v293
      %v302 = vpack.c.bf16 %v294, %v294
      %303 = vst [vmem:[%s221] sm:$0xf] %v295
      %304 = vst [vmem:[%s221 + $0x4] sm:$0xf] %v296
      %305 = vst [vmem:[%s221 + $0x8] sm:$0xf] %v297
      %306 = vst [vmem:[%s221 + $0xc] sm:$0xf] %v298
      %307 = vst [vmem:[%s221 + $0x10] sm:$0xf] %v299
      %308 = vst [vmem:[%s221 + $0x14] sm:$0xf] %v300
      %309 = vst [vmem:[%s221 + $0x18] sm:$0xf] %v301
      %310 = vst [vmem:[%s221 + $0x1c] sm:$0xf] %v302
      %s311 = smul.u32 8, %s15
      %p312 = scmp.lt.s32.totalorder %s311, 15
      %s313 = scalar_select %p312, %s311, 15
      %s314 = smul.addr %s313, 4
      %s315 = scalar_lea.vmem %s4, %s314
      // Predicated region
      $region37: #{_lambda_.23} parent=35 // pred_check
        %p316 = pneg %p127
      $region38: #{_lambda_.23} parent=35 // pred_check_branch
        %318 = sbr.rel (%p316) target = $region40
      $region39: #{_lambda_.23} parent=35 // pred_region
        %s319 = smul.u32 8, %s15
      $region40: #{_lambda_.23} parent=35 // pred_fallthru
        _
    $region36: #{_lambda_.23} parent=5 // pred_fallthru
      _
    %p320 = scmp.le.s32.totalorder 2, %s10
    // Predicated region
    $region41: #{_lambda_.23} parent=5 // pred_check
      %p321 = pneg %p320
    $region42: #{_lambda_.23} parent=5 // pred_check_branch
      %323 = sbr.rel (%p321) target = $region44
    $region43: #{_lambda_.23} parent=5 // pred_region
      %s324 = ssub.s32 %s10, 2
      // Predicated region
      $region45: #{_lambda_.23} parent=43 // pred_check
        %p325 = pneg %p133
      $region46: #{_lambda_.23} parent=43 // pred_check_branch
        %327 = sbr.rel (%p325) target = $region48
      $region47: #{_lambda_.23} parent=43 // pred_region
        %s328 = smul.u32 8, %s16
        %p329 = scmp.lt.s32.totalorder %s328, 15
        %s330 = scalar_select %p329, %s328, 15
        %s331 = smul.addr %s330, 4
        %s332 = scalar_lea.vmem %s4, %s331
      $region48: #{_lambda_.23} parent=43 // pred_fallthru
        _
    $region44: #{_lambda_.23} parent=5 // pred_fallthru
      _
  $region6: #{_lambda_.23} parent=0 // loop_footer
    %s14 = sadd.s32 1, %s10
  $region7: #{_lambda_.23} parent=0 // loop_footer_branch
    %9 = sbr.rel target = $region3
  $region8: #{_lambda_.23} parent=0 // loop_exit
    _

// kernel: _lambda_.25
$region0: #{_lambda_.25}
  #allocation0 [shape = 'u32[]', space=smem, size = 0x4, offset = 0x4, fixed_abs, tag = 'smem constant byte address 0x4 - core index']
  #allocation1 [shape = 'u32[72,128]{1,0:T(1,128)}', space=vmem, size = 0x9000, scoped, tag = 'internal scratch']
  %s0 = inlined_call_operand.vmem [shape: bf16[32,128], index: 0, kind: input, shape index: {}]
  %s1 = inlined_call_operand.vmem [shape: f32[1,128], index: 1, kind: input, shape index: {}]
  %s2 = inlined_call_operand.vmem [shape: f32[1,128], index: 2, kind: input, shape index: {}]
  %s3 = inlined_call_operand.vmem [shape: bf16[32,128], index: 3, kind: output, shape index: {}]
  %s4 = sld [smem:[#allocation0]]
  $region45: #{_lambda_.25} parent=0
    _
  %s6 = ssub.s32 1, %s4
  %s7 = scalar_select 0, %s6, %s4
  loop: start=0, step=1, limit=4
  $region2: #{_lambda_.25} parent=0 // loop_pre_header
    _
  $region3: #{_lambda_.25} parent=0 // loop_header
    %s9 = sphi 0, %s13
    %p10 = scmp.ge.s32.totalorder %s9, 4
    %s19 = sphi 0, %s21
    %s22 = sphi 0, %s19
    %s23 = sphi 0, %s22
    %s39 = sphi 0, %s23
    %s43 = sphi 0, %s43
    %s45 = sphi 0, %s43
    %s46 = sphi 0, %s45
    %s60 = sphi 0, %s46
    %s64 = sphi 0, %s64
    %s66 = sphi 0, %s64
    %s67 = sphi 0, %s66
    %s81 = sphi 0, %s67
    %s87 = sphi 0, %s89
    %s90 = sphi 0, %s87
    %s91 = sphi 0, %s90
    %s107 = sphi 0, %s91
  $region4: #{_lambda_.25} parent=0 // loop_header_branch
    %12 = sbr.rel (%p10) target = $region8
  $region5: #{_lambda_.25} parent=0 // loop_body
    %s14 = ssub.s32 %s9, 1
    %s15 = ssub.s32 %s9, 2
    %s16 = sadd.s32 %s9, 1
    %s17 = ssub.s32 %s9, %s16
    %p18 = scmp.eq.s32.totalorder %s17, 0
    %s20 = sadd.s32 %s19, 1
    %s21 = scalar_select %p18, %s19, %s20
    %p24 = pneg %p18
    %p25 = scmp.eq.s32.totalorder %s9, 1
    %p26 = por %p24, %p25
    %p27 = scmp.ne.s32.totalorder %s19, %s22
    %p28 = scmp.eq.s32.totalorder %s9, 0
    %p29 = por %p27, %p28
    %p30 = scmp.ne.s32.totalorder %s19, %s22
    %p31 = scmp.eq.s32.totalorder %s14, 1
    %p32 = por %p30, %p31
    %p33 = scmp.ne.s32.totalorder %s22, %s23
    %p34 = scmp.eq.s32.totalorder %s14, 0
    %p35 = por %p33, %p34
    %p36 = scmp.ne.s32.totalorder %s22, %s23
    %p37 = scmp.eq.s32.totalorder %s15, 1
    %p38 = por %p36, %p37
    %p40 = scmp.ne.s32.totalorder %s23, %s39
    %p41 = scmp.eq.s32.totalorder %s15, 0
    %p42 = por %p40, %p41
    %s44 = sadd.s32 %s43, 1
    %p47 = scmp.eq.s32.totalorder %s9, 1
    %p48 = scmp.ne.s32.totalorder %s43, %s45
    %p49 = scmp.eq.s32.totalorder %s9, 0
    %p50 = por %p48, %p49
    %p51 = scmp.ne.s32.totalorder %s43, %s45
    %p52 = scmp.eq.s32.totalorder %s14, 1
    %p53 = por %p51, %p52
    %p54 = scmp.ne.s32.totalorder %s45, %s46
    %p55 = scmp.eq.s32.totalorder %s14, 0
    %p56 = por %p54, %p55
    %p57 = scmp.ne.s32.totalorder %s45, %s46
    %p58 = scmp.eq.s32.totalorder %s15, 1
    %p59 = por %p57, %p58
    %p61 = scmp.ne.s32.totalorder %s46, %s60
    %p62 = scmp.eq.s32.totalorder %s15, 0
    %p63 = por %p61, %p62
    %s65 = sadd.s32 %s64, 1
    %p68 = scmp.eq.s32.totalorder %s9, 1
    %p69 = scmp.ne.s32.totalorder %s64, %s66
    %p70 = scmp.eq.s32.totalorder %s9, 0
    %p71 = por %p69, %p70
    %p72 = scmp.ne.s32.totalorder %s64, %s66
    %p73 = scmp.eq.s32.totalorder %s14, 1
    %p74 = por %p72, %p73
    %p75 = scmp.ne.s32.totalorder %s66, %s67
    %p76 = scmp.eq.s32.totalorder %s14, 0
    %p77 = por %p75, %p76
    %p78 = scmp.ne.s32.totalorder %s66, %s67
    %p79 = scmp.eq.s32.totalorder %s15, 1
    %p80 = por %p78, %p79
    %p82 = scmp.ne.s32.totalorder %s67, %s81
    %p83 = scmp.eq.s32.totalorder %s15, 0
    %p84 = por %p82, %p83
    %s85 = ssub.s32 %s9, %s16
    %p86 = scmp.eq.s32.totalorder %s85, 0
    %s88 = sadd.s32 %s87, 1
    %s89 = scalar_select %p86, %s87, %s88
    %p92 = pneg %p86
    %p93 = scmp.eq.s32.totalorder %s9, 1
    %p94 = por %p92, %p93
    %p95 = scmp.ne.s32.totalorder %s87, %s90
    %p96 = scmp.eq.s32.totalorder %s9, 0
    %p97 = por %p95, %p96
    %p98 = scmp.ne.s32.totalorder %s87, %s90
    %p99 = scmp.eq.s32.totalorder %s14, 1
    %p100 = por %p98, %p99
    %p101 = scmp.ne.s32.totalorder %s90, %s91
    %p102 = scmp.eq.s32.totalorder %s14, 0
    %p103 = por %p101, %p102
    %p104 = scmp.ne.s32.totalorder %s90, %s91
    %p105 = scmp.eq.s32.totalorder %s15, 1
    %p106 = por %p104, %p105
    %p108 = scmp.ne.s32.totalorder %s91, %s107
    %p109 = scmp.eq.s32.totalorder %s15, 0
    %p110 = por %p108, %p109
    %p111 = scmp.le.s32.totalorder 1, %s9
    %p112 = scmp.lt.s32.totalorder %s9, 3
    %p113 = pnand %p111, %p112
    %p114 = pneg %p113
    // Predicated region
    $region9: #{_lambda_.25} parent=5 // pred_check
      _
    $region10: #{_lambda_.25} parent=5 // pred_check_branch
      %116 = sbr.rel (%p113) target = $region12
    $region11: #{_lambda_.25} parent=5 // pred_region
      %s117 = ssub.s32 %s9, 1
      // Predicated region
      $region13: #{_lambda_.25} parent=11 // pred_check
        %p118 = pneg %p56
      $region14: #{_lambda_.25} parent=11 // pred_check_branch
        %120 = sbr.rel (%p118) target = $region16
      $region15: #{_lambda_.25} parent=11 // pred_region
        _
      $region16: #{_lambda_.25} parent=11 // pred_fallthru
        _
      // Predicated region
      $region17: #{_lambda_.25} parent=11 // pred_check
        %p121 = pneg %p77
      $region18: #{_lambda_.25} parent=11 // pred_check_branch
        %123 = sbr.rel (%p121) target = $region20
      $region19: #{_lambda_.25} parent=11 // pred_region
        _
      $region20: #{_lambda_.25} parent=11 // pred_fallthru
        _
    $region12: #{_lambda_.25} parent=5 // pred_fallthru
      _
    %p124 = scmp.lt.s32.totalorder %s9, 2
    // Predicated region
    $region21: #{_lambda_.25} parent=5 // pred_check
      %p125 = pneg %p124
    $region22: #{_lambda_.25} parent=5 // pred_check_branch
      %127 = sbr.rel (%p125) target = $region24
    $region23: #{_lambda_.25} parent=5 // pred_region
      // Predicated region
      $region25: #{_lambda_.25} parent=23 // pred_check
        %p128 = pneg %p29
      $region26: #{_lambda_.25} parent=23 // pred_check_branch
        %130 = sbr.rel (%p128) target = $region28
      $region27: #{_lambda_.25} parent=23 // pred_region
        %s131 = smul.u32 2, %s9
        %p132 = scmp.lt.s32.totalorder %s131, 3
        %s133 = scalar_select %p132, %s131, 3
        %s134 = smul.addr %s133, 4
        %s135 = scalar_lea.vmem %s0, %s134
        %s136 = smul.u32 2, %s9
      $region28: #{_lambda_.25} parent=23 // pred_fallthru
        _
    $region24: #{_lambda_.25} parent=5 // pred_fallthru
      _
    %p137 = scmp.le.s32.totalorder 1, %s9
    %p138 = scmp.lt.s32.totalorder %s9, 3
    %p139 = pnand %p137, %p138
    %p140 = pneg %p139
    // Predicated region
    $region29: #{_lambda_.25} parent=5 // pred_check
      _
    $region30: #{_lambda_.25} parent=5 // pred_check_branch
      %142 = sbr.rel (%p139) target = $region32
    $region31: #{_lambda_.25} parent=5 // pred_region
      %s143 = ssub.s32 %s9, 1
      %s144 = smul.u32 2, %s14
      %p145 = scmp.lt.s32.totalorder %s144, 3
      %s146 = scalar_select %p145, %s144, 3
      %s147 = smul.addr %s146, 4
      %s148 = scalar_lea.vmem %s0, %s147
      %p149 = pneg %p35
      %p150 = pneg %p32
      %p151 = pneg %p56
      %p152 = pneg %p53
      %p153 = pneg %p77
      %p154 = pneg %p74
      %p155 = pneg %p103
      %p156 = pneg %p100
      %s157 = smul.u32 2, %s14
      %p158 = scmp.lt.s32.totalorder %s157, 3
      %s159 = scalar_select %p158, %s157, 3
      %s160 = smul.addr %s159, 4
      %s161 = scalar_lea.vmem %s3, %s160
      %s162 = smul.u32 2, %s14
      %p163 = scmp.lt.s32.totalorder %s162, 3
      %s164 = scalar_select %p163, %s162, 3
      %s165 = smul.addr %s164, 4
      %s166 = scalar_lea.vmem %s0, %s165
      %s167 = smul.u32 2, %s14
      %s168 = smul.u32 2, %s14
      %p169 = scmp.lt.s32.totalorder %s168, 3
      %s170 = scalar_select %p169, %s168, 3
      %s171 = smul.addr %s170, 4
      %s172 = scalar_lea.vmem %s3, %s171
      %s173 = smul.u32 2, %s14
      %v174 = vld [vmem:[%s166] sm:$0xf]
      %v175 = vld [vmem:[%s166 + $0x4] sm:$0xf]
      %v176 = vunpack.c.l.bf16 %v174
      %v177 = vunpack.c.l.bf16 %v175
      %v178 = vld [vmem:[%s1] sm:$0x1]
      %v180 = vperm.slane %v178, 0
      %v182 = vmul.f32 %v176, %v180
      %v183 = vmul.f32 %v177, %v180
      %v184 = vld [vmem:[%s2] sm:$0x1]
      %v186 = vperm.slane %v184, 0
      %v188 = vadd.f32 %v182, %v186
      %v189 = vadd.f32 %v183, %v186
      %v190 = vmax.f32 %v188, 0.0
      %v191 = vmax.f32 %v189, 0.0
      %v192 = vpack.c.bf16 %v190, %v190
      %v193 = vpack.c.bf16 %v191, %v191
      %194 = vst [vmem:[%s172] sm:$0xf] %v192
      %195 = vst [vmem:[%s172 + $0x4] sm:$0xf] %v193
      %s196 = smul.u32 2, %s14
      %p197 = scmp.lt.s32.totalorder %s196, 3
      %s198 = scalar_select %p197, %s196, 3
      %s199 = smul.addr %s198, 4
      %s200 = scalar_lea.vmem %s3, %s199
      // Predicated region
      $region33: #{_lambda_.25} parent=31 // pred_check
        %p201 = pneg %p100
      $region34: #{_lambda_.25} parent=31 // pred_check_branch
        %203 = sbr.rel (%p201) target = $region36
      $region35: #{_lambda_.25} parent=31 // pred_region
        %s204 = smul.u32 2, %s14
      $region36: #{_lambda_.25} parent=31 // pred_fallthru
        _
    $region32: #{_lambda_.25} parent=5 // pred_fallthru
      _
    %p205 = scmp.le.s32.totalorder 2, %s9
    // Predicated region
    $region37: #{_lambda_.25} parent=5 // pred_check
      %p206 = pneg %p205
    $region38: #{_lambda_.25} parent=5 // pred_check_branch
      %208 = sbr.rel (%p206) target = $region40
    $region39: #{_lambda_.25} parent=5 // pred_region
      %s209 = ssub.s32 %s9, 2
      // Predicated region
      $region41: #{_lambda_.25} parent=39 // pred_check
        %p210 = pneg %p106
      $region42: #{_lambda_.25} parent=39 // pred_check_branch
        %212 = sbr.rel (%p210) target = $region44
      $region43: #{_lambda_.25} parent=39 // pred_region
        %s213 = smul.u32 2, %s15
        %p214 = scmp.lt.s32.totalorder %s213, 3
        %s215 = scalar_select %p214, %s213, 3
        %s216 = smul.addr %s215, 4
        %s217 = scalar_lea.vmem %s3, %s216
      $region44: #{_lambda_.25} parent=39 // pred_fallthru
        _
    $region40: #{_lambda_.25} parent=5 // pred_fallthru
      _
  $region6: #{_lambda_.25} parent=0 // loop_footer
    %s13 = sadd.s32 1, %s9
  $region7: #{_lambda_.25} parent=0 // loop_footer_branch
    %8 = sbr.rel target = $region3
  $region8: #{_lambda_.25} parent=0 // loop_exit
    _

// kernel: _lambda_.27
$region0: #{_lambda_.27}
  #allocation0 [shape = 'u32[]', space=smem, size = 0x4, offset = 0x4, fixed_abs, tag = 'smem constant byte address 0x4 - core index']
  #allocation1 [shape = 'u32[72,128]{1,0:T(1,128)}', space=vmem, size = 0x9000, scoped, tag = 'internal scratch']
  %s0 = inlined_call_operand.vmem [shape: bf16[32,128], index: 0, kind: input, shape index: {}]
  %s1 = inlined_call_operand.vmem [shape: bf16[32,128], index: 1, kind: input, shape index: {}]
  %s2 = inlined_call_operand.vmem [shape: f32[1,128], index: 2, kind: input, shape index: {}]
  %s3 = inlined_call_operand.vmem [shape: f32[1,128], index: 3, kind: input, shape index: {}]
  %s4 = inlined_call_operand.vmem [shape: bf16[32,128], index: 4, kind: output, shape index: {}]
  %s5 = sld [smem:[#allocation0]]
  $region49: #{_lambda_.27} parent=0
    _
  %s7 = ssub.s32 1, %s5
  %s8 = scalar_select 0, %s7, %s5
  loop: start=0, step=1, limit=4
  $region2: #{_lambda_.27} parent=0 // loop_pre_header
    _
  $region3: #{_lambda_.27} parent=0 // loop_header
    %s10 = sphi 0, %s14
    %p11 = scmp.ge.s32.totalorder %s10, 4
    %s20 = sphi 0, %s22
    %s23 = sphi 0, %s20
    %s24 = sphi 0, %s23
    %s40 = sphi 0, %s24
    %s46 = sphi 0, %s48
    %s49 = sphi 0, %s46
    %s50 = sphi 0, %s49
    %s66 = sphi 0, %s50
    %s70 = sphi 0, %s70
    %s72 = sphi 0, %s70
    %s73 = sphi 0, %s72
    %s87 = sphi 0, %s73
    %s91 = sphi 0, %s91
    %s93 = sphi 0, %s91
    %s94 = sphi 0, %s93
    %s108 = sphi 0, %s94
    %s114 = sphi 0, %s116
    %s117 = sphi 0, %s114
    %s118 = sphi 0, %s117
    %s134 = sphi 0, %s118
  $region4: #{_lambda_.27} parent=0 // loop_header_branch
    %13 = sbr.rel (%p11) target = $region8
  $region5: #{_lambda_.27} parent=0 // loop_body
    %s15 = ssub.s32 %s10, 1
    %s16 = ssub.s32 %s10, 2
    %s17 = sadd.s32 %s10, 1
    %s18 = ssub.s32 %s10, %s17
    %p19 = scmp.eq.s32.totalorder %s18, 0
    %s21 = sadd.s32 %s20, 1
    %s22 = scalar_select %p19, %s20, %s21
    %p25 = pneg %p19
    %p26 = scmp.eq.s32.totalorder %s10, 1
    %p27 = por %p25, %p26
    %p28 = scmp.ne.s32.totalorder %s20, %s23
    %p29 = scmp.eq.s32.totalorder %s10, 0
    %p30 = por %p28, %p29
    %p31 = scmp.ne.s32.totalorder %s20, %s23
    %p32 = scmp.eq.s32.totalorder %s15, 1
    %p33 = por %p31, %p32
    %p34 = scmp.ne.s32.totalorder %s23, %s24
    %p35 = scmp.eq.s32.totalorder %s15, 0
    %p36 = por %p34, %p35
    %p37 = scmp.ne.s32.totalorder %s23, %s24
    %p38 = scmp.eq.s32.totalorder %s16, 1
    %p39 = por %p37, %p38
    %p41 = scmp.ne.s32.totalorder %s24, %s40
    %p42 = scmp.eq.s32.totalorder %s16, 0
    %p43 = por %p41, %p42
    %s44 = ssub.s32 %s10, %s17
    %p45 = scmp.eq.s32.totalorder %s44, 0
    %s47 = sadd.s32 %s46, 1
    %s48 = scalar_select %p45, %s46, %s47
    %p51 = pneg %p45
    %p52 = scmp.eq.s32.totalorder %s10, 1
    %p53 = por %p51, %p52
    %p54 = scmp.ne.s32.totalorder %s46, %s49
    %p55 = scmp.eq.s32.totalorder %s10, 0
    %p56 = por %p54, %p55
    %p57 = scmp.ne.s32.totalorder %s46, %s49
    %p58 = scmp.eq.s32.totalorder %s15, 1
    %p59 = por %p57, %p58
    %p60 = scmp.ne.s32.totalorder %s49, %s50
    %p61 = scmp.eq.s32.totalorder %s15, 0
    %p62 = por %p60, %p61
    %p63 = scmp.ne.s32.totalorder %s49, %s50
    %p64 = scmp.eq.s32.totalorder %s16, 1
    %p65 = por %p63, %p64
    %p67 = scmp.ne.s32.totalorder %s50, %s66
    %p68 = scmp.eq.s32.totalorder %s16, 0
    %p69 = por %p67, %p68
    %s71 = sadd.s32 %s70, 1
    %p74 = scmp.eq.s32.totalorder %s10, 1
    %p75 = scmp.ne.s32.totalorder %s70, %s72
    %p76 = scmp.eq.s32.totalorder %s10, 0
    %p77 = por %p75, %p76
    %p78 = scmp.ne.s32.totalorder %s70, %s72
    %p79 = scmp.eq.s32.totalorder %s15, 1
    %p80 = por %p78, %p79
    %p81 = scmp.ne.s32.totalorder %s72, %s73
    %p82 = scmp.eq.s32.totalorder %s15, 0
    %p83 = por %p81, %p82
    %p84 = scmp.ne.s32.totalorder %s72, %s73
    %p85 = scmp.eq.s32.totalorder %s16, 1
    %p86 = por %p84, %p85
    %p88 = scmp.ne.s32.totalorder %s73, %s87
    %p89 = scmp.eq.s32.totalorder %s16, 0
    %p90 = por %p88, %p89
    %s92 = sadd.s32 %s91, 1
    %p95 = scmp.eq.s32.totalorder %s10, 1
    %p96 = scmp.ne.s32.totalorder %s91, %s93
    %p97 = scmp.eq.s32.totalorder %s10, 0
    %p98 = por %p96, %p97
    %p99 = scmp.ne.s32.totalorder %s91, %s93
    %p100 = scmp.eq.s32.totalorder %s15, 1
    %p101 = por %p99, %p100
    %p102 = scmp.ne.s32.totalorder %s93, %s94
    %p103 = scmp.eq.s32.totalorder %s15, 0
    %p104 = por %p102, %p103
    %p105 = scmp.ne.s32.totalorder %s93, %s94
    %p106 = scmp.eq.s32.totalorder %s16, 1
    %p107 = por %p105, %p106
    %p109 = scmp.ne.s32.totalorder %s94, %s108
    %p110 = scmp.eq.s32.totalorder %s16, 0
    %p111 = por %p109, %p110
    %s112 = ssub.s32 %s10, %s17
    %p113 = scmp.eq.s32.totalorder %s112, 0
    %s115 = sadd.s32 %s114, 1
    %s116 = scalar_select %p113, %s114, %s115
    %p119 = pneg %p113
    %p120 = scmp.eq.s32.totalorder %s10, 1
    %p121 = por %p119, %p120
    %p122 = scmp.ne.s32.totalorder %s114, %s117
    %p123 = scmp.eq.s32.totalorder %s10, 0
    %p124 = por %p122, %p123
    %p125 = scmp.ne.s32.totalorder %s114, %s117
    %p126 = scmp.eq.s32.totalorder %s15, 1
    %p127 = por %p125, %p126
    %p128 = scmp.ne.s32.totalorder %s117, %s118
    %p129 = scmp.eq.s32.totalorder %s15, 0
    %p130 = por %p128, %p129
    %p131 = scmp.ne.s32.totalorder %s117, %s118
    %p132 = scmp.eq.s32.totalorder %s16, 1
    %p133 = por %p131, %p132
    %p135 = scmp.ne.s32.totalorder %s118, %s134
    %p136 = scmp.eq.s32.totalorder %s16, 0
    %p137 = por %p135, %p136
    %p138 = scmp.le.s32.totalorder 1, %s10
    %p139 = scmp.lt.s32.totalorder %s10, 3
    %p140 = pnand %p138, %p139
    %p141 = pneg %p140
    // Predicated region
    $region9: #{_lambda_.27} parent=5 // pred_check
      _
    $region10: #{_lambda_.27} parent=5 // pred_check_branch
      %143 = sbr.rel (%p140) target = $region12
    $region11: #{_lambda_.27} parent=5 // pred_region
      %s144 = ssub.s32 %s10, 1
      // Predicated region
      $region13: #{_lambda_.27} parent=11 // pred_check
        %p145 = pneg %p83
      $region14: #{_lambda_.27} parent=11 // pred_check_branch
        %147 = sbr.rel (%p145) target = $region16
      $region15: #{_lambda_.27} parent=11 // pred_region
        _
      $region16: #{_lambda_.27} parent=11 // pred_fallthru
        _
      // Predicated region
      $region17: #{_lambda_.27} parent=11 // pred_check
        %p148 = pneg %p104
      $region18: #{_lambda_.27} parent=11 // pred_check_branch
        %150 = sbr.rel (%p148) target = $region20
      $region19: #{_lambda_.27} parent=11 // pred_region
        _
      $region20: #{_lambda_.27} parent=11 // pred_fallthru
        _
    $region12: #{_lambda_.27} parent=5 // pred_fallthru
      _
    %p151 = scmp.lt.s32.totalorder %s10, 2
    // Predicated region
    $region21: #{_lambda_.27} parent=5 // pred_check
      %p152 = pneg %p151
    $region22: #{_lambda_.27} parent=5 // pred_check_branch
      %154 = sbr.rel (%p152) target = $region24
    $region23: #{_lambda_.27} parent=5 // pred_region
      // Predicated region
      $region25: #{_lambda_.27} parent=23 // pred_check
        %p155 = pneg %p30
      $region26: #{_lambda_.27} parent=23 // pred_check_branch
        %157 = sbr.rel (%p155) target = $region28
      $region27: #{_lambda_.27} parent=23 // pred_region
        %s158 = smul.u32 2, %s10
        %p159 = scmp.lt.s32.totalorder %s158, 3
        %s160 = scalar_select %p159, %s158, 3
        %s161 = smul.addr %s160, 4
        %s162 = scalar_lea.vmem %s0, %s161
        %s163 = smul.u32 2, %s10
      $region28: #{_lambda_.27} parent=23 // pred_fallthru
        _
      // Predicated region
      $region29: #{_lambda_.27} parent=23 // pred_check
        %p164 = pneg %p56
      $region30: #{_lambda_.27} parent=23 // pred_check_branch
        %166 = sbr.rel (%p164) target = $region32
      $region31: #{_lambda_.27} parent=23 // pred_region
        %s167 = smul.u32 2, %s10
        %p168 = scmp.lt.s32.totalorder %s167, 3
        %s169 = scalar_select %p168, %s167, 3
        %s170 = smul.addr %s169, 4
        %s171 = scalar_lea.vmem %s1, %s170
        %s172 = smul.u32 2, %s10
      $region32: #{_lambda_.27} parent=23 // pred_fallthru
        _
    $region24: #{_lambda_.27} parent=5 // pred_fallthru
      _
    %p173 = scmp.le.s32.totalorder 1, %s10
    %p174 = scmp.lt.s32.totalorder %s10, 3
    %p175 = pnand %p173, %p174
    %p176 = pneg %p175
    // Predicated region
    $region33: #{_lambda_.27} parent=5 // pred_check
      _
    $region34: #{_lambda_.27} parent=5 // pred_check_branch
      %178 = sbr.rel (%p175) target = $region36
    $region35: #{_lambda_.27} parent=5 // pred_region
      %s179 = ssub.s32 %s10, 1
      %s180 = smul.u32 2, %s15
      %p181 = scmp.lt.s32.totalorder %s180, 3
      %s182 = scalar_select %p181, %s180, 3
      %s183 = smul.addr %s182, 4
      %s184 = scalar_lea.vmem %s0, %s183
      %p185 = pneg %p36
      %p186 = pneg %p33
      %s187 = smul.u32 2, %s15
      %p188 = scmp.lt.s32.totalorder %s187, 3
      %s189 = scalar_select %p188, %s187, 3
      %s190 = smul.addr %s189, 4
      %s191 = scalar_lea.vmem %s1, %s190
      %p192 = pneg %p62
      %p193 = pneg %p59
      %p194 = pneg %p83
      %p195 = pneg %p80
      %p196 = pneg %p104
      %p197 = pneg %p101
      %p198 = pneg %p130
      %p199 = pneg %p127
      %s200 = smul.u32 2, %s15
      %p201 = scmp.lt.s32.totalorder %s200, 3
      %s202 = scalar_select %p201, %s200, 3
      %s203 = smul.addr %s202, 4
      %s204 = scalar_lea.vmem %s4, %s203
      %s205 = smul.u32 2, %s15
      %p206 = scmp.lt.s32.totalorder %s205, 3
      %s207 = scalar_select %p206, %s205, 3
      %s208 = smul.addr %s207, 4
      %s209 = scalar_lea.vmem %s0, %s208
      %s210 = smul.u32 2, %s15
      %s211 = smul.u32 2, %s15
      %p212 = scmp.lt.s32.totalorder %s211, 3
      %s213 = scalar_select %p212, %s211, 3
      %s214 = smul.addr %s213, 4
      %s215 = scalar_lea.vmem %s1, %s214
      %s216 = smul.u32 2, %s15
      %s217 = smul.u32 2, %s15
      %p218 = scmp.lt.s32.totalorder %s217, 3
      %s219 = scalar_select %p218, %s217, 3
      %s220 = smul.addr %s219, 4
      %s221 = scalar_lea.vmem %s4, %s220
      %s222 = smul.u32 2, %s15
      %v223 = vld [vmem:[%s209] sm:$0xf]
      %v224 = vld [vmem:[%s209 + $0x4] sm:$0xf]
      %v225 = vunpack.c.l.bf16 %v223
      %v226 = vunpack.c.l.bf16 %v224
      %v227 = vld [vmem:[%s2] sm:$0x1]
      %v229 = vperm.slane %v227, 0
      %v231 = vmul.f32 %v225, %v229
      %v232 = vmul.f32 %v226, %v229
      %v233 = vld [vmem:[%s3] sm:$0x1]
      %v235 = vperm.slane %v233, 0
      %v237 = vadd.f32 %v231, %v235
      %v238 = vadd.f32 %v232, %v235
      %v239 = vld [vmem:[%s215] sm:$0xf]
      %v240 = vld [vmem:[%s215 + $0x4] sm:$0xf]
      %v241 = vunpack.c.l.bf16 %v239
      %v242 = vunpack.c.l.bf16 %v240
      %v243 = vadd.f32 %v237, %v241
      %v244 = vadd.f32 %v238, %v242
      %v245 = vmax.f32 %v243, 0.0
      %v246 = vmax.f32 %v244, 0.0
      %v247 = vpack.c.bf16 %v245, %v245
      %v248 = vpack.c.bf16 %v246, %v246
      %249 = vst [vmem:[%s221] sm:$0xf] %v247
      %250 = vst [vmem:[%s221 + $0x4] sm:$0xf] %v248
      %s251 = smul.u32 2, %s15
      %p252 = scmp.lt.s32.totalorder %s251, 3
      %s253 = scalar_select %p252, %s251, 3
      %s254 = smul.addr %s253, 4
      %s255 = scalar_lea.vmem %s4, %s254
      // Predicated region
      $region37: #{_lambda_.27} parent=35 // pred_check
        %p256 = pneg %p127
      $region38: #{_lambda_.27} parent=35 // pred_check_branch
        %258 = sbr.rel (%p256) target = $region40
      $region39: #{_lambda_.27} parent=35 // pred_region
        %s259 = smul.u32 2, %s15
      $region40: #{_lambda_.27} parent=35 // pred_fallthru
        _
    $region36: #{_lambda_.27} parent=5 // pred_fallthru
      _
    %p260 = scmp.le.s32.totalorder 2, %s10
    // Predicated region
    $region41: #{_lambda_.27} parent=5 // pred_check
      %p261 = pneg %p260
    $region42: #{_lambda_.27} parent=5 // pred_check_branch
      %263 = sbr.rel (%p261) target = $region44
    $region43: #{_lambda_.27} parent=5 // pred_region
      %s264 = ssub.s32 %s10, 2
      // Predicated region
      $region45: #{_lambda_.27} parent=43 // pred_check
        %p265 = pneg %p133
      $region46: #{_lambda_.27} parent=43 // pred_check_branch
        %267 = sbr.rel (%p265) target = $region48
      $region47: #{_lambda_.27} parent=43 // pred_region
        %s268 = smul.u32 2, %s16
        %p269 = scmp.lt.s32.totalorder %s268, 3
        %s270 = scalar_select %p269, %s268, 3
        %s271 = smul.addr %s270, 4
        %s272 = scalar_lea.vmem %s4, %s271
      $region48: #{_lambda_.27} parent=43 // pred_fallthru
        _
    $region44: #{_lambda_.27} parent=5 // pred_fallthru
      _
  $region6: #{_lambda_.27} parent=0 // loop_footer
    %s14 = sadd.s32 1, %s10
  $region7: #{_lambda_.27} parent=0 // loop_footer_branch
    %9 = sbr.rel target = $region3
  $region8: #{_lambda_.27} parent=0 // loop_exit
    _

// kernel: _lambda_.24
$region0: #{_lambda_.24}
  #allocation0 [shape = 'u32[]', space=smem, size = 0x4, offset = 0x4, fixed_abs, tag = 'smem constant byte address 0x4 - core index']
  #allocation1 [shape = 'u32[72,128]{1,0:T(1,128)}', space=vmem, size = 0x9000, scoped, tag = 'internal scratch']
  %s0 = inlined_call_operand.vmem [shape: bf16[32,1152], index: 0, kind: input, shape index: {}]
  %s1 = inlined_call_operand.vmem [shape: bf16[1152,128], index: 1, kind: input, shape index: {}]
  %s2 = inlined_call_operand.vmem [shape: bf16[32,128], index: 2, kind: output, shape index: {0}]
  %s3 = inlined_call_operand.vmem [shape: f32[16,128], index: 3, kind: output, shape index: {1}]
  %4 = xla_tuple %s2, %s3
  %s5 = sld [smem:[#allocation0]]
  $region49: #{_lambda_.24} parent=0
    _
  %s7 = ssub.s32 1, %s5
  %s8 = scalar_select 0, %s7, %s5
  loop: start=0, step=1, limit=4
  $region2: #{_lambda_.24} parent=0 // loop_pre_header
    _
  $region3: #{_lambda_.24} parent=0 // loop_header
    %s10 = sphi 0, %s14
    %p11 = scmp.ge.s32.totalorder %s10, 4
    %s17 = sphi 0, %s29
    %s18 = sphi 0, %s25
    %s19 = sphi 0, %s17
    %s20 = sphi 0, %s18
    %s21 = sphi 0, %s19
    %s22 = sphi 0, %s20
    %s32 = sphi 0, %s34
    %s35 = sphi 0, %s32
    %s36 = sphi 0, %s35
    %s52 = sphi 0, %s36
    %s58 = sphi 0, %s60
    %s61 = sphi 0, %s58
    %s62 = sphi 0, %s61
    %s78 = sphi 0, %s62
    %s86 = sphi 0, %s88
    %s89 = sphi 0, %s86
    %s90 = sphi 0, %s89
    %s106 = sphi 0, %s90
    %s114 = sphi 0, %s116
    %s117 = sphi 0, %s114
    %s118 = sphi 0, %s117
    %s134 = sphi 0, %s118
  $region4: #{_lambda_.24} parent=0 // loop_header_branch
    %13 = sbr.rel (%p11) target = $region8
  $region5: #{_lambda_.24} parent=0 // loop_body
    %s15 = ssub.s32 %s10, 1
    %s16 = ssub.s32 %s10, 2
    %s23 = sadd.s32 1, %s18
    %p24 = scmp.ge.s32.totalorder %s23, 1
    %s25 = scalar_select %p24, 0, %s23
    %s26 = sadd.s32 1, %s17
    %s27 = scalar_select %p24, %s26, %s17
    %p28 = scmp.ge.s32.totalorder %s27, 2
    %s29 = scalar_select %p28, 0, %s27
    %s30 = ssub.s32 %s17, %s29
    %p31 = scmp.eq.s32.totalorder %s30, 0
    %s33 = sadd.s32 %s32, 1
    %s34 = scalar_select %p31, %s32, %s33
    %p37 = pneg %p31
    %p38 = scmp.eq.s32.totalorder %s10, 1
    %p39 = por %p37, %p38
    %p40 = scmp.ne.s32.totalorder %s32, %s35
    %p41 = scmp.eq.s32.totalorder %s10, 0
    %p42 = por %p40, %p41
    %p43 = scmp.ne.s32.totalorder %s32, %s35
    %p44 = scmp.eq.s32.totalorder %s15, 1
    %p45 = por %p43, %p44
    %p46 = scmp.ne.s32.totalorder %s35, %s36
    %p47 = scmp.eq.s32.totalorder %s15, 0
    %p48 = por %p46, %p47
    %p49 = scmp.ne.s32.totalorder %s35, %s36
    %p50 = scmp.eq.s32.totalorder %s16, 1
    %p51 = por %p49, %p50
    %p53 = scmp.ne.s32.totalorder %s36, %s52
    %p54 = scmp.eq.s32.totalorder %s16, 0
    %p55 = por %p53, %p54
    %s56 = ssub.s32 %s18, %s25
    %p57 = scmp.eq.s32.totalorder %s56, 0
    %s59 = sadd.s32 %s58, 1
    %s60 = scalar_select %p57, %s58, %s59
    %p63 = pneg %p57
    %p64 = scmp.eq.s32.totalorder %s10, 1
    %p65 = por %p63, %p64
    %p66 = scmp.ne.s32.totalorder %s58, %s61
    %p67 = scmp.eq.s32.totalorder %s10, 0
    %p68 = por %p66, %p67
    %p69 = scmp.ne.s32.totalorder %s58, %s61
    %p70 = scmp.eq.s32.totalorder %s15, 1
    %p71 = por %p69, %p70
    %p72 = scmp.ne.s32.totalorder %s61, %s62
    %p73 = scmp.eq.s32.totalorder %s15, 0
    %p74 = por %p72, %p73
    %p75 = scmp.ne.s32.totalorder %s61, %s62
    %p76 = scmp.eq.s32.totalorder %s16, 1
    %p77 = por %p75, %p76
    %p79 = scmp.ne.s32.totalorder %s62, %s78
    %p80 = scmp.eq.s32.totalorder %s16, 0
    %p81 = por %p79, %p80
    %s82 = ssub.s32 %s17, %s29
    %s83 = ssub.s32 %s18, %s25
    %s84 = sor.u32 %s82, %s83
    %p85 = scmp.eq.s32.totalorder %s84, 0
    %s87 = sadd.s32 %s86, 1
    %s88 = scalar_select %p85, %s86, %s87
    %p91 = pneg %p85
    %p92 = scmp.eq.s32.totalorder %s10, 1
    %p93 = por %p91, %p92
    %p94 = scmp.ne.s32.totalorder %s86, %s89
    %p95 = scmp.eq.s32.totalorder %s10, 0
    %p96 = por %p94, %p95
    %p97 = scmp.ne.s32.totalorder %s86, %s89
    %p98 = scmp.eq.s32.totalorder %s15, 1
    %p99 = por %p97, %p98
    %p100 = scmp.ne.s32.totalorder %s89, %s90
    %p101 = scmp.eq.s32.totalorder %s15, 0
    %p102 = por %p100, %p101
    %p103 = scmp.ne.s32.totalorder %s89, %s90
    %p104 = scmp.eq.s32.totalorder %s16, 1
    %p105 = por %p103, %p104
    %p107 = scmp.ne.s32.totalorder %s90, %s106
    %p108 = scmp.eq.s32.totalorder %s16, 0
    %p109 = por %p107, %p108
    %s110 = ssub.s32 %s17, %s29
    %s111 = ssub.s32 %s18, %s25
    %s112 = sor.u32 %s110, %s111
    %p113 = scmp.eq.s32.totalorder %s112, 0
    %s115 = sadd.s32 %s114, 1
    %s116 = scalar_select %p113, %s114, %s115
    %p119 = pneg %p113
    %p120 = scmp.eq.s32.totalorder %s10, 1
    %p121 = por %p119, %p120
    %p122 = scmp.ne.s32.totalorder %s114, %s117
    %p123 = scmp.eq.s32.totalorder %s10, 0
    %p124 = por %p122, %p123
    %p125 = scmp.ne.s32.totalorder %s114, %s117
    %p126 = scmp.eq.s32.totalorder %s15, 1
    %p127 = por %p125, %p126
    %p128 = scmp.ne.s32.totalorder %s117, %s118
    %p129 = scmp.eq.s32.totalorder %s15, 0
    %p130 = por %p128, %p129
    %p131 = scmp.ne.s32.totalorder %s117, %s118
    %p132 = scmp.eq.s32.totalorder %s16, 1
    %p133 = por %p131, %p132
    %p135 = scmp.ne.s32.totalorder %s118, %s134
    %p136 = scmp.eq.s32.totalorder %s16, 0
    %p137 = por %p135, %p136
    %p138 = scmp.le.s32.totalorder 1, %s10
    %p139 = scmp.lt.s32.totalorder %s10, 3
    %p140 = pnand %p138, %p139
    %p141 = pneg %p140
    // Predicated region
    $region9: #{_lambda_.24} parent=5 // pred_check
      _
    $region10: #{_lambda_.24} parent=5 // pred_check_branch
      %143 = sbr.rel (%p140) target = $region12
    $region11: #{_lambda_.24} parent=5 // pred_region
      %s144 = ssub.s32 %s10, 1
      // Predicated region
      $region13: #{_lambda_.24} parent=11 // pred_check
        %p145 = pneg %p74
      $region14: #{_lambda_.24} parent=11 // pred_check_branch
        %147 = sbr.rel (%p145) target = $region16
      $region15: #{_lambda_.24} parent=11 // pred_region
        %p148 = scmp.lt.s32.totalorder %s20, 0
        %s149 = scalar_select %p148, %s20, 0
        %s150 = smul.addr %s149, 4
        %s151 = scalar_lea.vmem %s1, %s150
      $region16: #{_lambda_.24} parent=11 // pred_fallthru
        _
    $region12: #{_lambda_.24} parent=5 // pred_fallthru
      _
    %p152 = scmp.lt.s32.totalorder %s10, 2
    // Predicated region
    $region17: #{_lambda_.24} parent=5 // pred_check
      %p153 = pneg %p152
    $region18: #{_lambda_.24} parent=5 // pred_check_branch
      %155 = sbr.rel (%p153) target = $region20
    $region19: #{_lambda_.24} parent=5 // pred_region
      // Predicated region
      $region21: #{_lambda_.24} parent=19 // pred_check
        %p156 = pneg %p42
      $region22: #{_lambda_.24} parent=19 // pred_check_branch
        %158 = sbr.rel (%p156) target = $region24
      $region23: #{_lambda_.24} parent=19 // pred_region
        %s159 = smul.u32 2, %s17
        %p160 = scmp.lt.s32.totalorder %s159, 3
        %s161 = scalar_select %p160, %s159, 3
        %s162 = smul.addr %s161, 9
        %s163 = smul.addr %s162, 4
        %s164 = scalar_lea.vmem %s0, %s163
        %s165 = smul.u32 2, %s17
      $region24: #{_lambda_.24} parent=19 // pred_fallthru
        _
    $region20: #{_lambda_.24} parent=5 // pred_fallthru
      _
    %p166 = scmp.le.s32.totalorder 1, %s10
    %p167 = scmp.lt.s32.totalorder %s10, 3
    %p168 = pnand %p166, %p167
    %p169 = pneg %p168
    // Predicated region
    $region25: #{_lambda_.24} parent=5 // pred_check
      _
    $region26: #{_lambda_.24} parent=5 // pred_check_branch
      %171 = sbr.rel (%p168) target = $region28
    $region27: #{_lambda_.24} parent=5 // pred_region
      %s172 = ssub.s32 %s10, 1
      %s173 = smul.u32 2, %s19
      %p174 = scmp.lt.s32.totalorder %s173, 3
      %s175 = scalar_select %p174, %s173, 3
      %s176 = smul.addr %s175, 9
      %s177 = smul.addr %s176, 4
      %s178 = scalar_lea.vmem %s0, %s177
      %p179 = pneg %p48
      %p180 = pneg %p45
      %p181 = scmp.lt.s32.totalorder %s20, 0
      %s182 = scalar_select %p181, %s20, 0
      %s183 = smul.addr %s182, 4
      %s184 = scalar_lea.vmem %s1, %s183
      %p185 = pneg %p74
      %p186 = pneg %p71
      %p187 = pneg %p102
      %p188 = pneg %p99
      %s189 = smul.u32 2, %s19
      %p190 = scmp.lt.s32.totalorder %s189, 3
      %s191 = scalar_select %p190, %s189, 3
      %p192 = scmp.lt.s32.totalorder %s20, 0
      %s193 = scalar_select %p192, %s20, 0
      %s194 = sadd.s32 %s193, %s191
      %s195 = smul.addr %s194, 4
      %s196 = scalar_lea.vmem %s2, %s195
      %p197 = pneg %p130
      %p198 = pneg %p127
      %p199 = scmp.lt.s32.totalorder %s19, 1
      %s200 = scalar_select %p199, %s19, 1
      %p201 = scmp.lt.s32.totalorder %s20, 0
      %s202 = scalar_select %p201, %s20, 0
      %s203 = sadd.s32 %s202, %s200
      %s204 = smul.addr %s203, 8
      %s205 = scalar_lea.vmem %s3, %s204
      %s206 = smul.u32 2, %s19
      %p207 = scmp.lt.s32.totalorder %s206, 3
      %s208 = scalar_select %p207, %s206, 3
      %s209 = smul.addr %s208, 9
      %s210 = smul.addr %s209, 4
      %s211 = scalar_lea.vmem %s0, %s210
      %s212 = smul.u32 2, %s19
      %p213 = scmp.lt.s32.totalorder %s20, 0
      %s214 = scalar_select %p213, %s20, 0
      %s215 = smul.addr %s214, 4
      %s216 = scalar_lea.vmem %s1, %s215
      %s217 = smul.u32 2, %s19
      %p218 = scmp.lt.s32.totalorder %s217, 3
      %s219 = scalar_select %p218, %s217, 3
      %p220 = scmp.lt.s32.totalorder %s20, 0
      %s221 = scalar_select %p220, %s20, 0
      %s222 = sadd.s32 %s221, %s219
      %s223 = smul.addr %s222, 4
      %s224 = scalar_lea.vmem %s2, %s223
      %s225 = smul.u32 2, %s19
      %p226 = scmp.lt.s32.totalorder %s19, 1
      %s227 = scalar_select %p226, %s19, 1
      %p228 = scmp.lt.s32.totalorder %s20, 0
      %s229 = scalar_select %p228, %s20, 0
      %s230 = sadd.s32 %s229, %s227
      %s231 = smul.addr %s230, 8
      %s232 = scalar_lea.vmem %s3, %s231
      %v233 = vld [vmem:[%s211] sm:$0xff]
      %v234 = vld [vmem:[%s211 + $0x8] sm:$0xff]
      %v235 = vld [vmem:[%s211 + $0x10] sm:$0xff]
      %v236 = vld [vmem:[%s211 + $0x18] sm:$0xff]
      %v237 = vld [vmem:[%s211 + $0x20] sm:$0xf]
      %v238 = vld [vmem:[%s211 + $0x24] sm:$0xff]
      %v239 = vld [vmem:[%s211 + $0x2c] sm:$0xff]
      %v240 = vld [vmem:[%s211 + $0x34] sm:$0xff]
      %v241 = vld [vmem:[%s211 + $0x3c] sm:$0xff]
      %v242 = vld [vmem:[%s211 + $0x44] sm:$0xf]
      %v243 = vld [vmem:[%s216] sm:$0xf]
      %v244 = vld [vmem:[%s216 + $0x4] sm:$0xf]
      %v245 = vld [vmem:[%s216 + $0x8] sm:$0xf]
      %v246 = vld [vmem:[%s216 + $0xc] sm:$0xf]
      %v247 = vld [vmem:[%s216 + $0x10] sm:$0xf]
      %v248 = vld [vmem:[%s216 + $0x14] sm:$0xf]
      %v249 = vld [vmem:[%s216 + $0x18] sm:$0xf]
      %v250 = vld [vmem:[%s216 + $0x1c] sm:$0xf]
      %v251 = vld [vmem:[%s216 + $0x20] sm:$0xf]
      %v252 = vld [vmem:[%s216 + $0x24] sm:$0xf]
      %v253 = vld [vmem:[%s216 + $0x28] sm:$0xf]
      %v254 = vld [vmem:[%s216 + $0x2c] sm:$0xf]
      %v255 = vld [vmem:[%s216 + $0x30] sm:$0xf]
      %v256 = vld [vmem:[%s216 + $0x34] sm:$0xf]
      %v257 = vld [vmem:[%s216 + $0x38] sm:$0xf]
      %v258 = vld [vmem:[%s216 + $0x3c] sm:$0xf]
      %v259 = vld [vmem:[%s216 + $0x40] sm:$0xf]
      %v260 = vld [vmem:[%s216 + $0x44] sm:$0xf]
      %v261 = vld [vmem:[%s216 + $0x48] sm:$0xf]
      %v262 = vld [vmem:[%s216 + $0x4c] sm:$0xf]
      %v263 = vld [vmem:[%s216 + $0x50] sm:$0xf]
      %v264 = vld [vmem:[%s216 + $0x54] sm:$0xf]
      %v265 = vld [vmem:[%s216 + $0x58] sm:$0xf]
      %v266 = vld [vmem:[%s216 + $0x5c] sm:$0xf]
      %v267 = vld [vmem:[%s216 + $0x60] sm:$0xf]
      %v268 = vld [vmem:[%s216 + $0x64] sm:$0xf]
      %v269 = vld [vmem:[%s216 + $0x68] sm:$0xf]
      %v270 = vld [vmem:[%s216 + $0x6c] sm:$0xf]
      %v271 = vld [vmem:[%s216 + $0x70] sm:$0xf]
      %v272 = vld [vmem:[%s216 + $0x74] sm:$0xf]
      %v273 = vld [vmem:[%s216 + $0x78] sm:$0xf]
      %v274 = vld [vmem:[%s216 + $0x7c] sm:$0xf]
      %v275 = vld [vmem:[%s216 + $0x80] sm:$0xf]
      %v276 = vld [vmem:[%s216 + $0x84] sm:$0xf]
      %v277 = vld [vmem:[%s216 + $0x88] sm:$0xf]
      %v278 = vld [vmem:[%s216 + $0x8c] sm:$0xf]
      %v279 = vld [vmem:[%s216 + $0x90] sm:$0xf]
      %v280 = vld [vmem:[%s216 + $0x94] sm:$0xf]
      %v281 = vld [vmem:[%s216 + $0x98] sm:$0xf]
      %v282 = vld [vmem:[%s216 + $0x9c] sm:$0xf]
      %v283 = vld [vmem:[%s216 + $0xa0] sm:$0xf]
      %v284 = vld [vmem:[%s216 + $0xa4] sm:$0xf]
      %v285 = vld [vmem:[%s216 + $0xa8] sm:$0xf]
      %v286 = vld [vmem:[%s216 + $0xac] sm:$0xf]
      %v287 = vld [vmem:[%s216 + $0xb0] sm:$0xf]
      %v288 = vld [vmem:[%s216 + $0xb4] sm:$0xf]
      %v289 = vld [vmem:[%s216 + $0xb8] sm:$0xf]
      %v290 = vld [vmem:[%s216 + $0xbc] sm:$0xf]
      %v291 = vld [vmem:[%s216 + $0xc0] sm:$0xf]
      %v292 = vld [vmem:[%s216 + $0xc4] sm:$0xf]
      %v293 = vld [vmem:[%s216 + $0xc8] sm:$0xf]
      %v294 = vld [vmem:[%s216 + $0xcc] sm:$0xf]
      %v295 = vld [vmem:[%s216 + $0xd0] sm:$0xf]
      %v296 = vld [vmem:[%s216 + $0xd4] sm:$0xf]
      %v297 = vld [vmem:[%s216 + $0xd8] sm:$0xf]
      %v298 = vld [vmem:[%s216 + $0xdc] sm:$0xf]
      %v299 = vld [vmem:[%s216 + $0xe0] sm:$0xf]
      %v300 = vld [vmem:[%s216 + $0xe4] sm:$0xf]
      %v301 = vld [vmem:[%s216 + $0xe8] sm:$0xf]
      %v302 = vld [vmem:[%s216 + $0xec] sm:$0xf]
      %v303 = vld [vmem:[%s216 + $0xf0] sm:$0xf]
      %v304 = vld [vmem:[%s216 + $0xf4] sm:$0xf]
      %v305 = vld [vmem:[%s216 + $0xf8] sm:$0xf]
      %v306 = vld [vmem:[%s216 + $0xfc] sm:$0xf]
      %v307 = vld [vmem:[%s216 + $0x100] sm:$0xf]
      %v308 = vld [vmem:[%s216 + $0x104] sm:$0xf]
      %v309 = vld [vmem:[%s216 + $0x108] sm:$0xf]
      %v310 = vld [vmem:[%s216 + $0x10c] sm:$0xf]
      %v311 = vld [vmem:[%s216 + $0x110] sm:$0xf]
      %v312 = vld [vmem:[%s216 + $0x114] sm:$0xf]
      %v313 = vld [vmem:[%s216 + $0x118] sm:$0xf]
      %v314 = vld [vmem:[%s216 + $0x11c] sm:$0xf]
      %v315 = vld [vmem:[%s216 + $0x120] sm:$0xf]
      %v316 = vld [vmem:[%s216 + $0x124] sm:$0xf]
      %v317 = vld [vmem:[%s216 + $0x128] sm:$0xf]
      %v318 = vld [vmem:[%s216 + $0x12c] sm:$0xf]
      %v319 = vld [vmem:[%s216 + $0x130] sm:$0xf]
      %v320 = vld [vmem:[%s216 + $0x134] sm:$0xf]
      %v321 = vld [vmem:[%s216 + $0x138] sm:$0xf]
      %v322 = vld [vmem:[%s216 + $0x13c] sm:$0xf]
      %v323 = vld [vmem:[%s216 + $0x140] sm:$0xf]
      %v324 = vld [vmem:[%s216 + $0x144] sm:$0xf]
      %v325 = vld [vmem:[%s216 + $0x148] sm:$0xf]
      %v326 = vld [vmem:[%s216 + $0x14c] sm:$0xf]
      %v327 = vld [vmem:[%s216 + $0x150] sm:$0xf]
      %v328 = vld [vmem:[%s216 + $0x154] sm:$0xf]
      %v329 = vld [vmem:[%s216 + $0x158] sm:$0xf]
      %v330 = vld [vmem:[%s216 + $0x15c] sm:$0xf]
      %v331 = vld [vmem:[%s216 + $0x160] sm:$0xf]
      %v332 = vld [vmem:[%s216 + $0x164] sm:$0xf]
      %v333 = vld [vmem:[%s216 + $0x168] sm:$0xf]
      %v334 = vld [vmem:[%s216 + $0x16c] sm:$0xf]
      %v335 = vld [vmem:[%s216 + $0x170] sm:$0xf]
      %v336 = vld [vmem:[%s216 + $0x174] sm:$0xf]
      %v337 = vld [vmem:[%s216 + $0x178] sm:$0xf]
      %v338 = vld [vmem:[%s216 + $0x17c] sm:$0xf]
      %v339 = vld [vmem:[%s216 + $0x180] sm:$0xf]
      %v340 = vld [vmem:[%s216 + $0x184] sm:$0xf]
      %v341 = vld [vmem:[%s216 + $0x188] sm:$0xf]
      %v342 = vld [vmem:[%s216 + $0x18c] sm:$0xf]
      %v343 = vld [vmem:[%s216 + $0x190] sm:$0xf]
      %v344 = vld [vmem:[%s216 + $0x194] sm:$0xf]
      %v345 = vld [vmem:[%s216 + $0x198] sm:$0xf]
      %v346 = vld [vmem:[%s216 + $0x19c] sm:$0xf]
      %v347 = vld [vmem:[%s216 + $0x1a0] sm:$0xf]
      %v348 = vld [vmem:[%s216 + $0x1a4] sm:$0xf]
      %v349 = vld [vmem:[%s216 + $0x1a8] sm:$0xf]
      %v350 = vld [vmem:[%s216 + $0x1ac] sm:$0xf]
      %v351 = vld [vmem:[%s216 + $0x1b0] sm:$0xf]
      %v352 = vld [vmem:[%s216 + $0x1b4] sm:$0xf]
      %v353 = vld [vmem:[%s216 + $0x1b8] sm:$0xf]
      %v354 = vld [vmem:[%s216 + $0x1bc] sm:$0xf]
      %v355 = vld [vmem:[%s216 + $0x1c0] sm:$0xf]
      %v356 = vld [vmem:[%s216 + $0x1c4] sm:$0xf]
      %v357 = vld [vmem:[%s216 + $0x1c8] sm:$0xf]
      %v358 = vld [vmem:[%s216 + $0x1cc] sm:$0xf]
      %v359 = vld [vmem:[%s216 + $0x1d0] sm:$0xf]
      %v360 = vld [vmem:[%s216 + $0x1d4] sm:$0xf]
      %v361 = vld [vmem:[%s216 + $0x1d8] sm:$0xf]
      %v362 = vld [vmem:[%s216 + $0x1dc] sm:$0xf]
      %v363 = vld [vmem:[%s216 + $0x1e0] sm:$0xf]
      %v364 = vld [vmem:[%s216 + $0x1e4] sm:$0xf]
      %v365 = vld [vmem:[%s216 + $0x1e8] sm:$0xf]
      %v366 = vld [vmem:[%s216 + $0x1ec] sm:$0xf]
      %v367 = vld [vmem:[%s216 + $0x1f0] sm:$0xf]
      %v368 = vld [vmem:[%s216 + $0x1f4] sm:$0xf]
      %v369 = vld [vmem:[%s216 + $0x1f8] sm:$0xf]
      %v370 = vld [vmem:[%s216 + $0x1fc] sm:$0xf]
      %v371 = vld [vmem:[%s216 + $0x200] sm:$0xf]
      %v372 = vld [vmem:[%s216 + $0x204] sm:$0xf]
      %v373 = vld [vmem:[%s216 + $0x208] sm:$0xf]
      %v374 = vld [vmem:[%s216 + $0x20c] sm:$0xf]
      %v375 = vld [vmem:[%s216 + $0x210] sm:$0xf]
      %v376 = vld [vmem:[%s216 + $0x214] sm:$0xf]
      %v377 = vld [vmem:[%s216 + $0x218] sm:$0xf]
      %v378 = vld [vmem:[%s216 + $0x21c] sm:$0xf]
      %v379 = vld [vmem:[%s216 + $0x220] sm:$0xf]
      %v380 = vld [vmem:[%s216 + $0x224] sm:$0xf]
      %v381 = vld [vmem:[%s216 + $0x228] sm:$0xf]
      %v382 = vld [vmem:[%s216 + $0x22c] sm:$0xf]
      %v383 = vld [vmem:[%s216 + $0x230] sm:$0xf]
      %v384 = vld [vmem:[%s216 + $0x234] sm:$0xf]
      %v385 = vld [vmem:[%s216 + $0x238] sm:$0xf]
      %v386 = vld [vmem:[%s216 + $0x23c] sm:$0xf]
      %v397 = vunpack.c.l.b16 %v233
      %v398 = vunpack.c.h.b16 %v233
      %v399 = vunpack.c.l.b16 %v234
      %v400 = vunpack.c.h.b16 %v234
      %v401 = vunpack.c.l.b16 %v235
      %v402 = vunpack.c.h.b16 %v235
      %v403 = vunpack.c.l.b16 %v236
      %v404 = vunpack.c.h.b16 %v236
      %v405 = vunpack.c.l.b16 %v237
      %v406 = vunpack.c.l.b16 %v238
      %v407 = vunpack.c.h.b16 %v238
      %v408 = vunpack.c.l.b16 %v239
      %v409 = vunpack.c.h.b16 %v239
      %v410 = vunpack.c.l.b16 %v240
      %v411 = vunpack.c.h.b16 %v240
      %v412 = vunpack.c.l.b16 %v241
      %v413 = vunpack.c.h.b16 %v241
      %v414 = vunpack.c.l.b16 %v242
      %v415 = vpack.c.b16 %v406, %v397
      %v416 = vpack.c.b16 %v407, %v398
      %v417 = vpack.c.b16 %v408, %v399
      %v418 = vpack.c.b16 %v409, %v400
      %v419 = vpack.c.b16 %v410, %v401
      %v420 = vpack.c.b16 %v411, %v402
      %v421 = vpack.c.b16 %v412, %v403
      %v422 = vpack.c.b16 %v413, %v404
      %v423 = vpack.c.b16 %v414, %v405
      %v577 = vunpack.c.l.b16 %v243
      %v578 = vunpack.c.l.b16 %v244
      %v579 = vunpack.c.l.b16 %v245
      %v580 = vunpack.c.l.b16 %v246
      %v581 = vunpack.c.l.b16 %v247
      %v582 = vunpack.c.l.b16 %v248
      %v583 = vunpack.c.l.b16 %v249
      %v584 = vunpack.c.l.b16 %v250
      %v585 = vunpack.c.l.b16 %v251
      %v586 = vunpack.c.l.b16 %v252
      %v587 = vunpack.c.l.b16 %v253
      %v588 = vunpack.c.l.b16 %v254
      %v589 = vunpack.c.l.b16 %v255
      %v590 = vunpack.c.l.b16 %v256
      %v591 = vunpack.c.l.b16 %v257
      %v592 = vunpack.c.l.b16 %v258
      %v593 = vunpack.c.l.b16 %v259
      %v594 = vunpack.c.l.b16 %v260
      %v595 = vunpack.c.l.b16 %v261
      %v596 = vunpack.c.l.b16 %v262
      %v597 = vunpack.c.l.b16 %v263
      %v598 = vunpack.c.l.b16 %v264
      %v599 = vunpack.c.l.b16 %v265
      %v600 = vunpack.c.l.b16 %v266
      %v601 = vunpack.c.l.b16 %v267
      %v602 = vunpack.c.l.b16 %v268
      %v603 = vunpack.c.l.b16 %v269
      %v604 = vunpack.c.l.b16 %v270
      %v605 = vunpack.c.l.b16 %v271
      %v606 = vunpack.c.l.b16 %v272
      %v607 = vunpack.c.l.b16 %v273
      %v608 = vunpack.c.l.b16 %v274
      %v609 = vunpack.c.l.b16 %v275
      %v610 = vunpack.c.l.b16 %v276
      %v611 = vunpack.c.l.b16 %v277
      %v612 = vunpack.c.l.b16 %v278
      %v613 = vunpack.c.l.b16 %v279
      %v614 = vunpack.c.l.b16 %v280
      %v615 = vunpack.c.l.b16 %v281
      %v616 = vunpack.c.l.b16 %v282
      %v617 = vunpack.c.l.b16 %v283
      %v618 = vunpack.c.l.b16 %v284
      %v619 = vunpack.c.l.b16 %v285
      %v620 = vunpack.c.l.b16 %v286
      %v621 = vunpack.c.l.b16 %v287
      %v622 = vunpack.c.l.b16 %v288
      %v623 = vunpack.c.l.b16 %v289
      %v624 = vunpack.c.l.b16 %v290
      %v625 = vunpack.c.l.b16 %v291
      %v626 = vunpack.c.l.b16 %v292
      %v627 = vunpack.c.l.b16 %v293
      %v628 = vunpack.c.l.b16 %v294
      %v629 = vunpack.c.l.b16 %v295
      %v630 = vunpack.c.l.b16 %v296
      %v631 = vunpack.c.l.b16 %v297
      %v632 = vunpack.c.l.b16 %v298
      %v633 = vunpack.c.l.b16 %v299
      %v634 = vunpack.c.l.b16 %v300
      %v635 = vunpack.c.l.b16 %v301
      %v636 = vunpack.c.l.b16 %v302
      %v637 = vunpack.c.l.b16 %v303
      %v638 = vunpack.c.l.b16 %v304
      %v639 = vunpack.c.l.b16 %v305
      %v640 = vunpack.c.l.b16 %v306
      %v641 = vunpack.c.l.b16 %v307
      %v642 = vunpack.c.l.b16 %v308
      %v643 = vunpack.c.l.b16 %v309
      %v644 = vunpack.c.l.b16 %v310
      %v645 = vunpack.c.l.b16 %v311
      %v646 = vunpack.c.l.b16 %v312
      %v647 = vunpack.c.l.b16 %v313
      %v648 = vunpack.c.l.b16 %v314
      %v649 = vunpack.c.l.b16 %v315
      %v650 = vunpack.c.l.b16 %v316
      %v651 = vunpack.c.l.b16 %v317
      %v652 = vunpack.c.l.b16 %v318
      %v653 = vunpack.c.l.b16 %v319
      %v654 = vunpack.c.l.b16 %v320
      %v655 = vunpack.c.l.b16 %v321
      %v656 = vunpack.c.l.b16 %v322
      %v657 = vunpack.c.l.b16 %v323
      %v658 = vunpack.c.l.b16 %v324
      %v659 = vunpack.c.l.b16 %v325
      %v660 = vunpack.c.l.b16 %v326
      %v661 = vunpack.c.l.b16 %v327
      %v662 = vunpack.c.l.b16 %v328
      %v663 = vunpack.c.l.b16 %v329
      %v664 = vunpack.c.l.b16 %v330
      %v665 = vunpack.c.l.b16 %v331
      %v666 = vunpack.c.l.b16 %v332
      %v667 = vunpack.c.l.b16 %v333
      %v668 = vunpack.c.l.b16 %v334
      %v669 = vunpack.c.l.b16 %v335
      %v670 = vunpack.c.l.b16 %v336
      %v671 = vunpack.c.l.b16 %v337
      %v672 = vunpack.c.l.b16 %v338
      %v673 = vunpack.c.l.b16 %v339
      %v674 = vunpack.c.l.b16 %v340
      %v675 = vunpack.c.l.b16 %v341
      %v676 = vunpack.c.l.b16 %v342
      %v677 = vunpack.c.l.b16 %v343
      %v678 = vunpack.c.l.b16 %v344
      %v679 = vunpack.c.l.b16 %v345
      %v680 = vunpack.c.l.b16 %v346
      %v681 = vunpack.c.l.b16 %v347
      %v682 = vunpack.c.l.b16 %v348
      %v683 = vunpack.c.l.b16 %v349
      %v684 = vunpack.c.l.b16 %v350
      %v685 = vunpack.c.l.b16 %v351
      %v686 = vunpack.c.l.b16 %v352
      %v687 = vunpack.c.l.b16 %v353
      %v688 = vunpack.c.l.b16 %v354
      %v689 = vunpack.c.l.b16 %v355
      %v690 = vunpack.c.l.b16 %v356
      %v691 = vunpack.c.l.b16 %v357
      %v692 = vunpack.c.l.b16 %v358
      %v693 = vunpack.c.l.b16 %v359
      %v694 = vunpack.c.l.b16 %v360
      %v695 = vunpack.c.l.b16 %v361
      %v696 = vunpack.c.l.b16 %v362
      %v697 = vunpack.c.l.b16 %v363
      %v698 = vunpack.c.l.b16 %v364
      %v699 = vunpack.c.l.b16 %v365
      %v700 = vunpack.c.l.b16 %v366
      %v701 = vunpack.c.l.b16 %v367
      %v702 = vunpack.c.l.b16 %v368
      %v703 = vunpack.c.l.b16 %v369
      %v704 = vunpack.c.l.b16 %v370
      %v705 = vunpack.c.l.b16 %v371
      %v706 = vunpack.c.l.b16 %v372
      %v707 = vunpack.c.l.b16 %v373
      %v708 = vunpack.c.l.b16 %v374
      %v709 = vunpack.c.l.b16 %v375
      %v710 = vunpack.c.l.b16 %v376
      %v711 = vunpack.c.l.b16 %v377
      %v712 = vunpack.c.l.b16 %v378
      %v713 = vunpack.c.l.b16 %v379
      %v714 = vunpack.c.l.b16 %v380
      %v715 = vunpack.c.l.b16 %v381
      %v716 = vunpack.c.l.b16 %v382
      %v717 = vunpack.c.l.b16 %v383
      %v718 = vunpack.c.l.b16 %v384
      %v719 = vunpack.c.l.b16 %v385
      %v720 = vunpack.c.l.b16 %v386
      %v721 = vpack.c.b16 %v578, %v577
      %v722 = vpack.c.b16 %v580, %v579
      %v723 = vpack.c.b16 %v582, %v581
      %v724 = vpack.c.b16 %v584, %v583
      %v725 = vpack.c.b16 %v586, %v585
      %v726 = vpack.c.b16 %v588, %v587
      %v727 = vpack.c.b16 %v590, %v589
      %v728 = vpack.c.b16 %v592, %v591
      %v729 = vpack.c.b16 %v594, %v593
      %v730 = vpack.c.b16 %v596, %v595
      %v731 = vpack.c.b16 %v598, %v597
      %v732 = vpack.c.b16 %v600, %v599
      %v733 = vpack.c.b16 %v602, %v601
      %v734 = vpack.c.b16 %v604, %v603
      %v735 = vpack.c.b16 %v606, %v605
      %v736 = vpack.c.b16 %v608, %v607
      %v737 = vpack.c.b16 %v610, %v609
      %v738 = vpack.c.b16 %v612, %v611
      %v739 = vpack.c.b16 %v614, %v613
      %v740 = vpack.c.b16 %v616, %v615
      %v741 = vpack.c.b16 %v618, %v617
      %v742 = vpack.c.b16 %v620, %v619
      %v743 = vpack.c.b16 %v622, %v621
      %v744 = vpack.c.b16 %v624, %v623
      %v745 = vpack.c.b16 %v626, %v625
      %v746 = vpack.c.b16 %v628, %v627
      %v747 = vpack.c.b16 %v630, %v629
      %v748 = vpack.c.b16 %v632, %v631
      %v749 = vpack.c.b16 %v634, %v633
      %v750 = vpack.c.b16 %v636, %v635
      %v751 = vpack.c.b16 %v638, %v637
      %v752 = vpack.c.b16 %v640, %v639
      %v753 = vpack.c.b16 %v642, %v641
      %v754 = vpack.c.b16 %v644, %v643
      %v755 = vpack.c.b16 %v646, %v645
      %v756 = vpack.c.b16 %v648, %v647
      %v757 = vpack.c.b16 %v650, %v649
      %v758 = vpack.c.b16 %v652, %v651
      %v759 = vpack.c.b16 %v654, %v653
      %v760 = vpack.c.b16 %v656, %v655
      %v761 = vpack.c.b16 %v658, %v657
      %v762 = vpack.c.b16 %v660, %v659
      %v763 = vpack.c.b16 %v662, %v661
      %v764 = vpack.c.b16 %v664, %v663
      %v765 = vpack.c.b16 %v666, %v665
      %v766 = vpack.c.b16 %v668, %v667
      %v767 = vpack.c.b16 %v670, %v669
      %v768 = vpack.c.b16 %v672, %v671
      %v769 = vpack.c.b16 %v674, %v673
      %v770 = vpack.c.b16 %v676, %v675
      %v771 = vpack.c.b16 %v678, %v677
      %v772 = vpack.c.b16 %v680, %v679
      %v773 = vpack.c.b16 %v682, %v681
      %v774 = vpack.c.b16 %v684, %v683
      %v775 = vpack.c.b16 %v686, %v685
      %v776 = vpack.c.b16 %v688, %v687
      %v777 = vpack.c.b16 %v690, %v689
      %v778 = vpack.c.b16 %v692, %v691
      %v779 = vpack.c.b16 %v694, %v693
      %v780 = vpack.c.b16 %v696, %v695
      %v781 = vpack.c.b16 %v698, %v697
      %v782 = vpack.c.b16 %v700, %v699
      %v783 = vpack.c.b16 %v702, %v701
      %v784 = vpack.c.b16 %v704, %v703
      %v785 = vpack.c.b16 %v706, %v705
      %v786 = vpack.c.b16 %v708, %v707
      %v787 = vpack.c.b16 %v710, %v709
      %v788 = vpack.c.b16 %v712, %v711
      %v789 = vpack.c.b16 %v714, %v713
      %v790 = vpack.c.b16 %v716, %v715
      %v791 = vpack.c.b16 %v718, %v717
      %v792 = vpack.c.b16 %v720, %v719
      %865 = vmatpush.bf16.msra.mxu0 %v728
      %866 = vmatpush.bf16.msra.mxu0 %v727
      %867 = vmatpush.bf16.msra.mxu0 %v726
      %868 = vmatpush.bf16.msra.mxu0 %v725
      %869 = vmatpush.bf16.msra.mxu0 %v724
      %870 = vmatpush.bf16.msra.mxu0 %v723
      %871 = vmatpush.bf16.msra.mxu0 %v722
      %872 = vmatpush.bf16.msra.mxu0 %v721
      %873 = vmatmul.bf16.gmra.mxu0 %v415
      %v874 = vpop.f32.mrf.mxu0
      %v875 = vadd.f32 0.0, %v874
      %v876 = vpop.f32.mrf.mxu0
      %v877 = vadd.f32 0.0, %v876
      %878 = vdwg.mxu0
      %879 = vmatpush.bf16.msra.mxu0 %v736
      %880 = vmatpush.bf16.msra.mxu0 %v735
      %881 = vmatpush.bf16.msra.mxu0 %v734
      %882 = vmatpush.bf16.msra.mxu0 %v733
      %883 = vmatpush.bf16.msra.mxu0 %v732
      %884 = vmatpush.bf16.msra.mxu0 %v731
      %885 = vmatpush.bf16.msra.mxu0 %v730
      %886 = vmatpush.bf16.msra.mxu0 %v729
      %887 = vmatmul.bf16.gmra.mxu0 %v416
      %v888 = vpop.f32.mrf.mxu0
      %v889 = vadd.f32 %v875, %v888
      %v890 = vpop.f32.mrf.mxu0
      %v891 = vadd.f32 %v877, %v890
      %892 = vdwg.mxu0
      %893 = vmatpush.bf16.msra.mxu0 %v744
      %894 = vmatpush.bf16.msra.mxu0 %v743
      %895 = vmatpush.bf16.msra.mxu0 %v742
      %896 = vmatpush.bf16.msra.mxu0 %v741
      %897 = vmatpush.bf16.msra.mxu0 %v740
      %898 = vmatpush.bf16.msra.mxu0 %v739
      %899 = vmatpush.bf16.msra.mxu0 %v738
      %900 = vmatpush.bf16.msra.mxu0 %v737
      %901 = vmatmul.bf16.gmra.mxu0 %v417
      %v902 = vpop.f32.mrf.mxu0
      %v903 = vadd.f32 %v889, %v902
      %v904 = vpop.f32.mrf.mxu0
      %v905 = vadd.f32 %v891, %v904
      %906 = vdwg.mxu0
      %907 = vmatpush.bf16.msra.mxu0 %v752
      %908 = vmatpush.bf16.msra.mxu0 %v751
      %909 = vmatpush.bf16.msra.mxu0 %v750
      %910 = vmatpush.bf16.msra.mxu0 %v749
      %911 = vmatpush.bf16.msra.mxu0 %v748
      %912 = vmatpush.bf16.msra.mxu0 %v747
      %913 = vmatpush.bf16.msra.mxu0 %v746
      %914 = vmatpush.bf16.msra.mxu0 %v745
      %915 = vmatmul.bf16.gmra.mxu0 %v418
      %v916 = vpop.f32.mrf.mxu0
      %v917 = vadd.f32 %v903, %v916
      %v918 = vpop.f32.mrf.mxu0
      %v919 = vadd.f32 %v905, %v918
      %920 = vdwg.mxu0
      %921 = vmatpush.bf16.msra.mxu0 %v760
      %922 = vmatpush.bf16.msra.mxu0 %v759
      %923 = vmatpush.bf16.msra.mxu0 %v758
      %924 = vmatpush.bf16.msra.mxu0 %v757
      %925 = vmatpush.bf16.msra.mxu0 %v756
      %926 = vmatpush.bf16.msra.mxu0 %v755
      %927 = vmatpush.bf16.msra.mxu0 %v754
      %928 = vmatpush.bf16.msra.mxu0 %v753
      %929 = vmatmul.bf16.gmra.mxu0 %v419
      %v930 = vpop.f32.mrf.mxu0
      %v931 = vadd.f32 %v917, %v930
      %v932 = vpop.f32.mrf.mxu0
      %v933 = vadd.f32 %v919, %v932
      %934 = vdwg.mxu0
      %935 = vmatpush.bf16.msra.mxu0 %v768
      %936 = vmatpush.bf16.msra.mxu0 %v767
      %937 = vmatpush.bf16.msra.mxu0 %v766
      %938 = vmatpush.bf16.msra.mxu0 %v765
      %939 = vmatpush.bf16.msra.mxu0 %v764
      %940 = vmatpush.bf16.msra.mxu0 %v763
      %941 = vmatpush.bf16.msra.mxu0 %v762
      %942 = vmatpush.bf16.msra.mxu0 %v761
      %943 = vmatmul.bf16.gmra.mxu0 %v420
      %v944 = vpop.f32.mrf.mxu0
      %v945 = vadd.f32 %v931, %v944
      %v946 = vpop.f32.mrf.mxu0
      %v947 = vadd.f32 %v933, %v946
      %948 = vdwg.mxu0
      %949 = vmatpush.bf16.msra.mxu0 %v776
      %950 = vmatpush.bf16.msra.mxu0 %v775
      %951 = vmatpush.bf16.msra.mxu0 %v774
      %952 = vmatpush.bf16.msra.mxu0 %v773
      %953 = vmatpush.bf16.msra.mxu0 %v772
      %954 = vmatpush.bf16.msra.mxu0 %v771
      %955 = vmatpush.bf16.msra.mxu0 %v770
      %956 = vmatpush.bf16.msra.mxu0 %v769
      %957 = vmatmul.bf16.gmra.mxu0 %v421
      %v958 = vpop.f32.mrf.mxu0
      %v959 = vadd.f32 %v945, %v958
      %v960 = vpop.f32.mrf.mxu0
      %v961 = vadd.f32 %v947, %v960
      %962 = vdwg.mxu0
      %963 = vmatpush.bf16.msra.mxu0 %v784
      %964 = vmatpush.bf16.msra.mxu0 %v783
      %965 = vmatpush.bf16.msra.mxu0 %v782
      %966 = vmatpush.bf16.msra.mxu0 %v781
      %967 = vmatpush.bf16.msra.mxu0 %v780
      %968 = vmatpush.bf16.msra.mxu0 %v779
      %969 = vmatpush.bf16.msra.mxu0 %v778
      %970 = vmatpush.bf16.msra.mxu0 %v777
      %971 = vmatmul.bf16.gmra.mxu0 %v422
      %v972 = vpop.f32.mrf.mxu0
      %v973 = vadd.f32 %v959, %v972
      %v974 = vpop.f32.mrf.mxu0
      %v975 = vadd.f32 %v961, %v974
      %976 = vdwg.mxu0
      %977 = vmatpush.bf16.msra.mxu0 %v792
      %978 = vmatpush.bf16.msra.mxu0 %v791
      %979 = vmatpush.bf16.msra.mxu0 %v790
      %980 = vmatpush.bf16.msra.mxu0 %v789
      %981 = vmatpush.bf16.msra.mxu0 %v788
      %982 = vmatpush.bf16.msra.mxu0 %v787
      %983 = vmatpush.bf16.msra.mxu0 %v786
      %984 = vmatpush.bf16.msra.mxu0 %v785
      %985 = vmatmul.bf16.gmra.mxu0 %v423
      %v986 = vpop.f32.mrf.mxu0
      %v987 = vadd.f32 %v973, %v986
      %v988 = vpop.f32.mrf.mxu0
      %v989 = vadd.f32 %v975, %v988
      %990 = vdwg.mxu0
      %v991 = vpack.c.bf16 %v987, %v987
      %v992 = vpack.c.bf16 %v989, %v989
      %993 = vst [vmem:[%s224] sm:$0xf] %v991
      %994 = vst [vmem:[%s224 + $0x4] sm:$0xf] %v992
      %v995 = vadd.f32 %v987, %v989
      %v996 = vrot.slane %v995, 4
      %v997 = vadd.f32 %v995, %v996
      %v998 = vrot.slane %v997, 2
      %v999 = vadd.f32 %v997, %v998
      %v1000 = vrot.slane %v999, 1
      %v1001 = vadd.f32 %v999, %v1000
      %v1002 = vmul.f32 %v987, %v987
      %v1003 = vmul.f32 %v989, %v989
      %v1004 = vadd.f32 %v1002, %v1003
      %v1005 = vrot.slane %v1004, 4
      %v1006 = vadd.f32 %v1004, %v1005
      %v1007 = vrot.slane %v1006, 2
      %v1008 = vadd.f32 %v1006, %v1007
      %v1009 = vrot.slane %v1008, 1
      %v1010 = vadd.f32 %v1008, %v1009
      %v1011 = vlaneseq
      %v1012 = vshrl.u32 %v1011, 7
      %vm1013 = vcmp.eq.s32.totalorder %v1012, 0
      %vm1014 = vcmp.eq.s32.totalorder %v1012, 1
      %v1015 = vsel %vm1014, %v1010, 0.0
      %v1016 = vsel %vm1013, %v1001, %v1015
      %1017 = vst [vmem:[%s232] sm:$0xff] %v1016
      %s1018 = smul.u32 2, %s19
      %p1019 = scmp.lt.s32.totalorder %s1018, 3
      %s1020 = scalar_select %p1019, %s1018, 3
      %p1021 = scmp.lt.s32.totalorder %s20, 0
      %s1022 = scalar_select %p1021, %s20, 0
      %s1023 = sadd.s32 %s1022, %s1020
      %s1024 = smul.addr %s1023, 4
      %s1025 = scalar_lea.vmem %s2, %s1024
      %p1026 = scmp.lt.s32.totalorder %s19, 1
      %s1027 = scalar_select %p1026, %s19, 1
      %p1028 = scmp.lt.s32.totalorder %s20, 0
      %s1029 = scalar_select %p1028, %s20, 0
      %s1030 = sadd.s32 %s1029, %s1027
      %s1031 = smul.addr %s1030, 8
      %s1032 = scalar_lea.vmem %s3, %s1031
      // Predicated region
      $region29: #{_lambda_.24} parent=27 // pred_check
        %p1033 = pneg %p99
      $region30: #{_lambda_.24} parent=27 // pred_check_branch
        %1035 = sbr.rel (%p1033) target = $region32
      $region31: #{_lambda_.24} parent=27 // pred_region
        %s1036 = smul.u32 2, %s19
      $region32: #{_lambda_.24} parent=27 // pred_fallthru
        _
      // Predicated region
      $region33: #{_lambda_.24} parent=27 // pred_check
        %p1037 = pneg %p127
      $region34: #{_lambda_.24} parent=27 // pred_check_branch
        %1039 = sbr.rel (%p1037) target = $region36
      $region35: #{_lambda_.24} parent=27 // pred_region
        _
      $region36: #{_lambda_.24} parent=27 // pred_fallthru
        _
    $region28: #{_lambda_.24} parent=5 // pred_fallthru
      _
    %p1040 = scmp.le.s32.totalorder 2, %s10
    // Predicated region
    $region37: #{_lambda_.24} parent=5 // pred_check
      %p1041 = pneg %p1040
    $region38: #{_lambda_.24} parent=5 // pred_check_branch
      %1043 = sbr.rel (%p1041) target = $region40
    $region39: #{_lambda_.24} parent=5 // pred_region
      %s1044 = ssub.s32 %s10, 2
      // Predicated region
      $region41: #{_lambda_.24} parent=39 // pred_check
        %p1045 = pneg %p105
      $region42: #{_lambda_.24} parent=39 // pred_check_branch
        %1047 = sbr.rel (%p1045) target = $region44
      $region43: #{_lambda_.24} parent=39 // pred_region
        %s1048 = smul.u32 2, %s21
        %p1049 = scmp.lt.s32.totalorder %s1048, 3
        %s1050 = scalar_select %p1049, %s1048, 3
        %p1051 = scmp.lt.s32.totalorder %s22, 0
        %s1052 = scalar_select %p1051, %s22, 0
        %s1053 = sadd.s32 %s1052, %s1050
        %s1054 = smul.addr %s1053, 4
        %s1055 = scalar_lea.vmem %s2, %s1054
      $region44: #{_lambda_.24} parent=39 // pred_fallthru
        _
      // Predicated region
      $region45: #{_lambda_.24} parent=39 // pred_check
        %p1056 = pneg %p133
      $region46: #{_lambda_.24} parent=39 // pred_check_branch
        %1058 = sbr.rel (%p1056) target = $region48
      $region47: #{_lambda_.24} parent=39 // pred_region
        %p1059 = scmp.lt.s32.totalorder %s21, 1
        %s1060 = scalar_select %p1059, %s21, 1
        %p1061 = scmp.lt.s32.totalorder %s22, 0
        %s1062 = scalar_select %p1061, %s22, 0
        %s1063 = sadd.s32 %s1062, %s1060
        %s1064 = smul.addr %s1063, 8
        %s1065 = scalar_lea.vmem %s3, %s1064
      $region48: #{_lambda_.24} parent=39 // pred_fallthru
        _
    $region40: #{_lambda_.24} parent=5 // pred_fallthru
      _
  $region6: #{_lambda_.24} parent=0 // loop_footer
    %s14 = sadd.s32 1, %s10
  $region7: #{_lambda_.24} parent=0 // loop_footer_branch
    %9 = sbr.rel target = $region3
  $region8: #{_lambda_.24} parent=0 // loop_exit
    _

</llo_original>
